<compile_context>
chip_gen: v7x
topology: tpu7x:2x2x1
jax: 0.10.0
libtpu: 0.0.40
codegen_flags: <defaults>
</compile_context>

<pallas_src>
import math
import jax
import jax.numpy as jnp
from jax import lax
from jax.experimental import pallas as pl
from jax.experimental.pallas import tpu as pltpu

D_MODEL = 512
CONTEXT_LENGTH = 16
NUM_HEADS = 8
D_KEY = D_MODEL // NUM_HEADS
SCALE = math.sqrt(D_KEY)
NEG_INF = -1e30  # finite large-negative mask bias


def _mha_kernel(bias_ref, x_ref, wqkv_ref, wo_ref, bo_ref, o_ref):
    # bias_ref: (M, M)  f32   additive mask: 0 where (same batch element & causal) else -1e30
    # x_ref:    (M, D_MODEL)        bf16  (M = BB*T fused batch*time rows)
    # wqkv_ref: (D_MODEL, 3*D_MODEL) bf16  fused [Wq/sqrt(dk) | Wk | Wv] for all heads
    # wo_ref:   (D_MODEL, D_MODEL)   bf16  output projection (transposed)
    # bo_ref:   (1, D_MODEL)         f32   output projection bias
    # o_ref:    (M, D_MODEL)         f32
    x = x_ref[...]                                           # (M, 512) bf16

    # One fused lane-dense QKV projection for all heads (bf16 MXU, f32 accumulate).
    qkv = jnp.dot(x, wqkv_ref[...], preferred_element_type=jnp.float32)   # (M, 1536)

    bias = bias_ref[...]                                      # (M, M) f32

    head_ctx = []
    for h in range(NUM_HEADS):
        lo = h * D_KEY
        qh = qkv[:, lo:lo + D_KEY]                              # (M, 64), scale pre-folded
        kh = qkv[:, D_MODEL + lo:D_MODEL + lo + D_KEY]          # (M, 64)
        vh = qkv[:, 2 * D_MODEL + lo:2 * D_MODEL + lo + D_KEY]  # (M, 64)

        # Full (M, M) scores over all BB batch elements at once; the additive
        # block-diagonal+causal bias zeroes cross-batch / future entries exactly
        # (exp(-1e30 - m) underflows to 0), so softmax and P@V stay exact.
        # trans_b dot_general (no materialized k.T); kept f32 -- FLOPs here are tiny.
        s = lax.dot_general(qh, kh, (((1,), (1,)), ((), ())),
                            preferred_element_type=jnp.float32)  # (M, M)
        s = s + bias

        # Numerically-stable softmax in f32, exact divide.
        mx = jnp.max(s, axis=-1, keepdims=True)
        e = jnp.exp(s - mx)
        w = e * (1.0 / jnp.sum(e, axis=-1, keepdims=True))
        # TODO(synk): training-mode dropout on `w` (identity in eval mode).

        head_ctx.append(jnp.dot(w.astype(jnp.bfloat16), vh.astype(jnp.bfloat16),
                                preferred_element_type=jnp.float32))       # (M, 64)

    ctx = jnp.concatenate(head_ctx, axis=-1)                   # (M, 512) f32

    # Output projection (+ bias) on a full lane-dense 512-wide slab.
    out = jnp.dot(ctx.astype(jnp.bfloat16), wo_ref[...],
                  preferred_element_type=jnp.float32) + bo_ref[...]
    # TODO(synk): training-mode dropout on the output (identity in eval mode).
    o_ref[...] = out.astype(o_ref.dtype)


def _fuse_qkv(wq, wk, wv):
    """wq/wk/wv: (H, D_KEY, D_MODEL) PyTorch-style Linear weights -> (D_MODEL, 3*D_MODEL)."""
    def t(w):  # -> (D_MODEL, H*D_KEY); column h*D_KEY+e == row e of head h's weight
        return jnp.transpose(w, (2, 0, 1)).reshape(D_MODEL, NUM_HEADS * D_KEY)
    # Fold the 1/sqrt(D_KEY) attention scale into the Q columns.
    return jnp.concatenate([t(wq) / SCALE, t(wk), t(wv)], axis=-1)


def _mask_bias(bb, t):
    """(bb*t, bb*t) additive bias: 0 on (same batch element & causal), -1e30 elsewhere."""
    idx = jnp.arange(bb * t)
    same_elem = (idx[:, None] // t) == (idx[None, :] // t)
    causal = idx[None, :] <= idx[:, None]
    return jnp.where(same_elem & causal, 0.0, NEG_INF).astype(jnp.float32)


def mha_forward(x, wq, wk, wv, wo, bo, *, batch_block=8):
    """x: (B, T, D_MODEL); wq/wk/wv: (H, D_KEY, D_MODEL); wo: (D_MODEL, D_MODEL); bo: (D_MODEL,)."""
    B, T, D = x.shape
    assert D == D_MODEL and T <= CONTEXT_LENGTH
    assert T % 8 == 0, "T must be a multiple of 8 for TPU (8,128) tiling"

    bb = min(batch_block, B)                    # batch elements per grid step
    nblk = pl.cdiv(B, bb)
    b_pad = nblk * bb
    m = bb * T                                  # fused M rows per step (128 for bb=8, T=16)

    xp = x if b_pad == B else jnp.pad(x, ((0, b_pad - B), (0, 0), (0, 0)))
    x2d = xp.reshape(b_pad * T, D_MODEL).astype(jnp.bfloat16)

    wqkv = _fuse_qkv(wq, wk, wv).astype(jnp.bfloat16)   # (512, 1536)
    wo_t = wo.T.astype(jnp.bfloat16)                    # (512, 512)
    bo2d = bo.reshape(1, D_MODEL).astype(jnp.float32)
    bias = _mask_bias(bb, T)                            # (m, m)

    out2d = pl.pallas_call(
        _mha_kernel,
        out_shape=jax.ShapeDtypeStruct((b_pad * T, D_MODEL), jnp.float32),
        grid_spec=pltpu.PrefetchScalarGridSpec(
            num_scalar_prefetch=0,
            grid=(nblk,),
            in_specs=[
                pl.BlockSpec((m, m), lambda b: (0, 0)),                       # mask bias
                pl.BlockSpec((m, D_MODEL), lambda b: (b, 0)),                 # x slab
                pl.BlockSpec((D_MODEL, 3 * D_MODEL), lambda b: (0, 0)),       # fused Wqkv
                pl.BlockSpec((D_MODEL, D_MODEL), lambda b: (0, 0)),           # Wo^T
                pl.BlockSpec((1, D_MODEL), lambda b: (0, 0)),                 # b_o
            ],
            out_specs=pl.BlockSpec((m, D_MODEL), lambda b: (b, 0)),
        ),
        compiler_params=pltpu.CompilerParams(
            dimension_semantics=("parallel",)),
    )(bias, x2d, wqkv, wo_t, bo2d)

    return out2d.reshape(b_pad, T, D_MODEL)[:B]


def mha_reference(x, wq, wk, wv, wo, bo):
    """Pure-JAX f32 reference matching the PyTorch MultiHeadAttention (eval mode)."""
    B, T, _ = x.shape
    q = jnp.einsum('btd,hed->bhte', x, wq)
    k = jnp.einsum('btd,hed->bhte', x, wk)
    v = jnp.einsum('btd,hed->bhte', x, wv)
    s = jnp.einsum('bhqe,bhke->bhqk', q, k) / SCALE
    mask = jnp.tril(jnp.ones((T, T), dtype=bool))
    s = jnp.where(mask, s, -jnp.inf)
    p = jax.nn.softmax(s, axis=-1)
    ctx = jnp.einsum('bhqk,bhke->bhqe', p, v)
    ctx = jnp.transpose(ctx, (0, 2, 1, 3)).reshape(B, T, D_MODEL)
    return ctx @ wo.T + bo


if __name__ == "__main__":
    key = jax.random.PRNGKey(0)
    kx, kq, kk, kv, ko, kb = jax.random.split(key, 6)

    B, T = 16, CONTEXT_LENGTH                       # 2 grid steps of M=128 rows each
    x = jax.random.normal(kx, (B, T, D_MODEL), dtype=jnp.float32)

    # Deterministic parameter init (PyTorch Linear uses kaiming-uniform; any
    # deterministic init is fine for this synthetic test).
    bound = 1.0 / math.sqrt(D_MODEL)
    wq = jax.random.uniform(kq, (NUM_HEADS, D_KEY, D_MODEL), minval=-bound, maxval=bound)
    wk = jax.random.uniform(kk, (NUM_HEADS, D_KEY, D_MODEL), minval=-bound, maxval=bound)
    wv = jax.random.uniform(kv, (NUM_HEADS, D_KEY, D_MODEL), minval=-bound, maxval=bound)
    wo = jax.random.uniform(ko, (D_MODEL, D_MODEL), minval=-bound, maxval=bound)
    bo = jax.random.uniform(kb, (D_MODEL,), minval=-bound, maxval=bound)

    out = mha_forward(x, wq, wk, wv, wo, bo)
    out = jax.block_until_ready(out)

    ref = mha_reference(x, wq, wk, wv, wo, bo)
    assert out.shape == (B, T, D_MODEL)
    # Tolerance reflects bf16 MXU operands (x, Wqkv, probs/V, ctx/Wo) with f32 accumulation.
    assert jnp.allclose(out, ref, atol=3e-2, rtol=3e-2), "mismatch vs reference"

    print("KERNEL_OK")
</pallas_src>

<mosaic_0001>
module attributes {stable_mosaic.version = 11 : i64} {
  func.func @_mha_kernel(%arg0: i32, %arg1: memref<128x128xf32, #tpu.memory_space<vmem>>, %arg2: memref<128x512xbf16, #tpu.memory_space<vmem>>, %arg3: memref<512x1536xbf16, #tpu.memory_space<vmem>>, %arg4: memref<512x512xbf16, #tpu.memory_space<vmem>>, %arg5: memref<1x512xf32, #tpu.memory_space<vmem>>, %arg6: memref<128x512xf32, #tpu.memory_space<vmem>>) attributes {dimension_semantics = [#tpu.dimension_semantics<parallel>], iteration_bounds = array<i64: 2>, scalar_prefetch = 0 : i64, scratch_operands = 0 : i64, tpu.core_type = #tpu.core_type<tc>, window_params = [{pipeline_mode = #tpu.pipeline_mode<synchronous>, transform_indices = @transform_0, window_bounds = array<i64: 128, 128>}, {transform_indices = @transform_1, window_bounds = array<i64: 128, 512>}, {pipeline_mode = #tpu.pipeline_mode<synchronous>, transform_indices = @transform_2, window_bounds = array<i64: 512, 1536>}, {pipeline_mode = #tpu.pipeline_mode<synchronous>, transform_indices = @transform_3, window_bounds = array<i64: 512, 512>}, {pipeline_mode = #tpu.pipeline_mode<synchronous>, transform_indices = @transform_4, window_bounds = array<i64: 1, 512>}, {transform_indices = @transform_5, window_bounds = array<i64: 128, 512>}]} {
    %c0 = arith.constant 0 : index
    %c0_0 = arith.constant 0 : index
    %0 = vector.load %arg2[%c0, %c0_0] : memref<128x512xbf16, #tpu.memory_space<vmem>>, vector<128x512xbf16>
    %c0_1 = arith.constant 0 : index
    %c0_2 = arith.constant 0 : index
    %1 = vector.load %arg3[%c0_1, %c0_2] : memref<512x1536xbf16, #tpu.memory_space<vmem>>, vector<512x1536xbf16>
    %cst = arith.constant dense<0.000000e+00> : vector<128x1536xf32>
    %2 = tpu.matmul %0, %1, %cst {dimension_numbers = #tpu.dot_dimension_numbers<[1], [0], [0], [1], [0, 0, 1, 1], [], []>} : vector<128x512xbf16>, vector<512x1536xbf16>, vector<128x1536xf32> -> vector<128x1536xf32>
    %c0_3 = arith.constant 0 : index
    %c0_4 = arith.constant 0 : index
    %3 = vector.load %arg1[%c0_3, %c0_4] : memref<128x128xf32, #tpu.memory_space<vmem>>, vector<128x128xf32>
    %4 = vector.extract_strided_slice %2 {offsets = [0, 0], sizes = [128, 64], strides = [1, 1]} : vector<128x1536xf32> to vector<128x64xf32>
    %5 = vector.extract_strided_slice %2 {offsets = [0, 512], sizes = [128, 64], strides = [1, 1]} : vector<128x1536xf32> to vector<128x64xf32>
    %6 = vector.extract_strided_slice %2 {offsets = [0, 1024], sizes = [128, 64], strides = [1, 1]} : vector<128x1536xf32> to vector<128x64xf32>
    %cst_5 = arith.constant dense<0.000000e+00> : vector<128x128xf32>
    %7 = tpu.matmul %4, %5, %cst_5 {dimension_numbers = #tpu.dot_dimension_numbers<[1], [1], [0], [0], [0, 0, 1, 0], [], []>} : vector<128x64xf32>, vector<128x64xf32>, vector<128x128xf32> -> vector<128x128xf32>
    %8 = arith.addf %7, %3 : vector<128x128xf32>
    %cst_6 = arith.constant dense<0xFF800000> : vector<128xf32>
    %9 = vector.multi_reduction <maximumf>, %8, %cst_6 [1] : vector<128x128xf32> to vector<128xf32>
    %10 = vector.shape_cast %9 : vector<128xf32> to vector<128x1xf32>
    %11 = vector.broadcast %10 : vector<128x1xf32> to vector<128x128xf32>
    %12 = arith.subf %8, %11 : vector<128x128xf32>
    %13 = math.exp %12 : vector<128x128xf32>
    %cst_7 = arith.constant dense<0.000000e+00> : vector<128xf32>
    %14 = vector.multi_reduction <add>, %13, %cst_7 [1] : vector<128x128xf32> to vector<128xf32>
    %15 = vector.shape_cast %14 : vector<128xf32> to vector<128x1xf32>
    %cst_8 = arith.constant 1.000000e+00 : f32
    %16 = vector.broadcast %cst_8 : f32 to vector<128x1xf32>
    %17 = arith.divf %16, %15 : vector<128x1xf32>
    %18 = vector.broadcast %17 : vector<128x1xf32> to vector<128x128xf32>
    %19 = arith.mulf %13, %18 : vector<128x128xf32>
    %20 = arith.truncf %19 : vector<128x128xf32> to vector<128x128xbf16>
    %21 = arith.truncf %6 : vector<128x64xf32> to vector<128x64xbf16>
    %cst_9 = arith.constant dense<0.000000e+00> : vector<128x64xf32>
    %22 = tpu.matmul %20, %21, %cst_9 {dimension_numbers = #tpu.dot_dimension_numbers<[1], [0], [0], [1], [0, 0, 1, 1], [], []>} : vector<128x128xbf16>, vector<128x64xbf16>, vector<128x64xf32> -> vector<128x64xf32>
    %23 = vector.extract_strided_slice %2 {offsets = [0, 64], sizes = [128, 64], strides = [1, 1]} : vector<128x1536xf32> to vector<128x64xf32>
    %24 = vector.extract_strided_slice %2 {offsets = [0, 576], sizes = [128, 64], strides = [1, 1]} : vector<128x1536xf32> to vector<128x64xf32>
    %25 = vector.extract_strided_slice %2 {offsets = [0, 1088], sizes = [128, 64], strides = [1, 1]} : vector<128x1536xf32> to vector<128x64xf32>
    %cst_10 = arith.constant dense<0.000000e+00> : vector<128x128xf32>
    %26 = tpu.matmul %23, %24, %cst_10 {dimension_numbers = #tpu.dot_dimension_numbers<[1], [1], [0], [0], [0, 0, 1, 0], [], []>} : vector<128x64xf32>, vector<128x64xf32>, vector<128x128xf32> -> vector<128x128xf32>
    %27 = arith.addf %26, %3 : vector<128x128xf32>
    %cst_11 = arith.constant dense<0xFF800000> : vector<128xf32>
    %28 = vector.multi_reduction <maximumf>, %27, %cst_11 [1] : vector<128x128xf32> to vector<128xf32>
    %29 = vector.shape_cast %28 : vector<128xf32> to vector<128x1xf32>
    %30 = vector.broadcast %29 : vector<128x1xf32> to vector<128x128xf32>
    %31 = arith.subf %27, %30 : vector<128x128xf32>
    %32 = math.exp %31 : vector<128x128xf32>
    %cst_12 = arith.constant dense<0.000000e+00> : vector<128xf32>
    %33 = vector.multi_reduction <add>, %32, %cst_12 [1] : vector<128x128xf32> to vector<128xf32>
    %34 = vector.shape_cast %33 : vector<128xf32> to vector<128x1xf32>
    %cst_13 = arith.constant 1.000000e+00 : f32
    %35 = vector.broadcast %cst_13 : f32 to vector<128x1xf32>
    %36 = arith.divf %35, %34 : vector<128x1xf32>
    %37 = vector.broadcast %36 : vector<128x1xf32> to vector<128x128xf32>
    %38 = arith.mulf %32, %37 : vector<128x128xf32>
    %39 = arith.truncf %38 : vector<128x128xf32> to vector<128x128xbf16>
    %40 = arith.truncf %25 : vector<128x64xf32> to vector<128x64xbf16>
    %cst_14 = arith.constant dense<0.000000e+00> : vector<128x64xf32>
    %41 = tpu.matmul %39, %40, %cst_14 {dimension_numbers = #tpu.dot_dimension_numbers<[1], [0], [0], [1], [0, 0, 1, 1], [], []>} : vector<128x128xbf16>, vector<128x64xbf16>, vector<128x64xf32> -> vector<128x64xf32>
    %42 = vector.extract_strided_slice %2 {offsets = [0, 128], sizes = [128, 64], strides = [1, 1]} : vector<128x1536xf32> to vector<128x64xf32>
    %43 = vector.extract_strided_slice %2 {offsets = [0, 640], sizes = [128, 64], strides = [1, 1]} : vector<128x1536xf32> to vector<128x64xf32>
    %44 = vector.extract_strided_slice %2 {offsets = [0, 1152], sizes = [128, 64], strides = [1, 1]} : vector<128x1536xf32> to vector<128x64xf32>
    %cst_15 = arith.constant dense<0.000000e+00> : vector<128x128xf32>
    %45 = tpu.matmul %42, %43, %cst_15 {dimension_numbers = #tpu.dot_dimension_numbers<[1], [1], [0], [0], [0, 0, 1, 0], [], []>} : vector<128x64xf32>, vector<128x64xf32>, vector<128x128xf32> -> vector<128x128xf32>
    %46 = arith.addf %45, %3 : vector<128x128xf32>
    %cst_16 = arith.constant dense<0xFF800000> : vector<128xf32>
    %47 = vector.multi_reduction <maximumf>, %46, %cst_16 [1] : vector<128x128xf32> to vector<128xf32>
    %48 = vector.shape_cast %47 : vector<128xf32> to vector<128x1xf32>
    %49 = vector.broadcast %48 : vector<128x1xf32> to vector<128x128xf32>
    %50 = arith.subf %46, %49 : vector<128x128xf32>
    %51 = math.exp %50 : vector<128x128xf32>
    %cst_17 = arith.constant dense<0.000000e+00> : vector<128xf32>
    %52 = vector.multi_reduction <add>, %51, %cst_17 [1] : vector<128x128xf32> to vector<128xf32>
    %53 = vector.shape_cast %52 : vector<128xf32> to vector<128x1xf32>
    %cst_18 = arith.constant 1.000000e+00 : f32
    %54 = vector.broadcast %cst_18 : f32 to vector<128x1xf32>
    %55 = arith.divf %54, %53 : vector<128x1xf32>
    %56 = vector.broadcast %55 : vector<128x1xf32> to vector<128x128xf32>
    %57 = arith.mulf %51, %56 : vector<128x128xf32>
    %58 = arith.truncf %57 : vector<128x128xf32> to vector<128x128xbf16>
    %59 = arith.truncf %44 : vector<128x64xf32> to vector<128x64xbf16>
    %cst_19 = arith.constant dense<0.000000e+00> : vector<128x64xf32>
    %60 = tpu.matmul %58, %59, %cst_19 {dimension_numbers = #tpu.dot_dimension_numbers<[1], [0], [0], [1], [0, 0, 1, 1], [], []>} : vector<128x128xbf16>, vector<128x64xbf16>, vector<128x64xf32> -> vector<128x64xf32>
    %61 = vector.extract_strided_slice %2 {offsets = [0, 192], sizes = [128, 64], strides = [1, 1]} : vector<128x1536xf32> to vector<128x64xf32>
    %62 = vector.extract_strided_slice %2 {offsets = [0, 704], sizes = [128, 64], strides = [1, 1]} : vector<128x1536xf32> to vector<128x64xf32>
    %63 = vector.extract_strided_slice %2 {offsets = [0, 1216], sizes = [128, 64], strides = [1, 1]} : vector<128x1536xf32> to vector<128x64xf32>
    %cst_20 = arith.constant dense<0.000000e+00> : vector<128x128xf32>
    %64 = tpu.matmul %61, %62, %cst_20 {dimension_numbers = #tpu.dot_dimension_numbers<[1], [1], [0], [0], [0, 0, 1, 0], [], []>} : vector<128x64xf32>, vector<128x64xf32>, vector<128x128xf32> -> vector<128x128xf32>
    %65 = arith.addf %64, %3 : vector<128x128xf32>
    %cst_21 = arith.constant dense<0xFF800000> : vector<128xf32>
    %66 = vector.multi_reduction <maximumf>, %65, %cst_21 [1] : vector<128x128xf32> to vector<128xf32>
    %67 = vector.shape_cast %66 : vector<128xf32> to vector<128x1xf32>
    %68 = vector.broadcast %67 : vector<128x1xf32> to vector<128x128xf32>
    %69 = arith.subf %65, %68 : vector<128x128xf32>
    %70 = math.exp %69 : vector<128x128xf32>
    %cst_22 = arith.constant dense<0.000000e+00> : vector<128xf32>
    %71 = vector.multi_reduction <add>, %70, %cst_22 [1] : vector<128x128xf32> to vector<128xf32>
    %72 = vector.shape_cast %71 : vector<128xf32> to vector<128x1xf32>
    %cst_23 = arith.constant 1.000000e+00 : f32
    %73 = vector.broadcast %cst_23 : f32 to vector<128x1xf32>
    %74 = arith.divf %73, %72 : vector<128x1xf32>
    %75 = vector.broadcast %74 : vector<128x1xf32> to vector<128x128xf32>
    %76 = arith.mulf %70, %75 : vector<128x128xf32>
    %77 = arith.truncf %76 : vector<128x128xf32> to vector<128x128xbf16>
    %78 = arith.truncf %63 : vector<128x64xf32> to vector<128x64xbf16>
    %cst_24 = arith.constant dense<0.000000e+00> : vector<128x64xf32>
    %79 = tpu.matmul %77, %78, %cst_24 {dimension_numbers = #tpu.dot_dimension_numbers<[1], [0], [0], [1], [0, 0, 1, 1], [], []>} : vector<128x128xbf16>, vector<128x64xbf16>, vector<128x64xf32> -> vector<128x64xf32>
    %80 = vector.extract_strided_slice %2 {offsets = [0, 256], sizes = [128, 64], strides = [1, 1]} : vector<128x1536xf32> to vector<128x64xf32>
    %81 = vector.extract_strided_slice %2 {offsets = [0, 768], sizes = [128, 64], strides = [1, 1]} : vector<128x1536xf32> to vector<128x64xf32>
    %82 = vector.extract_strided_slice %2 {offsets = [0, 1280], sizes = [128, 64], strides = [1, 1]} : vector<128x1536xf32> to vector<128x64xf32>
    %cst_25 = arith.constant dense<0.000000e+00> : vector<128x128xf32>
    %83 = tpu.matmul %80, %81, %cst_25 {dimension_numbers = #tpu.dot_dimension_numbers<[1], [1], [0], [0], [0, 0, 1, 0], [], []>} : vector<128x64xf32>, vector<128x64xf32>, vector<128x128xf32> -> vector<128x128xf32>
    %84 = arith.addf %83, %3 : vector<128x128xf32>
    %cst_26 = arith.constant dense<0xFF800000> : vector<128xf32>
    %85 = vector.multi_reduction <maximumf>, %84, %cst_26 [1] : vector<128x128xf32> to vector<128xf32>
    %86 = vector.shape_cast %85 : vector<128xf32> to vector<128x1xf32>
    %87 = vector.broadcast %86 : vector<128x1xf32> to vector<128x128xf32>
    %88 = arith.subf %84, %87 : vector<128x128xf32>
    %89 = math.exp %88 : vector<128x128xf32>
    %cst_27 = arith.constant dense<0.000000e+00> : vector<128xf32>
    %90 = vector.multi_reduction <add>, %89, %cst_27 [1] : vector<128x128xf32> to vector<128xf32>
    %91 = vector.shape_cast %90 : vector<128xf32> to vector<128x1xf32>
    %cst_28 = arith.constant 1.000000e+00 : f32
    %92 = vector.broadcast %cst_28 : f32 to vector<128x1xf32>
    %93 = arith.divf %92, %91 : vector<128x1xf32>
    %94 = vector.broadcast %93 : vector<128x1xf32> to vector<128x128xf32>
    %95 = arith.mulf %89, %94 : vector<128x128xf32>
    %96 = arith.truncf %95 : vector<128x128xf32> to vector<128x128xbf16>
    %97 = arith.truncf %82 : vector<128x64xf32> to vector<128x64xbf16>
    %cst_29 = arith.constant dense<0.000000e+00> : vector<128x64xf32>
    %98 = tpu.matmul %96, %97, %cst_29 {dimension_numbers = #tpu.dot_dimension_numbers<[1], [0], [0], [1], [0, 0, 1, 1], [], []>} : vector<128x128xbf16>, vector<128x64xbf16>, vector<128x64xf32> -> vector<128x64xf32>
    %99 = vector.extract_strided_slice %2 {offsets = [0, 320], sizes = [128, 64], strides = [1, 1]} : vector<128x1536xf32> to vector<128x64xf32>
    %100 = vector.extract_strided_slice %2 {offsets = [0, 832], sizes = [128, 64], strides = [1, 1]} : vector<128x1536xf32> to vector<128x64xf32>
    %101 = vector.extract_strided_slice %2 {offsets = [0, 1344], sizes = [128, 64], strides = [1, 1]} : vector<128x1536xf32> to vector<128x64xf32>
    %cst_30 = arith.constant dense<0.000000e+00> : vector<128x128xf32>
    %102 = tpu.matmul %99, %100, %cst_30 {dimension_numbers = #tpu.dot_dimension_numbers<[1], [1], [0], [0], [0, 0, 1, 0], [], []>} : vector<128x64xf32>, vector<128x64xf32>, vector<128x128xf32> -> vector<128x128xf32>
    %103 = arith.addf %102, %3 : vector<128x128xf32>
    %cst_31 = arith.constant dense<0xFF800000> : vector<128xf32>
    %104 = vector.multi_reduction <maximumf>, %103, %cst_31 [1] : vector<128x128xf32> to vector<128xf32>
    %105 = vector.shape_cast %104 : vector<128xf32> to vector<128x1xf32>
    %106 = vector.broadcast %105 : vector<128x1xf32> to vector<128x128xf32>
    %107 = arith.subf %103, %106 : vector<128x128xf32>
    %108 = math.exp %107 : vector<128x128xf32>
    %cst_32 = arith.constant dense<0.000000e+00> : vector<128xf32>
    %109 = vector.multi_reduction <add>, %108, %cst_32 [1] : vector<128x128xf32> to vector<128xf32>
    %110 = vector.shape_cast %109 : vector<128xf32> to vector<128x1xf32>
    %cst_33 = arith.constant 1.000000e+00 : f32
    %111 = vector.broadcast %cst_33 : f32 to vector<128x1xf32>
    %112 = arith.divf %111, %110 : vector<128x1xf32>
    %113 = vector.broadcast %112 : vector<128x1xf32> to vector<128x128xf32>
    %114 = arith.mulf %108, %113 : vector<128x128xf32>
    %115 = arith.truncf %114 : vector<128x128xf32> to vector<128x128xbf16>
    %116 = arith.truncf %101 : vector<128x64xf32> to vector<128x64xbf16>
    %cst_34 = arith.constant dense<0.000000e+00> : vector<128x64xf32>
    %117 = tpu.matmul %115, %116, %cst_34 {dimension_numbers = #tpu.dot_dimension_numbers<[1], [0], [0], [1], [0, 0, 1, 1], [], []>} : vector<128x128xbf16>, vector<128x64xbf16>, vector<128x64xf32> -> vector<128x64xf32>
    %118 = vector.extract_strided_slice %2 {offsets = [0, 384], sizes = [128, 64], strides = [1, 1]} : vector<128x1536xf32> to vector<128x64xf32>
    %119 = vector.extract_strided_slice %2 {offsets = [0, 896], sizes = [128, 64], strides = [1, 1]} : vector<128x1536xf32> to vector<128x64xf32>
    %120 = vector.extract_strided_slice %2 {offsets = [0, 1408], sizes = [128, 64], strides = [1, 1]} : vector<128x1536xf32> to vector<128x64xf32>
    %cst_35 = arith.constant dense<0.000000e+00> : vector<128x128xf32>
    %121 = tpu.matmul %118, %119, %cst_35 {dimension_numbers = #tpu.dot_dimension_numbers<[1], [1], [0], [0], [0, 0, 1, 0], [], []>} : vector<128x64xf32>, vector<128x64xf32>, vector<128x128xf32> -> vector<128x128xf32>
    %122 = arith.addf %121, %3 : vector<128x128xf32>
    %cst_36 = arith.constant dense<0xFF800000> : vector<128xf32>
    %123 = vector.multi_reduction <maximumf>, %122, %cst_36 [1] : vector<128x128xf32> to vector<128xf32>
    %124 = vector.shape_cast %123 : vector<128xf32> to vector<128x1xf32>
    %125 = vector.broadcast %124 : vector<128x1xf32> to vector<128x128xf32>
    %126 = arith.subf %122, %125 : vector<128x128xf32>
    %127 = math.exp %126 : vector<128x128xf32>
    %cst_37 = arith.constant dense<0.000000e+00> : vector<128xf32>
    %128 = vector.multi_reduction <add>, %127, %cst_37 [1] : vector<128x128xf32> to vector<128xf32>
    %129 = vector.shape_cast %128 : vector<128xf32> to vector<128x1xf32>
    %cst_38 = arith.constant 1.000000e+00 : f32
    %130 = vector.broadcast %cst_38 : f32 to vector<128x1xf32>
    %131 = arith.divf %130, %129 : vector<128x1xf32>
    %132 = vector.broadcast %131 : vector<128x1xf32> to vector<128x128xf32>
    %133 = arith.mulf %127, %132 : vector<128x128xf32>
    %134 = arith.truncf %133 : vector<128x128xf32> to vector<128x128xbf16>
    %135 = arith.truncf %120 : vector<128x64xf32> to vector<128x64xbf16>
    %cst_39 = arith.constant dense<0.000000e+00> : vector<128x64xf32>
    %136 = tpu.matmul %134, %135, %cst_39 {dimension_numbers = #tpu.dot_dimension_numbers<[1], [0], [0], [1], [0, 0, 1, 1], [], []>} : vector<128x128xbf16>, vector<128x64xbf16>, vector<128x64xf32> -> vector<128x64xf32>
    %137 = vector.extract_strided_slice %2 {offsets = [0, 448], sizes = [128, 64], strides = [1, 1]} : vector<128x1536xf32> to vector<128x64xf32>
    %138 = vector.extract_strided_slice %2 {offsets = [0, 960], sizes = [128, 64], strides = [1, 1]} : vector<128x1536xf32> to vector<128x64xf32>
    %139 = vector.extract_strided_slice %2 {offsets = [0, 1472], sizes = [128, 64], strides = [1, 1]} : vector<128x1536xf32> to vector<128x64xf32>
    %cst_40 = arith.constant dense<0.000000e+00> : vector<128x128xf32>
    %140 = tpu.matmul %137, %138, %cst_40 {dimension_numbers = #tpu.dot_dimension_numbers<[1], [1], [0], [0], [0, 0, 1, 0], [], []>} : vector<128x64xf32>, vector<128x64xf32>, vector<128x128xf32> -> vector<128x128xf32>
    %141 = arith.addf %140, %3 : vector<128x128xf32>
    %cst_41 = arith.constant dense<0xFF800000> : vector<128xf32>
    %142 = vector.multi_reduction <maximumf>, %141, %cst_41 [1] : vector<128x128xf32> to vector<128xf32>
    %143 = vector.shape_cast %142 : vector<128xf32> to vector<128x1xf32>
    %144 = vector.broadcast %143 : vector<128x1xf32> to vector<128x128xf32>
    %145 = arith.subf %141, %144 : vector<128x128xf32>
    %146 = math.exp %145 : vector<128x128xf32>
    %cst_42 = arith.constant dense<0.000000e+00> : vector<128xf32>
    %147 = vector.multi_reduction <add>, %146, %cst_42 [1] : vector<128x128xf32> to vector<128xf32>
    %148 = vector.shape_cast %147 : vector<128xf32> to vector<128x1xf32>
    %cst_43 = arith.constant 1.000000e+00 : f32
    %149 = vector.broadcast %cst_43 : f32 to vector<128x1xf32>
    %150 = arith.divf %149, %148 : vector<128x1xf32>
    %151 = vector.broadcast %150 : vector<128x1xf32> to vector<128x128xf32>
    %152 = arith.mulf %146, %151 : vector<128x128xf32>
    %153 = arith.truncf %152 : vector<128x128xf32> to vector<128x128xbf16>
    %154 = arith.truncf %139 : vector<128x64xf32> to vector<128x64xbf16>
    %cst_44 = arith.constant dense<0.000000e+00> : vector<128x64xf32>
    %155 = tpu.matmul %153, %154, %cst_44 {dimension_numbers = #tpu.dot_dimension_numbers<[1], [0], [0], [1], [0, 0, 1, 1], [], []>} : vector<128x128xbf16>, vector<128x64xbf16>, vector<128x64xf32> -> vector<128x64xf32>
    %156 = tpu.concatenate %22, %41, %60, %79, %98, %117, %136, %155 in 1 : vector<128x64xf32>, vector<128x64xf32>, vector<128x64xf32>, vector<128x64xf32>, vector<128x64xf32>, vector<128x64xf32>, vector<128x64xf32>, vector<128x64xf32> -> vector<128x512xf32>
    %157 = arith.truncf %156 : vector<128x512xf32> to vector<128x512xbf16>
    %c0_45 = arith.constant 0 : index
    %c0_46 = arith.constant 0 : index
    %158 = vector.load %arg4[%c0_45, %c0_46] : memref<512x512xbf16, #tpu.memory_space<vmem>>, vector<512x512xbf16>
    %cst_47 = arith.constant dense<0.000000e+00> : vector<128x512xf32>
    %159 = tpu.matmul %157, %158, %cst_47 {dimension_numbers = #tpu.dot_dimension_numbers<[1], [0], [0], [1], [0, 0, 1, 1], [], []>} : vector<128x512xbf16>, vector<512x512xbf16>, vector<128x512xf32> -> vector<128x512xf32>
    %c0_48 = arith.constant 0 : index
    %c0_49 = arith.constant 0 : index
    %160 = vector.load %arg5[%c0_48, %c0_49] : memref<1x512xf32, #tpu.memory_space<vmem>>, vector<1x512xf32>
    %161 = vector.broadcast %160 : vector<1x512xf32> to vector<128x512xf32>
    %162 = arith.addf %159, %161 : vector<128x512xf32>
    %c0_50 = arith.constant 0 : index
    %c0_51 = arith.constant 0 : index
    %163 = vector.load %arg6[%c0_50, %c0_51] : memref<128x512xf32, #tpu.memory_space<vmem>>, vector<128x512xf32>
    tpu.vector_store %arg6[%c0_50, %c0_51], %162 {strides = array<i32>} : memref<128x512xf32, #tpu.memory_space<vmem>>, vector<128x512xf32>,
    return
  }
  func.func @transform_0(%arg0: i32) -> (i32, i32) {
    %c0_i32 = arith.constant 0 : i32
    %c0_i32_0 = arith.constant 0 : i32
    %c0_i32_1 = arith.constant 0 : i32
    return %c0_i32, %c0_i32_0 : i32, i32
  }
  func.func @transform_1(%arg0: i32) -> (i32, i32) {
    %c0_i32 = arith.constant 0 : i32
    %c0_i32_0 = arith.constant 0 : i32
    return %arg0, %c0_i32 : i32, i32
  }
  func.func @transform_2(%arg0: i32) -> (i32, i32) {
    %c0_i32 = arith.constant 0 : i32
    %c0_i32_0 = arith.constant 0 : i32
    %c0_i32_1 = arith.constant 0 : i32
    return %c0_i32, %c0_i32_0 : i32, i32
  }
  func.func @transform_3(%arg0: i32) -> (i32, i32) {
    %c0_i32 = arith.constant 0 : i32
    %c0_i32_0 = arith.constant 0 : i32
    %c0_i32_1 = arith.constant 0 : i32
    return %c0_i32, %c0_i32_0 : i32, i32
  }
  func.func @transform_4(%arg0: i32) -> (i32, i32) {
    %c0_i32 = arith.constant 0 : i32
    %c0_i32_0 = arith.constant 0 : i32
    %c0_i32_1 = arith.constant 0 : i32
    return %c0_i32, %c0_i32_0 : i32, i32
  }
  func.func @transform_5(%arg0: i32) -> (i32, i32) {
    %c0_i32 = arith.constant 0 : i32
    %c0_i32_0 = arith.constant 0 : i32
    return %arg0, %c0_i32 : i32, i32
  }
}

</mosaic_0001>

<llo_original>
// kernel: tpu_custom_call.1
$region0: #{tpu_custom_call.1}
  #allocation0 [shape = 'u32[]', space=smem, size = 0x4, offset = 0x4, fixed_abs, tag = 'smem constant byte address 0x4 - core index']
  #allocation1 [shape = 'u32[144,128]{1,0:T(1,128)}', space=vmem, size = 0x12000, scoped, tag = 'internal scratch']
  %s0 = inlined_call_operand.hbm [shape: f32[128,128], index: 0, kind: input, shape index: {}]
  %s1 = inlined_call_operand.hbm [shape: bf16[256,512], index: 1, kind: input, shape index: {}]
  %s2 = inlined_call_operand.hbm [shape: bf16[512,1536], index: 2, kind: input, shape index: {}]
  %s3 = inlined_call_operand.hbm [shape: bf16[512,512], index: 3, kind: input, shape index: {}]
  %s4 = inlined_call_operand.hbm [shape: f32[1,512], index: 4, kind: input, shape index: {}]
  %s5 = inlined_call_operand.hbm [shape: f32[256,512], index: 5, kind: output, shape index: {}]
  %s6 = sld [smem:[#allocation0]]
  $region73: #{tpu_custom_call.1} parent=0
    _
  %s8 = ssub.s32 1, %s6
  %s9 = scalar_select 0, %s8, %s6
  $region1: #{tpu_custom_call.1} parent=0
    #allocation2 [shape = 'u8[65536]{0}', space=vmem, size = 0x10000, scoped, tag = 'input window, operand 0, single buffered']
    #allocation3 [shape = 's32[2]{0}', space=sflag, size = 0x8, scoped, tag = 'scoped memory for tpu_custom_call.1']
    #allocation4 [shape = 's32[2]{0}', space=sflag, size = 0x8, scoped, tag = 'scoped memory for tpu_custom_call.1']
    #allocation5 [shape = 'u8[262144]{0}', space=vmem, size = 0x40000, scoped, tag = 'input window, operand 1']
    #allocation6 [shape = 's32[2]{0}', space=sflag, size = 0x8, scoped, tag = 'scoped memory for tpu_custom_call.1']
    #allocation7 [shape = 'u8[1572864]{0}', space=vmem, size = 0x180000, scoped, tag = 'input window, operand 2, single buffered']
    #allocation8 [shape = 'u8[524288]{0}', space=vmem, size = 0x80000, scoped, tag = 'input window, operand 3, single buffered']
    #allocation9 [shape = 's32[1]{0}', space=sflag, size = 0x4, scoped, tag = 'scoped memory for tpu_custom_call.1']
    #allocation10 [shape = 'u8[2048]{0}', space=vmem, size = 0x800, scoped, tag = 'input window, operand 4, single buffered']
    #allocation11 [shape = 'u8[524288]{0}', space=vmem, size = 0x80000, scoped, tag = 'output window, operand 0']
    %10 = vsyncpa [#allocation3], 0
    %11 = vsyncpa [#allocation6], 0
    %s12 = scalar_lea.sflag [#allocation6], 1
    %13 = vsyncpa %s12, 0
    %14 = vsyncpa [#allocation9], 0
    %15 = vsyncpa [#allocation4], 0
    %s16 = scalar_lea.sflag [#allocation4], 1
    %17 = vsyncpa %s16, 0
    loop: start=0, step=1, limit=4
    $region2: #{tpu_custom_call.1} parent=1 // loop_pre_header
      _
    $region3: #{tpu_custom_call.1} parent=1 // loop_header
      %s19 = sphi 0, %s23
      %p20 = scmp.ge.s32.totalorder %s19, 4
      %s27 = sphi 0, %s27
      %s29 = sphi 0, %s27
      %s30 = sphi 0, %s29
      %s44 = sphi 0, %s30
      %s50 = sphi 0, %s52
      %s53 = sphi 0, %s50
      %s54 = sphi 0, %s53
      %s70 = sphi 0, %s54
      %s74 = sphi 0, %s74
      %s76 = sphi 0, %s74
      %s77 = sphi 0, %s76
      %s91 = sphi 0, %s77
      %s95 = sphi 0, %s95
      %s97 = sphi 0, %s95
      %s98 = sphi 0, %s97
      %s112 = sphi 0, %s98
      %s116 = sphi 0, %s116
      %s118 = sphi 0, %s116
      %s119 = sphi 0, %s118
      %s133 = sphi 0, %s119
      %s139 = sphi 0, %s141
      %s142 = sphi 0, %s139
      %s143 = sphi 0, %s142
      %s159 = sphi 0, %s143
    $region4: #{tpu_custom_call.1} parent=1 // loop_header_branch
      %22 = sbr.rel (%p20) target = $region8
    $region5: #{tpu_custom_call.1} parent=1 // loop_body
      %s24 = ssub.s32 %s19, 1
      %s25 = ssub.s32 %s19, 2
      %s26 = sadd.s32 %s19, 1
      %s28 = sadd.s32 %s27, 1
      %p31 = scmp.eq.s32.totalorder %s19, 1
      %p32 = scmp.ne.s32.totalorder %s27, %s29
      %p33 = scmp.eq.s32.totalorder %s19, 0
      %p34 = por %p32, %p33
      %p35 = scmp.ne.s32.totalorder %s27, %s29
      %p36 = scmp.eq.s32.totalorder %s24, 1
      %p37 = por %p35, %p36
      %p38 = scmp.ne.s32.totalorder %s29, %s30
      %p39 = scmp.eq.s32.totalorder %s24, 0
      %p40 = por %p38, %p39
      %p41 = scmp.ne.s32.totalorder %s29, %s30
      %p42 = scmp.eq.s32.totalorder %s25, 1
      %p43 = por %p41, %p42
      %p45 = scmp.ne.s32.totalorder %s30, %s44
      %p46 = scmp.eq.s32.totalorder %s25, 0
      %p47 = por %p45, %p46
      %s48 = ssub.s32 %s19, %s26
      %p49 = scmp.eq.s32.totalorder %s48, 0
      %s51 = sadd.s32 %s50, 1
      %s52 = scalar_select %p49, %s50, %s51
      %p55 = pneg %p49
      %p56 = scmp.eq.s32.totalorder %s19, 1
      %p57 = por %p55, %p56
      %p58 = scmp.ne.s32.totalorder %s50, %s53
      %p59 = scmp.eq.s32.totalorder %s19, 0
      %p60 = por %p58, %p59
      %p61 = scmp.ne.s32.totalorder %s50, %s53
      %p62 = scmp.eq.s32.totalorder %s24, 1
      %p63 = por %p61, %p62
      %p64 = scmp.ne.s32.totalorder %s53, %s54
      %p65 = scmp.eq.s32.totalorder %s24, 0
      %p66 = por %p64, %p65
      %p67 = scmp.ne.s32.totalorder %s53, %s54
      %p68 = scmp.eq.s32.totalorder %s25, 1
      %p69 = por %p67, %p68
      %p71 = scmp.ne.s32.totalorder %s54, %s70
      %p72 = scmp.eq.s32.totalorder %s25, 0
      %p73 = por %p71, %p72
      %s75 = sadd.s32 %s74, 1
      %p78 = scmp.eq.s32.totalorder %s19, 1
      %p79 = scmp.ne.s32.totalorder %s74, %s76
      %p80 = scmp.eq.s32.totalorder %s19, 0
      %p81 = por %p79, %p80
      %p82 = scmp.ne.s32.totalorder %s74, %s76
      %p83 = scmp.eq.s32.totalorder %s24, 1
      %p84 = por %p82, %p83
      %p85 = scmp.ne.s32.totalorder %s76, %s77
      %p86 = scmp.eq.s32.totalorder %s24, 0
      %p87 = por %p85, %p86
      %p88 = scmp.ne.s32.totalorder %s76, %s77
      %p89 = scmp.eq.s32.totalorder %s25, 1
      %p90 = por %p88, %p89
      %p92 = scmp.ne.s32.totalorder %s77, %s91
      %p93 = scmp.eq.s32.totalorder %s25, 0
      %p94 = por %p92, %p93
      %s96 = sadd.s32 %s95, 1
      %p99 = scmp.eq.s32.totalorder %s19, 1
      %p100 = scmp.ne.s32.totalorder %s95, %s97
      %p101 = scmp.eq.s32.totalorder %s19, 0
      %p102 = por %p100, %p101
      %p103 = scmp.ne.s32.totalorder %s95, %s97
      %p104 = scmp.eq.s32.totalorder %s24, 1
      %p105 = por %p103, %p104
      %p106 = scmp.ne.s32.totalorder %s97, %s98
      %p107 = scmp.eq.s32.totalorder %s24, 0
      %p108 = por %p106, %p107
      %p109 = scmp.ne.s32.totalorder %s97, %s98
      %p110 = scmp.eq.s32.totalorder %s25, 1
      %p111 = por %p109, %p110
      %p113 = scmp.ne.s32.totalorder %s98, %s112
      %p114 = scmp.eq.s32.totalorder %s25, 0
      %p115 = por %p113, %p114
      %s117 = sadd.s32 %s116, 1
      %p120 = scmp.eq.s32.totalorder %s19, 1
      %p121 = scmp.ne.s32.totalorder %s116, %s118
      %p122 = scmp.eq.s32.totalorder %s19, 0
      %p123 = por %p121, %p122
      %p124 = scmp.ne.s32.totalorder %s116, %s118
      %p125 = scmp.eq.s32.totalorder %s24, 1
      %p126 = por %p124, %p125
      %p127 = scmp.ne.s32.totalorder %s118, %s119
      %p128 = scmp.eq.s32.totalorder %s24, 0
      %p129 = por %p127, %p128
      %p130 = scmp.ne.s32.totalorder %s118, %s119
      %p131 = scmp.eq.s32.totalorder %s25, 1
      %p132 = por %p130, %p131
      %p134 = scmp.ne.s32.totalorder %s119, %s133
      %p135 = scmp.eq.s32.totalorder %s25, 0
      %p136 = por %p134, %p135
      %s137 = ssub.s32 %s19, %s26
      %p138 = scmp.eq.s32.totalorder %s137, 0
      %s140 = sadd.s32 %s139, 1
      %s141 = scalar_select %p138, %s139, %s140
      %p144 = pneg %p138
      %p145 = scmp.eq.s32.totalorder %s19, 1
      %p146 = por %p144, %p145
      %p147 = scmp.ne.s32.totalorder %s139, %s142
      %p148 = scmp.eq.s32.totalorder %s19, 0
      %p149 = por %p147, %p148
      %p150 = scmp.ne.s32.totalorder %s139, %s142
      %p151 = scmp.eq.s32.totalorder %s24, 1
      %p152 = por %p150, %p151
      %p153 = scmp.ne.s32.totalorder %s142, %s143
      %p154 = scmp.eq.s32.totalorder %s24, 0
      %p155 = por %p153, %p154
      %p156 = scmp.ne.s32.totalorder %s142, %s143
      %p157 = scmp.eq.s32.totalorder %s25, 1
      %p158 = por %p156, %p157
      %p160 = scmp.ne.s32.totalorder %s143, %s159
      %p161 = scmp.eq.s32.totalorder %s25, 0
      %p162 = por %p160, %p161
      %p163 = scmp.le.s32.totalorder 1, %s19
      %p164 = scmp.lt.s32.totalorder %s19, 3
      %p165 = pnand %p163, %p164
      %p166 = pneg %p165
      // Predicated region
      $region9: #{tpu_custom_call.1} parent=5 // pred_check
        _
      $region10: #{tpu_custom_call.1} parent=5 // pred_check_branch
        %168 = sbr.rel (%p165) target = $region12
      $region11: #{tpu_custom_call.1} parent=5 // pred_region
        %s169 = ssub.s32 %s19, 1
        // Predicated region
        $region13: #{tpu_custom_call.1} parent=11 // pred_check
          %p170 = pneg %p40
        $region14: #{tpu_custom_call.1} parent=11 // pred_check_branch
          %172 = sbr.rel (%p170) target = $region16
        $region15: #{tpu_custom_call.1} parent=11 // pred_region
          %s174 = ssub.s32 2048, 2048
          %175 = vsyncadd [#allocation3], %s174
          %s176 = sshll.u32 [#allocation2], 4
          %s177 = int_to_ptr.vmem [resolvable:$true] %s176
          %182 = dma.hbm_to_vmem [thread:$0]  %s0, 2048, %s177, [#allocation3], 128, 128, 8
        $region16: #{tpu_custom_call.1} parent=11 // pred_fallthru
          _
        // Predicated region
        $region17: #{tpu_custom_call.1} parent=11 // pred_check
          %p183 = pneg %p87
        $region18: #{tpu_custom_call.1} parent=11 // pred_check_branch
          %185 = sbr.rel (%p183) target = $region20
        $region19: #{tpu_custom_call.1} parent=11 // pred_region
          %s187 = ssub.s32 49152, 49152
          %188 = vsyncadd [#allocation6], %s187
          %s189 = sshll.u32 [#allocation7], 4
          %s190 = int_to_ptr.vmem [resolvable:$true] %s189
          %195 = dma.hbm_to_vmem [thread:$0]  %s2, 49152, %s190, [#allocation6], 768, 768, 48
        $region20: #{tpu_custom_call.1} parent=11 // pred_fallthru
          _
        // Predicated region
        $region21: #{tpu_custom_call.1} parent=11 // pred_check
          %p196 = pneg %p108
        $region22: #{tpu_custom_call.1} parent=11 // pred_check_branch
          %198 = sbr.rel (%p196) target = $region24
        $region23: #{tpu_custom_call.1} parent=11 // pred_region
          %s200 = ssub.s32 16384, 16384
          %201 = vsyncadd [#allocation9], %s200
          %s202 = sshll.u32 [#allocation8], 4
          %s203 = int_to_ptr.vmem [resolvable:$true] %s202
          %208 = dma.hbm_to_vmem [thread:$0]  %s3, 16384, %s203, [#allocation9], 256, 256, 16
        $region24: #{tpu_custom_call.1} parent=11 // pred_fallthru
          _
        // Predicated region
        $region25: #{tpu_custom_call.1} parent=11 // pred_check
          %p209 = pneg %p129
        $region26: #{tpu_custom_call.1} parent=11 // pred_check_branch
          %211 = sbr.rel (%p209) target = $region28
        $region27: #{tpu_custom_call.1} parent=11 // pred_region
          %s213 = ssub.s32 64, 64
          %214 = vsyncadd [#allocation9], %s213
          %s216 = sshll.u32 [#allocation10], 4
          %s217 = int_to_ptr.vmem [resolvable:$true] %s216
          %219 = dma.hbm_to_vmem [thread:$0]  %s4, 64, %s217, [#allocation9]
        $region28: #{tpu_custom_call.1} parent=11 // pred_fallthru
          _
      $region12: #{tpu_custom_call.1} parent=5 // pred_fallthru
        _
      %p220 = scmp.lt.s32.totalorder %s19, 2
      // Predicated region
      $region29: #{tpu_custom_call.1} parent=5 // pred_check
        %p221 = pneg %p220
      $region30: #{tpu_custom_call.1} parent=5 // pred_check_branch
        %223 = sbr.rel (%p221) target = $region32
      $region31: #{tpu_custom_call.1} parent=5 // pred_region
        // Predicated region
        $region33: #{tpu_custom_call.1} parent=31 // pred_check
          %p224 = pneg %p60
        $region34: #{tpu_custom_call.1} parent=31 // pred_check_branch
          %226 = sbr.rel (%p224) target = $region36
        $region35: #{tpu_custom_call.1} parent=31 // pred_region
          %s227 = sand.u32 %s19, 1
          %s228 = scalar_lea.sflag [#allocation6], %s227
          %s229 = sand.u32 %s50, 1
          %s230 = smul.addr %s229, 256
          %s231 = scalar_lea.vmem [#allocation5], %s230
          %s232 = smul.u32 16, %s19
          %s234 = ssub.s32 4096, 4096
          %235 = vsyncadd %s228, %s234
          %s236 = smul.addr %s232, 4
          %s237 = smul.addr %s236, 64
          %s238 = scalar_lea.hbm %s1, %s237
          %s239 = sshll.u32 %s231, 4
          %s240 = int_to_ptr.vmem [resolvable:$true] %s239
          %245 = dma.hbm_to_vmem [thread:$0]  %s238, 4096, %s240, %s228, 256, 256, 16
        $region36: #{tpu_custom_call.1} parent=31 // pred_fallthru
          _
      $region32: #{tpu_custom_call.1} parent=5 // pred_fallthru
        _
      %p246 = scmp.le.s32.totalorder 1, %s19
      %p247 = scmp.lt.s32.totalorder %s19, 3
      %p248 = pnand %p246, %p247
      %p249 = pneg %p248
      // Predicated region
      $region37: #{tpu_custom_call.1} parent=5 // pred_check
        _
      $region38: #{tpu_custom_call.1} parent=5 // pred_check_branch
        %251 = sbr.rel (%p248) target = $region40
      $region39: #{tpu_custom_call.1} parent=5 // pred_region
        %s252 = ssub.s32 %s19, 1
        // Predicated region
        $region41: #{tpu_custom_call.1} parent=39 // pred_check
          %p253 = pneg %p40
        $region42: #{tpu_custom_call.1} parent=39 // pred_check_branch
          %255 = sbr.rel (%p253) target = $region44
        $region43: #{tpu_custom_call.1} parent=39 // pred_region
          %256 = dma.done [#allocation3], 2048
        $region44: #{tpu_custom_call.1} parent=39 // pred_fallthru
          _
        %s257 = sand.u32 %s24, 1
        %s258 = scalar_lea.sflag [#allocation6], %s257
        %s259 = sand.u32 %s53, 1
        %s260 = smul.addr %s259, 256
        %s261 = scalar_lea.vmem [#allocation5], %s260
        // Predicated region
        $region45: #{tpu_custom_call.1} parent=39 // pred_check
          %p262 = pneg %p66
        $region46: #{tpu_custom_call.1} parent=39 // pred_check_branch
          %264 = sbr.rel (%p262) target = $region48
        $region47: #{tpu_custom_call.1} parent=39 // pred_region
          %265 = dma.done %s258, 4096
        $region48: #{tpu_custom_call.1} parent=39 // pred_fallthru
          _
        // Predicated region
        $region49: #{tpu_custom_call.1} parent=39 // pred_check
          %p266 = pneg %p87
        $region50: #{tpu_custom_call.1} parent=39 // pred_check_branch
          %268 = sbr.rel (%p266) target = $region52
        $region51: #{tpu_custom_call.1} parent=39 // pred_region
          %269 = dma.done [#allocation6], 49152
        $region52: #{tpu_custom_call.1} parent=39 // pred_fallthru
          _
        // Predicated region
        $region53: #{tpu_custom_call.1} parent=39 // pred_check
          %p270 = pneg %p108
        $region54: #{tpu_custom_call.1} parent=39 // pred_check_branch
          %272 = sbr.rel (%p270) target = $region56
        $region55: #{tpu_custom_call.1} parent=39 // pred_region
          %273 = dma.done [#allocation9], 16384
        $region56: #{tpu_custom_call.1} parent=39 // pred_fallthru
          _
        // Predicated region
        $region57: #{tpu_custom_call.1} parent=39 // pred_check
          %p274 = pneg %p129
        $region58: #{tpu_custom_call.1} parent=39 // pred_check_branch
          %276 = sbr.rel (%p274) target = $region60
        $region59: #{tpu_custom_call.1} parent=39 // pred_region
          %277 = dma.done [#allocation9], 64
        $region60: #{tpu_custom_call.1} parent=39 // pred_fallthru
          _
        %p278 = pneg %p40
        %p279 = pneg %p37
        %s280 = sand.u32 %s24, 1
        %s281 = scalar_lea.sflag [#allocation6], %s280
        %s282 = sand.u32 %s53, 1
        %s283 = smul.addr %s282, 256
        %s284 = scalar_lea.vmem [#allocation5], %s283
        %p285 = pneg %p66
        %p286 = pneg %p63
        %p287 = pneg %p87
        %p288 = pneg %p84
        %p289 = pneg %p108
        %p290 = pneg %p105
        %p291 = pneg %p129
        %p292 = pneg %p126
        %p293 = pneg %p155
        %p294 = pneg %p152
        %s295 = sand.u32 %s142, 1
        %s296 = scalar_lea.sflag [#allocation4], %s295
        %s297 = sand.u32 %s142, 1
        %s298 = smul.addr %s297, 512
        %s299 = scalar_lea.vmem [#allocation11], %s298
        %s300 = smul.u32 16, %s24
        %s301 = smul.u32 16, %s24
        %v303 = vld [vmem:[%s261] sm:$0xff]
        %v304 = vld [vmem:[%s261 + $0x8] sm:$0xff]
        %v305 = vld [vmem:[%s261 + $0x10] sm:$0xff]
        %v306 = vld [vmem:[%s261 + $0x18] sm:$0xff]
        %v307 = vld [vmem:[%s261 + $0x20] sm:$0xff]
        %v308 = vld [vmem:[%s261 + $0x28] sm:$0xff]
        %v309 = vld [vmem:[%s261 + $0x30] sm:$0xff]
        %v310 = vld [vmem:[%s261 + $0x38] sm:$0xff]
        %v311 = vld [vmem:[%s261 + $0x40] sm:$0xff]
        %v312 = vld [vmem:[%s261 + $0x48] sm:$0xff]
        %v313 = vld [vmem:[%s261 + $0x50] sm:$0xff]
        %v314 = vld [vmem:[%s261 + $0x58] sm:$0xff]
        %v315 = vld [vmem:[%s261 + $0x60] sm:$0xff]
        %v316 = vld [vmem:[%s261 + $0x68] sm:$0xff]
        %v317 = vld [vmem:[%s261 + $0x70] sm:$0xff]
        %v318 = vld [vmem:[%s261 + $0x78] sm:$0xff]
        %v319 = vld [vmem:[%s261 + $0x80] sm:$0xff]
        %v320 = vld [vmem:[%s261 + $0x88] sm:$0xff]
        %v321 = vld [vmem:[%s261 + $0x90] sm:$0xff]
        %v322 = vld [vmem:[%s261 + $0x98] sm:$0xff]
        %v323 = vld [vmem:[%s261 + $0xa0] sm:$0xff]
        %v324 = vld [vmem:[%s261 + $0xa8] sm:$0xff]
        %v325 = vld [vmem:[%s261 + $0xb0] sm:$0xff]
        %v326 = vld [vmem:[%s261 + $0xb8] sm:$0xff]
        %v327 = vld [vmem:[%s261 + $0xc0] sm:$0xff]
        %v328 = vld [vmem:[%s261 + $0xc8] sm:$0xff]
        %v329 = vld [vmem:[%s261 + $0xd0] sm:$0xff]
        %v330 = vld [vmem:[%s261 + $0xd8] sm:$0xff]
        %v331 = vld [vmem:[%s261 + $0xe0] sm:$0xff]
        %v332 = vld [vmem:[%s261 + $0xe8] sm:$0xff]
        %v333 = vld [vmem:[%s261 + $0xf0] sm:$0xff]
        %v334 = vld [vmem:[%s261 + $0xf8] sm:$0xff]
        %v335 = vld [vmem:[#allocation7] sm:$0xff]
        %v336 = vld [vmem:[#allocation7 + $0x8] sm:$0xff]
        %v337 = vld [vmem:[#allocation7 + $0x10] sm:$0xff]
        %v338 = vld [vmem:[#allocation7 + $0x18] sm:$0xff]
        %v339 = vld [vmem:[#allocation7 + $0x20] sm:$0xff]
        %v340 = vld [vmem:[#allocation7 + $0x28] sm:$0xff]
        %v341 = vld [vmem:[#allocation7 + $0x30] sm:$0xff]
        %v342 = vld [vmem:[#allocation7 + $0x38] sm:$0xff]
        %v343 = vld [vmem:[#allocation7 + $0x40] sm:$0xff]
        %v344 = vld [vmem:[#allocation7 + $0x48] sm:$0xff]
        %v345 = vld [vmem:[#allocation7 + $0x50] sm:$0xff]
        %v346 = vld [vmem:[#allocation7 + $0x58] sm:$0xff]
        %v347 = vld [vmem:[#allocation7 + $0x60] sm:$0xff]
        %v348 = vld [vmem:[#allocation7 + $0x68] sm:$0xff]
        %v349 = vld [vmem:[#allocation7 + $0x70] sm:$0xff]
        %v350 = vld [vmem:[#allocation7 + $0x78] sm:$0xff]
        %v351 = vld [vmem:[#allocation7 + $0x80] sm:$0xff]
        %v352 = vld [vmem:[#allocation7 + $0x88] sm:$0xff]
        %v353 = vld [vmem:[#allocation7 + $0x90] sm:$0xff]
        %v354 = vld [vmem:[#allocation7 + $0x98] sm:$0xff]
        %v355 = vld [vmem:[#allocation7 + $0xa0] sm:$0xff]
        %v356 = vld [vmem:[#allocation7 + $0xa8] sm:$0xff]
        %v357 = vld [vmem:[#allocation7 + $0xb0] sm:$0xff]
        %v358 = vld [vmem:[#allocation7 + $0xb8] sm:$0xff]
        %v359 = vld [vmem:[#allocation7 + $0xc0] sm:$0xff]
        %v360 = vld [vmem:[#allocation7 + $0xc8] sm:$0xff]
        %v361 = vld [vmem:[#allocation7 + $0xd0] sm:$0xff]
        %v362 = vld [vmem:[#allocation7 + $0xd8] sm:$0xff]
        %v363 = vld [vmem:[#allocation7 + $0xe0] sm:$0xff]
        %v364 = vld [vmem:[#allocation7 + $0xe8] sm:$0xff]
        %v365 = vld [vmem:[#allocation7 + $0xf0] sm:$0xff]
        %v366 = vld [vmem:[#allocation7 + $0xf8] sm:$0xff]
        %v367 = vld [vmem:[#allocation7 + $0x100] sm:$0xff]
        %v368 = vld [vmem:[#allocation7 + $0x108] sm:$0xff]
        %v369 = vld [vmem:[#allocation7 + $0x110] sm:$0xff]
        %v370 = vld [vmem:[#allocation7 + $0x118] sm:$0xff]
        %v371 = vld [vmem:[#allocation7 + $0x120] sm:$0xff]
        %v372 = vld [vmem:[#allocation7 + $0x128] sm:$0xff]
        %v373 = vld [vmem:[#allocation7 + $0x130] sm:$0xff]
        %v374 = vld [vmem:[#allocation7 + $0x138] sm:$0xff]
        %v375 = vld [vmem:[#allocation7 + $0x140] sm:$0xff]
        %v376 = vld [vmem:[#allocation7 + $0x148] sm:$0xff]
        %v377 = vld [vmem:[#allocation7 + $0x150] sm:$0xff]
        %v378 = vld [vmem:[#allocation7 + $0x158] sm:$0xff]
        %v379 = vld [vmem:[#allocation7 + $0x160] sm:$0xff]
        %v380 = vld [vmem:[#allocation7 + $0x168] sm:$0xff]
        %v381 = vld [vmem:[#allocation7 + $0x170] sm:$0xff]
        %v382 = vld [vmem:[#allocation7 + $0x178] sm:$0xff]
        %v383 = vld [vmem:[#allocation7 + $0x180] sm:$0xff]
        %v384 = vld [vmem:[#allocation7 + $0x188] sm:$0xff]
        %v385 = vld [vmem:[#allocation7 + $0x190] sm:$0xff]
        %v386 = vld [vmem:[#allocation7 + $0x198] sm:$0xff]
        %v387 = vld [vmem:[#allocation7 + $0x1a0] sm:$0xff]
        %v388 = vld [vmem:[#allocation7 + $0x1a8] sm:$0xff]
        %v389 = vld [vmem:[#allocation7 + $0x1b0] sm:$0xff]
        %v390 = vld [vmem:[#allocation7 + $0x1b8] sm:$0xff]
        %v391 = vld [vmem:[#allocation7 + $0x1c0] sm:$0xff]
        %v392 = vld [vmem:[#allocation7 + $0x1c8] sm:$0xff]
        %v393 = vld [vmem:[#allocation7 + $0x1d0] sm:$0xff]
        %v394 = vld [vmem:[#allocation7 + $0x1d8] sm:$0xff]
        %v395 = vld [vmem:[#allocation7 + $0x1e0] sm:$0xff]
        %v396 = vld [vmem:[#allocation7 + $0x1e8] sm:$0xff]
        %v397 = vld [vmem:[#allocation7 + $0x1f0] sm:$0xff]
        %v398 = vld [vmem:[#allocation7 + $0x1f8] sm:$0xff]
        %v399 = vld [vmem:[#allocation7 + $0x200] sm:$0xff]
        %v400 = vld [vmem:[#allocation7 + $0x208] sm:$0xff]
        %v401 = vld [vmem:[#allocation7 + $0x210] sm:$0xff]
        %v402 = vld [vmem:[#allocation7 + $0x218] sm:$0xff]
        %v403 = vld [vmem:[#allocation7 + $0x220] sm:$0xff]
        %v404 = vld [vmem:[#allocation7 + $0x228] sm:$0xff]
        %v405 = vld [vmem:[#allocation7 + $0x230] sm:$0xff]
        %v406 = vld [vmem:[#allocation7 + $0x238] sm:$0xff]
        %v407 = vld [vmem:[#allocation7 + $0x240] sm:$0xff]
        %v408 = vld [vmem:[#allocation7 + $0x248] sm:$0xff]
        %v409 = vld [vmem:[#allocation7 + $0x250] sm:$0xff]
        %v410 = vld [vmem:[#allocation7 + $0x258] sm:$0xff]
        %v411 = vld [vmem:[#allocation7 + $0x260] sm:$0xff]
        %v412 = vld [vmem:[#allocation7 + $0x268] sm:$0xff]
        %v413 = vld [vmem:[#allocation7 + $0x270] sm:$0xff]
        %v414 = vld [vmem:[#allocation7 + $0x278] sm:$0xff]
        %v415 = vld [vmem:[#allocation7 + $0x280] sm:$0xff]
        %v416 = vld [vmem:[#allocation7 + $0x288] sm:$0xff]
        %v417 = vld [vmem:[#allocation7 + $0x290] sm:$0xff]
        %v418 = vld [vmem:[#allocation7 + $0x298] sm:$0xff]
        %v419 = vld [vmem:[#allocation7 + $0x2a0] sm:$0xff]
        %v420 = vld [vmem:[#allocation7 + $0x2a8] sm:$0xff]
        %v421 = vld [vmem:[#allocation7 + $0x2b0] sm:$0xff]
        %v422 = vld [vmem:[#allocation7 + $0x2b8] sm:$0xff]
        %v423 = vld [vmem:[#allocation7 + $0x2c0] sm:$0xff]
        %v424 = vld [vmem:[#allocation7 + $0x2c8] sm:$0xff]
        %v425 = vld [vmem:[#allocation7 + $0x2d0] sm:$0xff]
        %v426 = vld [vmem:[#allocation7 + $0x2d8] sm:$0xff]
        %v427 = vld [vmem:[#allocation7 + $0x2e0] sm:$0xff]
        %v428 = vld [vmem:[#allocation7 + $0x2e8] sm:$0xff]
        %v429 = vld [vmem:[#allocation7 + $0x2f0] sm:$0xff]
        %v430 = vld [vmem:[#allocation7 + $0x2f8] sm:$0xff]
        %v431 = vld [vmem:[#allocation7 + $0x300] sm:$0xff]
        %v432 = vld [vmem:[#allocation7 + $0x308] sm:$0xff]
        %v433 = vld [vmem:[#allocation7 + $0x310] sm:$0xff]
        %v434 = vld [vmem:[#allocation7 + $0x318] sm:$0xff]
        %v435 = vld [vmem:[#allocation7 + $0x320] sm:$0xff]
        %v436 = vld [vmem:[#allocation7 + $0x328] sm:$0xff]
        %v437 = vld [vmem:[#allocation7 + $0x330] sm:$0xff]
        %v438 = vld [vmem:[#allocation7 + $0x338] sm:$0xff]
        %v439 = vld [vmem:[#allocation7 + $0x340] sm:$0xff]
        %v440 = vld [vmem:[#allocation7 + $0x348] sm:$0xff]
        %v441 = vld [vmem:[#allocation7 + $0x350] sm:$0xff]
        %v442 = vld [vmem:[#allocation7 + $0x358] sm:$0xff]
        %v443 = vld [vmem:[#allocation7 + $0x360] sm:$0xff]
        %v444 = vld [vmem:[#allocation7 + $0x368] sm:$0xff]
        %v445 = vld [vmem:[#allocation7 + $0x370] sm:$0xff]
        %v446 = vld [vmem:[#allocation7 + $0x378] sm:$0xff]
        %v447 = vld [vmem:[#allocation7 + $0x380] sm:$0xff]
        %v448 = vld [vmem:[#allocation7 + $0x388] sm:$0xff]
        %v449 = vld [vmem:[#allocation7 + $0x390] sm:$0xff]
        %v450 = vld [vmem:[#allocation7 + $0x398] sm:$0xff]
        %v451 = vld [vmem:[#allocation7 + $0x3a0] sm:$0xff]
        %v452 = vld [vmem:[#allocation7 + $0x3a8] sm:$0xff]
        %v453 = vld [vmem:[#allocation7 + $0x3b0] sm:$0xff]
        %v454 = vld [vmem:[#allocation7 + $0x3b8] sm:$0xff]
        %v455 = vld [vmem:[#allocation7 + $0x3c0] sm:$0xff]
        %v456 = vld [vmem:[#allocation7 + $0x3c8] sm:$0xff]
        %v457 = vld [vmem:[#allocation7 + $0x3d0] sm:$0xff]
        %v458 = vld [vmem:[#allocation7 + $0x3d8] sm:$0xff]
        %v459 = vld [vmem:[#allocation7 + $0x3e0] sm:$0xff]
        %v460 = vld [vmem:[#allocation7 + $0x3e8] sm:$0xff]
        %v461 = vld [vmem:[#allocation7 + $0x3f0] sm:$0xff]
        %v462 = vld [vmem:[#allocation7 + $0x3f8] sm:$0xff]
        %v463 = vld [vmem:[#allocation7 + $0x400] sm:$0xff]
        %v464 = vld [vmem:[#allocation7 + $0x408] sm:$0xff]
        %v465 = vld [vmem:[#allocation7 + $0x410] sm:$0xff]
        %v466 = vld [vmem:[#allocation7 + $0x418] sm:$0xff]
        %v467 = vld [vmem:[#allocation7 + $0x420] sm:$0xff]
        %v468 = vld [vmem:[#allocation7 + $0x428] sm:$0xff]
        %v469 = vld [vmem:[#allocation7 + $0x430] sm:$0xff]
        %v470 = vld [vmem:[#allocation7 + $0x438] sm:$0xff]
        %v471 = vld [vmem:[#allocation7 + $0x440] sm:$0xff]
        %v472 = vld [vmem:[#allocation7 + $0x448] sm:$0xff]
        %v473 = vld [vmem:[#allocation7 + $0x450] sm:$0xff]
        %v474 = vld [vmem:[#allocation7 + $0x458] sm:$0xff]
        %v475 = vld [vmem:[#allocation7 + $0x460] sm:$0xff]
        %v476 = vld [vmem:[#allocation7 + $0x468] sm:$0xff]
        %v477 = vld [vmem:[#allocation7 + $0x470] sm:$0xff]
        %v478 = vld [vmem:[#allocation7 + $0x478] sm:$0xff]
        %v479 = vld [vmem:[#allocation7 + $0x480] sm:$0xff]
        %v480 = vld [vmem:[#allocation7 + $0x488] sm:$0xff]
        %v481 = vld [vmem:[#allocation7 + $0x490] sm:$0xff]
        %v482 = vld [vmem:[#allocation7 + $0x498] sm:$0xff]
        %v483 = vld [vmem:[#allocation7 + $0x4a0] sm:$0xff]
        %v484 = vld [vmem:[#allocation7 + $0x4a8] sm:$0xff]
        %v485 = vld [vmem:[#allocation7 + $0x4b0] sm:$0xff]
        %v486 = vld [vmem:[#allocation7 + $0x4b8] sm:$0xff]
        %v487 = vld [vmem:[#allocation7 + $0x4c0] sm:$0xff]
        %v488 = vld [vmem:[#allocation7 + $0x4c8] sm:$0xff]
        %v489 = vld [vmem:[#allocation7 + $0x4d0] sm:$0xff]
        %v490 = vld [vmem:[#allocation7 + $0x4d8] sm:$0xff]
        %v491 = vld [vmem:[#allocation7 + $0x4e0] sm:$0xff]
        %v492 = vld [vmem:[#allocation7 + $0x4e8] sm:$0xff]
        %v493 = vld [vmem:[#allocation7 + $0x4f0] sm:$0xff]
        %v494 = vld [vmem:[#allocation7 + $0x4f8] sm:$0xff]
        %v495 = vld [vmem:[#allocation7 + $0x500] sm:$0xff]
        %v496 = vld [vmem:[#allocation7 + $0x508] sm:$0xff]
        %v497 = vld [vmem:[#allocation7 + $0x510] sm:$0xff]
        %v498 = vld [vmem:[#allocation7 + $0x518] sm:$0xff]
        %v499 = vld [vmem:[#allocation7 + $0x520] sm:$0xff]
        %v500 = vld [vmem:[#allocation7 + $0x528] sm:$0xff]
        %v501 = vld [vmem:[#allocation7 + $0x530] sm:$0xff]
        %v502 = vld [vmem:[#allocation7 + $0x538] sm:$0xff]
        %v503 = vld [vmem:[#allocation7 + $0x540] sm:$0xff]
        %v504 = vld [vmem:[#allocation7 + $0x548] sm:$0xff]
        %v505 = vld [vmem:[#allocation7 + $0x550] sm:$0xff]
        %v506 = vld [vmem:[#allocation7 + $0x558] sm:$0xff]
        %v507 = vld [vmem:[#allocation7 + $0x560] sm:$0xff]
        %v508 = vld [vmem:[#allocation7 + $0x568] sm:$0xff]
        %v509 = vld [vmem:[#allocation7 + $0x570] sm:$0xff]
        %v510 = vld [vmem:[#allocation7 + $0x578] sm:$0xff]
        %v511 = vld [vmem:[#allocation7 + $0x580] sm:$0xff]
        %v512 = vld [vmem:[#allocation7 + $0x588] sm:$0xff]
        %v513 = vld [vmem:[#allocation7 + $0x590] sm:$0xff]
        %v514 = vld [vmem:[#allocation7 + $0x598] sm:$0xff]
        %v515 = vld [vmem:[#allocation7 + $0x5a0] sm:$0xff]
        %v516 = vld [vmem:[#allocation7 + $0x5a8] sm:$0xff]
        %v517 = vld [vmem:[#allocation7 + $0x5b0] sm:$0xff]
        %v518 = vld [vmem:[#allocation7 + $0x5b8] sm:$0xff]
        %v519 = vld [vmem:[#allocation7 + $0x5c0] sm:$0xff]
        %v520 = vld [vmem:[#allocation7 + $0x5c8] sm:$0xff]
        %v521 = vld [vmem:[#allocation7 + $0x5d0] sm:$0xff]
        %v522 = vld [vmem:[#allocation7 + $0x5d8] sm:$0xff]
        %v523 = vld [vmem:[#allocation7 + $0x5e0] sm:$0xff]
        %v524 = vld [vmem:[#allocation7 + $0x5e8] sm:$0xff]
        %v525 = vld [vmem:[#allocation7 + $0x5f0] sm:$0xff]
        %v526 = vld [vmem:[#allocation7 + $0x5f8] sm:$0xff]
        %v527 = vld [vmem:[#allocation7 + $0x600] sm:$0xff]
        %v528 = vld [vmem:[#allocation7 + $0x608] sm:$0xff]
        %v529 = vld [vmem:[#allocation7 + $0x610] sm:$0xff]
        %v530 = vld [vmem:[#allocation7 + $0x618] sm:$0xff]
        %v531 = vld [vmem:[#allocation7 + $0x620] sm:$0xff]
        %v532 = vld [vmem:[#allocation7 + $0x628] sm:$0xff]
        %v533 = vld [vmem:[#allocation7 + $0x630] sm:$0xff]
        %v534 = vld [vmem:[#allocation7 + $0x638] sm:$0xff]
        %v535 = vld [vmem:[#allocation7 + $0x640] sm:$0xff]
        %v536 = vld [vmem:[#allocation7 + $0x648] sm:$0xff]
        %v537 = vld [vmem:[#allocation7 + $0x650] sm:$0xff]
        %v538 = vld [vmem:[#allocation7 + $0x658] sm:$0xff]
        %v539 = vld [vmem:[#allocation7 + $0x660] sm:$0xff]
        %v540 = vld [vmem:[#allocation7 + $0x668] sm:$0xff]
        %v541 = vld [vmem:[#allocation7 + $0x670] sm:$0xff]
        %v542 = vld [vmem:[#allocation7 + $0x678] sm:$0xff]
        %v543 = vld [vmem:[#allocation7 + $0x680] sm:$0xff]
        %v544 = vld [vmem:[#allocation7 + $0x688] sm:$0xff]
        %v545 = vld [vmem:[#allocation7 + $0x690] sm:$0xff]
        %v546 = vld [vmem:[#allocation7 + $0x698] sm:$0xff]
        %v547 = vld [vmem:[#allocation7 + $0x6a0] sm:$0xff]
        %v548 = vld [vmem:[#allocation7 + $0x6a8] sm:$0xff]
        %v549 = vld [vmem:[#allocation7 + $0x6b0] sm:$0xff]
        %v550 = vld [vmem:[#allocation7 + $0x6b8] sm:$0xff]
        %v551 = vld [vmem:[#allocation7 + $0x6c0] sm:$0xff]
        %v552 = vld [vmem:[#allocation7 + $0x6c8] sm:$0xff]
        %v553 = vld [vmem:[#allocation7 + $0x6d0] sm:$0xff]
        %v554 = vld [vmem:[#allocation7 + $0x6d8] sm:$0xff]
        %v555 = vld [vmem:[#allocation7 + $0x6e0] sm:$0xff]
        %v556 = vld [vmem:[#allocation7 + $0x6e8] sm:$0xff]
        %v557 = vld [vmem:[#allocation7 + $0x6f0] sm:$0xff]
        %v558 = vld [vmem:[#allocation7 + $0x6f8] sm:$0xff]
        %v559 = vld [vmem:[#allocation7 + $0x700] sm:$0xff]
        %v560 = vld [vmem:[#allocation7 + $0x708] sm:$0xff]
        %v561 = vld [vmem:[#allocation7 + $0x710] sm:$0xff]
        %v562 = vld [vmem:[#allocation7 + $0x718] sm:$0xff]
        %v563 = vld [vmem:[#allocation7 + $0x720] sm:$0xff]
        %v564 = vld [vmem:[#allocation7 + $0x728] sm:$0xff]
        %v565 = vld [vmem:[#allocation7 + $0x730] sm:$0xff]
        %v566 = vld [vmem:[#allocation7 + $0x738] sm:$0xff]
        %v567 = vld [vmem:[#allocation7 + $0x740] sm:$0xff]
        %v568 = vld [vmem:[#allocation7 + $0x748] sm:$0xff]
        %v569 = vld [vmem:[#allocation7 + $0x750] sm:$0xff]
        %v570 = vld [vmem:[#allocation7 + $0x758] sm:$0xff]
        %v571 = vld [vmem:[#allocation7 + $0x760] sm:$0xff]
        %v572 = vld [vmem:[#allocation7 + $0x768] sm:$0xff]
        %v573 = vld [vmem:[#allocation7 + $0x770] sm:$0xff]
        %v574 = vld [vmem:[#allocation7 + $0x778] sm:$0xff]
        %v575 = vld [vmem:[#allocation7 + $0x780] sm:$0xff]
        %v576 = vld [vmem:[#allocation7 + $0x788] sm:$0xff]
        %v577 = vld [vmem:[#allocation7 + $0x790] sm:$0xff]
        %v578 = vld [vmem:[#allocation7 + $0x798] sm:$0xff]
        %v579 = vld [vmem:[#allocation7 + $0x7a0] sm:$0xff]
        %v580 = vld [vmem:[#allocation7 + $0x7a8] sm:$0xff]
        %v581 = vld [vmem:[#allocation7 + $0x7b0] sm:$0xff]
        %v582 = vld [vmem:[#allocation7 + $0x7b8] sm:$0xff]
        %v583 = vld [vmem:[#allocation7 + $0x7c0] sm:$0xff]
        %v584 = vld [vmem:[#allocation7 + $0x7c8] sm:$0xff]
        %v585 = vld [vmem:[#allocation7 + $0x7d0] sm:$0xff]
        %v586 = vld [vmem:[#allocation7 + $0x7d8] sm:$0xff]
        %v587 = vld [vmem:[#allocation7 + $0x7e0] sm:$0xff]
        %v588 = vld [vmem:[#allocation7 + $0x7e8] sm:$0xff]
        %v589 = vld [vmem:[#allocation7 + $0x7f0] sm:$0xff]
        %v590 = vld [vmem:[#allocation7 + $0x7f8] sm:$0xff]
        %v591 = vld [vmem:[#allocation7 + $0x800] sm:$0xff]
        %v592 = vld [vmem:[#allocation7 + $0x808] sm:$0xff]
        %v593 = vld [vmem:[#allocation7 + $0x810] sm:$0xff]
        %v594 = vld [vmem:[#allocation7 + $0x818] sm:$0xff]
        %v595 = vld [vmem:[#allocation7 + $0x820] sm:$0xff]
        %v596 = vld [vmem:[#allocation7 + $0x828] sm:$0xff]
        %v597 = vld [vmem:[#allocation7 + $0x830] sm:$0xff]
        %v598 = vld [vmem:[#allocation7 + $0x838] sm:$0xff]
        %v599 = vld [vmem:[#allocation7 + $0x840] sm:$0xff]
        %v600 = vld [vmem:[#allocation7 + $0x848] sm:$0xff]
        %v601 = vld [vmem:[#allocation7 + $0x850] sm:$0xff]
        %v602 = vld [vmem:[#allocation7 + $0x858] sm:$0xff]
        %v603 = vld [vmem:[#allocation7 + $0x860] sm:$0xff]
        %v604 = vld [vmem:[#allocation7 + $0x868] sm:$0xff]
        %v605 = vld [vmem:[#allocation7 + $0x870] sm:$0xff]
        %v606 = vld [vmem:[#allocation7 + $0x878] sm:$0xff]
        %v607 = vld [vmem:[#allocation7 + $0x880] sm:$0xff]
        %v608 = vld [vmem:[#allocation7 + $0x888] sm:$0xff]
        %v609 = vld [vmem:[#allocation7 + $0x890] sm:$0xff]
        %v610 = vld [vmem:[#allocation7 + $0x898] sm:$0xff]
        %v611 = vld [vmem:[#allocation7 + $0x8a0] sm:$0xff]
        %v612 = vld [vmem:[#allocation7 + $0x8a8] sm:$0xff]
        %v613 = vld [vmem:[#allocation7 + $0x8b0] sm:$0xff]
        %v614 = vld [vmem:[#allocation7 + $0x8b8] sm:$0xff]
        %v615 = vld [vmem:[#allocation7 + $0x8c0] sm:$0xff]
        %v616 = vld [vmem:[#allocation7 + $0x8c8] sm:$0xff]
        %v617 = vld [vmem:[#allocation7 + $0x8d0] sm:$0xff]
        %v618 = vld [vmem:[#allocation7 + $0x8d8] sm:$0xff]
        %v619 = vld [vmem:[#allocation7 + $0x8e0] sm:$0xff]
        %v620 = vld [vmem:[#allocation7 + $0x8e8] sm:$0xff]
        %v621 = vld [vmem:[#allocation7 + $0x8f0] sm:$0xff]
        %v622 = vld [vmem:[#allocation7 + $0x8f8] sm:$0xff]
        %v623 = vld [vmem:[#allocation7 + $0x900] sm:$0xff]
        %v624 = vld [vmem:[#allocation7 + $0x908] sm:$0xff]
        %v625 = vld [vmem:[#allocation7 + $0x910] sm:$0xff]
        %v626 = vld [vmem:[#allocation7 + $0x918] sm:$0xff]
        %v627 = vld [vmem:[#allocation7 + $0x920] sm:$0xff]
        %v628 = vld [vmem:[#allocation7 + $0x928] sm:$0xff]
        %v629 = vld [vmem:[#allocation7 + $0x930] sm:$0xff]
        %v630 = vld [vmem:[#allocation7 + $0x938] sm:$0xff]
        %v631 = vld [vmem:[#allocation7 + $0x940] sm:$0xff]
        %v632 = vld [vmem:[#allocation7 + $0x948] sm:$0xff]
        %v633 = vld [vmem:[#allocation7 + $0x950] sm:$0xff]
        %v634 = vld [vmem:[#allocation7 + $0x958] sm:$0xff]
        %v635 = vld [vmem:[#allocation7 + $0x960] sm:$0xff]
        %v636 = vld [vmem:[#allocation7 + $0x968] sm:$0xff]
        %v637 = vld [vmem:[#allocation7 + $0x970] sm:$0xff]
        %v638 = vld [vmem:[#allocation7 + $0x978] sm:$0xff]
        %v639 = vld [vmem:[#allocation7 + $0x980] sm:$0xff]
        %v640 = vld [vmem:[#allocation7 + $0x988] sm:$0xff]
        %v641 = vld [vmem:[#allocation7 + $0x990] sm:$0xff]
        %v642 = vld [vmem:[#allocation7 + $0x998] sm:$0xff]
        %v643 = vld [vmem:[#allocation7 + $0x9a0] sm:$0xff]
        %v644 = vld [vmem:[#allocation7 + $0x9a8] sm:$0xff]
        %v645 = vld [vmem:[#allocation7 + $0x9b0] sm:$0xff]
        %v646 = vld [vmem:[#allocation7 + $0x9b8] sm:$0xff]
        %v647 = vld [vmem:[#allocation7 + $0x9c0] sm:$0xff]
        %v648 = vld [vmem:[#allocation7 + $0x9c8] sm:$0xff]
        %v649 = vld [vmem:[#allocation7 + $0x9d0] sm:$0xff]
        %v650 = vld [vmem:[#allocation7 + $0x9d8] sm:$0xff]
        %v651 = vld [vmem:[#allocation7 + $0x9e0] sm:$0xff]
        %v652 = vld [vmem:[#allocation7 + $0x9e8] sm:$0xff]
        %v653 = vld [vmem:[#allocation7 + $0x9f0] sm:$0xff]
        %v654 = vld [vmem:[#allocation7 + $0x9f8] sm:$0xff]
        %v655 = vld [vmem:[#allocation7 + $0xa00] sm:$0xff]
        %v656 = vld [vmem:[#allocation7 + $0xa08] sm:$0xff]
        %v657 = vld [vmem:[#allocation7 + $0xa10] sm:$0xff]
        %v658 = vld [vmem:[#allocation7 + $0xa18] sm:$0xff]
        %v659 = vld [vmem:[#allocation7 + $0xa20] sm:$0xff]
        %v660 = vld [vmem:[#allocation7 + $0xa28] sm:$0xff]
        %v661 = vld [vmem:[#allocation7 + $0xa30] sm:$0xff]
        %v662 = vld [vmem:[#allocation7 + $0xa38] sm:$0xff]
        %v663 = vld [vmem:[#allocation7 + $0xa40] sm:$0xff]
        %v664 = vld [vmem:[#allocation7 + $0xa48] sm:$0xff]
        %v665 = vld [vmem:[#allocation7 + $0xa50] sm:$0xff]
        %v666 = vld [vmem:[#allocation7 + $0xa58] sm:$0xff]
        %v667 = vld [vmem:[#allocation7 + $0xa60] sm:$0xff]
        %v668 = vld [vmem:[#allocation7 + $0xa68] sm:$0xff]
        %v669 = vld [vmem:[#allocation7 + $0xa70] sm:$0xff]
        %v670 = vld [vmem:[#allocation7 + $0xa78] sm:$0xff]
        %v671 = vld [vmem:[#allocation7 + $0xa80] sm:$0xff]
        %v672 = vld [vmem:[#allocation7 + $0xa88] sm:$0xff]
        %v673 = vld [vmem:[#allocation7 + $0xa90] sm:$0xff]
        %v674 = vld [vmem:[#allocation7 + $0xa98] sm:$0xff]
        %v675 = vld [vmem:[#allocation7 + $0xaa0] sm:$0xff]
        %v676 = vld [vmem:[#allocation7 + $0xaa8] sm:$0xff]
        %v677 = vld [vmem:[#allocation7 + $0xab0] sm:$0xff]
        %v678 = vld [vmem:[#allocation7 + $0xab8] sm:$0xff]
        %v679 = vld [vmem:[#allocation7 + $0xac0] sm:$0xff]
        %v680 = vld [vmem:[#allocation7 + $0xac8] sm:$0xff]
        %v681 = vld [vmem:[#allocation7 + $0xad0] sm:$0xff]
        %v682 = vld [vmem:[#allocation7 + $0xad8] sm:$0xff]
        %v683 = vld [vmem:[#allocation7 + $0xae0] sm:$0xff]
        %v684 = vld [vmem:[#allocation7 + $0xae8] sm:$0xff]
        %v685 = vld [vmem:[#allocation7 + $0xaf0] sm:$0xff]
        %v686 = vld [vmem:[#allocation7 + $0xaf8] sm:$0xff]
        %v687 = vld [vmem:[#allocation7 + $0xb00] sm:$0xff]
        %v688 = vld [vmem:[#allocation7 + $0xb08] sm:$0xff]
        %v689 = vld [vmem:[#allocation7 + $0xb10] sm:$0xff]
        %v690 = vld [vmem:[#allocation7 + $0xb18] sm:$0xff]
        %v691 = vld [vmem:[#allocation7 + $0xb20] sm:$0xff]
        %v692 = vld [vmem:[#allocation7 + $0xb28] sm:$0xff]
        %v693 = vld [vmem:[#allocation7 + $0xb30] sm:$0xff]
        %v694 = vld [vmem:[#allocation7 + $0xb38] sm:$0xff]
        %v695 = vld [vmem:[#allocation7 + $0xb40] sm:$0xff]
        %v696 = vld [vmem:[#allocation7 + $0xb48] sm:$0xff]
        %v697 = vld [vmem:[#allocation7 + $0xb50] sm:$0xff]
        %v698 = vld [vmem:[#allocation7 + $0xb58] sm:$0xff]
        %v699 = vld [vmem:[#allocation7 + $0xb60] sm:$0xff]
        %v700 = vld [vmem:[#allocation7 + $0xb68] sm:$0xff]
        %v701 = vld [vmem:[#allocation7 + $0xb70] sm:$0xff]
        %v702 = vld [vmem:[#allocation7 + $0xb78] sm:$0xff]
        %v703 = vld [vmem:[#allocation7 + $0xb80] sm:$0xff]
        %v704 = vld [vmem:[#allocation7 + $0xb88] sm:$0xff]
        %v705 = vld [vmem:[#allocation7 + $0xb90] sm:$0xff]
        %v706 = vld [vmem:[#allocation7 + $0xb98] sm:$0xff]
        %v707 = vld [vmem:[#allocation7 + $0xba0] sm:$0xff]
        %v708 = vld [vmem:[#allocation7 + $0xba8] sm:$0xff]
        %v709 = vld [vmem:[#allocation7 + $0xbb0] sm:$0xff]
        %v710 = vld [vmem:[#allocation7 + $0xbb8] sm:$0xff]
        %v711 = vld [vmem:[#allocation7 + $0xbc0] sm:$0xff]
        %v712 = vld [vmem:[#allocation7 + $0xbc8] sm:$0xff]
        %v713 = vld [vmem:[#allocation7 + $0xbd0] sm:$0xff]
        %v714 = vld [vmem:[#allocation7 + $0xbd8] sm:$0xff]
        %v715 = vld [vmem:[#allocation7 + $0xbe0] sm:$0xff]
        %v716 = vld [vmem:[#allocation7 + $0xbe8] sm:$0xff]
        %v717 = vld [vmem:[#allocation7 + $0xbf0] sm:$0xff]
        %v718 = vld [vmem:[#allocation7 + $0xbf8] sm:$0xff]
        %v751 = vunpack.c.l.b16 %v303
        %v752 = vunpack.c.h.b16 %v303
        %v753 = vunpack.c.l.b16 %v304
        %v754 = vunpack.c.h.b16 %v304
        %v755 = vunpack.c.l.b16 %v305
        %v756 = vunpack.c.h.b16 %v305
        %v757 = vunpack.c.l.b16 %v306
        %v758 = vunpack.c.h.b16 %v306
        %v759 = vunpack.c.l.b16 %v307
        %v760 = vunpack.c.h.b16 %v307
        %v761 = vunpack.c.l.b16 %v308
        %v762 = vunpack.c.h.b16 %v308
        %v763 = vunpack.c.l.b16 %v309
        %v764 = vunpack.c.h.b16 %v309
        %v765 = vunpack.c.l.b16 %v310
        %v766 = vunpack.c.h.b16 %v310
        %v767 = vunpack.c.l.b16 %v311
        %v768 = vunpack.c.h.b16 %v311
        %v769 = vunpack.c.l.b16 %v312
        %v770 = vunpack.c.h.b16 %v312
        %v771 = vunpack.c.l.b16 %v313
        %v772 = vunpack.c.h.b16 %v313
        %v773 = vunpack.c.l.b16 %v314
        %v774 = vunpack.c.h.b16 %v314
        %v775 = vunpack.c.l.b16 %v315
        %v776 = vunpack.c.h.b16 %v315
        %v777 = vunpack.c.l.b16 %v316
        %v778 = vunpack.c.h.b16 %v316
        %v779 = vunpack.c.l.b16 %v317
        %v780 = vunpack.c.h.b16 %v317
        %v781 = vunpack.c.l.b16 %v318
        %v782 = vunpack.c.h.b16 %v318
        %v783 = vunpack.c.l.b16 %v319
        %v784 = vunpack.c.h.b16 %v319
        %v785 = vunpack.c.l.b16 %v320
        %v786 = vunpack.c.h.b16 %v320
        %v787 = vunpack.c.l.b16 %v321
        %v788 = vunpack.c.h.b16 %v321
        %v789 = vunpack.c.l.b16 %v322
        %v790 = vunpack.c.h.b16 %v322
        %v791 = vunpack.c.l.b16 %v323
        %v792 = vunpack.c.h.b16 %v323
        %v793 = vunpack.c.l.b16 %v324
        %v794 = vunpack.c.h.b16 %v324
        %v795 = vunpack.c.l.b16 %v325
        %v796 = vunpack.c.h.b16 %v325
        %v797 = vunpack.c.l.b16 %v326
        %v798 = vunpack.c.h.b16 %v326
        %v799 = vunpack.c.l.b16 %v327
        %v800 = vunpack.c.h.b16 %v327
        %v801 = vunpack.c.l.b16 %v328
        %v802 = vunpack.c.h.b16 %v328
        %v803 = vunpack.c.l.b16 %v329
        %v804 = vunpack.c.h.b16 %v329
        %v805 = vunpack.c.l.b16 %v330
        %v806 = vunpack.c.h.b16 %v330
        %v807 = vunpack.c.l.b16 %v331
        %v808 = vunpack.c.h.b16 %v331
        %v809 = vunpack.c.l.b16 %v332
        %v810 = vunpack.c.h.b16 %v332
        %v811 = vunpack.c.l.b16 %v333
        %v812 = vunpack.c.h.b16 %v333
        %v813 = vunpack.c.l.b16 %v334
        %v814 = vunpack.c.h.b16 %v334
        %v815 = vpack.c.b16 %v755, %v751
        %v816 = vpack.c.b16 %v756, %v752
        %v817 = vpack.c.b16 %v757, %v753
        %v818 = vpack.c.b16 %v758, %v754
        %v819 = vpack.c.b16 %v763, %v759
        %v820 = vpack.c.b16 %v764, %v760
        %v821 = vpack.c.b16 %v765, %v761
        %v822 = vpack.c.b16 %v766, %v762
        %v823 = vpack.c.b16 %v771, %v767
        %v824 = vpack.c.b16 %v772, %v768
        %v825 = vpack.c.b16 %v773, %v769
        %v826 = vpack.c.b16 %v774, %v770
        %v827 = vpack.c.b16 %v779, %v775
        %v828 = vpack.c.b16 %v780, %v776
        %v829 = vpack.c.b16 %v781, %v777
        %v830 = vpack.c.b16 %v782, %v778
        %v831 = vpack.c.b16 %v787, %v783
        %v832 = vpack.c.b16 %v788, %v784
        %v833 = vpack.c.b16 %v789, %v785
        %v834 = vpack.c.b16 %v790, %v786
        %v835 = vpack.c.b16 %v795, %v791
        %v836 = vpack.c.b16 %v796, %v792
        %v837 = vpack.c.b16 %v797, %v793
        %v838 = vpack.c.b16 %v798, %v794
        %v839 = vpack.c.b16 %v803, %v799
        %v840 = vpack.c.b16 %v804, %v800
        %v841 = vpack.c.b16 %v805, %v801
        %v842 = vpack.c.b16 %v806, %v802
        %v843 = vpack.c.b16 %v811, %v807
        %v844 = vpack.c.b16 %v812, %v808
        %v845 = vpack.c.b16 %v813, %v809
        %v846 = vpack.c.b16 %v814, %v810
        %v1263 = vunpack.c.l.b16 %v335
        %v1264 = vunpack.c.h.b16 %v335
        %v1265 = vunpack.c.l.b16 %v336
        %v1266 = vunpack.c.h.b16 %v336
        %v1267 = vunpack.c.l.b16 %v337
        %v1268 = vunpack.c.h.b16 %v337
        %v1269 = vunpack.c.l.b16 %v338
        %v1270 = vunpack.c.h.b16 %v338
        %v1271 = vunpack.c.l.b16 %v339
        %v1272 = vunpack.c.h.b16 %v339
        %v1273 = vunpack.c.l.b16 %v340
        %v1274 = vunpack.c.h.b16 %v340
        %v1275 = vunpack.c.l.b16 %v341
        %v1276 = vunpack.c.h.b16 %v341
        %v1277 = vunpack.c.l.b16 %v342
        %v1278 = vunpack.c.h.b16 %v342
        %v1279 = vunpack.c.l.b16 %v343
        %v1280 = vunpack.c.h.b16 %v343
        %v1281 = vunpack.c.l.b16 %v344
        %v1282 = vunpack.c.h.b16 %v344
        %v1283 = vunpack.c.l.b16 %v345
        %v1284 = vunpack.c.h.b16 %v345
        %v1285 = vunpack.c.l.b16 %v346
        %v1286 = vunpack.c.h.b16 %v346
        %v1287 = vunpack.c.l.b16 %v347
        %v1288 = vunpack.c.h.b16 %v347
        %v1289 = vunpack.c.l.b16 %v348
        %v1290 = vunpack.c.h.b16 %v348
        %v1291 = vunpack.c.l.b16 %v349
        %v1292 = vunpack.c.h.b16 %v349
        %v1293 = vunpack.c.l.b16 %v350
        %v1294 = vunpack.c.h.b16 %v350
        %v1295 = vunpack.c.l.b16 %v351
        %v1296 = vunpack.c.h.b16 %v351
        %v1297 = vunpack.c.l.b16 %v352
        %v1298 = vunpack.c.h.b16 %v352
        %v1299 = vunpack.c.l.b16 %v353
        %v1300 = vunpack.c.h.b16 %v353
        %v1301 = vunpack.c.l.b16 %v354
        %v1302 = vunpack.c.h.b16 %v354
        %v1303 = vunpack.c.l.b16 %v355
        %v1304 = vunpack.c.h.b16 %v355
        %v1305 = vunpack.c.l.b16 %v356
        %v1306 = vunpack.c.h.b16 %v356
        %v1307 = vunpack.c.l.b16 %v357
        %v1308 = vunpack.c.h.b16 %v357
        %v1309 = vunpack.c.l.b16 %v358
        %v1310 = vunpack.c.h.b16 %v358
        %v1311 = vunpack.c.l.b16 %v359
        %v1312 = vunpack.c.h.b16 %v359
        %v1313 = vunpack.c.l.b16 %v360
        %v1314 = vunpack.c.h.b16 %v360
        %v1315 = vunpack.c.l.b16 %v361
        %v1316 = vunpack.c.h.b16 %v361
        %v1317 = vunpack.c.l.b16 %v362
        %v1318 = vunpack.c.h.b16 %v362
        %v1319 = vunpack.c.l.b16 %v363
        %v1320 = vunpack.c.h.b16 %v363
        %v1321 = vunpack.c.l.b16 %v364
        %v1322 = vunpack.c.h.b16 %v364
        %v1323 = vunpack.c.l.b16 %v365
        %v1324 = vunpack.c.h.b16 %v365
        %v1325 = vunpack.c.l.b16 %v366
        %v1326 = vunpack.c.h.b16 %v366
        %v1327 = vunpack.c.l.b16 %v367
        %v1328 = vunpack.c.h.b16 %v367
        %v1329 = vunpack.c.l.b16 %v368
        %v1330 = vunpack.c.h.b16 %v368
        %v1331 = vunpack.c.l.b16 %v369
        %v1332 = vunpack.c.h.b16 %v369
        %v1333 = vunpack.c.l.b16 %v370
        %v1334 = vunpack.c.h.b16 %v370
        %v1335 = vunpack.c.l.b16 %v371
        %v1336 = vunpack.c.h.b16 %v371
        %v1337 = vunpack.c.l.b16 %v372
        %v1338 = vunpack.c.h.b16 %v372
        %v1339 = vunpack.c.l.b16 %v373
        %v1340 = vunpack.c.h.b16 %v373
        %v1341 = vunpack.c.l.b16 %v374
        %v1342 = vunpack.c.h.b16 %v374
        %v1343 = vunpack.c.l.b16 %v375
        %v1344 = vunpack.c.h.b16 %v375
        %v1345 = vunpack.c.l.b16 %v376
        %v1346 = vunpack.c.h.b16 %v376
        %v1347 = vunpack.c.l.b16 %v377
        %v1348 = vunpack.c.h.b16 %v377
        %v1349 = vunpack.c.l.b16 %v378
        %v1350 = vunpack.c.h.b16 %v378
        %v1351 = vunpack.c.l.b16 %v379
        %v1352 = vunpack.c.h.b16 %v379
        %v1353 = vunpack.c.l.b16 %v380
        %v1354 = vunpack.c.h.b16 %v380
        %v1355 = vunpack.c.l.b16 %v381
        %v1356 = vunpack.c.h.b16 %v381
        %v1357 = vunpack.c.l.b16 %v382
        %v1358 = vunpack.c.h.b16 %v382
        %v1359 = vunpack.c.l.b16 %v383
        %v1360 = vunpack.c.h.b16 %v383
        %v1361 = vunpack.c.l.b16 %v384
        %v1362 = vunpack.c.h.b16 %v384
        %v1363 = vunpack.c.l.b16 %v385
        %v1364 = vunpack.c.h.b16 %v385
        %v1365 = vunpack.c.l.b16 %v386
        %v1366 = vunpack.c.h.b16 %v386
        %v1367 = vunpack.c.l.b16 %v387
        %v1368 = vunpack.c.h.b16 %v387
        %v1369 = vunpack.c.l.b16 %v388
        %v1370 = vunpack.c.h.b16 %v388
        %v1371 = vunpack.c.l.b16 %v389
        %v1372 = vunpack.c.h.b16 %v389
        %v1373 = vunpack.c.l.b16 %v390
        %v1374 = vunpack.c.h.b16 %v390
        %v1375 = vunpack.c.l.b16 %v391
        %v1376 = vunpack.c.h.b16 %v391
        %v1377 = vunpack.c.l.b16 %v392
        %v1378 = vunpack.c.h.b16 %v392
        %v1379 = vunpack.c.l.b16 %v393
        %v1380 = vunpack.c.h.b16 %v393
        %v1381 = vunpack.c.l.b16 %v394
        %v1382 = vunpack.c.h.b16 %v394
        %v1383 = vunpack.c.l.b16 %v395
        %v1384 = vunpack.c.h.b16 %v395
        %v1385 = vunpack.c.l.b16 %v396
        %v1386 = vunpack.c.h.b16 %v396
        %v1387 = vunpack.c.l.b16 %v397
        %v1388 = vunpack.c.h.b16 %v397
        %v1389 = vunpack.c.l.b16 %v398
        %v1390 = vunpack.c.h.b16 %v398
        %v1391 = vunpack.c.l.b16 %v399
        %v1392 = vunpack.c.h.b16 %v399
        %v1393 = vunpack.c.l.b16 %v400
        %v1394 = vunpack.c.h.b16 %v400
        %v1395 = vunpack.c.l.b16 %v401
        %v1396 = vunpack.c.h.b16 %v401
        %v1397 = vunpack.c.l.b16 %v402
        %v1398 = vunpack.c.h.b16 %v402
        %v1399 = vunpack.c.l.b16 %v403
        %v1400 = vunpack.c.h.b16 %v403
        %v1401 = vunpack.c.l.b16 %v404
        %v1402 = vunpack.c.h.b16 %v404
        %v1403 = vunpack.c.l.b16 %v405
        %v1404 = vunpack.c.h.b16 %v405
        %v1405 = vunpack.c.l.b16 %v406
        %v1406 = vunpack.c.h.b16 %v406
        %v1407 = vunpack.c.l.b16 %v407
        %v1408 = vunpack.c.h.b16 %v407
        %v1409 = vunpack.c.l.b16 %v408
        %v1410 = vunpack.c.h.b16 %v408
        %v1411 = vunpack.c.l.b16 %v409
        %v1412 = vunpack.c.h.b16 %v409
        %v1413 = vunpack.c.l.b16 %v410
        %v1414 = vunpack.c.h.b16 %v410
        %v1415 = vunpack.c.l.b16 %v411
        %v1416 = vunpack.c.h.b16 %v411
        %v1417 = vunpack.c.l.b16 %v412
        %v1418 = vunpack.c.h.b16 %v412
        %v1419 = vunpack.c.l.b16 %v413
        %v1420 = vunpack.c.h.b16 %v413
        %v1421 = vunpack.c.l.b16 %v414
        %v1422 = vunpack.c.h.b16 %v414
        %v1423 = vunpack.c.l.b16 %v415
        %v1424 = vunpack.c.h.b16 %v415
        %v1425 = vunpack.c.l.b16 %v416
        %v1426 = vunpack.c.h.b16 %v416
        %v1427 = vunpack.c.l.b16 %v417
        %v1428 = vunpack.c.h.b16 %v417
        %v1429 = vunpack.c.l.b16 %v418
        %v1430 = vunpack.c.h.b16 %v418
        %v1431 = vunpack.c.l.b16 %v419
        %v1432 = vunpack.c.h.b16 %v419
        %v1433 = vunpack.c.l.b16 %v420
        %v1434 = vunpack.c.h.b16 %v420
        %v1435 = vunpack.c.l.b16 %v421
        %v1436 = vunpack.c.h.b16 %v421
        %v1437 = vunpack.c.l.b16 %v422
        %v1438 = vunpack.c.h.b16 %v422
        %v1439 = vunpack.c.l.b16 %v423
        %v1440 = vunpack.c.h.b16 %v423
        %v1441 = vunpack.c.l.b16 %v424
        %v1442 = vunpack.c.h.b16 %v424
        %v1443 = vunpack.c.l.b16 %v425
        %v1444 = vunpack.c.h.b16 %v425
        %v1445 = vunpack.c.l.b16 %v426
        %v1446 = vunpack.c.h.b16 %v426
        %v1447 = vunpack.c.l.b16 %v427
        %v1448 = vunpack.c.h.b16 %v427
        %v1449 = vunpack.c.l.b16 %v428
        %v1450 = vunpack.c.h.b16 %v428
        %v1451 = vunpack.c.l.b16 %v429
        %v1452 = vunpack.c.h.b16 %v429
        %v1453 = vunpack.c.l.b16 %v430
        %v1454 = vunpack.c.h.b16 %v430
        %v1455 = vunpack.c.l.b16 %v431
        %v1456 = vunpack.c.h.b16 %v431
        %v1457 = vunpack.c.l.b16 %v432
        %v1458 = vunpack.c.h.b16 %v432
        %v1459 = vunpack.c.l.b16 %v433
        %v1460 = vunpack.c.h.b16 %v433
        %v1461 = vunpack.c.l.b16 %v434
        %v1462 = vunpack.c.h.b16 %v434
        %v1463 = vunpack.c.l.b16 %v435
        %v1464 = vunpack.c.h.b16 %v435
        %v1465 = vunpack.c.l.b16 %v436
        %v1466 = vunpack.c.h.b16 %v436
        %v1467 = vunpack.c.l.b16 %v437
        %v1468 = vunpack.c.h.b16 %v437
        %v1469 = vunpack.c.l.b16 %v438
        %v1470 = vunpack.c.h.b16 %v438
        %v1471 = vunpack.c.l.b16 %v439
        %v1472 = vunpack.c.h.b16 %v439
        %v1473 = vunpack.c.l.b16 %v440
        %v1474 = vunpack.c.h.b16 %v440
        %v1475 = vunpack.c.l.b16 %v441
        %v1476 = vunpack.c.h.b16 %v441
        %v1477 = vunpack.c.l.b16 %v442
        %v1478 = vunpack.c.h.b16 %v442
        %v1479 = vunpack.c.l.b16 %v443
        %v1480 = vunpack.c.h.b16 %v443
        %v1481 = vunpack.c.l.b16 %v444
        %v1482 = vunpack.c.h.b16 %v444
        %v1483 = vunpack.c.l.b16 %v445
        %v1484 = vunpack.c.h.b16 %v445
        %v1485 = vunpack.c.l.b16 %v446
        %v1486 = vunpack.c.h.b16 %v446
        %v1487 = vunpack.c.l.b16 %v447
        %v1488 = vunpack.c.h.b16 %v447
        %v1489 = vunpack.c.l.b16 %v448
        %v1490 = vunpack.c.h.b16 %v448
        %v1491 = vunpack.c.l.b16 %v449
        %v1492 = vunpack.c.h.b16 %v449
        %v1493 = vunpack.c.l.b16 %v450
        %v1494 = vunpack.c.h.b16 %v450
        %v1495 = vunpack.c.l.b16 %v451
        %v1496 = vunpack.c.h.b16 %v451
        %v1497 = vunpack.c.l.b16 %v452
        %v1498 = vunpack.c.h.b16 %v452
        %v1499 = vunpack.c.l.b16 %v453
        %v1500 = vunpack.c.h.b16 %v453
        %v1501 = vunpack.c.l.b16 %v454
        %v1502 = vunpack.c.h.b16 %v454
        %v1503 = vunpack.c.l.b16 %v455
        %v1504 = vunpack.c.h.b16 %v455
        %v1505 = vunpack.c.l.b16 %v456
        %v1506 = vunpack.c.h.b16 %v456
        %v1507 = vunpack.c.l.b16 %v457
        %v1508 = vunpack.c.h.b16 %v457
        %v1509 = vunpack.c.l.b16 %v458
        %v1510 = vunpack.c.h.b16 %v458
        %v1511 = vunpack.c.l.b16 %v459
        %v1512 = vunpack.c.h.b16 %v459
        %v1513 = vunpack.c.l.b16 %v460
        %v1514 = vunpack.c.h.b16 %v460
        %v1515 = vunpack.c.l.b16 %v461
        %v1516 = vunpack.c.h.b16 %v461
        %v1517 = vunpack.c.l.b16 %v462
        %v1518 = vunpack.c.h.b16 %v462
        %v1519 = vunpack.c.l.b16 %v463
        %v1520 = vunpack.c.h.b16 %v463
        %v1521 = vunpack.c.l.b16 %v464
        %v1522 = vunpack.c.h.b16 %v464
        %v1523 = vunpack.c.l.b16 %v465
        %v1524 = vunpack.c.h.b16 %v465
        %v1525 = vunpack.c.l.b16 %v466
        %v1526 = vunpack.c.h.b16 %v466
        %v1527 = vunpack.c.l.b16 %v467
        %v1528 = vunpack.c.h.b16 %v467
        %v1529 = vunpack.c.l.b16 %v468
        %v1530 = vunpack.c.h.b16 %v468
        %v1531 = vunpack.c.l.b16 %v469
        %v1532 = vunpack.c.h.b16 %v469
        %v1533 = vunpack.c.l.b16 %v470
        %v1534 = vunpack.c.h.b16 %v470
        %v1535 = vunpack.c.l.b16 %v471
        %v1536 = vunpack.c.h.b16 %v471
        %v1537 = vunpack.c.l.b16 %v472
        %v1538 = vunpack.c.h.b16 %v472
        %v1539 = vunpack.c.l.b16 %v473
        %v1540 = vunpack.c.h.b16 %v473
        %v1541 = vunpack.c.l.b16 %v474
        %v1542 = vunpack.c.h.b16 %v474
        %v1543 = vunpack.c.l.b16 %v475
        %v1544 = vunpack.c.h.b16 %v475
        %v1545 = vunpack.c.l.b16 %v476
        %v1546 = vunpack.c.h.b16 %v476
        %v1547 = vunpack.c.l.b16 %v477
        %v1548 = vunpack.c.h.b16 %v477
        %v1549 = vunpack.c.l.b16 %v478
        %v1550 = vunpack.c.h.b16 %v478
        %v1551 = vunpack.c.l.b16 %v479
        %v1552 = vunpack.c.h.b16 %v479
        %v1553 = vunpack.c.l.b16 %v480
        %v1554 = vunpack.c.h.b16 %v480
        %v1555 = vunpack.c.l.b16 %v481
        %v1556 = vunpack.c.h.b16 %v481
        %v1557 = vunpack.c.l.b16 %v482
        %v1558 = vunpack.c.h.b16 %v482
        %v1559 = vunpack.c.l.b16 %v483
        %v1560 = vunpack.c.h.b16 %v483
        %v1561 = vunpack.c.l.b16 %v484
        %v1562 = vunpack.c.h.b16 %v484
        %v1563 = vunpack.c.l.b16 %v485
        %v1564 = vunpack.c.h.b16 %v485
        %v1565 = vunpack.c.l.b16 %v486
        %v1566 = vunpack.c.h.b16 %v486
        %v1567 = vunpack.c.l.b16 %v487
        %v1568 = vunpack.c.h.b16 %v487
        %v1569 = vunpack.c.l.b16 %v488
        %v1570 = vunpack.c.h.b16 %v488
        %v1571 = vunpack.c.l.b16 %v489
        %v1572 = vunpack.c.h.b16 %v489
        %v1573 = vunpack.c.l.b16 %v490
        %v1574 = vunpack.c.h.b16 %v490
        %v1575 = vunpack.c.l.b16 %v491
        %v1576 = vunpack.c.h.b16 %v491
        %v1577 = vunpack.c.l.b16 %v492
        %v1578 = vunpack.c.h.b16 %v492
        %v1579 = vunpack.c.l.b16 %v493
        %v1580 = vunpack.c.h.b16 %v493
        %v1581 = vunpack.c.l.b16 %v494
        %v1582 = vunpack.c.h.b16 %v494
        %v1583 = vunpack.c.l.b16 %v495
        %v1584 = vunpack.c.h.b16 %v495
        %v1585 = vunpack.c.l.b16 %v496
        %v1586 = vunpack.c.h.b16 %v496
        %v1587 = vunpack.c.l.b16 %v497
        %v1588 = vunpack.c.h.b16 %v497
        %v1589 = vunpack.c.l.b16 %v498
        %v1590 = vunpack.c.h.b16 %v498
        %v1591 = vunpack.c.l.b16 %v499
        %v1592 = vunpack.c.h.b16 %v499
        %v1593 = vunpack.c.l.b16 %v500
        %v1594 = vunpack.c.h.b16 %v500
        %v1595 = vunpack.c.l.b16 %v501
        %v1596 = vunpack.c.h.b16 %v501
        %v1597 = vunpack.c.l.b16 %v502
        %v1598 = vunpack.c.h.b16 %v502
        %v1599 = vunpack.c.l.b16 %v503
        %v1600 = vunpack.c.h.b16 %v503
        %v1601 = vunpack.c.l.b16 %v504
        %v1602 = vunpack.c.h.b16 %v504
        %v1603 = vunpack.c.l.b16 %v505
        %v1604 = vunpack.c.h.b16 %v505
        %v1605 = vunpack.c.l.b16 %v506
        %v1606 = vunpack.c.h.b16 %v506
        %v1607 = vunpack.c.l.b16 %v507
        %v1608 = vunpack.c.h.b16 %v507
        %v1609 = vunpack.c.l.b16 %v508
        %v1610 = vunpack.c.h.b16 %v508
        %v1611 = vunpack.c.l.b16 %v509
        %v1612 = vunpack.c.h.b16 %v509
        %v1613 = vunpack.c.l.b16 %v510
        %v1614 = vunpack.c.h.b16 %v510
        %v1615 = vunpack.c.l.b16 %v511
        %v1616 = vunpack.c.h.b16 %v511
        %v1617 = vunpack.c.l.b16 %v512
        %v1618 = vunpack.c.h.b16 %v512
        %v1619 = vunpack.c.l.b16 %v513
        %v1620 = vunpack.c.h.b16 %v513
        %v1621 = vunpack.c.l.b16 %v514
        %v1622 = vunpack.c.h.b16 %v514
        %v1623 = vunpack.c.l.b16 %v515
        %v1624 = vunpack.c.h.b16 %v515
        %v1625 = vunpack.c.l.b16 %v516
        %v1626 = vunpack.c.h.b16 %v516
        %v1627 = vunpack.c.l.b16 %v517
        %v1628 = vunpack.c.h.b16 %v517
        %v1629 = vunpack.c.l.b16 %v518
        %v1630 = vunpack.c.h.b16 %v518
        %v1631 = vunpack.c.l.b16 %v519
        %v1632 = vunpack.c.h.b16 %v519
        %v1633 = vunpack.c.l.b16 %v520
        %v1634 = vunpack.c.h.b16 %v520
        %v1635 = vunpack.c.l.b16 %v521
        %v1636 = vunpack.c.h.b16 %v521
        %v1637 = vunpack.c.l.b16 %v522
        %v1638 = vunpack.c.h.b16 %v522
        %v1639 = vunpack.c.l.b16 %v523
        %v1640 = vunpack.c.h.b16 %v523
        %v1641 = vunpack.c.l.b16 %v524
        %v1642 = vunpack.c.h.b16 %v524
        %v1643 = vunpack.c.l.b16 %v525
        %v1644 = vunpack.c.h.b16 %v525
        %v1645 = vunpack.c.l.b16 %v526
        %v1646 = vunpack.c.h.b16 %v526
        %v1647 = vunpack.c.l.b16 %v527
        %v1648 = vunpack.c.h.b16 %v527
        %v1649 = vunpack.c.l.b16 %v528
        %v1650 = vunpack.c.h.b16 %v528
        %v1651 = vunpack.c.l.b16 %v529
        %v1652 = vunpack.c.h.b16 %v529
        %v1653 = vunpack.c.l.b16 %v530
        %v1654 = vunpack.c.h.b16 %v530
        %v1655 = vunpack.c.l.b16 %v531
        %v1656 = vunpack.c.h.b16 %v531
        %v1657 = vunpack.c.l.b16 %v532
        %v1658 = vunpack.c.h.b16 %v532
        %v1659 = vunpack.c.l.b16 %v533
        %v1660 = vunpack.c.h.b16 %v533
        %v1661 = vunpack.c.l.b16 %v534
        %v1662 = vunpack.c.h.b16 %v534
        %v1663 = vunpack.c.l.b16 %v535
        %v1664 = vunpack.c.h.b16 %v535
        %v1665 = vunpack.c.l.b16 %v536
        %v1666 = vunpack.c.h.b16 %v536
        %v1667 = vunpack.c.l.b16 %v537
        %v1668 = vunpack.c.h.b16 %v537
        %v1669 = vunpack.c.l.b16 %v538
        %v1670 = vunpack.c.h.b16 %v538
        %v1671 = vunpack.c.l.b16 %v539
        %v1672 = vunpack.c.h.b16 %v539
        %v1673 = vunpack.c.l.b16 %v540
        %v1674 = vunpack.c.h.b16 %v540
        %v1675 = vunpack.c.l.b16 %v541
        %v1676 = vunpack.c.h.b16 %v541
        %v1677 = vunpack.c.l.b16 %v542
        %v1678 = vunpack.c.h.b16 %v542
        %v1679 = vunpack.c.l.b16 %v543
        %v1680 = vunpack.c.h.b16 %v543
        %v1681 = vunpack.c.l.b16 %v544
        %v1682 = vunpack.c.h.b16 %v544
        %v1683 = vunpack.c.l.b16 %v545
        %v1684 = vunpack.c.h.b16 %v545
        %v1685 = vunpack.c.l.b16 %v546
        %v1686 = vunpack.c.h.b16 %v546
        %v1687 = vunpack.c.l.b16 %v547
        %v1688 = vunpack.c.h.b16 %v547
        %v1689 = vunpack.c.l.b16 %v548
        %v1690 = vunpack.c.h.b16 %v548
        %v1691 = vunpack.c.l.b16 %v549
        %v1692 = vunpack.c.h.b16 %v549
        %v1693 = vunpack.c.l.b16 %v550
        %v1694 = vunpack.c.h.b16 %v550
        %v1695 = vunpack.c.l.b16 %v551
        %v1696 = vunpack.c.h.b16 %v551
        %v1697 = vunpack.c.l.b16 %v552
        %v1698 = vunpack.c.h.b16 %v552
        %v1699 = vunpack.c.l.b16 %v553
        %v1700 = vunpack.c.h.b16 %v553
        %v1701 = vunpack.c.l.b16 %v554
        %v1702 = vunpack.c.h.b16 %v554
        %v1703 = vunpack.c.l.b16 %v555
        %v1704 = vunpack.c.h.b16 %v555
        %v1705 = vunpack.c.l.b16 %v556
        %v1706 = vunpack.c.h.b16 %v556
        %v1707 = vunpack.c.l.b16 %v557
        %v1708 = vunpack.c.h.b16 %v557
        %v1709 = vunpack.c.l.b16 %v558
        %v1710 = vunpack.c.h.b16 %v558
        %v1711 = vunpack.c.l.b16 %v559
        %v1712 = vunpack.c.h.b16 %v559
        %v1713 = vunpack.c.l.b16 %v560
        %v1714 = vunpack.c.h.b16 %v560
        %v1715 = vunpack.c.l.b16 %v561
        %v1716 = vunpack.c.h.b16 %v561
        %v1717 = vunpack.c.l.b16 %v562
        %v1718 = vunpack.c.h.b16 %v562
        %v1719 = vunpack.c.l.b16 %v563
        %v1720 = vunpack.c.h.b16 %v563
        %v1721 = vunpack.c.l.b16 %v564
        %v1722 = vunpack.c.h.b16 %v564
        %v1723 = vunpack.c.l.b16 %v565
        %v1724 = vunpack.c.h.b16 %v565
        %v1725 = vunpack.c.l.b16 %v566
        %v1726 = vunpack.c.h.b16 %v566
        %v1727 = vunpack.c.l.b16 %v567
        %v1728 = vunpack.c.h.b16 %v567
        %v1729 = vunpack.c.l.b16 %v568
        %v1730 = vunpack.c.h.b16 %v568
        %v1731 = vunpack.c.l.b16 %v569
        %v1732 = vunpack.c.h.b16 %v569
        %v1733 = vunpack.c.l.b16 %v570
        %v1734 = vunpack.c.h.b16 %v570
        %v1735 = vunpack.c.l.b16 %v571
        %v1736 = vunpack.c.h.b16 %v571
        %v1737 = vunpack.c.l.b16 %v572
        %v1738 = vunpack.c.h.b16 %v572
        %v1739 = vunpack.c.l.b16 %v573
        %v1740 = vunpack.c.h.b16 %v573
        %v1741 = vunpack.c.l.b16 %v574
        %v1742 = vunpack.c.h.b16 %v574
        %v1743 = vunpack.c.l.b16 %v575
        %v1744 = vunpack.c.h.b16 %v575
        %v1745 = vunpack.c.l.b16 %v576
        %v1746 = vunpack.c.h.b16 %v576
        %v1747 = vunpack.c.l.b16 %v577
        %v1748 = vunpack.c.h.b16 %v577
        %v1749 = vunpack.c.l.b16 %v578
        %v1750 = vunpack.c.h.b16 %v578
        %v1751 = vunpack.c.l.b16 %v579
        %v1752 = vunpack.c.h.b16 %v579
        %v1753 = vunpack.c.l.b16 %v580
        %v1754 = vunpack.c.h.b16 %v580
        %v1755 = vunpack.c.l.b16 %v581
        %v1756 = vunpack.c.h.b16 %v581
        %v1757 = vunpack.c.l.b16 %v582
        %v1758 = vunpack.c.h.b16 %v582
        %v1759 = vunpack.c.l.b16 %v583
        %v1760 = vunpack.c.h.b16 %v583
        %v1761 = vunpack.c.l.b16 %v584
        %v1762 = vunpack.c.h.b16 %v584
        %v1763 = vunpack.c.l.b16 %v585
        %v1764 = vunpack.c.h.b16 %v585
        %v1765 = vunpack.c.l.b16 %v586
        %v1766 = vunpack.c.h.b16 %v586
        %v1767 = vunpack.c.l.b16 %v587
        %v1768 = vunpack.c.h.b16 %v587
        %v1769 = vunpack.c.l.b16 %v588
        %v1770 = vunpack.c.h.b16 %v588
        %v1771 = vunpack.c.l.b16 %v589
        %v1772 = vunpack.c.h.b16 %v589
        %v1773 = vunpack.c.l.b16 %v590
        %v1774 = vunpack.c.h.b16 %v590
        %v1775 = vunpack.c.l.b16 %v591
        %v1776 = vunpack.c.h.b16 %v591
        %v1777 = vunpack.c.l.b16 %v592
        %v1778 = vunpack.c.h.b16 %v592
        %v1779 = vunpack.c.l.b16 %v593
        %v1780 = vunpack.c.h.b16 %v593
        %v1781 = vunpack.c.l.b16 %v594
        %v1782 = vunpack.c.h.b16 %v594
        %v1783 = vunpack.c.l.b16 %v595
        %v1784 = vunpack.c.h.b16 %v595
        %v1785 = vunpack.c.l.b16 %v596
        %v1786 = vunpack.c.h.b16 %v596
        %v1787 = vunpack.c.l.b16 %v597
        %v1788 = vunpack.c.h.b16 %v597
        %v1789 = vunpack.c.l.b16 %v598
        %v1790 = vunpack.c.h.b16 %v598
        %v1791 = vunpack.c.l.b16 %v599
        %v1792 = vunpack.c.h.b16 %v599
        %v1793 = vunpack.c.l.b16 %v600
        %v1794 = vunpack.c.h.b16 %v600
        %v1795 = vunpack.c.l.b16 %v601
        %v1796 = vunpack.c.h.b16 %v601
        %v1797 = vunpack.c.l.b16 %v602
        %v1798 = vunpack.c.h.b16 %v602
        %v1799 = vunpack.c.l.b16 %v603
        %v1800 = vunpack.c.h.b16 %v603
        %v1801 = vunpack.c.l.b16 %v604
        %v1802 = vunpack.c.h.b16 %v604
        %v1803 = vunpack.c.l.b16 %v605
        %v1804 = vunpack.c.h.b16 %v605
        %v1805 = vunpack.c.l.b16 %v606
        %v1806 = vunpack.c.h.b16 %v606
        %v1807 = vunpack.c.l.b16 %v607
        %v1808 = vunpack.c.h.b16 %v607
        %v1809 = vunpack.c.l.b16 %v608
        %v1810 = vunpack.c.h.b16 %v608
        %v1811 = vunpack.c.l.b16 %v609
        %v1812 = vunpack.c.h.b16 %v609
        %v1813 = vunpack.c.l.b16 %v610
        %v1814 = vunpack.c.h.b16 %v610
        %v1815 = vunpack.c.l.b16 %v611
        %v1816 = vunpack.c.h.b16 %v611
        %v1817 = vunpack.c.l.b16 %v612
        %v1818 = vunpack.c.h.b16 %v612
        %v1819 = vunpack.c.l.b16 %v613
        %v1820 = vunpack.c.h.b16 %v613
        %v1821 = vunpack.c.l.b16 %v614
        %v1822 = vunpack.c.h.b16 %v614
        %v1823 = vunpack.c.l.b16 %v615
        %v1824 = vunpack.c.h.b16 %v615
        %v1825 = vunpack.c.l.b16 %v616
        %v1826 = vunpack.c.h.b16 %v616
        %v1827 = vunpack.c.l.b16 %v617
        %v1828 = vunpack.c.h.b16 %v617
        %v1829 = vunpack.c.l.b16 %v618
        %v1830 = vunpack.c.h.b16 %v618
        %v1831 = vunpack.c.l.b16 %v619
        %v1832 = vunpack.c.h.b16 %v619
        %v1833 = vunpack.c.l.b16 %v620
        %v1834 = vunpack.c.h.b16 %v620
        %v1835 = vunpack.c.l.b16 %v621
        %v1836 = vunpack.c.h.b16 %v621
        %v1837 = vunpack.c.l.b16 %v622
        %v1838 = vunpack.c.h.b16 %v622
        %v1839 = vunpack.c.l.b16 %v623
        %v1840 = vunpack.c.h.b16 %v623
        %v1841 = vunpack.c.l.b16 %v624
        %v1842 = vunpack.c.h.b16 %v624
        %v1843 = vunpack.c.l.b16 %v625
        %v1844 = vunpack.c.h.b16 %v625
        %v1845 = vunpack.c.l.b16 %v626
        %v1846 = vunpack.c.h.b16 %v626
        %v1847 = vunpack.c.l.b16 %v627
        %v1848 = vunpack.c.h.b16 %v627
        %v1849 = vunpack.c.l.b16 %v628
        %v1850 = vunpack.c.h.b16 %v628
        %v1851 = vunpack.c.l.b16 %v629
        %v1852 = vunpack.c.h.b16 %v629
        %v1853 = vunpack.c.l.b16 %v630
        %v1854 = vunpack.c.h.b16 %v630
        %v1855 = vunpack.c.l.b16 %v631
        %v1856 = vunpack.c.h.b16 %v631
        %v1857 = vunpack.c.l.b16 %v632
        %v1858 = vunpack.c.h.b16 %v632
        %v1859 = vunpack.c.l.b16 %v633
        %v1860 = vunpack.c.h.b16 %v633
        %v1861 = vunpack.c.l.b16 %v634
        %v1862 = vunpack.c.h.b16 %v634
        %v1863 = vunpack.c.l.b16 %v635
        %v1864 = vunpack.c.h.b16 %v635
        %v1865 = vunpack.c.l.b16 %v636
        %v1866 = vunpack.c.h.b16 %v636
        %v1867 = vunpack.c.l.b16 %v637
        %v1868 = vunpack.c.h.b16 %v637
        %v1869 = vunpack.c.l.b16 %v638
        %v1870 = vunpack.c.h.b16 %v638
        %v1871 = vunpack.c.l.b16 %v639
        %v1872 = vunpack.c.h.b16 %v639
        %v1873 = vunpack.c.l.b16 %v640
        %v1874 = vunpack.c.h.b16 %v640
        %v1875 = vunpack.c.l.b16 %v641
        %v1876 = vunpack.c.h.b16 %v641
        %v1877 = vunpack.c.l.b16 %v642
        %v1878 = vunpack.c.h.b16 %v642
        %v1879 = vunpack.c.l.b16 %v643
        %v1880 = vunpack.c.h.b16 %v643
        %v1881 = vunpack.c.l.b16 %v644
        %v1882 = vunpack.c.h.b16 %v644
        %v1883 = vunpack.c.l.b16 %v645
        %v1884 = vunpack.c.h.b16 %v645
        %v1885 = vunpack.c.l.b16 %v646
        %v1886 = vunpack.c.h.b16 %v646
        %v1887 = vunpack.c.l.b16 %v647
        %v1888 = vunpack.c.h.b16 %v647
        %v1889 = vunpack.c.l.b16 %v648
        %v1890 = vunpack.c.h.b16 %v648
        %v1891 = vunpack.c.l.b16 %v649
        %v1892 = vunpack.c.h.b16 %v649
        %v1893 = vunpack.c.l.b16 %v650
        %v1894 = vunpack.c.h.b16 %v650
        %v1895 = vunpack.c.l.b16 %v651
        %v1896 = vunpack.c.h.b16 %v651
        %v1897 = vunpack.c.l.b16 %v652
        %v1898 = vunpack.c.h.b16 %v652
        %v1899 = vunpack.c.l.b16 %v653
        %v1900 = vunpack.c.h.b16 %v653
        %v1901 = vunpack.c.l.b16 %v654
        %v1902 = vunpack.c.h.b16 %v654
        %v1903 = vunpack.c.l.b16 %v655
        %v1904 = vunpack.c.h.b16 %v655
        %v1905 = vunpack.c.l.b16 %v656
        %v1906 = vunpack.c.h.b16 %v656
        %v1907 = vunpack.c.l.b16 %v657
        %v1908 = vunpack.c.h.b16 %v657
        %v1909 = vunpack.c.l.b16 %v658
        %v1910 = vunpack.c.h.b16 %v658
        %v1911 = vunpack.c.l.b16 %v659
        %v1912 = vunpack.c.h.b16 %v659
        %v1913 = vunpack.c.l.b16 %v660
        %v1914 = vunpack.c.h.b16 %v660
        %v1915 = vunpack.c.l.b16 %v661
        %v1916 = vunpack.c.h.b16 %v661
        %v1917 = vunpack.c.l.b16 %v662
        %v1918 = vunpack.c.h.b16 %v662
        %v1919 = vunpack.c.l.b16 %v663
        %v1920 = vunpack.c.h.b16 %v663
        %v1921 = vunpack.c.l.b16 %v664
        %v1922 = vunpack.c.h.b16 %v664
        %v1923 = vunpack.c.l.b16 %v665
        %v1924 = vunpack.c.h.b16 %v665
        %v1925 = vunpack.c.l.b16 %v666
        %v1926 = vunpack.c.h.b16 %v666
        %v1927 = vunpack.c.l.b16 %v667
        %v1928 = vunpack.c.h.b16 %v667
        %v1929 = vunpack.c.l.b16 %v668
        %v1930 = vunpack.c.h.b16 %v668
        %v1931 = vunpack.c.l.b16 %v669
        %v1932 = vunpack.c.h.b16 %v669
        %v1933 = vunpack.c.l.b16 %v670
        %v1934 = vunpack.c.h.b16 %v670
        %v1935 = vunpack.c.l.b16 %v671
        %v1936 = vunpack.c.h.b16 %v671
        %v1937 = vunpack.c.l.b16 %v672
        %v1938 = vunpack.c.h.b16 %v672
        %v1939 = vunpack.c.l.b16 %v673
        %v1940 = vunpack.c.h.b16 %v673
        %v1941 = vunpack.c.l.b16 %v674
        %v1942 = vunpack.c.h.b16 %v674
        %v1943 = vunpack.c.l.b16 %v675
        %v1944 = vunpack.c.h.b16 %v675
        %v1945 = vunpack.c.l.b16 %v676
        %v1946 = vunpack.c.h.b16 %v676
        %v1947 = vunpack.c.l.b16 %v677
        %v1948 = vunpack.c.h.b16 %v677
        %v1949 = vunpack.c.l.b16 %v678
        %v1950 = vunpack.c.h.b16 %v678
        %v1951 = vunpack.c.l.b16 %v679
        %v1952 = vunpack.c.h.b16 %v679
        %v1953 = vunpack.c.l.b16 %v680
        %v1954 = vunpack.c.h.b16 %v680
        %v1955 = vunpack.c.l.b16 %v681
        %v1956 = vunpack.c.h.b16 %v681
        %v1957 = vunpack.c.l.b16 %v682
        %v1958 = vunpack.c.h.b16 %v682
        %v1959 = vunpack.c.l.b16 %v683
        %v1960 = vunpack.c.h.b16 %v683
        %v1961 = vunpack.c.l.b16 %v684
        %v1962 = vunpack.c.h.b16 %v684
        %v1963 = vunpack.c.l.b16 %v685
        %v1964 = vunpack.c.h.b16 %v685
        %v1965 = vunpack.c.l.b16 %v686
        %v1966 = vunpack.c.h.b16 %v686
        %v1967 = vunpack.c.l.b16 %v687
        %v1968 = vunpack.c.h.b16 %v687
        %v1969 = vunpack.c.l.b16 %v688
        %v1970 = vunpack.c.h.b16 %v688
        %v1971 = vunpack.c.l.b16 %v689
        %v1972 = vunpack.c.h.b16 %v689
        %v1973 = vunpack.c.l.b16 %v690
        %v1974 = vunpack.c.h.b16 %v690
        %v1975 = vunpack.c.l.b16 %v691
        %v1976 = vunpack.c.h.b16 %v691
        %v1977 = vunpack.c.l.b16 %v692
        %v1978 = vunpack.c.h.b16 %v692
        %v1979 = vunpack.c.l.b16 %v693
        %v1980 = vunpack.c.h.b16 %v693
        %v1981 = vunpack.c.l.b16 %v694
        %v1982 = vunpack.c.h.b16 %v694
        %v1983 = vunpack.c.l.b16 %v695
        %v1984 = vunpack.c.h.b16 %v695
        %v1985 = vunpack.c.l.b16 %v696
        %v1986 = vunpack.c.h.b16 %v696
        %v1987 = vunpack.c.l.b16 %v697
        %v1988 = vunpack.c.h.b16 %v697
        %v1989 = vunpack.c.l.b16 %v698
        %v1990 = vunpack.c.h.b16 %v698
        %v1991 = vunpack.c.l.b16 %v699
        %v1992 = vunpack.c.h.b16 %v699
        %v1993 = vunpack.c.l.b16 %v700
        %v1994 = vunpack.c.h.b16 %v700
        %v1995 = vunpack.c.l.b16 %v701
        %v1996 = vunpack.c.h.b16 %v701
        %v1997 = vunpack.c.l.b16 %v702
        %v1998 = vunpack.c.h.b16 %v702
        %v1999 = vunpack.c.l.b16 %v703
        %v2000 = vunpack.c.h.b16 %v703
        %v2001 = vunpack.c.l.b16 %v704
        %v2002 = vunpack.c.h.b16 %v704
        %v2003 = vunpack.c.l.b16 %v705
        %v2004 = vunpack.c.h.b16 %v705
        %v2005 = vunpack.c.l.b16 %v706
        %v2006 = vunpack.c.h.b16 %v706
        %v2007 = vunpack.c.l.b16 %v707
        %v2008 = vunpack.c.h.b16 %v707
        %v2009 = vunpack.c.l.b16 %v708
        %v2010 = vunpack.c.h.b16 %v708
        %v2011 = vunpack.c.l.b16 %v709
        %v2012 = vunpack.c.h.b16 %v709
        %v2013 = vunpack.c.l.b16 %v710
        %v2014 = vunpack.c.h.b16 %v710
        %v2015 = vunpack.c.l.b16 %v711
        %v2016 = vunpack.c.h.b16 %v711
        %v2017 = vunpack.c.l.b16 %v712
        %v2018 = vunpack.c.h.b16 %v712
        %v2019 = vunpack.c.l.b16 %v713
        %v2020 = vunpack.c.h.b16 %v713
        %v2021 = vunpack.c.l.b16 %v714
        %v2022 = vunpack.c.h.b16 %v714
        %v2023 = vunpack.c.l.b16 %v715
        %v2024 = vunpack.c.h.b16 %v715
        %v2025 = vunpack.c.l.b16 %v716
        %v2026 = vunpack.c.h.b16 %v716
        %v2027 = vunpack.c.l.b16 %v717
        %v2028 = vunpack.c.h.b16 %v717
        %v2029 = vunpack.c.l.b16 %v718
        %v2030 = vunpack.c.h.b16 %v718
        %v2031 = vpack.c.b16 %v1275, %v1263
        %v2032 = vpack.c.b16 %v1276, %v1264
        %v2033 = vpack.c.b16 %v1277, %v1265
        %v2034 = vpack.c.b16 %v1278, %v1266
        %v2035 = vpack.c.b16 %v1279, %v1267
        %v2036 = vpack.c.b16 %v1280, %v1268
        %v2037 = vpack.c.b16 %v1281, %v1269
        %v2038 = vpack.c.b16 %v1282, %v1270
        %v2039 = vpack.c.b16 %v1283, %v1271
        %v2040 = vpack.c.b16 %v1284, %v1272
        %v2041 = vpack.c.b16 %v1285, %v1273
        %v2042 = vpack.c.b16 %v1286, %v1274
        %v2043 = vpack.c.b16 %v1299, %v1287
        %v2044 = vpack.c.b16 %v1300, %v1288
        %v2045 = vpack.c.b16 %v1301, %v1289
        %v2046 = vpack.c.b16 %v1302, %v1290
        %v2047 = vpack.c.b16 %v1303, %v1291
        %v2048 = vpack.c.b16 %v1304, %v1292
        %v2049 = vpack.c.b16 %v1305, %v1293
        %v2050 = vpack.c.b16 %v1306, %v1294
        %v2051 = vpack.c.b16 %v1307, %v1295
        %v2052 = vpack.c.b16 %v1308, %v1296
        %v2053 = vpack.c.b16 %v1309, %v1297
        %v2054 = vpack.c.b16 %v1310, %v1298
        %v2055 = vpack.c.b16 %v1323, %v1311
        %v2056 = vpack.c.b16 %v1324, %v1312
        %v2057 = vpack.c.b16 %v1325, %v1313
        %v2058 = vpack.c.b16 %v1326, %v1314
        %v2059 = vpack.c.b16 %v1327, %v1315
        %v2060 = vpack.c.b16 %v1328, %v1316
        %v2061 = vpack.c.b16 %v1329, %v1317
        %v2062 = vpack.c.b16 %v1330, %v1318
        %v2063 = vpack.c.b16 %v1331, %v1319
        %v2064 = vpack.c.b16 %v1332, %v1320
        %v2065 = vpack.c.b16 %v1333, %v1321
        %v2066 = vpack.c.b16 %v1334, %v1322
        %v2067 = vpack.c.b16 %v1347, %v1335
        %v2068 = vpack.c.b16 %v1348, %v1336
        %v2069 = vpack.c.b16 %v1349, %v1337
        %v2070 = vpack.c.b16 %v1350, %v1338
        %v2071 = vpack.c.b16 %v1351, %v1339
        %v2072 = vpack.c.b16 %v1352, %v1340
        %v2073 = vpack.c.b16 %v1353, %v1341
        %v2074 = vpack.c.b16 %v1354, %v1342
        %v2075 = vpack.c.b16 %v1355, %v1343
        %v2076 = vpack.c.b16 %v1356, %v1344
        %v2077 = vpack.c.b16 %v1357, %v1345
        %v2078 = vpack.c.b16 %v1358, %v1346
        %v2079 = vpack.c.b16 %v1371, %v1359
        %v2080 = vpack.c.b16 %v1372, %v1360
        %v2081 = vpack.c.b16 %v1373, %v1361
        %v2082 = vpack.c.b16 %v1374, %v1362
        %v2083 = vpack.c.b16 %v1375, %v1363
        %v2084 = vpack.c.b16 %v1376, %v1364
        %v2085 = vpack.c.b16 %v1377, %v1365
        %v2086 = vpack.c.b16 %v1378, %v1366
        %v2087 = vpack.c.b16 %v1379, %v1367
        %v2088 = vpack.c.b16 %v1380, %v1368
        %v2089 = vpack.c.b16 %v1381, %v1369
        %v2090 = vpack.c.b16 %v1382, %v1370
        %v2091 = vpack.c.b16 %v1395, %v1383
        %v2092 = vpack.c.b16 %v1396, %v1384
        %v2093 = vpack.c.b16 %v1397, %v1385
        %v2094 = vpack.c.b16 %v1398, %v1386
        %v2095 = vpack.c.b16 %v1399, %v1387
        %v2096 = vpack.c.b16 %v1400, %v1388
        %v2097 = vpack.c.b16 %v1401, %v1389
        %v2098 = vpack.c.b16 %v1402, %v1390
        %v2099 = vpack.c.b16 %v1403, %v1391
        %v2100 = vpack.c.b16 %v1404, %v1392
        %v2101 = vpack.c.b16 %v1405, %v1393
        %v2102 = vpack.c.b16 %v1406, %v1394
        %v2103 = vpack.c.b16 %v1419, %v1407
        %v2104 = vpack.c.b16 %v1420, %v1408
        %v2105 = vpack.c.b16 %v1421, %v1409
        %v2106 = vpack.c.b16 %v1422, %v1410
        %v2107 = vpack.c.b16 %v1423, %v1411
        %v2108 = vpack.c.b16 %v1424, %v1412
        %v2109 = vpack.c.b16 %v1425, %v1413
        %v2110 = vpack.c.b16 %v1426, %v1414
        %v2111 = vpack.c.b16 %v1427, %v1415
        %v2112 = vpack.c.b16 %v1428, %v1416
        %v2113 = vpack.c.b16 %v1429, %v1417
        %v2114 = vpack.c.b16 %v1430, %v1418
        %v2115 = vpack.c.b16 %v1443, %v1431
        %v2116 = vpack.c.b16 %v1444, %v1432
        %v2117 = vpack.c.b16 %v1445, %v1433
        %v2118 = vpack.c.b16 %v1446, %v1434
        %v2119 = vpack.c.b16 %v1447, %v1435
        %v2120 = vpack.c.b16 %v1448, %v1436
        %v2121 = vpack.c.b16 %v1449, %v1437
        %v2122 = vpack.c.b16 %v1450, %v1438
        %v2123 = vpack.c.b16 %v1451, %v1439
        %v2124 = vpack.c.b16 %v1452, %v1440
        %v2125 = vpack.c.b16 %v1453, %v1441
        %v2126 = vpack.c.b16 %v1454, %v1442
        %v2127 = vpack.c.b16 %v1467, %v1455
        %v2128 = vpack.c.b16 %v1468, %v1456
        %v2129 = vpack.c.b16 %v1469, %v1457
        %v2130 = vpack.c.b16 %v1470, %v1458
        %v2131 = vpack.c.b16 %v1471, %v1459
        %v2132 = vpack.c.b16 %v1472, %v1460
        %v2133 = vpack.c.b16 %v1473, %v1461
        %v2134 = vpack.c.b16 %v1474, %v1462
        %v2135 = vpack.c.b16 %v1475, %v1463
        %v2136 = vpack.c.b16 %v1476, %v1464
        %v2137 = vpack.c.b16 %v1477, %v1465
        %v2138 = vpack.c.b16 %v1478, %v1466
        %v2139 = vpack.c.b16 %v1491, %v1479
        %v2140 = vpack.c.b16 %v1492, %v1480
        %v2141 = vpack.c.b16 %v1493, %v1481
        %v2142 = vpack.c.b16 %v1494, %v1482
        %v2143 = vpack.c.b16 %v1495, %v1483
        %v2144 = vpack.c.b16 %v1496, %v1484
        %v2145 = vpack.c.b16 %v1497, %v1485
        %v2146 = vpack.c.b16 %v1498, %v1486
        %v2147 = vpack.c.b16 %v1499, %v1487
        %v2148 = vpack.c.b16 %v1500, %v1488
        %v2149 = vpack.c.b16 %v1501, %v1489
        %v2150 = vpack.c.b16 %v1502, %v1490
        %v2151 = vpack.c.b16 %v1515, %v1503
        %v2152 = vpack.c.b16 %v1516, %v1504
        %v2153 = vpack.c.b16 %v1517, %v1505
        %v2154 = vpack.c.b16 %v1518, %v1506
        %v2155 = vpack.c.b16 %v1519, %v1507
        %v2156 = vpack.c.b16 %v1520, %v1508
        %v2157 = vpack.c.b16 %v1521, %v1509
        %v2158 = vpack.c.b16 %v1522, %v1510
        %v2159 = vpack.c.b16 %v1523, %v1511
        %v2160 = vpack.c.b16 %v1524, %v1512
        %v2161 = vpack.c.b16 %v1525, %v1513
        %v2162 = vpack.c.b16 %v1526, %v1514
        %v2163 = vpack.c.b16 %v1539, %v1527
        %v2164 = vpack.c.b16 %v1540, %v1528
        %v2165 = vpack.c.b16 %v1541, %v1529
        %v2166 = vpack.c.b16 %v1542, %v1530
        %v2167 = vpack.c.b16 %v1543, %v1531
        %v2168 = vpack.c.b16 %v1544, %v1532
        %v2169 = vpack.c.b16 %v1545, %v1533
        %v2170 = vpack.c.b16 %v1546, %v1534
        %v2171 = vpack.c.b16 %v1547, %v1535
        %v2172 = vpack.c.b16 %v1548, %v1536
        %v2173 = vpack.c.b16 %v1549, %v1537
        %v2174 = vpack.c.b16 %v1550, %v1538
        %v2175 = vpack.c.b16 %v1563, %v1551
        %v2176 = vpack.c.b16 %v1564, %v1552
        %v2177 = vpack.c.b16 %v1565, %v1553
        %v2178 = vpack.c.b16 %v1566, %v1554
        %v2179 = vpack.c.b16 %v1567, %v1555
        %v2180 = vpack.c.b16 %v1568, %v1556
        %v2181 = vpack.c.b16 %v1569, %v1557
        %v2182 = vpack.c.b16 %v1570, %v1558
        %v2183 = vpack.c.b16 %v1571, %v1559
        %v2184 = vpack.c.b16 %v1572, %v1560
        %v2185 = vpack.c.b16 %v1573, %v1561
        %v2186 = vpack.c.b16 %v1574, %v1562
        %v2187 = vpack.c.b16 %v1587, %v1575
        %v2188 = vpack.c.b16 %v1588, %v1576
        %v2189 = vpack.c.b16 %v1589, %v1577
        %v2190 = vpack.c.b16 %v1590, %v1578
        %v2191 = vpack.c.b16 %v1591, %v1579
        %v2192 = vpack.c.b16 %v1592, %v1580
        %v2193 = vpack.c.b16 %v1593, %v1581
        %v2194 = vpack.c.b16 %v1594, %v1582
        %v2195 = vpack.c.b16 %v1595, %v1583
        %v2196 = vpack.c.b16 %v1596, %v1584
        %v2197 = vpack.c.b16 %v1597, %v1585
        %v2198 = vpack.c.b16 %v1598, %v1586
        %v2199 = vpack.c.b16 %v1611, %v1599
        %v2200 = vpack.c.b16 %v1612, %v1600
        %v2201 = vpack.c.b16 %v1613, %v1601
        %v2202 = vpack.c.b16 %v1614, %v1602
        %v2203 = vpack.c.b16 %v1615, %v1603
        %v2204 = vpack.c.b16 %v1616, %v1604
        %v2205 = vpack.c.b16 %v1617, %v1605
        %v2206 = vpack.c.b16 %v1618, %v1606
        %v2207 = vpack.c.b16 %v1619, %v1607
        %v2208 = vpack.c.b16 %v1620, %v1608
        %v2209 = vpack.c.b16 %v1621, %v1609
        %v2210 = vpack.c.b16 %v1622, %v1610
        %v2211 = vpack.c.b16 %v1635, %v1623
        %v2212 = vpack.c.b16 %v1636, %v1624
        %v2213 = vpack.c.b16 %v1637, %v1625
        %v2214 = vpack.c.b16 %v1638, %v1626
        %v2215 = vpack.c.b16 %v1639, %v1627
        %v2216 = vpack.c.b16 %v1640, %v1628
        %v2217 = vpack.c.b16 %v1641, %v1629
        %v2218 = vpack.c.b16 %v1642, %v1630
        %v2219 = vpack.c.b16 %v1643, %v1631
        %v2220 = vpack.c.b16 %v1644, %v1632
        %v2221 = vpack.c.b16 %v1645, %v1633
        %v2222 = vpack.c.b16 %v1646, %v1634
        %v2223 = vpack.c.b16 %v1659, %v1647
        %v2224 = vpack.c.b16 %v1660, %v1648
        %v2225 = vpack.c.b16 %v1661, %v1649
        %v2226 = vpack.c.b16 %v1662, %v1650
        %v2227 = vpack.c.b16 %v1663, %v1651
        %v2228 = vpack.c.b16 %v1664, %v1652
        %v2229 = vpack.c.b16 %v1665, %v1653
        %v2230 = vpack.c.b16 %v1666, %v1654
        %v2231 = vpack.c.b16 %v1667, %v1655
        %v2232 = vpack.c.b16 %v1668, %v1656
        %v2233 = vpack.c.b16 %v1669, %v1657
        %v2234 = vpack.c.b16 %v1670, %v1658
        %v2235 = vpack.c.b16 %v1683, %v1671
        %v2236 = vpack.c.b16 %v1684, %v1672
        %v2237 = vpack.c.b16 %v1685, %v1673
        %v2238 = vpack.c.b16 %v1686, %v1674
        %v2239 = vpack.c.b16 %v1687, %v1675
        %v2240 = vpack.c.b16 %v1688, %v1676
        %v2241 = vpack.c.b16 %v1689, %v1677
        %v2242 = vpack.c.b16 %v1690, %v1678
        %v2243 = vpack.c.b16 %v1691, %v1679
        %v2244 = vpack.c.b16 %v1692, %v1680
        %v2245 = vpack.c.b16 %v1693, %v1681
        %v2246 = vpack.c.b16 %v1694, %v1682
        %v2247 = vpack.c.b16 %v1707, %v1695
        %v2248 = vpack.c.b16 %v1708, %v1696
        %v2249 = vpack.c.b16 %v1709, %v1697
        %v2250 = vpack.c.b16 %v1710, %v1698
        %v2251 = vpack.c.b16 %v1711, %v1699
        %v2252 = vpack.c.b16 %v1712, %v1700
        %v2253 = vpack.c.b16 %v1713, %v1701
        %v2254 = vpack.c.b16 %v1714, %v1702
        %v2255 = vpack.c.b16 %v1715, %v1703
        %v2256 = vpack.c.b16 %v1716, %v1704
        %v2257 = vpack.c.b16 %v1717, %v1705
        %v2258 = vpack.c.b16 %v1718, %v1706
        %v2259 = vpack.c.b16 %v1731, %v1719
        %v2260 = vpack.c.b16 %v1732, %v1720
        %v2261 = vpack.c.b16 %v1733, %v1721
        %v2262 = vpack.c.b16 %v1734, %v1722
        %v2263 = vpack.c.b16 %v1735, %v1723
        %v2264 = vpack.c.b16 %v1736, %v1724
        %v2265 = vpack.c.b16 %v1737, %v1725
        %v2266 = vpack.c.b16 %v1738, %v1726
        %v2267 = vpack.c.b16 %v1739, %v1727
        %v2268 = vpack.c.b16 %v1740, %v1728
        %v2269 = vpack.c.b16 %v1741, %v1729
        %v2270 = vpack.c.b16 %v1742, %v1730
        %v2271 = vpack.c.b16 %v1755, %v1743
        %v2272 = vpack.c.b16 %v1756, %v1744
        %v2273 = vpack.c.b16 %v1757, %v1745
        %v2274 = vpack.c.b16 %v1758, %v1746
        %v2275 = vpack.c.b16 %v1759, %v1747
        %v2276 = vpack.c.b16 %v1760, %v1748
        %v2277 = vpack.c.b16 %v1761, %v1749
        %v2278 = vpack.c.b16 %v1762, %v1750
        %v2279 = vpack.c.b16 %v1763, %v1751
        %v2280 = vpack.c.b16 %v1764, %v1752
        %v2281 = vpack.c.b16 %v1765, %v1753
        %v2282 = vpack.c.b16 %v1766, %v1754
        %v2283 = vpack.c.b16 %v1779, %v1767
        %v2284 = vpack.c.b16 %v1780, %v1768
        %v2285 = vpack.c.b16 %v1781, %v1769
        %v2286 = vpack.c.b16 %v1782, %v1770
        %v2287 = vpack.c.b16 %v1783, %v1771
        %v2288 = vpack.c.b16 %v1784, %v1772
        %v2289 = vpack.c.b16 %v1785, %v1773
        %v2290 = vpack.c.b16 %v1786, %v1774
        %v2291 = vpack.c.b16 %v1787, %v1775
        %v2292 = vpack.c.b16 %v1788, %v1776
        %v2293 = vpack.c.b16 %v1789, %v1777
        %v2294 = vpack.c.b16 %v1790, %v1778
        %v2295 = vpack.c.b16 %v1803, %v1791
        %v2296 = vpack.c.b16 %v1804, %v1792
        %v2297 = vpack.c.b16 %v1805, %v1793
        %v2298 = vpack.c.b16 %v1806, %v1794
        %v2299 = vpack.c.b16 %v1807, %v1795
        %v2300 = vpack.c.b16 %v1808, %v1796
        %v2301 = vpack.c.b16 %v1809, %v1797
        %v2302 = vpack.c.b16 %v1810, %v1798
        %v2303 = vpack.c.b16 %v1811, %v1799
        %v2304 = vpack.c.b16 %v1812, %v1800
        %v2305 = vpack.c.b16 %v1813, %v1801
        %v2306 = vpack.c.b16 %v1814, %v1802
        %v2307 = vpack.c.b16 %v1827, %v1815
        %v2308 = vpack.c.b16 %v1828, %v1816
        %v2309 = vpack.c.b16 %v1829, %v1817
        %v2310 = vpack.c.b16 %v1830, %v1818
        %v2311 = vpack.c.b16 %v1831, %v1819
        %v2312 = vpack.c.b16 %v1832, %v1820
        %v2313 = vpack.c.b16 %v1833, %v1821
        %v2314 = vpack.c.b16 %v1834, %v1822
        %v2315 = vpack.c.b16 %v1835, %v1823
        %v2316 = vpack.c.b16 %v1836, %v1824
        %v2317 = vpack.c.b16 %v1837, %v1825
        %v2318 = vpack.c.b16 %v1838, %v1826
        %v2319 = vpack.c.b16 %v1851, %v1839
        %v2320 = vpack.c.b16 %v1852, %v1840
        %v2321 = vpack.c.b16 %v1853, %v1841
        %v2322 = vpack.c.b16 %v1854, %v1842
        %v2323 = vpack.c.b16 %v1855, %v1843
        %v2324 = vpack.c.b16 %v1856, %v1844
        %v2325 = vpack.c.b16 %v1857, %v1845
        %v2326 = vpack.c.b16 %v1858, %v1846
        %v2327 = vpack.c.b16 %v1859, %v1847
        %v2328 = vpack.c.b16 %v1860, %v1848
        %v2329 = vpack.c.b16 %v1861, %v1849
        %v2330 = vpack.c.b16 %v1862, %v1850
        %v2331 = vpack.c.b16 %v1875, %v1863
        %v2332 = vpack.c.b16 %v1876, %v1864
        %v2333 = vpack.c.b16 %v1877, %v1865
        %v2334 = vpack.c.b16 %v1878, %v1866
        %v2335 = vpack.c.b16 %v1879, %v1867
        %v2336 = vpack.c.b16 %v1880, %v1868
        %v2337 = vpack.c.b16 %v1881, %v1869
        %v2338 = vpack.c.b16 %v1882, %v1870
        %v2339 = vpack.c.b16 %v1883, %v1871
        %v2340 = vpack.c.b16 %v1884, %v1872
        %v2341 = vpack.c.b16 %v1885, %v1873
        %v2342 = vpack.c.b16 %v1886, %v1874
        %v2343 = vpack.c.b16 %v1899, %v1887
        %v2344 = vpack.c.b16 %v1900, %v1888
        %v2345 = vpack.c.b16 %v1901, %v1889
        %v2346 = vpack.c.b16 %v1902, %v1890
        %v2347 = vpack.c.b16 %v1903, %v1891
        %v2348 = vpack.c.b16 %v1904, %v1892
        %v2349 = vpack.c.b16 %v1905, %v1893
        %v2350 = vpack.c.b16 %v1906, %v1894
        %v2351 = vpack.c.b16 %v1907, %v1895
        %v2352 = vpack.c.b16 %v1908, %v1896
        %v2353 = vpack.c.b16 %v1909, %v1897
        %v2354 = vpack.c.b16 %v1910, %v1898
        %v2355 = vpack.c.b16 %v1923, %v1911
        %v2356 = vpack.c.b16 %v1924, %v1912
        %v2357 = vpack.c.b16 %v1925, %v1913
        %v2358 = vpack.c.b16 %v1926, %v1914
        %v2359 = vpack.c.b16 %v1927, %v1915
        %v2360 = vpack.c.b16 %v1928, %v1916
        %v2361 = vpack.c.b16 %v1929, %v1917
        %v2362 = vpack.c.b16 %v1930, %v1918
        %v2363 = vpack.c.b16 %v1931, %v1919
        %v2364 = vpack.c.b16 %v1932, %v1920
        %v2365 = vpack.c.b16 %v1933, %v1921
        %v2366 = vpack.c.b16 %v1934, %v1922
        %v2367 = vpack.c.b16 %v1947, %v1935
        %v2368 = vpack.c.b16 %v1948, %v1936
        %v2369 = vpack.c.b16 %v1949, %v1937
        %v2370 = vpack.c.b16 %v1950, %v1938
        %v2371 = vpack.c.b16 %v1951, %v1939
        %v2372 = vpack.c.b16 %v1952, %v1940
        %v2373 = vpack.c.b16 %v1953, %v1941
        %v2374 = vpack.c.b16 %v1954, %v1942
        %v2375 = vpack.c.b16 %v1955, %v1943
        %v2376 = vpack.c.b16 %v1956, %v1944
        %v2377 = vpack.c.b16 %v1957, %v1945
        %v2378 = vpack.c.b16 %v1958, %v1946
        %v2379 = vpack.c.b16 %v1971, %v1959
        %v2380 = vpack.c.b16 %v1972, %v1960
        %v2381 = vpack.c.b16 %v1973, %v1961
        %v2382 = vpack.c.b16 %v1974, %v1962
        %v2383 = vpack.c.b16 %v1975, %v1963
        %v2384 = vpack.c.b16 %v1976, %v1964
        %v2385 = vpack.c.b16 %v1977, %v1965
        %v2386 = vpack.c.b16 %v1978, %v1966
        %v2387 = vpack.c.b16 %v1979, %v1967
        %v2388 = vpack.c.b16 %v1980, %v1968
        %v2389 = vpack.c.b16 %v1981, %v1969
        %v2390 = vpack.c.b16 %v1982, %v1970
        %v2391 = vpack.c.b16 %v1995, %v1983
        %v2392 = vpack.c.b16 %v1996, %v1984
        %v2393 = vpack.c.b16 %v1997, %v1985
        %v2394 = vpack.c.b16 %v1998, %v1986
        %v2395 = vpack.c.b16 %v1999, %v1987
        %v2396 = vpack.c.b16 %v2000, %v1988
        %v2397 = vpack.c.b16 %v2001, %v1989
        %v2398 = vpack.c.b16 %v2002, %v1990
        %v2399 = vpack.c.b16 %v2003, %v1991
        %v2400 = vpack.c.b16 %v2004, %v1992
        %v2401 = vpack.c.b16 %v2005, %v1993
        %v2402 = vpack.c.b16 %v2006, %v1994
        %v2403 = vpack.c.b16 %v2019, %v2007
        %v2404 = vpack.c.b16 %v2020, %v2008
        %v2405 = vpack.c.b16 %v2021, %v2009
        %v2406 = vpack.c.b16 %v2022, %v2010
        %v2407 = vpack.c.b16 %v2023, %v2011
        %v2408 = vpack.c.b16 %v2024, %v2012
        %v2409 = vpack.c.b16 %v2025, %v2013
        %v2410 = vpack.c.b16 %v2026, %v2014
        %v2411 = vpack.c.b16 %v2027, %v2015
        %v2412 = vpack.c.b16 %v2028, %v2016
        %v2413 = vpack.c.b16 %v2029, %v2017
        %v2414 = vpack.c.b16 %v2030, %v2018
        %2799 = vmatprep.subr.bf16.mxu0 %v2032
        %2800 = vmatpush1.bf16.msra.mxu0 %v2031
        %2801 = vmatprep.subr.bf16.mxu0 %v2044
        %2802 = vmatpush1.bf16.msra.mxu0 %v2043
        %2803 = vmatprep.subr.bf16.mxu0 %v2056
        %2804 = vmatpush1.bf16.msra.mxu0 %v2055
        %2805 = vmatprep.subr.bf16.mxu0 %v2068
        %2806 = vmatpush1.bf16.msra.mxu0 %v2067
        %2807 = vmatprep.subr.bf16.mxu0 %v2080
        %2808 = vmatpush1.bf16.msra.mxu0 %v2079
        %2809 = vmatprep.subr.bf16.mxu0 %v2092
        %2810 = vmatpush1.bf16.msra.mxu0 %v2091
        %2811 = vmatprep.subr.bf16.mxu0 %v2104
        %2812 = vmatpush1.bf16.msra.mxu0 %v2103
        %2813 = vmatprep.subr.bf16.mxu0 %v2116
        %2814 = vmatpush1.bf16.msra.mxu0 %v2115
        %2815 = vmatprep.subr.bf16.mxu0 %v2128
        %2816 = vmatpush1.bf16.msra.mxu0 %v2127
        %2817 = vmatprep.subr.bf16.mxu0 %v2140
        %2818 = vmatpush1.bf16.msra.mxu0 %v2139
        %2819 = vmatprep.subr.bf16.mxu0 %v2152
        %2820 = vmatpush1.bf16.msra.mxu0 %v2151
        %2821 = vmatprep.subr.bf16.mxu0 %v2164
        %2822 = vmatpush1.bf16.msra.mxu0 %v2163
        %2823 = vmatprep.subr.bf16.mxu0 %v2176
        %2824 = vmatpush1.bf16.msra.mxu0 %v2175
        %2825 = vmatprep.subr.bf16.mxu0 %v2188
        %2826 = vmatpush1.bf16.msra.mxu0 %v2187
        %2827 = vmatprep.subr.bf16.mxu0 %v2200
        %2828 = vmatpush1.bf16.msra.mxu0 %v2199
        %2829 = vmatprep.subr.bf16.mxu0 %v2212
        %2830 = vmatpush1.bf16.msra.mxu0 %v2211
        %2831 = vmatprep.mubr.bf16.mxu0 %v816
        %2832 = vmatmul.mubr.bf16.gmra.mrb[0].mxu0 %v815
        %v2833 = vpop.f32.mrb[0].mxu0
        %v2834 = vadd.f32 0.0, %v2833
        %v2835 = vpop.f32.mrb[0].mxu0
        %v2836 = vadd.f32 0.0, %v2835
        %v2837 = vpop.f32.mrb[0].mxu0
        %v2838 = vadd.f32 0.0, %v2837
        %v2839 = vpop.f32.mrb[0].mxu0
        %v2840 = vadd.f32 0.0, %v2839
        %2841 = vmatprep.mubr.bf16.mxu0 %v820
        %2842 = vmatmul.mubr.bf16.gmra.mrb[0].mxu0 %v819
        %v2843 = vpop.f32.mrb[0].mxu0
        %v2844 = vadd.f32 0.0, %v2843
        %v2845 = vpop.f32.mrb[0].mxu0
        %v2846 = vadd.f32 0.0, %v2845
        %v2847 = vpop.f32.mrb[0].mxu0
        %v2848 = vadd.f32 0.0, %v2847
        %v2849 = vpop.f32.mrb[0].mxu0
        %v2850 = vadd.f32 0.0, %v2849
        %2851 = vmatprep.mubr.bf16.mxu0 %v824
        %2852 = vmatmul.mubr.bf16.gmra.mrb[0].mxu0 %v823
        %v2853 = vpop.f32.mrb[0].mxu0
        %v2854 = vadd.f32 0.0, %v2853
        %v2855 = vpop.f32.mrb[0].mxu0
        %v2856 = vadd.f32 0.0, %v2855
        %v2857 = vpop.f32.mrb[0].mxu0
        %v2858 = vadd.f32 0.0, %v2857
        %v2859 = vpop.f32.mrb[0].mxu0
        %v2860 = vadd.f32 0.0, %v2859
        %2861 = vmatprep.mubr.bf16.mxu0 %v828
        %2862 = vmatmul.mubr.bf16.gmra.mrb[0].mxu0 %v827
        %v2863 = vpop.f32.mrb[0].mxu0
        %v2864 = vadd.f32 0.0, %v2863
        %v2865 = vpop.f32.mrb[0].mxu0
        %v2866 = vadd.f32 0.0, %v2865
        %v2867 = vpop.f32.mrb[0].mxu0
        %v2868 = vadd.f32 0.0, %v2867
        %v2869 = vpop.f32.mrb[0].mxu0
        %v2870 = vadd.f32 0.0, %v2869
        %2871 = vmatprep.mubr.bf16.mxu0 %v832
        %2872 = vmatmul.mubr.bf16.gmra.mrb[0].mxu0 %v831
        %v2873 = vpop.f32.mrb[0].mxu0
        %v2874 = vadd.f32 0.0, %v2873
        %v2875 = vpop.f32.mrb[0].mxu0
        %v2876 = vadd.f32 0.0, %v2875
        %v2877 = vpop.f32.mrb[0].mxu0
        %v2878 = vadd.f32 0.0, %v2877
        %v2879 = vpop.f32.mrb[0].mxu0
        %v2880 = vadd.f32 0.0, %v2879
        %2881 = vmatprep.mubr.bf16.mxu0 %v836
        %2882 = vmatmul.mubr.bf16.gmra.mrb[0].mxu0 %v835
        %v2883 = vpop.f32.mrb[0].mxu0
        %v2884 = vadd.f32 0.0, %v2883
        %v2885 = vpop.f32.mrb[0].mxu0
        %v2886 = vadd.f32 0.0, %v2885
        %v2887 = vpop.f32.mrb[0].mxu0
        %v2888 = vadd.f32 0.0, %v2887
        %v2889 = vpop.f32.mrb[0].mxu0
        %v2890 = vadd.f32 0.0, %v2889
        %2891 = vmatprep.mubr.bf16.mxu0 %v840
        %2892 = vmatmul.mubr.bf16.gmra.mrb[0].mxu0 %v839
        %v2893 = vpop.f32.mrb[0].mxu0
        %v2894 = vadd.f32 0.0, %v2893
        %v2895 = vpop.f32.mrb[0].mxu0
        %v2896 = vadd.f32 0.0, %v2895
        %v2897 = vpop.f32.mrb[0].mxu0
        %v2898 = vadd.f32 0.0, %v2897
        %v2899 = vpop.f32.mrb[0].mxu0
        %v2900 = vadd.f32 0.0, %v2899
        %2901 = vmatprep.mubr.bf16.mxu0 %v844
        %2902 = vmatmul.mubr.bf16.gmra.mrb[0].mxu0 %v843
        %v2903 = vpop.f32.mrb[0].mxu0
        %v2904 = vadd.f32 0.0, %v2903
        %v2905 = vpop.f32.mrb[0].mxu0
        %v2906 = vadd.f32 0.0, %v2905
        %v2907 = vpop.f32.mrb[0].mxu0
        %v2908 = vadd.f32 0.0, %v2907
        %v2909 = vpop.f32.mrb[0].mxu0
        %v2910 = vadd.f32 0.0, %v2909
        %2911 = vdwg.mxu0
        %2912 = vmatprep.subr.bf16.mxu0 %v2224
        %2913 = vmatpush1.bf16.msra.mxu0 %v2223
        %2914 = vmatprep.subr.bf16.mxu0 %v2236
        %2915 = vmatpush1.bf16.msra.mxu0 %v2235
        %2916 = vmatprep.subr.bf16.mxu0 %v2248
        %2917 = vmatpush1.bf16.msra.mxu0 %v2247
        %2918 = vmatprep.subr.bf16.mxu0 %v2260
        %2919 = vmatpush1.bf16.msra.mxu0 %v2259
        %2920 = vmatprep.subr.bf16.mxu0 %v2272
        %2921 = vmatpush1.bf16.msra.mxu0 %v2271
        %2922 = vmatprep.subr.bf16.mxu0 %v2284
        %2923 = vmatpush1.bf16.msra.mxu0 %v2283
        %2924 = vmatprep.subr.bf16.mxu0 %v2296
        %2925 = vmatpush1.bf16.msra.mxu0 %v2295
        %2926 = vmatprep.subr.bf16.mxu0 %v2308
        %2927 = vmatpush1.bf16.msra.mxu0 %v2307
        %2928 = vmatprep.subr.bf16.mxu0 %v2320
        %2929 = vmatpush1.bf16.msra.mxu0 %v2319
        %2930 = vmatprep.subr.bf16.mxu0 %v2332
        %2931 = vmatpush1.bf16.msra.mxu0 %v2331
        %2932 = vmatprep.subr.bf16.mxu0 %v2344
        %2933 = vmatpush1.bf16.msra.mxu0 %v2343
        %2934 = vmatprep.subr.bf16.mxu0 %v2356
        %2935 = vmatpush1.bf16.msra.mxu0 %v2355
        %2936 = vmatprep.subr.bf16.mxu0 %v2368
        %2937 = vmatpush1.bf16.msra.mxu0 %v2367
        %2938 = vmatprep.subr.bf16.mxu0 %v2380
        %2939 = vmatpush1.bf16.msra.mxu0 %v2379
        %2940 = vmatprep.subr.bf16.mxu0 %v2392
        %2941 = vmatpush1.bf16.msra.mxu0 %v2391
        %2942 = vmatprep.subr.bf16.mxu0 %v2404
        %2943 = vmatpush1.bf16.msra.mxu0 %v2403
        %2944 = vmatprep.mubr.bf16.mxu0 %v818
        %2945 = vmatmul.mubr.bf16.gmra.mrb[0].mxu0 %v817
        %v2946 = vpop.f32.mrb[0].mxu0
        %v2947 = vadd.f32 %v2834, %v2946
        %v2948 = vpop.f32.mrb[0].mxu0
        %v2949 = vadd.f32 %v2836, %v2948
        %v2950 = vpop.f32.mrb[0].mxu0
        %v2951 = vadd.f32 %v2838, %v2950
        %v2952 = vpop.f32.mrb[0].mxu0
        %v2953 = vadd.f32 %v2840, %v2952
        %2954 = vmatprep.mubr.bf16.mxu0 %v822
        %2955 = vmatmul.mubr.bf16.gmra.mrb[0].mxu0 %v821
        %v2956 = vpop.f32.mrb[0].mxu0
        %v2957 = vadd.f32 %v2844, %v2956
        %v2958 = vpop.f32.mrb[0].mxu0
        %v2959 = vadd.f32 %v2846, %v2958
        %v2960 = vpop.f32.mrb[0].mxu0
        %v2961 = vadd.f32 %v2848, %v2960
        %v2962 = vpop.f32.mrb[0].mxu0
        %v2963 = vadd.f32 %v2850, %v2962
        %2964 = vmatprep.mubr.bf16.mxu0 %v826
        %2965 = vmatmul.mubr.bf16.gmra.mrb[0].mxu0 %v825
        %v2966 = vpop.f32.mrb[0].mxu0
        %v2967 = vadd.f32 %v2854, %v2966
        %v2968 = vpop.f32.mrb[0].mxu0
        %v2969 = vadd.f32 %v2856, %v2968
        %v2970 = vpop.f32.mrb[0].mxu0
        %v2971 = vadd.f32 %v2858, %v2970
        %v2972 = vpop.f32.mrb[0].mxu0
        %v2973 = vadd.f32 %v2860, %v2972
        %2974 = vmatprep.mubr.bf16.mxu0 %v830
        %2975 = vmatmul.mubr.bf16.gmra.mrb[0].mxu0 %v829
        %v2976 = vpop.f32.mrb[0].mxu0
        %v2977 = vadd.f32 %v2864, %v2976
        %v2978 = vpop.f32.mrb[0].mxu0
        %v2979 = vadd.f32 %v2866, %v2978
        %v2980 = vpop.f32.mrb[0].mxu0
        %v2981 = vadd.f32 %v2868, %v2980
        %v2982 = vpop.f32.mrb[0].mxu0
        %v2983 = vadd.f32 %v2870, %v2982
        %2984 = vmatprep.mubr.bf16.mxu0 %v834
        %2985 = vmatmul.mubr.bf16.gmra.mrb[0].mxu0 %v833
        %v2986 = vpop.f32.mrb[0].mxu0
        %v2987 = vadd.f32 %v2874, %v2986
        %v2988 = vpop.f32.mrb[0].mxu0
        %v2989 = vadd.f32 %v2876, %v2988
        %v2990 = vpop.f32.mrb[0].mxu0
        %v2991 = vadd.f32 %v2878, %v2990
        %v2992 = vpop.f32.mrb[0].mxu0
        %v2993 = vadd.f32 %v2880, %v2992
        %2994 = vmatprep.mubr.bf16.mxu0 %v838
        %2995 = vmatmul.mubr.bf16.gmra.mrb[0].mxu0 %v837
        %v2996 = vpop.f32.mrb[0].mxu0
        %v2997 = vadd.f32 %v2884, %v2996
        %v2998 = vpop.f32.mrb[0].mxu0
        %v2999 = vadd.f32 %v2886, %v2998
        %v3000 = vpop.f32.mrb[0].mxu0
        %v3001 = vadd.f32 %v2888, %v3000
        %v3002 = vpop.f32.mrb[0].mxu0
        %v3003 = vadd.f32 %v2890, %v3002
        %3004 = vmatprep.mubr.bf16.mxu0 %v842
        %3005 = vmatmul.mubr.bf16.gmra.mrb[0].mxu0 %v841
        %v3006 = vpop.f32.mrb[0].mxu0
        %v3007 = vadd.f32 %v2894, %v3006
        %v3008 = vpop.f32.mrb[0].mxu0
        %v3009 = vadd.f32 %v2896, %v3008
        %v3010 = vpop.f32.mrb[0].mxu0
        %v3011 = vadd.f32 %v2898, %v3010
        %v3012 = vpop.f32.mrb[0].mxu0
        %v3013 = vadd.f32 %v2900, %v3012
        %3014 = vmatprep.mubr.bf16.mxu0 %v846
        %3015 = vmatmul.mubr.bf16.gmra.mrb[0].mxu0 %v845
        %v3016 = vpop.f32.mrb[0].mxu0
        %v3017 = vadd.f32 %v2904, %v3016
        %v3018 = vpop.f32.mrb[0].mxu0
        %v3019 = vadd.f32 %v2906, %v3018
        %v3020 = vpop.f32.mrb[0].mxu0
        %v3021 = vadd.f32 %v2908, %v3020
        %v3022 = vpop.f32.mrb[0].mxu0
        %v3023 = vadd.f32 %v2910, %v3022
        %3024 = vdwg.mxu0
        %3025 = vmatprep.subr.bf16.mxu0 %v2034
        %3026 = vmatpush1.bf16.msra.mxu0 %v2033
        %3027 = vmatprep.subr.bf16.mxu0 %v2046
        %3028 = vmatpush1.bf16.msra.mxu0 %v2045
        %3029 = vmatprep.subr.bf16.mxu0 %v2058
        %3030 = vmatpush1.bf16.msra.mxu0 %v2057
        %3031 = vmatprep.subr.bf16.mxu0 %v2070
        %3032 = vmatpush1.bf16.msra.mxu0 %v2069
        %3033 = vmatprep.subr.bf16.mxu0 %v2082
        %3034 = vmatpush1.bf16.msra.mxu0 %v2081
        %3035 = vmatprep.subr.bf16.mxu0 %v2094
        %3036 = vmatpush1.bf16.msra.mxu0 %v2093
        %3037 = vmatprep.subr.bf16.mxu0 %v2106
        %3038 = vmatpush1.bf16.msra.mxu0 %v2105
        %3039 = vmatprep.subr.bf16.mxu0 %v2118
        %3040 = vmatpush1.bf16.msra.mxu0 %v2117
        %3041 = vmatprep.subr.bf16.mxu0 %v2130
        %3042 = vmatpush1.bf16.msra.mxu0 %v2129
        %3043 = vmatprep.subr.bf16.mxu0 %v2142
        %3044 = vmatpush1.bf16.msra.mxu0 %v2141
        %3045 = vmatprep.subr.bf16.mxu0 %v2154
        %3046 = vmatpush1.bf16.msra.mxu0 %v2153
        %3047 = vmatprep.subr.bf16.mxu0 %v2166
        %3048 = vmatpush1.bf16.msra.mxu0 %v2165
        %3049 = vmatprep.subr.bf16.mxu0 %v2178
        %3050 = vmatpush1.bf16.msra.mxu0 %v2177
        %3051 = vmatprep.subr.bf16.mxu0 %v2190
        %3052 = vmatpush1.bf16.msra.mxu0 %v2189
        %3053 = vmatprep.subr.bf16.mxu0 %v2202
        %3054 = vmatpush1.bf16.msra.mxu0 %v2201
        %3055 = vmatprep.subr.bf16.mxu0 %v2214
        %3056 = vmatpush1.bf16.msra.mxu0 %v2213
        %3057 = vmatprep.mubr.bf16.mxu0 %v816
        %3058 = vmatmul.mubr.bf16.gmra.mrb[0].mxu0 %v815
        %v3059 = vpop.f32.mrb[0].mxu0
        %v3060 = vadd.f32 0.0, %v3059
        %v3061 = vpop.f32.mrb[0].mxu0
        %v3062 = vadd.f32 0.0, %v3061
        %v3063 = vpop.f32.mrb[0].mxu0
        %v3064 = vadd.f32 0.0, %v3063
        %v3065 = vpop.f32.mrb[0].mxu0
        %v3066 = vadd.f32 0.0, %v3065
        %3067 = vmatprep.mubr.bf16.mxu0 %v820
        %3068 = vmatmul.mubr.bf16.gmra.mrb[0].mxu0 %v819
        %v3069 = vpop.f32.mrb[0].mxu0
        %v3070 = vadd.f32 0.0, %v3069
        %v3071 = vpop.f32.mrb[0].mxu0
        %v3072 = vadd.f32 0.0, %v3071
        %v3073 = vpop.f32.mrb[0].mxu0
        %v3074 = vadd.f32 0.0, %v3073
        %v3075 = vpop.f32.mrb[0].mxu0
        %v3076 = vadd.f32 0.0, %v3075
        %3077 = vmatprep.mubr.bf16.mxu0 %v824
        %3078 = vmatmul.mubr.bf16.gmra.mrb[0].mxu0 %v823
        %v3079 = vpop.f32.mrb[0].mxu0
        %v3080 = vadd.f32 0.0, %v3079
        %v3081 = vpop.f32.mrb[0].mxu0
        %v3082 = vadd.f32 0.0, %v3081
        %v3083 = vpop.f32.mrb[0].mxu0
        %v3084 = vadd.f32 0.0, %v3083
        %v3085 = vpop.f32.mrb[0].mxu0
        %v3086 = vadd.f32 0.0, %v3085
        %3087 = vmatprep.mubr.bf16.mxu0 %v828
        %3088 = vmatmul.mubr.bf16.gmra.mrb[0].mxu0 %v827
        %v3089 = vpop.f32.mrb[0].mxu0
        %v3090 = vadd.f32 0.0, %v3089
        %v3091 = vpop.f32.mrb[0].mxu0
        %v3092 = vadd.f32 0.0, %v3091
        %v3093 = vpop.f32.mrb[0].mxu0
        %v3094 = vadd.f32 0.0, %v3093
        %v3095 = vpop.f32.mrb[0].mxu0
        %v3096 = vadd.f32 0.0, %v3095
        %3097 = vmatprep.mubr.bf16.mxu0 %v832
        %3098 = vmatmul.mubr.bf16.gmra.mrb[0].mxu0 %v831
        %v3099 = vpop.f32.mrb[0].mxu0
        %v3100 = vadd.f32 0.0, %v3099
        %v3101 = vpop.f32.mrb[0].mxu0
        %v3102 = vadd.f32 0.0, %v3101
        %v3103 = vpop.f32.mrb[0].mxu0
        %v3104 = vadd.f32 0.0, %v3103
        %v3105 = vpop.f32.mrb[0].mxu0
        %v3106 = vadd.f32 0.0, %v3105
        %3107 = vmatprep.mubr.bf16.mxu0 %v836
        %3108 = vmatmul.mubr.bf16.gmra.mrb[0].mxu0 %v835
        %v3109 = vpop.f32.mrb[0].mxu0
        %v3110 = vadd.f32 0.0, %v3109
        %v3111 = vpop.f32.mrb[0].mxu0
        %v3112 = vadd.f32 0.0, %v3111
        %v3113 = vpop.f32.mrb[0].mxu0
        %v3114 = vadd.f32 0.0, %v3113
        %v3115 = vpop.f32.mrb[0].mxu0
        %v3116 = vadd.f32 0.0, %v3115
        %3117 = vmatprep.mubr.bf16.mxu0 %v840
        %3118 = vmatmul.mubr.bf16.gmra.mrb[0].mxu0 %v839
        %v3119 = vpop.f32.mrb[0].mxu0
        %v3120 = vadd.f32 0.0, %v3119
        %v3121 = vpop.f32.mrb[0].mxu0
        %v3122 = vadd.f32 0.0, %v3121
        %v3123 = vpop.f32.mrb[0].mxu0
        %v3124 = vadd.f32 0.0, %v3123
        %v3125 = vpop.f32.mrb[0].mxu0
        %v3126 = vadd.f32 0.0, %v3125
        %3127 = vmatprep.mubr.bf16.mxu0 %v844
        %3128 = vmatmul.mubr.bf16.gmra.mrb[0].mxu0 %v843
        %v3129 = vpop.f32.mrb[0].mxu0
        %v3130 = vadd.f32 0.0, %v3129
        %v3131 = vpop.f32.mrb[0].mxu0
        %v3132 = vadd.f32 0.0, %v3131
        %v3133 = vpop.f32.mrb[0].mxu0
        %v3134 = vadd.f32 0.0, %v3133
        %v3135 = vpop.f32.mrb[0].mxu0
        %v3136 = vadd.f32 0.0, %v3135
        %3137 = vdwg.mxu0
        %3138 = vmatprep.subr.bf16.mxu0 %v2226
        %3139 = vmatpush1.bf16.msra.mxu0 %v2225
        %3140 = vmatprep.subr.bf16.mxu0 %v2238
        %3141 = vmatpush1.bf16.msra.mxu0 %v2237
        %3142 = vmatprep.subr.bf16.mxu0 %v2250
        %3143 = vmatpush1.bf16.msra.mxu0 %v2249
        %3144 = vmatprep.subr.bf16.mxu0 %v2262
        %3145 = vmatpush1.bf16.msra.mxu0 %v2261
        %3146 = vmatprep.subr.bf16.mxu0 %v2274
        %3147 = vmatpush1.bf16.msra.mxu0 %v2273
        %3148 = vmatprep.subr.bf16.mxu0 %v2286
        %3149 = vmatpush1.bf16.msra.mxu0 %v2285
        %3150 = vmatprep.subr.bf16.mxu0 %v2298
        %3151 = vmatpush1.bf16.msra.mxu0 %v2297
        %3152 = vmatprep.subr.bf16.mxu0 %v2310
        %3153 = vmatpush1.bf16.msra.mxu0 %v2309
        %3154 = vmatprep.subr.bf16.mxu0 %v2322
        %3155 = vmatpush1.bf16.msra.mxu0 %v2321
        %3156 = vmatprep.subr.bf16.mxu0 %v2334
        %3157 = vmatpush1.bf16.msra.mxu0 %v2333
        %3158 = vmatprep.subr.bf16.mxu0 %v2346
        %3159 = vmatpush1.bf16.msra.mxu0 %v2345
        %3160 = vmatprep.subr.bf16.mxu0 %v2358
        %3161 = vmatpush1.bf16.msra.mxu0 %v2357
        %3162 = vmatprep.subr.bf16.mxu0 %v2370
        %3163 = vmatpush1.bf16.msra.mxu0 %v2369
        %3164 = vmatprep.subr.bf16.mxu0 %v2382
        %3165 = vmatpush1.bf16.msra.mxu0 %v2381
        %3166 = vmatprep.subr.bf16.mxu0 %v2394
        %3167 = vmatpush1.bf16.msra.mxu0 %v2393
        %3168 = vmatprep.subr.bf16.mxu0 %v2406
        %3169 = vmatpush1.bf16.msra.mxu0 %v2405
        %3170 = vmatprep.mubr.bf16.mxu0 %v818
        %3171 = vmatmul.mubr.bf16.gmra.mrb[0].mxu0 %v817
        %v3172 = vpop.f32.mrb[0].mxu0
        %v3173 = vadd.f32 %v3060, %v3172
        %v3174 = vpop.f32.mrb[0].mxu0
        %v3175 = vadd.f32 %v3062, %v3174
        %v3176 = vpop.f32.mrb[0].mxu0
        %v3177 = vadd.f32 %v3064, %v3176
        %v3178 = vpop.f32.mrb[0].mxu0
        %v3179 = vadd.f32 %v3066, %v3178
        %3180 = vmatprep.mubr.bf16.mxu0 %v822
        %3181 = vmatmul.mubr.bf16.gmra.mrb[0].mxu0 %v821
        %v3182 = vpop.f32.mrb[0].mxu0
        %v3183 = vadd.f32 %v3070, %v3182
        %v3184 = vpop.f32.mrb[0].mxu0
        %v3185 = vadd.f32 %v3072, %v3184
        %v3186 = vpop.f32.mrb[0].mxu0
        %v3187 = vadd.f32 %v3074, %v3186
        %v3188 = vpop.f32.mrb[0].mxu0
        %v3189 = vadd.f32 %v3076, %v3188
        %3190 = vmatprep.mubr.bf16.mxu0 %v826
        %3191 = vmatmul.mubr.bf16.gmra.mrb[0].mxu0 %v825
        %v3192 = vpop.f32.mrb[0].mxu0
        %v3193 = vadd.f32 %v3080, %v3192
        %v3194 = vpop.f32.mrb[0].mxu0
        %v3195 = vadd.f32 %v3082, %v3194
        %v3196 = vpop.f32.mrb[0].mxu0
        %v3197 = vadd.f32 %v3084, %v3196
        %v3198 = vpop.f32.mrb[0].mxu0
        %v3199 = vadd.f32 %v3086, %v3198
        %3200 = vmatprep.mubr.bf16.mxu0 %v830
        %3201 = vmatmul.mubr.bf16.gmra.mrb[0].mxu0 %v829
        %v3202 = vpop.f32.mrb[0].mxu0
        %v3203 = vadd.f32 %v3090, %v3202
        %v3204 = vpop.f32.mrb[0].mxu0
        %v3205 = vadd.f32 %v3092, %v3204
        %v3206 = vpop.f32.mrb[0].mxu0
        %v3207 = vadd.f32 %v3094, %v3206
        %v3208 = vpop.f32.mrb[0].mxu0
        %v3209 = vadd.f32 %v3096, %v3208
        %3210 = vmatprep.mubr.bf16.mxu0 %v834
        %3211 = vmatmul.mubr.bf16.gmra.mrb[0].mxu0 %v833
        %v3212 = vpop.f32.mrb[0].mxu0
        %v3213 = vadd.f32 %v3100, %v3212
        %v3214 = vpop.f32.mrb[0].mxu0
        %v3215 = vadd.f32 %v3102, %v3214
        %v3216 = vpop.f32.mrb[0].mxu0
        %v3217 = vadd.f32 %v3104, %v3216
        %v3218 = vpop.f32.mrb[0].mxu0
        %v3219 = vadd.f32 %v3106, %v3218
        %3220 = vmatprep.mubr.bf16.mxu0 %v838
        %3221 = vmatmul.mubr.bf16.gmra.mrb[0].mxu0 %v837
        %v3222 = vpop.f32.mrb[0].mxu0
        %v3223 = vadd.f32 %v3110, %v3222
        %v3224 = vpop.f32.mrb[0].mxu0
        %v3225 = vadd.f32 %v3112, %v3224
        %v3226 = vpop.f32.mrb[0].mxu0
        %v3227 = vadd.f32 %v3114, %v3226
        %v3228 = vpop.f32.mrb[0].mxu0
        %v3229 = vadd.f32 %v3116, %v3228
        %3230 = vmatprep.mubr.bf16.mxu0 %v842
        %3231 = vmatmul.mubr.bf16.gmra.mrb[0].mxu0 %v841
        %v3232 = vpop.f32.mrb[0].mxu0
        %v3233 = vadd.f32 %v3120, %v3232
        %v3234 = vpop.f32.mrb[0].mxu0
        %v3235 = vadd.f32 %v3122, %v3234
        %v3236 = vpop.f32.mrb[0].mxu0
        %v3237 = vadd.f32 %v3124, %v3236
        %v3238 = vpop.f32.mrb[0].mxu0
        %v3239 = vadd.f32 %v3126, %v3238
        %3240 = vmatprep.mubr.bf16.mxu0 %v846
        %3241 = vmatmul.mubr.bf16.gmra.mrb[0].mxu0 %v845
        %v3242 = vpop.f32.mrb[0].mxu0
        %v3243 = vadd.f32 %v3130, %v3242
        %v3244 = vpop.f32.mrb[0].mxu0
        %v3245 = vadd.f32 %v3132, %v3244
        %v3246 = vpop.f32.mrb[0].mxu0
        %v3247 = vadd.f32 %v3134, %v3246
        %v3248 = vpop.f32.mrb[0].mxu0
        %v3249 = vadd.f32 %v3136, %v3248
        %3250 = vdwg.mxu0
        %3251 = vmatprep.subr.bf16.mxu0 %v2036
        %3252 = vmatpush1.bf16.msra.mxu0 %v2035
        %3253 = vmatprep.subr.bf16.mxu0 %v2048
        %3254 = vmatpush1.bf16.msra.mxu0 %v2047
        %3255 = vmatprep.subr.bf16.mxu0 %v2060
        %3256 = vmatpush1.bf16.msra.mxu0 %v2059
        %3257 = vmatprep.subr.bf16.mxu0 %v2072
        %3258 = vmatpush1.bf16.msra.mxu0 %v2071
        %3259 = vmatprep.subr.bf16.mxu0 %v2084
        %3260 = vmatpush1.bf16.msra.mxu0 %v2083
        %3261 = vmatprep.subr.bf16.mxu0 %v2096
        %3262 = vmatpush1.bf16.msra.mxu0 %v2095
        %3263 = vmatprep.subr.bf16.mxu0 %v2108
        %3264 = vmatpush1.bf16.msra.mxu0 %v2107
        %3265 = vmatprep.subr.bf16.mxu0 %v2120
        %3266 = vmatpush1.bf16.msra.mxu0 %v2119
        %3267 = vmatprep.subr.bf16.mxu0 %v2132
        %3268 = vmatpush1.bf16.msra.mxu0 %v2131
        %3269 = vmatprep.subr.bf16.mxu0 %v2144
        %3270 = vmatpush1.bf16.msra.mxu0 %v2143
        %3271 = vmatprep.subr.bf16.mxu0 %v2156
        %3272 = vmatpush1.bf16.msra.mxu0 %v2155
        %3273 = vmatprep.subr.bf16.mxu0 %v2168
        %3274 = vmatpush1.bf16.msra.mxu0 %v2167
        %3275 = vmatprep.subr.bf16.mxu0 %v2180
        %3276 = vmatpush1.bf16.msra.mxu0 %v2179
        %3277 = vmatprep.subr.bf16.mxu0 %v2192
        %3278 = vmatpush1.bf16.msra.mxu0 %v2191
        %3279 = vmatprep.subr.bf16.mxu0 %v2204
        %3280 = vmatpush1.bf16.msra.mxu0 %v2203
        %3281 = vmatprep.subr.bf16.mxu0 %v2216
        %3282 = vmatpush1.bf16.msra.mxu0 %v2215
        %3283 = vmatprep.mubr.bf16.mxu0 %v816
        %3284 = vmatmul.mubr.bf16.gmra.mrb[0].mxu0 %v815
        %v3285 = vpop.f32.mrb[0].mxu0
        %v3286 = vadd.f32 0.0, %v3285
        %v3287 = vpop.f32.mrb[0].mxu0
        %v3288 = vadd.f32 0.0, %v3287
        %v3289 = vpop.f32.mrb[0].mxu0
        %v3290 = vadd.f32 0.0, %v3289
        %v3291 = vpop.f32.mrb[0].mxu0
        %v3292 = vadd.f32 0.0, %v3291
        %3293 = vmatprep.mubr.bf16.mxu0 %v820
        %3294 = vmatmul.mubr.bf16.gmra.mrb[0].mxu0 %v819
        %v3295 = vpop.f32.mrb[0].mxu0
        %v3296 = vadd.f32 0.0, %v3295
        %v3297 = vpop.f32.mrb[0].mxu0
        %v3298 = vadd.f32 0.0, %v3297
        %v3299 = vpop.f32.mrb[0].mxu0
        %v3300 = vadd.f32 0.0, %v3299
        %v3301 = vpop.f32.mrb[0].mxu0
        %v3302 = vadd.f32 0.0, %v3301
        %3303 = vmatprep.mubr.bf16.mxu0 %v824
        %3304 = vmatmul.mubr.bf16.gmra.mrb[0].mxu0 %v823
        %v3305 = vpop.f32.mrb[0].mxu0
        %v3306 = vadd.f32 0.0, %v3305
        %v3307 = vpop.f32.mrb[0].mxu0
        %v3308 = vadd.f32 0.0, %v3307
        %v3309 = vpop.f32.mrb[0].mxu0
        %v3310 = vadd.f32 0.0, %v3309
        %v3311 = vpop.f32.mrb[0].mxu0
        %v3312 = vadd.f32 0.0, %v3311
        %3313 = vmatprep.mubr.bf16.mxu0 %v828
        %3314 = vmatmul.mubr.bf16.gmra.mrb[0].mxu0 %v827
        %v3315 = vpop.f32.mrb[0].mxu0
        %v3316 = vadd.f32 0.0, %v3315
        %v3317 = vpop.f32.mrb[0].mxu0
        %v3318 = vadd.f32 0.0, %v3317
        %v3319 = vpop.f32.mrb[0].mxu0
        %v3320 = vadd.f32 0.0, %v3319
        %v3321 = vpop.f32.mrb[0].mxu0
        %v3322 = vadd.f32 0.0, %v3321
        %3323 = vmatprep.mubr.bf16.mxu0 %v832
        %3324 = vmatmul.mubr.bf16.gmra.mrb[0].mxu0 %v831
        %v3325 = vpop.f32.mrb[0].mxu0
        %v3326 = vadd.f32 0.0, %v3325
        %v3327 = vpop.f32.mrb[0].mxu0
        %v3328 = vadd.f32 0.0, %v3327
        %v3329 = vpop.f32.mrb[0].mxu0
        %v3330 = vadd.f32 0.0, %v3329
        %v3331 = vpop.f32.mrb[0].mxu0
        %v3332 = vadd.f32 0.0, %v3331
        %3333 = vmatprep.mubr.bf16.mxu0 %v836
        %3334 = vmatmul.mubr.bf16.gmra.mrb[0].mxu0 %v835
        %v3335 = vpop.f32.mrb[0].mxu0
        %v3336 = vadd.f32 0.0, %v3335
        %v3337 = vpop.f32.mrb[0].mxu0
        %v3338 = vadd.f32 0.0, %v3337
        %v3339 = vpop.f32.mrb[0].mxu0
        %v3340 = vadd.f32 0.0, %v3339
        %v3341 = vpop.f32.mrb[0].mxu0
        %v3342 = vadd.f32 0.0, %v3341
        %3343 = vmatprep.mubr.bf16.mxu0 %v840
        %3344 = vmatmul.mubr.bf16.gmra.mrb[0].mxu0 %v839
        %v3345 = vpop.f32.mrb[0].mxu0
        %v3346 = vadd.f32 0.0, %v3345
        %v3347 = vpop.f32.mrb[0].mxu0
        %v3348 = vadd.f32 0.0, %v3347
        %v3349 = vpop.f32.mrb[0].mxu0
        %v3350 = vadd.f32 0.0, %v3349
        %v3351 = vpop.f32.mrb[0].mxu0
        %v3352 = vadd.f32 0.0, %v3351
        %3353 = vmatprep.mubr.bf16.mxu0 %v844
        %3354 = vmatmul.mubr.bf16.gmra.mrb[0].mxu0 %v843
        %v3355 = vpop.f32.mrb[0].mxu0
        %v3356 = vadd.f32 0.0, %v3355
        %v3357 = vpop.f32.mrb[0].mxu0
        %v3358 = vadd.f32 0.0, %v3357
        %v3359 = vpop.f32.mrb[0].mxu0
        %v3360 = vadd.f32 0.0, %v3359
        %v3361 = vpop.f32.mrb[0].mxu0
        %v3362 = vadd.f32 0.0, %v3361
        %3363 = vdwg.mxu0
        %3364 = vmatprep.subr.bf16.mxu0 %v2228
        %3365 = vmatpush1.bf16.msra.mxu0 %v2227
        %3366 = vmatprep.subr.bf16.mxu0 %v2240
        %3367 = vmatpush1.bf16.msra.mxu0 %v2239
        %3368 = vmatprep.subr.bf16.mxu0 %v2252
        %3369 = vmatpush1.bf16.msra.mxu0 %v2251
        %3370 = vmatprep.subr.bf16.mxu0 %v2264
        %3371 = vmatpush1.bf16.msra.mxu0 %v2263
        %3372 = vmatprep.subr.bf16.mxu0 %v2276
        %3373 = vmatpush1.bf16.msra.mxu0 %v2275
        %3374 = vmatprep.subr.bf16.mxu0 %v2288
        %3375 = vmatpush1.bf16.msra.mxu0 %v2287
        %3376 = vmatprep.subr.bf16.mxu0 %v2300
        %3377 = vmatpush1.bf16.msra.mxu0 %v2299
        %3378 = vmatprep.subr.bf16.mxu0 %v2312
        %3379 = vmatpush1.bf16.msra.mxu0 %v2311
        %3380 = vmatprep.subr.bf16.mxu0 %v2324
        %3381 = vmatpush1.bf16.msra.mxu0 %v2323
        %3382 = vmatprep.subr.bf16.mxu0 %v2336
        %3383 = vmatpush1.bf16.msra.mxu0 %v2335
        %3384 = vmatprep.subr.bf16.mxu0 %v2348
        %3385 = vmatpush1.bf16.msra.mxu0 %v2347
        %3386 = vmatprep.subr.bf16.mxu0 %v2360
        %3387 = vmatpush1.bf16.msra.mxu0 %v2359
        %3388 = vmatprep.subr.bf16.mxu0 %v2372
        %3389 = vmatpush1.bf16.msra.mxu0 %v2371
        %3390 = vmatprep.subr.bf16.mxu0 %v2384
        %3391 = vmatpush1.bf16.msra.mxu0 %v2383
        %3392 = vmatprep.subr.bf16.mxu0 %v2396
        %3393 = vmatpush1.bf16.msra.mxu0 %v2395
        %3394 = vmatprep.subr.bf16.mxu0 %v2408
        %3395 = vmatpush1.bf16.msra.mxu0 %v2407
        %3396 = vmatprep.mubr.bf16.mxu0 %v818
        %3397 = vmatmul.mubr.bf16.gmra.mrb[0].mxu0 %v817
        %v3398 = vpop.f32.mrb[0].mxu0
        %v3399 = vadd.f32 %v3286, %v3398
        %v3400 = vpop.f32.mrb[0].mxu0
        %v3401 = vadd.f32 %v3288, %v3400
        %v3402 = vpop.f32.mrb[0].mxu0
        %v3403 = vadd.f32 %v3290, %v3402
        %v3404 = vpop.f32.mrb[0].mxu0
        %v3405 = vadd.f32 %v3292, %v3404
        %3406 = vmatprep.mubr.bf16.mxu0 %v822
        %3407 = vmatmul.mubr.bf16.gmra.mrb[0].mxu0 %v821
        %v3408 = vpop.f32.mrb[0].mxu0
        %v3409 = vadd.f32 %v3296, %v3408
        %v3410 = vpop.f32.mrb[0].mxu0
        %v3411 = vadd.f32 %v3298, %v3410
        %v3412 = vpop.f32.mrb[0].mxu0
        %v3413 = vadd.f32 %v3300, %v3412
        %v3414 = vpop.f32.mrb[0].mxu0
        %v3415 = vadd.f32 %v3302, %v3414
        %3416 = vmatprep.mubr.bf16.mxu0 %v826
        %3417 = vmatmul.mubr.bf16.gmra.mrb[0].mxu0 %v825
        %v3418 = vpop.f32.mrb[0].mxu0
        %v3419 = vadd.f32 %v3306, %v3418
        %v3420 = vpop.f32.mrb[0].mxu0
        %v3421 = vadd.f32 %v3308, %v3420
        %v3422 = vpop.f32.mrb[0].mxu0
        %v3423 = vadd.f32 %v3310, %v3422
        %v3424 = vpop.f32.mrb[0].mxu0
        %v3425 = vadd.f32 %v3312, %v3424
        %3426 = vmatprep.mubr.bf16.mxu0 %v830
        %3427 = vmatmul.mubr.bf16.gmra.mrb[0].mxu0 %v829
        %v3428 = vpop.f32.mrb[0].mxu0
        %v3429 = vadd.f32 %v3316, %v3428
        %v3430 = vpop.f32.mrb[0].mxu0
        %v3431 = vadd.f32 %v3318, %v3430
        %v3432 = vpop.f32.mrb[0].mxu0
        %v3433 = vadd.f32 %v3320, %v3432
        %v3434 = vpop.f32.mrb[0].mxu0
        %v3435 = vadd.f32 %v3322, %v3434
        %3436 = vmatprep.mubr.bf16.mxu0 %v834
        %3437 = vmatmul.mubr.bf16.gmra.mrb[0].mxu0 %v833
        %v3438 = vpop.f32.mrb[0].mxu0
        %v3439 = vadd.f32 %v3326, %v3438
        %v3440 = vpop.f32.mrb[0].mxu0
        %v3441 = vadd.f32 %v3328, %v3440
        %v3442 = vpop.f32.mrb[0].mxu0
        %v3443 = vadd.f32 %v3330, %v3442
        %v3444 = vpop.f32.mrb[0].mxu0
        %v3445 = vadd.f32 %v3332, %v3444
        %3446 = vmatprep.mubr.bf16.mxu0 %v838
        %3447 = vmatmul.mubr.bf16.gmra.mrb[0].mxu0 %v837
        %v3448 = vpop.f32.mrb[0].mxu0
        %v3449 = vadd.f32 %v3336, %v3448
        %v3450 = vpop.f32.mrb[0].mxu0
        %v3451 = vadd.f32 %v3338, %v3450
        %v3452 = vpop.f32.mrb[0].mxu0
        %v3453 = vadd.f32 %v3340, %v3452
        %v3454 = vpop.f32.mrb[0].mxu0
        %v3455 = vadd.f32 %v3342, %v3454
        %3456 = vmatprep.mubr.bf16.mxu0 %v842
        %3457 = vmatmul.mubr.bf16.gmra.mrb[0].mxu0 %v841
        %v3458 = vpop.f32.mrb[0].mxu0
        %v3459 = vadd.f32 %v3346, %v3458
        %v3460 = vpop.f32.mrb[0].mxu0
        %v3461 = vadd.f32 %v3348, %v3460
        %v3462 = vpop.f32.mrb[0].mxu0
        %v3463 = vadd.f32 %v3350, %v3462
        %v3464 = vpop.f32.mrb[0].mxu0
        %v3465 = vadd.f32 %v3352, %v3464
        %3466 = vmatprep.mubr.bf16.mxu0 %v846
        %3467 = vmatmul.mubr.bf16.gmra.mrb[0].mxu0 %v845
        %v3468 = vpop.f32.mrb[0].mxu0
        %v3469 = vadd.f32 %v3356, %v3468
        %v3470 = vpop.f32.mrb[0].mxu0
        %v3471 = vadd.f32 %v3358, %v3470
        %v3472 = vpop.f32.mrb[0].mxu0
        %v3473 = vadd.f32 %v3360, %v3472
        %v3474 = vpop.f32.mrb[0].mxu0
        %v3475 = vadd.f32 %v3362, %v3474
        %3476 = vdwg.mxu0
        %3477 = vmatprep.subr.bf16.mxu0 %v2038
        %3478 = vmatpush1.bf16.msra.mxu0 %v2037
        %3479 = vmatprep.subr.bf16.mxu0 %v2050
        %3480 = vmatpush1.bf16.msra.mxu0 %v2049
        %3481 = vmatprep.subr.bf16.mxu0 %v2062
        %3482 = vmatpush1.bf16.msra.mxu0 %v2061
        %3483 = vmatprep.subr.bf16.mxu0 %v2074
        %3484 = vmatpush1.bf16.msra.mxu0 %v2073
        %3485 = vmatprep.subr.bf16.mxu0 %v2086
        %3486 = vmatpush1.bf16.msra.mxu0 %v2085
        %3487 = vmatprep.subr.bf16.mxu0 %v2098
        %3488 = vmatpush1.bf16.msra.mxu0 %v2097
        %3489 = vmatprep.subr.bf16.mxu0 %v2110
        %3490 = vmatpush1.bf16.msra.mxu0 %v2109
        %3491 = vmatprep.subr.bf16.mxu0 %v2122
        %3492 = vmatpush1.bf16.msra.mxu0 %v2121
        %3493 = vmatprep.subr.bf16.mxu0 %v2134
        %3494 = vmatpush1.bf16.msra.mxu0 %v2133
        %3495 = vmatprep.subr.bf16.mxu0 %v2146
        %3496 = vmatpush1.bf16.msra.mxu0 %v2145
        %3497 = vmatprep.subr.bf16.mxu0 %v2158
        %3498 = vmatpush1.bf16.msra.mxu0 %v2157
        %3499 = vmatprep.subr.bf16.mxu0 %v2170
        %3500 = vmatpush1.bf16.msra.mxu0 %v2169
        %3501 = vmatprep.subr.bf16.mxu0 %v2182
        %3502 = vmatpush1.bf16.msra.mxu0 %v2181
        %3503 = vmatprep.subr.bf16.mxu0 %v2194
        %3504 = vmatpush1.bf16.msra.mxu0 %v2193
        %3505 = vmatprep.subr.bf16.mxu0 %v2206
        %3506 = vmatpush1.bf16.msra.mxu0 %v2205
        %3507 = vmatprep.subr.bf16.mxu0 %v2218
        %3508 = vmatpush1.bf16.msra.mxu0 %v2217
        %3509 = vmatprep.mubr.bf16.mxu0 %v816
        %3510 = vmatmul.mubr.bf16.gmra.mrb[0].mxu0 %v815
        %v3511 = vpop.f32.mrb[0].mxu0
        %v3512 = vadd.f32 0.0, %v3511
        %v3513 = vpop.f32.mrb[0].mxu0
        %v3514 = vadd.f32 0.0, %v3513
        %v3515 = vpop.f32.mrb[0].mxu0
        %v3516 = vadd.f32 0.0, %v3515
        %v3517 = vpop.f32.mrb[0].mxu0
        %v3518 = vadd.f32 0.0, %v3517
        %3519 = vmatprep.mubr.bf16.mxu0 %v820
        %3520 = vmatmul.mubr.bf16.gmra.mrb[0].mxu0 %v819
        %v3521 = vpop.f32.mrb[0].mxu0
        %v3522 = vadd.f32 0.0, %v3521
        %v3523 = vpop.f32.mrb[0].mxu0
        %v3524 = vadd.f32 0.0, %v3523
        %v3525 = vpop.f32.mrb[0].mxu0
        %v3526 = vadd.f32 0.0, %v3525
        %v3527 = vpop.f32.mrb[0].mxu0
        %v3528 = vadd.f32 0.0, %v3527
        %3529 = vmatprep.mubr.bf16.mxu0 %v824
        %3530 = vmatmul.mubr.bf16.gmra.mrb[0].mxu0 %v823
        %v3531 = vpop.f32.mrb[0].mxu0
        %v3532 = vadd.f32 0.0, %v3531
        %v3533 = vpop.f32.mrb[0].mxu0
        %v3534 = vadd.f32 0.0, %v3533
        %v3535 = vpop.f32.mrb[0].mxu0
        %v3536 = vadd.f32 0.0, %v3535
        %v3537 = vpop.f32.mrb[0].mxu0
        %v3538 = vadd.f32 0.0, %v3537
        %3539 = vmatprep.mubr.bf16.mxu0 %v828
        %3540 = vmatmul.mubr.bf16.gmra.mrb[0].mxu0 %v827
        %v3541 = vpop.f32.mrb[0].mxu0
        %v3542 = vadd.f32 0.0, %v3541
        %v3543 = vpop.f32.mrb[0].mxu0
        %v3544 = vadd.f32 0.0, %v3543
        %v3545 = vpop.f32.mrb[0].mxu0
        %v3546 = vadd.f32 0.0, %v3545
        %v3547 = vpop.f32.mrb[0].mxu0
        %v3548 = vadd.f32 0.0, %v3547
        %3549 = vmatprep.mubr.bf16.mxu0 %v832
        %3550 = vmatmul.mubr.bf16.gmra.mrb[0].mxu0 %v831
        %v3551 = vpop.f32.mrb[0].mxu0
        %v3552 = vadd.f32 0.0, %v3551
        %v3553 = vpop.f32.mrb[0].mxu0
        %v3554 = vadd.f32 0.0, %v3553
        %v3555 = vpop.f32.mrb[0].mxu0
        %v3556 = vadd.f32 0.0, %v3555
        %v3557 = vpop.f32.mrb[0].mxu0
        %v3558 = vadd.f32 0.0, %v3557
        %3559 = vmatprep.mubr.bf16.mxu0 %v836
        %3560 = vmatmul.mubr.bf16.gmra.mrb[0].mxu0 %v835
        %v3561 = vpop.f32.mrb[0].mxu0
        %v3562 = vadd.f32 0.0, %v3561
        %v3563 = vpop.f32.mrb[0].mxu0
        %v3564 = vadd.f32 0.0, %v3563
        %v3565 = vpop.f32.mrb[0].mxu0
        %v3566 = vadd.f32 0.0, %v3565
        %v3567 = vpop.f32.mrb[0].mxu0
        %v3568 = vadd.f32 0.0, %v3567
        %3569 = vmatprep.mubr.bf16.mxu0 %v840
        %3570 = vmatmul.mubr.bf16.gmra.mrb[0].mxu0 %v839
        %v3571 = vpop.f32.mrb[0].mxu0
        %v3572 = vadd.f32 0.0, %v3571
        %v3573 = vpop.f32.mrb[0].mxu0
        %v3574 = vadd.f32 0.0, %v3573
        %v3575 = vpop.f32.mrb[0].mxu0
        %v3576 = vadd.f32 0.0, %v3575
        %v3577 = vpop.f32.mrb[0].mxu0
        %v3578 = vadd.f32 0.0, %v3577
        %3579 = vmatprep.mubr.bf16.mxu0 %v844
        %3580 = vmatmul.mubr.bf16.gmra.mrb[0].mxu0 %v843
        %v3581 = vpop.f32.mrb[0].mxu0
        %v3582 = vadd.f32 0.0, %v3581
        %v3583 = vpop.f32.mrb[0].mxu0
        %v3584 = vadd.f32 0.0, %v3583
        %v3585 = vpop.f32.mrb[0].mxu0
        %v3586 = vadd.f32 0.0, %v3585
        %v3587 = vpop.f32.mrb[0].mxu0
        %v3588 = vadd.f32 0.0, %v3587
        %3589 = vdwg.mxu0
        %3590 = vmatprep.subr.bf16.mxu0 %v2230
        %3591 = vmatpush1.bf16.msra.mxu0 %v2229
        %3592 = vmatprep.subr.bf16.mxu0 %v2242
        %3593 = vmatpush1.bf16.msra.mxu0 %v2241
        %3594 = vmatprep.subr.bf16.mxu0 %v2254
        %3595 = vmatpush1.bf16.msra.mxu0 %v2253
        %3596 = vmatprep.subr.bf16.mxu0 %v2266
        %3597 = vmatpush1.bf16.msra.mxu0 %v2265
        %3598 = vmatprep.subr.bf16.mxu0 %v2278
        %3599 = vmatpush1.bf16.msra.mxu0 %v2277
        %3600 = vmatprep.subr.bf16.mxu0 %v2290
        %3601 = vmatpush1.bf16.msra.mxu0 %v2289
        %3602 = vmatprep.subr.bf16.mxu0 %v2302
        %3603 = vmatpush1.bf16.msra.mxu0 %v2301
        %3604 = vmatprep.subr.bf16.mxu0 %v2314
        %3605 = vmatpush1.bf16.msra.mxu0 %v2313
        %3606 = vmatprep.subr.bf16.mxu0 %v2326
        %3607 = vmatpush1.bf16.msra.mxu0 %v2325
        %3608 = vmatprep.subr.bf16.mxu0 %v2338
        %3609 = vmatpush1.bf16.msra.mxu0 %v2337
        %3610 = vmatprep.subr.bf16.mxu0 %v2350
        %3611 = vmatpush1.bf16.msra.mxu0 %v2349
        %3612 = vmatprep.subr.bf16.mxu0 %v2362
        %3613 = vmatpush1.bf16.msra.mxu0 %v2361
        %3614 = vmatprep.subr.bf16.mxu0 %v2374
        %3615 = vmatpush1.bf16.msra.mxu0 %v2373
        %3616 = vmatprep.subr.bf16.mxu0 %v2386
        %3617 = vmatpush1.bf16.msra.mxu0 %v2385
        %3618 = vmatprep.subr.bf16.mxu0 %v2398
        %3619 = vmatpush1.bf16.msra.mxu0 %v2397
        %3620 = vmatprep.subr.bf16.mxu0 %v2410
        %3621 = vmatpush1.bf16.msra.mxu0 %v2409
        %3622 = vmatprep.mubr.bf16.mxu0 %v818
        %3623 = vmatmul.mubr.bf16.gmra.mrb[0].mxu0 %v817
        %v3624 = vpop.f32.mrb[0].mxu0
        %v3625 = vadd.f32 %v3512, %v3624
        %v3626 = vpop.f32.mrb[0].mxu0
        %v3627 = vadd.f32 %v3514, %v3626
        %v3628 = vpop.f32.mrb[0].mxu0
        %v3629 = vadd.f32 %v3516, %v3628
        %v3630 = vpop.f32.mrb[0].mxu0
        %v3631 = vadd.f32 %v3518, %v3630
        %3632 = vmatprep.mubr.bf16.mxu0 %v822
        %3633 = vmatmul.mubr.bf16.gmra.mrb[0].mxu0 %v821
        %v3634 = vpop.f32.mrb[0].mxu0
        %v3635 = vadd.f32 %v3522, %v3634
        %v3636 = vpop.f32.mrb[0].mxu0
        %v3637 = vadd.f32 %v3524, %v3636
        %v3638 = vpop.f32.mrb[0].mxu0
        %v3639 = vadd.f32 %v3526, %v3638
        %v3640 = vpop.f32.mrb[0].mxu0
        %v3641 = vadd.f32 %v3528, %v3640
        %3642 = vmatprep.mubr.bf16.mxu0 %v826
        %3643 = vmatmul.mubr.bf16.gmra.mrb[0].mxu0 %v825
        %v3644 = vpop.f32.mrb[0].mxu0
        %v3645 = vadd.f32 %v3532, %v3644
        %v3646 = vpop.f32.mrb[0].mxu0
        %v3647 = vadd.f32 %v3534, %v3646
        %v3648 = vpop.f32.mrb[0].mxu0
        %v3649 = vadd.f32 %v3536, %v3648
        %v3650 = vpop.f32.mrb[0].mxu0
        %v3651 = vadd.f32 %v3538, %v3650
        %3652 = vmatprep.mubr.bf16.mxu0 %v830
        %3653 = vmatmul.mubr.bf16.gmra.mrb[0].mxu0 %v829
        %v3654 = vpop.f32.mrb[0].mxu0
        %v3655 = vadd.f32 %v3542, %v3654
        %v3656 = vpop.f32.mrb[0].mxu0
        %v3657 = vadd.f32 %v3544, %v3656
        %v3658 = vpop.f32.mrb[0].mxu0
        %v3659 = vadd.f32 %v3546, %v3658
        %v3660 = vpop.f32.mrb[0].mxu0
        %v3661 = vadd.f32 %v3548, %v3660
        %3662 = vmatprep.mubr.bf16.mxu0 %v834
        %3663 = vmatmul.mubr.bf16.gmra.mrb[0].mxu0 %v833
        %v3664 = vpop.f32.mrb[0].mxu0
        %v3665 = vadd.f32 %v3552, %v3664
        %v3666 = vpop.f32.mrb[0].mxu0
        %v3667 = vadd.f32 %v3554, %v3666
        %v3668 = vpop.f32.mrb[0].mxu0
        %v3669 = vadd.f32 %v3556, %v3668
        %v3670 = vpop.f32.mrb[0].mxu0
        %v3671 = vadd.f32 %v3558, %v3670
        %3672 = vmatprep.mubr.bf16.mxu0 %v838
        %3673 = vmatmul.mubr.bf16.gmra.mrb[0].mxu0 %v837
        %v3674 = vpop.f32.mrb[0].mxu0
        %v3675 = vadd.f32 %v3562, %v3674
        %v3676 = vpop.f32.mrb[0].mxu0
        %v3677 = vadd.f32 %v3564, %v3676
        %v3678 = vpop.f32.mrb[0].mxu0
        %v3679 = vadd.f32 %v3566, %v3678
        %v3680 = vpop.f32.mrb[0].mxu0
        %v3681 = vadd.f32 %v3568, %v3680
        %3682 = vmatprep.mubr.bf16.mxu0 %v842
        %3683 = vmatmul.mubr.bf16.gmra.mrb[0].mxu0 %v841
        %v3684 = vpop.f32.mrb[0].mxu0
        %v3685 = vadd.f32 %v3572, %v3684
        %v3686 = vpop.f32.mrb[0].mxu0
        %v3687 = vadd.f32 %v3574, %v3686
        %v3688 = vpop.f32.mrb[0].mxu0
        %v3689 = vadd.f32 %v3576, %v3688
        %v3690 = vpop.f32.mrb[0].mxu0
        %v3691 = vadd.f32 %v3578, %v3690
        %3692 = vmatprep.mubr.bf16.mxu0 %v846
        %3693 = vmatmul.mubr.bf16.gmra.mrb[0].mxu0 %v845
        %v3694 = vpop.f32.mrb[0].mxu0
        %v3695 = vadd.f32 %v3582, %v3694
        %v3696 = vpop.f32.mrb[0].mxu0
        %v3697 = vadd.f32 %v3584, %v3696
        %v3698 = vpop.f32.mrb[0].mxu0
        %v3699 = vadd.f32 %v3586, %v3698
        %v3700 = vpop.f32.mrb[0].mxu0
        %v3701 = vadd.f32 %v3588, %v3700
        %3702 = vdwg.mxu0
        %3703 = vmatprep.subr.bf16.mxu0 %v2040
        %3704 = vmatpush1.bf16.msra.mxu0 %v2039
        %3705 = vmatprep.subr.bf16.mxu0 %v2052
        %3706 = vmatpush1.bf16.msra.mxu0 %v2051
        %3707 = vmatprep.subr.bf16.mxu0 %v2064
        %3708 = vmatpush1.bf16.msra.mxu0 %v2063
        %3709 = vmatprep.subr.bf16.mxu0 %v2076
        %3710 = vmatpush1.bf16.msra.mxu0 %v2075
        %3711 = vmatprep.subr.bf16.mxu0 %v2088
        %3712 = vmatpush1.bf16.msra.mxu0 %v2087
        %3713 = vmatprep.subr.bf16.mxu0 %v2100
        %3714 = vmatpush1.bf16.msra.mxu0 %v2099
        %3715 = vmatprep.subr.bf16.mxu0 %v2112
        %3716 = vmatpush1.bf16.msra.mxu0 %v2111
        %3717 = vmatprep.subr.bf16.mxu0 %v2124
        %3718 = vmatpush1.bf16.msra.mxu0 %v2123
        %3719 = vmatprep.subr.bf16.mxu0 %v2136
        %3720 = vmatpush1.bf16.msra.mxu0 %v2135
        %3721 = vmatprep.subr.bf16.mxu0 %v2148
        %3722 = vmatpush1.bf16.msra.mxu0 %v2147
        %3723 = vmatprep.subr.bf16.mxu0 %v2160
        %3724 = vmatpush1.bf16.msra.mxu0 %v2159
        %3725 = vmatprep.subr.bf16.mxu0 %v2172
        %3726 = vmatpush1.bf16.msra.mxu0 %v2171
        %3727 = vmatprep.subr.bf16.mxu0 %v2184
        %3728 = vmatpush1.bf16.msra.mxu0 %v2183
        %3729 = vmatprep.subr.bf16.mxu0 %v2196
        %3730 = vmatpush1.bf16.msra.mxu0 %v2195
        %3731 = vmatprep.subr.bf16.mxu0 %v2208
        %3732 = vmatpush1.bf16.msra.mxu0 %v2207
        %3733 = vmatprep.subr.bf16.mxu0 %v2220
        %3734 = vmatpush1.bf16.msra.mxu0 %v2219
        %3735 = vmatprep.mubr.bf16.mxu0 %v816
        %3736 = vmatmul.mubr.bf16.gmra.mrb[0].mxu0 %v815
        %v3737 = vpop.f32.mrb[0].mxu0
        %v3738 = vadd.f32 0.0, %v3737
        %v3739 = vpop.f32.mrb[0].mxu0
        %v3740 = vadd.f32 0.0, %v3739
        %v3741 = vpop.f32.mrb[0].mxu0
        %v3742 = vadd.f32 0.0, %v3741
        %v3743 = vpop.f32.mrb[0].mxu0
        %v3744 = vadd.f32 0.0, %v3743
        %3745 = vmatprep.mubr.bf16.mxu0 %v820
        %3746 = vmatmul.mubr.bf16.gmra.mrb[0].mxu0 %v819
        %v3747 = vpop.f32.mrb[0].mxu0
        %v3748 = vadd.f32 0.0, %v3747
        %v3749 = vpop.f32.mrb[0].mxu0
        %v3750 = vadd.f32 0.0, %v3749
        %v3751 = vpop.f32.mrb[0].mxu0
        %v3752 = vadd.f32 0.0, %v3751
        %v3753 = vpop.f32.mrb[0].mxu0
        %v3754 = vadd.f32 0.0, %v3753
        %3755 = vmatprep.mubr.bf16.mxu0 %v824
        %3756 = vmatmul.mubr.bf16.gmra.mrb[0].mxu0 %v823
        %v3757 = vpop.f32.mrb[0].mxu0
        %v3758 = vadd.f32 0.0, %v3757
        %v3759 = vpop.f32.mrb[0].mxu0
        %v3760 = vadd.f32 0.0, %v3759
        %v3761 = vpop.f32.mrb[0].mxu0
        %v3762 = vadd.f32 0.0, %v3761
        %v3763 = vpop.f32.mrb[0].mxu0
        %v3764 = vadd.f32 0.0, %v3763
        %3765 = vmatprep.mubr.bf16.mxu0 %v828
        %3766 = vmatmul.mubr.bf16.gmra.mrb[0].mxu0 %v827
        %v3767 = vpop.f32.mrb[0].mxu0
        %v3768 = vadd.f32 0.0, %v3767
        %v3769 = vpop.f32.mrb[0].mxu0
        %v3770 = vadd.f32 0.0, %v3769
        %v3771 = vpop.f32.mrb[0].mxu0
        %v3772 = vadd.f32 0.0, %v3771
        %v3773 = vpop.f32.mrb[0].mxu0
        %v3774 = vadd.f32 0.0, %v3773
        %3775 = vmatprep.mubr.bf16.mxu0 %v832
        %3776 = vmatmul.mubr.bf16.gmra.mrb[0].mxu0 %v831
        %v3777 = vpop.f32.mrb[0].mxu0
        %v3778 = vadd.f32 0.0, %v3777
        %v3779 = vpop.f32.mrb[0].mxu0
        %v3780 = vadd.f32 0.0, %v3779
        %v3781 = vpop.f32.mrb[0].mxu0
        %v3782 = vadd.f32 0.0, %v3781
        %v3783 = vpop.f32.mrb[0].mxu0
        %v3784 = vadd.f32 0.0, %v3783
        %3785 = vmatprep.mubr.bf16.mxu0 %v836
        %3786 = vmatmul.mubr.bf16.gmra.mrb[0].mxu0 %v835
        %v3787 = vpop.f32.mrb[0].mxu0
        %v3788 = vadd.f32 0.0, %v3787
        %v3789 = vpop.f32.mrb[0].mxu0
        %v3790 = vadd.f32 0.0, %v3789
        %v3791 = vpop.f32.mrb[0].mxu0
        %v3792 = vadd.f32 0.0, %v3791
        %v3793 = vpop.f32.mrb[0].mxu0
        %v3794 = vadd.f32 0.0, %v3793
        %3795 = vmatprep.mubr.bf16.mxu0 %v840
        %3796 = vmatmul.mubr.bf16.gmra.mrb[0].mxu0 %v839
        %v3797 = vpop.f32.mrb[0].mxu0
        %v3798 = vadd.f32 0.0, %v3797
        %v3799 = vpop.f32.mrb[0].mxu0
        %v3800 = vadd.f32 0.0, %v3799
        %v3801 = vpop.f32.mrb[0].mxu0
        %v3802 = vadd.f32 0.0, %v3801
        %v3803 = vpop.f32.mrb[0].mxu0
        %v3804 = vadd.f32 0.0, %v3803
        %3805 = vmatprep.mubr.bf16.mxu0 %v844
        %3806 = vmatmul.mubr.bf16.gmra.mrb[0].mxu0 %v843
        %v3807 = vpop.f32.mrb[0].mxu0
        %v3808 = vadd.f32 0.0, %v3807
        %v3809 = vpop.f32.mrb[0].mxu0
        %v3810 = vadd.f32 0.0, %v3809
        %v3811 = vpop.f32.mrb[0].mxu0
        %v3812 = vadd.f32 0.0, %v3811
        %v3813 = vpop.f32.mrb[0].mxu0
        %v3814 = vadd.f32 0.0, %v3813
        %3815 = vdwg.mxu0
        %3816 = vmatprep.subr.bf16.mxu0 %v2232
        %3817 = vmatpush1.bf16.msra.mxu0 %v2231
        %3818 = vmatprep.subr.bf16.mxu0 %v2244
        %3819 = vmatpush1.bf16.msra.mxu0 %v2243
        %3820 = vmatprep.subr.bf16.mxu0 %v2256
        %3821 = vmatpush1.bf16.msra.mxu0 %v2255
        %3822 = vmatprep.subr.bf16.mxu0 %v2268
        %3823 = vmatpush1.bf16.msra.mxu0 %v2267
        %3824 = vmatprep.subr.bf16.mxu0 %v2280
        %3825 = vmatpush1.bf16.msra.mxu0 %v2279
        %3826 = vmatprep.subr.bf16.mxu0 %v2292
        %3827 = vmatpush1.bf16.msra.mxu0 %v2291
        %3828 = vmatprep.subr.bf16.mxu0 %v2304
        %3829 = vmatpush1.bf16.msra.mxu0 %v2303
        %3830 = vmatprep.subr.bf16.mxu0 %v2316
        %3831 = vmatpush1.bf16.msra.mxu0 %v2315
        %3832 = vmatprep.subr.bf16.mxu0 %v2328
        %3833 = vmatpush1.bf16.msra.mxu0 %v2327
        %3834 = vmatprep.subr.bf16.mxu0 %v2340
        %3835 = vmatpush1.bf16.msra.mxu0 %v2339
        %3836 = vmatprep.subr.bf16.mxu0 %v2352
        %3837 = vmatpush1.bf16.msra.mxu0 %v2351
        %3838 = vmatprep.subr.bf16.mxu0 %v2364
        %3839 = vmatpush1.bf16.msra.mxu0 %v2363
        %3840 = vmatprep.subr.bf16.mxu0 %v2376
        %3841 = vmatpush1.bf16.msra.mxu0 %v2375
        %3842 = vmatprep.subr.bf16.mxu0 %v2388
        %3843 = vmatpush1.bf16.msra.mxu0 %v2387
        %3844 = vmatprep.subr.bf16.mxu0 %v2400
        %3845 = vmatpush1.bf16.msra.mxu0 %v2399
        %3846 = vmatprep.subr.bf16.mxu0 %v2412
        %3847 = vmatpush1.bf16.msra.mxu0 %v2411
        %3848 = vmatprep.mubr.bf16.mxu0 %v818
        %3849 = vmatmul.mubr.bf16.gmra.mrb[0].mxu0 %v817
        %v3850 = vpop.f32.mrb[0].mxu0
        %v3851 = vadd.f32 %v3738, %v3850
        %v3852 = vpop.f32.mrb[0].mxu0
        %v3853 = vadd.f32 %v3740, %v3852
        %v3854 = vpop.f32.mrb[0].mxu0
        %v3855 = vadd.f32 %v3742, %v3854
        %v3856 = vpop.f32.mrb[0].mxu0
        %v3857 = vadd.f32 %v3744, %v3856
        %3858 = vmatprep.mubr.bf16.mxu0 %v822
        %3859 = vmatmul.mubr.bf16.gmra.mrb[0].mxu0 %v821
        %v3860 = vpop.f32.mrb[0].mxu0
        %v3861 = vadd.f32 %v3748, %v3860
        %v3862 = vpop.f32.mrb[0].mxu0
        %v3863 = vadd.f32 %v3750, %v3862
        %v3864 = vpop.f32.mrb[0].mxu0
        %v3865 = vadd.f32 %v3752, %v3864
        %v3866 = vpop.f32.mrb[0].mxu0
        %v3867 = vadd.f32 %v3754, %v3866
        %3868 = vmatprep.mubr.bf16.mxu0 %v826
        %3869 = vmatmul.mubr.bf16.gmra.mrb[0].mxu0 %v825
        %v3870 = vpop.f32.mrb[0].mxu0
        %v3871 = vadd.f32 %v3758, %v3870
        %v3872 = vpop.f32.mrb[0].mxu0
        %v3873 = vadd.f32 %v3760, %v3872
        %v3874 = vpop.f32.mrb[0].mxu0
        %v3875 = vadd.f32 %v3762, %v3874
        %v3876 = vpop.f32.mrb[0].mxu0
        %v3877 = vadd.f32 %v3764, %v3876
        %3878 = vmatprep.mubr.bf16.mxu0 %v830
        %3879 = vmatmul.mubr.bf16.gmra.mrb[0].mxu0 %v829
        %v3880 = vpop.f32.mrb[0].mxu0
        %v3881 = vadd.f32 %v3768, %v3880
        %v3882 = vpop.f32.mrb[0].mxu0
        %v3883 = vadd.f32 %v3770, %v3882
        %v3884 = vpop.f32.mrb[0].mxu0
        %v3885 = vadd.f32 %v3772, %v3884
        %v3886 = vpop.f32.mrb[0].mxu0
        %v3887 = vadd.f32 %v3774, %v3886
        %3888 = vmatprep.mubr.bf16.mxu0 %v834
        %3889 = vmatmul.mubr.bf16.gmra.mrb[0].mxu0 %v833
        %v3890 = vpop.f32.mrb[0].mxu0
        %v3891 = vadd.f32 %v3778, %v3890
        %v3892 = vpop.f32.mrb[0].mxu0
        %v3893 = vadd.f32 %v3780, %v3892
        %v3894 = vpop.f32.mrb[0].mxu0
        %v3895 = vadd.f32 %v3782, %v3894
        %v3896 = vpop.f32.mrb[0].mxu0
        %v3897 = vadd.f32 %v3784, %v3896
        %3898 = vmatprep.mubr.bf16.mxu0 %v838
        %3899 = vmatmul.mubr.bf16.gmra.mrb[0].mxu0 %v837
        %v3900 = vpop.f32.mrb[0].mxu0
        %v3901 = vadd.f32 %v3788, %v3900
        %v3902 = vpop.f32.mrb[0].mxu0
        %v3903 = vadd.f32 %v3790, %v3902
        %v3904 = vpop.f32.mrb[0].mxu0
        %v3905 = vadd.f32 %v3792, %v3904
        %v3906 = vpop.f32.mrb[0].mxu0
        %v3907 = vadd.f32 %v3794, %v3906
        %3908 = vmatprep.mubr.bf16.mxu0 %v842
        %3909 = vmatmul.mubr.bf16.gmra.mrb[0].mxu0 %v841
        %v3910 = vpop.f32.mrb[0].mxu0
        %v3911 = vadd.f32 %v3798, %v3910
        %v3912 = vpop.f32.mrb[0].mxu0
        %v3913 = vadd.f32 %v3800, %v3912
        %v3914 = vpop.f32.mrb[0].mxu0
        %v3915 = vadd.f32 %v3802, %v3914
        %v3916 = vpop.f32.mrb[0].mxu0
        %v3917 = vadd.f32 %v3804, %v3916
        %3918 = vmatprep.mubr.bf16.mxu0 %v846
        %3919 = vmatmul.mubr.bf16.gmra.mrb[0].mxu0 %v845
        %v3920 = vpop.f32.mrb[0].mxu0
        %v3921 = vadd.f32 %v3808, %v3920
        %v3922 = vpop.f32.mrb[0].mxu0
        %v3923 = vadd.f32 %v3810, %v3922
        %v3924 = vpop.f32.mrb[0].mxu0
        %v3925 = vadd.f32 %v3812, %v3924
        %v3926 = vpop.f32.mrb[0].mxu0
        %v3927 = vadd.f32 %v3814, %v3926
        %3928 = vdwg.mxu0
        %3929 = vmatprep.subr.bf16.mxu0 %v2042
        %3930 = vmatpush1.bf16.msra.mxu0 %v2041
        %3931 = vmatprep.subr.bf16.mxu0 %v2054
        %3932 = vmatpush1.bf16.msra.mxu0 %v2053
        %3933 = vmatprep.subr.bf16.mxu0 %v2066
        %3934 = vmatpush1.bf16.msra.mxu0 %v2065
        %3935 = vmatprep.subr.bf16.mxu0 %v2078
        %3936 = vmatpush1.bf16.msra.mxu0 %v2077
        %3937 = vmatprep.subr.bf16.mxu0 %v2090
        %3938 = vmatpush1.bf16.msra.mxu0 %v2089
        %3939 = vmatprep.subr.bf16.mxu0 %v2102
        %3940 = vmatpush1.bf16.msra.mxu0 %v2101
        %3941 = vmatprep.subr.bf16.mxu0 %v2114
        %3942 = vmatpush1.bf16.msra.mxu0 %v2113
        %3943 = vmatprep.subr.bf16.mxu0 %v2126
        %3944 = vmatpush1.bf16.msra.mxu0 %v2125
        %3945 = vmatprep.subr.bf16.mxu0 %v2138
        %3946 = vmatpush1.bf16.msra.mxu0 %v2137
        %3947 = vmatprep.subr.bf16.mxu0 %v2150
        %3948 = vmatpush1.bf16.msra.mxu0 %v2149
        %3949 = vmatprep.subr.bf16.mxu0 %v2162
        %3950 = vmatpush1.bf16.msra.mxu0 %v2161
        %3951 = vmatprep.subr.bf16.mxu0 %v2174
        %3952 = vmatpush1.bf16.msra.mxu0 %v2173
        %3953 = vmatprep.subr.bf16.mxu0 %v2186
        %3954 = vmatpush1.bf16.msra.mxu0 %v2185
        %3955 = vmatprep.subr.bf16.mxu0 %v2198
        %3956 = vmatpush1.bf16.msra.mxu0 %v2197
        %3957 = vmatprep.subr.bf16.mxu0 %v2210
        %3958 = vmatpush1.bf16.msra.mxu0 %v2209
        %3959 = vmatprep.subr.bf16.mxu0 %v2222
        %3960 = vmatpush1.bf16.msra.mxu0 %v2221
        %3961 = vmatprep.mubr.bf16.mxu0 %v816
        %3962 = vmatmul.mubr.bf16.gmra.mrb[0].mxu0 %v815
        %v3963 = vpop.f32.mrb[0].mxu0
        %v3964 = vadd.f32 0.0, %v3963
        %v3965 = vpop.f32.mrb[0].mxu0
        %v3966 = vadd.f32 0.0, %v3965
        %v3967 = vpop.f32.mrb[0].mxu0
        %v3968 = vadd.f32 0.0, %v3967
        %v3969 = vpop.f32.mrb[0].mxu0
        %v3970 = vadd.f32 0.0, %v3969
        %3971 = vmatprep.mubr.bf16.mxu0 %v820
        %3972 = vmatmul.mubr.bf16.gmra.mrb[0].mxu0 %v819
        %v3973 = vpop.f32.mrb[0].mxu0
        %v3974 = vadd.f32 0.0, %v3973
        %v3975 = vpop.f32.mrb[0].mxu0
        %v3976 = vadd.f32 0.0, %v3975
        %v3977 = vpop.f32.mrb[0].mxu0
        %v3978 = vadd.f32 0.0, %v3977
        %v3979 = vpop.f32.mrb[0].mxu0
        %v3980 = vadd.f32 0.0, %v3979
        %3981 = vmatprep.mubr.bf16.mxu0 %v824
        %3982 = vmatmul.mubr.bf16.gmra.mrb[0].mxu0 %v823
        %v3983 = vpop.f32.mrb[0].mxu0
        %v3984 = vadd.f32 0.0, %v3983
        %v3985 = vpop.f32.mrb[0].mxu0
        %v3986 = vadd.f32 0.0, %v3985
        %v3987 = vpop.f32.mrb[0].mxu0
        %v3988 = vadd.f32 0.0, %v3987
        %v3989 = vpop.f32.mrb[0].mxu0
        %v3990 = vadd.f32 0.0, %v3989
        %3991 = vmatprep.mubr.bf16.mxu0 %v828
        %3992 = vmatmul.mubr.bf16.gmra.mrb[0].mxu0 %v827
        %v3993 = vpop.f32.mrb[0].mxu0
        %v3994 = vadd.f32 0.0, %v3993
        %v3995 = vpop.f32.mrb[0].mxu0
        %v3996 = vadd.f32 0.0, %v3995
        %v3997 = vpop.f32.mrb[0].mxu0
        %v3998 = vadd.f32 0.0, %v3997
        %v3999 = vpop.f32.mrb[0].mxu0
        %v4000 = vadd.f32 0.0, %v3999
        %4001 = vmatprep.mubr.bf16.mxu0 %v832
        %4002 = vmatmul.mubr.bf16.gmra.mrb[0].mxu0 %v831
        %v4003 = vpop.f32.mrb[0].mxu0
        %v4004 = vadd.f32 0.0, %v4003
        %v4005 = vpop.f32.mrb[0].mxu0
        %v4006 = vadd.f32 0.0, %v4005
        %v4007 = vpop.f32.mrb[0].mxu0
        %v4008 = vadd.f32 0.0, %v4007
        %v4009 = vpop.f32.mrb[0].mxu0
        %v4010 = vadd.f32 0.0, %v4009
        %4011 = vmatprep.mubr.bf16.mxu0 %v836
        %4012 = vmatmul.mubr.bf16.gmra.mrb[0].mxu0 %v835
        %v4013 = vpop.f32.mrb[0].mxu0
        %v4014 = vadd.f32 0.0, %v4013
        %v4015 = vpop.f32.mrb[0].mxu0
        %v4016 = vadd.f32 0.0, %v4015
        %v4017 = vpop.f32.mrb[0].mxu0
        %v4018 = vadd.f32 0.0, %v4017
        %v4019 = vpop.f32.mrb[0].mxu0
        %v4020 = vadd.f32 0.0, %v4019
        %4021 = vmatprep.mubr.bf16.mxu0 %v840
        %4022 = vmatmul.mubr.bf16.gmra.mrb[0].mxu0 %v839
        %v4023 = vpop.f32.mrb[0].mxu0
        %v4024 = vadd.f32 0.0, %v4023
        %v4025 = vpop.f32.mrb[0].mxu0
        %v4026 = vadd.f32 0.0, %v4025
        %v4027 = vpop.f32.mrb[0].mxu0
        %v4028 = vadd.f32 0.0, %v4027
        %v4029 = vpop.f32.mrb[0].mxu0
        %v4030 = vadd.f32 0.0, %v4029
        %4031 = vmatprep.mubr.bf16.mxu0 %v844
        %4032 = vmatmul.mubr.bf16.gmra.mrb[0].mxu0 %v843
        %v4033 = vpop.f32.mrb[0].mxu0
        %v4034 = vadd.f32 0.0, %v4033
        %v4035 = vpop.f32.mrb[0].mxu0
        %v4036 = vadd.f32 0.0, %v4035
        %v4037 = vpop.f32.mrb[0].mxu0
        %v4038 = vadd.f32 0.0, %v4037
        %v4039 = vpop.f32.mrb[0].mxu0
        %v4040 = vadd.f32 0.0, %v4039
        %4041 = vdwg.mxu0
        %4042 = vmatprep.subr.bf16.mxu0 %v2234
        %4043 = vmatpush1.bf16.msra.mxu0 %v2233
        %4044 = vmatprep.subr.bf16.mxu0 %v2246
        %4045 = vmatpush1.bf16.msra.mxu0 %v2245
        %4046 = vmatprep.subr.bf16.mxu0 %v2258
        %4047 = vmatpush1.bf16.msra.mxu0 %v2257
        %4048 = vmatprep.subr.bf16.mxu0 %v2270
        %4049 = vmatpush1.bf16.msra.mxu0 %v2269
        %4050 = vmatprep.subr.bf16.mxu0 %v2282
        %4051 = vmatpush1.bf16.msra.mxu0 %v2281
        %4052 = vmatprep.subr.bf16.mxu0 %v2294
        %4053 = vmatpush1.bf16.msra.mxu0 %v2293
        %4054 = vmatprep.subr.bf16.mxu0 %v2306
        %4055 = vmatpush1.bf16.msra.mxu0 %v2305
        %4056 = vmatprep.subr.bf16.mxu0 %v2318
        %4057 = vmatpush1.bf16.msra.mxu0 %v2317
        %4058 = vmatprep.subr.bf16.mxu0 %v2330
        %4059 = vmatpush1.bf16.msra.mxu0 %v2329
        %4060 = vmatprep.subr.bf16.mxu0 %v2342
        %4061 = vmatpush1.bf16.msra.mxu0 %v2341
        %4062 = vmatprep.subr.bf16.mxu0 %v2354
        %4063 = vmatpush1.bf16.msra.mxu0 %v2353
        %4064 = vmatprep.subr.bf16.mxu0 %v2366
        %4065 = vmatpush1.bf16.msra.mxu0 %v2365
        %4066 = vmatprep.subr.bf16.mxu0 %v2378
        %4067 = vmatpush1.bf16.msra.mxu0 %v2377
        %4068 = vmatprep.subr.bf16.mxu0 %v2390
        %4069 = vmatpush1.bf16.msra.mxu0 %v2389
        %4070 = vmatprep.subr.bf16.mxu0 %v2402
        %4071 = vmatpush1.bf16.msra.mxu0 %v2401
        %4072 = vmatprep.subr.bf16.mxu0 %v2414
        %4073 = vmatpush1.bf16.msra.mxu0 %v2413
        %4074 = vmatprep.mubr.bf16.mxu0 %v818
        %4075 = vmatmul.mubr.bf16.gmra.mrb[0].mxu0 %v817
        %v4076 = vpop.f32.mrb[0].mxu0
        %v4077 = vadd.f32 %v3964, %v4076
        %v4078 = vpop.f32.mrb[0].mxu0
        %v4079 = vadd.f32 %v3966, %v4078
        %v4080 = vpop.f32.mrb[0].mxu0
        %v4081 = vadd.f32 %v3968, %v4080
        %v4082 = vpop.f32.mrb[0].mxu0
        %v4083 = vadd.f32 %v3970, %v4082
        %4084 = vmatprep.mubr.bf16.mxu0 %v822
        %4085 = vmatmul.mubr.bf16.gmra.mrb[0].mxu0 %v821
        %v4086 = vpop.f32.mrb[0].mxu0
        %v4087 = vadd.f32 %v3974, %v4086
        %v4088 = vpop.f32.mrb[0].mxu0
        %v4089 = vadd.f32 %v3976, %v4088
        %v4090 = vpop.f32.mrb[0].mxu0
        %v4091 = vadd.f32 %v3978, %v4090
        %v4092 = vpop.f32.mrb[0].mxu0
        %v4093 = vadd.f32 %v3980, %v4092
        %4094 = vmatprep.mubr.bf16.mxu0 %v826
        %4095 = vmatmul.mubr.bf16.gmra.mrb[0].mxu0 %v825
        %v4096 = vpop.f32.mrb[0].mxu0
        %v4097 = vadd.f32 %v3984, %v4096
        %v4098 = vpop.f32.mrb[0].mxu0
        %v4099 = vadd.f32 %v3986, %v4098
        %v4100 = vpop.f32.mrb[0].mxu0
        %v4101 = vadd.f32 %v3988, %v4100
        %v4102 = vpop.f32.mrb[0].mxu0
        %v4103 = vadd.f32 %v3990, %v4102
        %4104 = vmatprep.mubr.bf16.mxu0 %v830
        %4105 = vmatmul.mubr.bf16.gmra.mrb[0].mxu0 %v829
        %v4106 = vpop.f32.mrb[0].mxu0
        %v4107 = vadd.f32 %v3994, %v4106
        %v4108 = vpop.f32.mrb[0].mxu0
        %v4109 = vadd.f32 %v3996, %v4108
        %v4110 = vpop.f32.mrb[0].mxu0
        %v4111 = vadd.f32 %v3998, %v4110
        %v4112 = vpop.f32.mrb[0].mxu0
        %v4113 = vadd.f32 %v4000, %v4112
        %4114 = vmatprep.mubr.bf16.mxu0 %v834
        %4115 = vmatmul.mubr.bf16.gmra.mrb[0].mxu0 %v833
        %v4116 = vpop.f32.mrb[0].mxu0
        %v4117 = vadd.f32 %v4004, %v4116
        %v4118 = vpop.f32.mrb[0].mxu0
        %v4119 = vadd.f32 %v4006, %v4118
        %v4120 = vpop.f32.mrb[0].mxu0
        %v4121 = vadd.f32 %v4008, %v4120
        %v4122 = vpop.f32.mrb[0].mxu0
        %v4123 = vadd.f32 %v4010, %v4122
        %4124 = vmatprep.mubr.bf16.mxu0 %v838
        %4125 = vmatmul.mubr.bf16.gmra.mrb[0].mxu0 %v837
        %v4126 = vpop.f32.mrb[0].mxu0
        %v4127 = vadd.f32 %v4014, %v4126
        %v4128 = vpop.f32.mrb[0].mxu0
        %v4129 = vadd.f32 %v4016, %v4128
        %v4130 = vpop.f32.mrb[0].mxu0
        %v4131 = vadd.f32 %v4018, %v4130
        %v4132 = vpop.f32.mrb[0].mxu0
        %v4133 = vadd.f32 %v4020, %v4132
        %4134 = vmatprep.mubr.bf16.mxu0 %v842
        %4135 = vmatmul.mubr.bf16.gmra.mrb[0].mxu0 %v841
        %v4136 = vpop.f32.mrb[0].mxu0
        %v4137 = vadd.f32 %v4024, %v4136
        %v4138 = vpop.f32.mrb[0].mxu0
        %v4139 = vadd.f32 %v4026, %v4138
        %v4140 = vpop.f32.mrb[0].mxu0
        %v4141 = vadd.f32 %v4028, %v4140
        %v4142 = vpop.f32.mrb[0].mxu0
        %v4143 = vadd.f32 %v4030, %v4142
        %4144 = vmatprep.mubr.bf16.mxu0 %v846
        %4145 = vmatmul.mubr.bf16.gmra.mrb[0].mxu0 %v845
        %v4146 = vpop.f32.mrb[0].mxu0
        %v4147 = vadd.f32 %v4034, %v4146
        %v4148 = vpop.f32.mrb[0].mxu0
        %v4149 = vadd.f32 %v4036, %v4148
        %v4150 = vpop.f32.mrb[0].mxu0
        %v4151 = vadd.f32 %v4038, %v4150
        %v4152 = vpop.f32.mrb[0].mxu0
        %v4153 = vadd.f32 %v4040, %v4152
        %4154 = vdwg.mxu0
        %v4155 = vld [vmem:[#allocation2] sm:$0xff]
        %v4156 = vld [vmem:[#allocation2 + $0x8] sm:$0xff]
        %v4157 = vld [vmem:[#allocation2 + $0x10] sm:$0xff]
        %v4158 = vld [vmem:[#allocation2 + $0x18] sm:$0xff]
        %v4159 = vld [vmem:[#allocation2 + $0x20] sm:$0xff]
        %v4160 = vld [vmem:[#allocation2 + $0x28] sm:$0xff]
        %v4161 = vld [vmem:[#allocation2 + $0x30] sm:$0xff]
        %v4162 = vld [vmem:[#allocation2 + $0x38] sm:$0xff]
        %v4163 = vld [vmem:[#allocation2 + $0x40] sm:$0xff]
        %v4164 = vld [vmem:[#allocation2 + $0x48] sm:$0xff]
        %v4165 = vld [vmem:[#allocation2 + $0x50] sm:$0xff]
        %v4166 = vld [vmem:[#allocation2 + $0x58] sm:$0xff]
        %v4167 = vld [vmem:[#allocation2 + $0x60] sm:$0xff]
        %v4168 = vld [vmem:[#allocation2 + $0x68] sm:$0xff]
        %v4169 = vld [vmem:[#allocation2 + $0x70] sm:$0xff]
        %v4170 = vld [vmem:[#allocation2 + $0x78] sm:$0xff]
        %vm4171 = vcmask 523264
        %v4173 = vsel %vm4171, %v2947, 0
        %v4176 = vsel %vm4171, %v2951, 0
        %v4179 = vsel %vm4171, %v2957, 0
        %v4182 = vsel %vm4171, %v2961, 0
        %v4185 = vsel %vm4171, %v2967, 0
        %v4188 = vsel %vm4171, %v2971, 0
        %v4191 = vsel %vm4171, %v2977, 0
        %v4194 = vsel %vm4171, %v2981, 0
        %v4197 = vsel %vm4171, %v2987, 0
        %v4200 = vsel %vm4171, %v2991, 0
        %v4203 = vsel %vm4171, %v2997, 0
        %v4206 = vsel %vm4171, %v3001, 0
        %v4209 = vsel %vm4171, %v3007, 0
        %v4212 = vsel %vm4171, %v3011, 0
        %v4215 = vsel %vm4171, %v3017, 0
        %v4218 = vsel %vm4171, %v3021, 0
        %v4221 = vsel %vm4171, %v3399, 0
        %v4224 = vsel %vm4171, %v3403, 0
        %v4227 = vsel %vm4171, %v3409, 0
        %v4230 = vsel %vm4171, %v3413, 0
        %v4233 = vsel %vm4171, %v3419, 0
        %v4236 = vsel %vm4171, %v3423, 0
        %v4239 = vsel %vm4171, %v3429, 0
        %v4242 = vsel %vm4171, %v3433, 0
        %v4245 = vsel %vm4171, %v3439, 0
        %v4248 = vsel %vm4171, %v3443, 0
        %v4251 = vsel %vm4171, %v3449, 0
        %v4254 = vsel %vm4171, %v3453, 0
        %v4257 = vsel %vm4171, %v3459, 0
        %v4260 = vsel %vm4171, %v3463, 0
        %v4263 = vsel %vm4171, %v3469, 0
        %v4266 = vsel %vm4171, %v3473, 0
        %4268 = vmatprep.subr.mxu0 0.0
        %4269 = vmatpush1.xpose.msra.mxu0 %v4221
        %4270 = vmatprep.subr.mxu0 0.0
        %4271 = vmatpush1.xpose.msra.mxu0 %v4224
        %4272 = vmatprep.subr.mxu0 0.0
        %4273 = vmatpush1.xpose.msra.mxu0 %v4227
        %4274 = vmatprep.subr.mxu0 0.0
        %4275 = vmatpush1.xpose.msra.mxu0 %v4230
        %4276 = vmatprep.subr.mxu0 0.0
        %4277 = vmatpush1.xpose.msra.mxu0 %v4233
        %4278 = vmatprep.subr.mxu0 0.0
        %4279 = vmatpush1.xpose.msra.mxu0 %v4236
        %4280 = vmatprep.subr.mxu0 0.0
        %4281 = vmatpush1.xpose.msra.mxu0 %v4239
        %4282 = vmatprep.subr.mxu0 0.0
        %4283 = vmatpush1.xpose.msra.mxu0 %v4242
        %4284 = vmatprep.subr.mxu0 0.0
        %4285 = vmatpush1.xpose.msra.mxu0 %v4245
        %4286 = vmatprep.subr.mxu0 0.0
        %4287 = vmatpush1.xpose.msra.mxu0 %v4248
        %4288 = vmatprep.subr.mxu0 0.0
        %4289 = vmatpush1.xpose.msra.mxu0 %v4251
        %4290 = vmatprep.subr.mxu0 0.0
        %4291 = vmatpush1.xpose.msra.mxu0 %v4254
        %4292 = vmatprep.subr.mxu0 0.0
        %4293 = vmatpush1.xpose.msra.mxu0 %v4257
        %4294 = vmatprep.subr.mxu0 0.0
        %4295 = vmatpush1.xpose.msra.mxu0 %v4260
        %4296 = vmatprep.subr.mxu0 0.0
        %4297 = vmatpush1.xpose.msra.mxu0 %v4263
        %4298 = vmatprep.subr.mxu0 0.0
        %4299 = vmatpush1.xpose.msra.mxu0 %v4266
        %4300 = vmatprep.subr.mxu0 0.0
        %4301 = vmatpush1.xpose.msra.mxu0 0.0
        %4302 = vmatprep.subr.mxu0 0.0
        %4303 = vmatpush1.xpose.msra.mxu0 0.0
        %4304 = vmatprep.subr.mxu0 0.0
        %4305 = vmatpush1.xpose.msra.mxu0 0.0
        %4306 = vmatprep.subr.mxu0 0.0
        %4307 = vmatpush1.xpose.msra.mxu0 0.0
        %4308 = vmatprep.subr.mxu0 0.0
        %4309 = vmatpush1.xpose.msra.mxu0 0.0
        %4310 = vmatprep.subr.mxu0 0.0
        %4311 = vmatpush1.xpose.msra.mxu0 0.0
        %4312 = vmatprep.subr.mxu0 0.0
        %4313 = vmatpush1.xpose.msra.mxu0 0.0
        %4314 = vmatprep.subr.mxu0 0.0
        %4315 = vmatpush1.xpose.msra.mxu0 0.0
        %4316 = vmatprep.subr.mxu0 0.0
        %4317 = vmatpush1.xpose.msra.mxu0 0.0
        %4318 = vmatprep.subr.mxu0 0.0
        %4319 = vmatpush1.xpose.msra.mxu0 0.0
        %4320 = vmatprep.subr.mxu0 0.0
        %4321 = vmatpush1.xpose.msra.mxu0 0.0
        %4322 = vmatprep.subr.mxu0 0.0
        %4323 = vmatpush1.xpose.msra.mxu0 0.0
        %4324 = vmatprep.subr.mxu0 0.0
        %4325 = vmatpush1.xpose.msra.mxu0 0.0
        %4326 = vmatprep.subr.mxu0 0.0
        %4327 = vmatpush1.xpose.msra.mxu0 0.0
        %4328 = vmatprep.subr.mxu0 0.0
        %4329 = vmatpush1.xpose.msra.mxu0 0.0
        %4330 = vmatprep.subr.mxu0 0.0
        %4331 = vmatpush1.xpose.msra.mxu0 0.0
        %4332 = vmatprep.mubr.f32.mxu0 0.0
        %4333 = vmatmul.mubr.f32.gmra.mrb[0].mxu0 %v4173
        %v4334 = vpop.f32.mrb[0].mxu0
        %v4335 = vadd.f32 %v4155, %v4334
        %v4336 = vpop.f32.mrb[0].mxu0
        %4337 = vmatprep.mubr.f32.mxu0 0.0
        %4338 = vmatmul.mubr.f32.gmra.mrb[0].mxu0 %v4176
        %v4339 = vpop.f32.mrb[0].mxu0
        %v4340 = vadd.f32 %v4156, %v4339
        %v4341 = vpop.f32.mrb[0].mxu0
        %4342 = vmatprep.mubr.f32.mxu0 0.0
        %4343 = vmatmul.mubr.f32.gmra.mrb[0].mxu0 %v4179
        %v4344 = vpop.f32.mrb[0].mxu0
        %v4345 = vadd.f32 %v4157, %v4344
        %v4346 = vpop.f32.mrb[0].mxu0
        %4347 = vmatprep.mubr.f32.mxu0 0.0
        %4348 = vmatmul.mubr.f32.gmra.mrb[0].mxu0 %v4182
        %v4349 = vpop.f32.mrb[0].mxu0
        %v4350 = vadd.f32 %v4158, %v4349
        %v4351 = vpop.f32.mrb[0].mxu0
        %4352 = vmatprep.mubr.f32.mxu0 0.0
        %4353 = vmatmul.mubr.f32.gmra.mrb[0].mxu0 %v4185
        %v4354 = vpop.f32.mrb[0].mxu0
        %v4355 = vadd.f32 %v4159, %v4354
        %v4356 = vpop.f32.mrb[0].mxu0
        %4357 = vmatprep.mubr.f32.mxu0 0.0
        %4358 = vmatmul.mubr.f32.gmra.mrb[0].mxu0 %v4188
        %v4359 = vpop.f32.mrb[0].mxu0
        %v4360 = vadd.f32 %v4160, %v4359
        %v4361 = vpop.f32.mrb[0].mxu0
        %4362 = vmatprep.mubr.f32.mxu0 0.0
        %4363 = vmatmul.mubr.f32.gmra.mrb[0].mxu0 %v4191
        %v4364 = vpop.f32.mrb[0].mxu0
        %v4365 = vadd.f32 %v4161, %v4364
        %v4366 = vpop.f32.mrb[0].mxu0
        %4367 = vmatprep.mubr.f32.mxu0 0.0
        %4368 = vmatmul.mubr.f32.gmra.mrb[0].mxu0 %v4194
        %v4369 = vpop.f32.mrb[0].mxu0
        %v4370 = vadd.f32 %v4162, %v4369
        %v4371 = vpop.f32.mrb[0].mxu0
        %4372 = vmatprep.mubr.f32.mxu0 0.0
        %4373 = vmatmul.mubr.f32.gmra.mrb[0].mxu0 %v4197
        %v4374 = vpop.f32.mrb[0].mxu0
        %v4375 = vadd.f32 %v4163, %v4374
        %v4376 = vpop.f32.mrb[0].mxu0
        %4377 = vmatprep.mubr.f32.mxu0 0.0
        %4378 = vmatmul.mubr.f32.gmra.mrb[0].mxu0 %v4200
        %v4379 = vpop.f32.mrb[0].mxu0
        %v4380 = vadd.f32 %v4164, %v4379
        %v4381 = vpop.f32.mrb[0].mxu0
        %4382 = vmatprep.mubr.f32.mxu0 0.0
        %4383 = vmatmul.mubr.f32.gmra.mrb[0].mxu0 %v4203
        %v4384 = vpop.f32.mrb[0].mxu0
        %v4385 = vadd.f32 %v4165, %v4384
        %v4386 = vpop.f32.mrb[0].mxu0
        %4387 = vmatprep.mubr.f32.mxu0 0.0
        %4388 = vmatmul.mubr.f32.gmra.mrb[0].mxu0 %v4206
        %v4389 = vpop.f32.mrb[0].mxu0
        %v4390 = vadd.f32 %v4166, %v4389
        %v4391 = vpop.f32.mrb[0].mxu0
        %4392 = vmatprep.mubr.f32.mxu0 0.0
        %4393 = vmatmul.mubr.f32.gmra.mrb[0].mxu0 %v4209
        %v4394 = vpop.f32.mrb[0].mxu0
        %v4395 = vadd.f32 %v4167, %v4394
        %v4396 = vpop.f32.mrb[0].mxu0
        %4397 = vmatprep.mubr.f32.mxu0 0.0
        %4398 = vmatmul.mubr.f32.gmra.mrb[0].mxu0 %v4212
        %v4399 = vpop.f32.mrb[0].mxu0
        %v4400 = vadd.f32 %v4168, %v4399
        %v4401 = vpop.f32.mrb[0].mxu0
        %4402 = vmatprep.mubr.f32.mxu0 0.0
        %4403 = vmatmul.mubr.f32.gmra.mrb[0].mxu0 %v4215
        %v4404 = vpop.f32.mrb[0].mxu0
        %v4405 = vadd.f32 %v4169, %v4404
        %v4406 = vpop.f32.mrb[0].mxu0
        %4407 = vmatprep.mubr.f32.mxu0 0.0
        %4408 = vmatmul.mubr.f32.gmra.mrb[0].mxu0 %v4218
        %v4409 = vpop.f32.mrb[0].mxu0
        %v4410 = vadd.f32 %v4170, %v4409
        %v4411 = vpop.f32.mrb[0].mxu0
        %4412 = vdwg.mxu0
        %4413 = vmax.xlane.f32.xlu0 %v4335
        %v4414 = vpop.xlane.xlu0 %4413
        %4415 = vmax.xlane.f32.xlu0 %v4340
        %v4416 = vpop.xlane.xlu0 %4415
        %4417 = vmax.xlane.f32.xlu0 %v4345
        %v4418 = vpop.xlane.xlu0 %4417
        %4419 = vmax.xlane.f32.xlu0 %v4350
        %v4420 = vpop.xlane.xlu0 %4419
        %4421 = vmax.xlane.f32.xlu0 %v4355
        %v4422 = vpop.xlane.xlu0 %4421
        %4423 = vmax.xlane.f32.xlu0 %v4360
        %v4424 = vpop.xlane.xlu0 %4423
        %4425 = vmax.xlane.f32.xlu0 %v4365
        %v4426 = vpop.xlane.xlu0 %4425
        %4427 = vmax.xlane.f32.xlu0 %v4370
        %v4428 = vpop.xlane.xlu0 %4427
        %4429 = vmax.xlane.f32.xlu0 %v4375
        %v4430 = vpop.xlane.xlu0 %4429
        %4431 = vmax.xlane.f32.xlu0 %v4380
        %v4432 = vpop.xlane.xlu0 %4431
        %4433 = vmax.xlane.f32.xlu0 %v4385
        %v4434 = vpop.xlane.xlu0 %4433
        %4435 = vmax.xlane.f32.xlu0 %v4390
        %v4436 = vpop.xlane.xlu0 %4435
        %4437 = vmax.xlane.f32.xlu0 %v4395
        %v4438 = vpop.xlane.xlu0 %4437
        %4439 = vmax.xlane.f32.xlu0 %v4400
        %v4440 = vpop.xlane.xlu0 %4439
        %4441 = vmax.xlane.f32.xlu0 %v4405
        %v4442 = vpop.xlane.xlu0 %4441
        %4443 = vmax.xlane.f32.xlu0 %v4410
        %v4444 = vpop.xlane.xlu0 %4443
        %v4445 = vsub.f32 %v4335, %v4414
        %v4446 = vsub.f32 %v4340, %v4416
        %v4447 = vsub.f32 %v4345, %v4418
        %v4448 = vsub.f32 %v4350, %v4420
        %v4449 = vsub.f32 %v4355, %v4422
        %v4450 = vsub.f32 %v4360, %v4424
        %v4451 = vsub.f32 %v4365, %v4426
        %v4452 = vsub.f32 %v4370, %v4428
        %v4453 = vsub.f32 %v4375, %v4430
        %v4454 = vsub.f32 %v4380, %v4432
        %v4455 = vsub.f32 %v4385, %v4434
        %v4456 = vsub.f32 %v4390, %v4436
        %v4457 = vsub.f32 %v4395, %v4438
        %v4458 = vsub.f32 %v4400, %v4440
        %v4459 = vsub.f32 %v4405, %v4442
        %v4460 = vsub.f32 %v4410, %v4444
        %v4461 = vmul.f32 %v4445, 1.442695
        %v4462 = vpow.pop %v4461
        %v4463 = vmul.f32 %v4446, 1.442695
        %v4464 = vpow.pop %v4463
        %v4465 = vmul.f32 %v4447, 1.442695
        %v4466 = vpow.pop %v4465
        %v4467 = vmul.f32 %v4448, 1.442695
        %v4468 = vpow.pop %v4467
        %v4469 = vmul.f32 %v4449, 1.442695
        %v4470 = vpow.pop %v4469
        %v4471 = vmul.f32 %v4450, 1.442695
        %v4472 = vpow.pop %v4471
        %v4473 = vmul.f32 %v4451, 1.442695
        %v4474 = vpow.pop %v4473
        %v4475 = vmul.f32 %v4452, 1.442695
        %v4476 = vpow.pop %v4475
        %v4477 = vmul.f32 %v4453, 1.442695
        %v4478 = vpow.pop %v4477
        %v4479 = vmul.f32 %v4454, 1.442695
        %v4480 = vpow.pop %v4479
        %v4481 = vmul.f32 %v4455, 1.442695
        %v4482 = vpow.pop %v4481
        %v4483 = vmul.f32 %v4456, 1.442695
        %v4484 = vpow.pop %v4483
        %v4485 = vmul.f32 %v4457, 1.442695
        %v4486 = vpow.pop %v4485
        %v4487 = vmul.f32 %v4458, 1.442695
        %v4488 = vpow.pop %v4487
        %v4489 = vmul.f32 %v4459, 1.442695
        %v4490 = vpow.pop %v4489
        %v4491 = vmul.f32 %v4460, 1.442695
        %v4492 = vpow.pop %v4491
        %4493 = vadd.xlane.f32.xlu0 %v4462
        %v4494 = vpop.xlane.xlu0 %4493
        %4495 = vadd.xlane.f32.xlu0 %v4464
        %v4496 = vpop.xlane.xlu0 %4495
        %4497 = vadd.xlane.f32.xlu0 %v4466
        %v4498 = vpop.xlane.xlu0 %4497
        %4499 = vadd.xlane.f32.xlu0 %v4468
        %v4500 = vpop.xlane.xlu0 %4499
        %4501 = vadd.xlane.f32.xlu0 %v4470
        %v4502 = vpop.xlane.xlu0 %4501
        %4503 = vadd.xlane.f32.xlu0 %v4472
        %v4504 = vpop.xlane.xlu0 %4503
        %4505 = vadd.xlane.f32.xlu0 %v4474
        %v4506 = vpop.xlane.xlu0 %4505
        %4507 = vadd.xlane.f32.xlu0 %v4476
        %v4508 = vpop.xlane.xlu0 %4507
        %4509 = vadd.xlane.f32.xlu0 %v4478
        %v4510 = vpop.xlane.xlu0 %4509
        %4511 = vadd.xlane.f32.xlu0 %v4480
        %v4512 = vpop.xlane.xlu0 %4511
        %4513 = vadd.xlane.f32.xlu0 %v4482
        %v4514 = vpop.xlane.xlu0 %4513
        %4515 = vadd.xlane.f32.xlu0 %v4484
        %v4516 = vpop.xlane.xlu0 %4515
        %4517 = vadd.xlane.f32.xlu0 %v4486
        %v4518 = vpop.xlane.xlu0 %4517
        %4519 = vadd.xlane.f32.xlu0 %v4488
        %v4520 = vpop.xlane.xlu0 %4519
        %4521 = vadd.xlane.f32.xlu0 %v4490
        %v4522 = vpop.xlane.xlu0 %4521
        %4523 = vadd.xlane.f32.xlu0 %v4492
        %v4524 = vpop.xlane.xlu0 %4523
        %v4525 = vrcp.pop %v4494
        %v4526 = vmul.f32 1.0, %v4525
        %v4527 = vrcp.pop %v4496
        %v4528 = vmul.f32 1.0, %v4527
        %v4529 = vrcp.pop %v4498
        %v4530 = vmul.f32 1.0, %v4529
        %v4531 = vrcp.pop %v4500
        %v4532 = vmul.f32 1.0, %v4531
        %v4533 = vrcp.pop %v4502
        %v4534 = vmul.f32 1.0, %v4533
        %v4535 = vrcp.pop %v4504
        %v4536 = vmul.f32 1.0, %v4535
        %v4537 = vrcp.pop %v4506
        %v4538 = vmul.f32 1.0, %v4537
        %v4539 = vrcp.pop %v4508
        %v4540 = vmul.f32 1.0, %v4539
        %v4541 = vrcp.pop %v4510
        %v4542 = vmul.f32 1.0, %v4541
        %v4543 = vrcp.pop %v4512
        %v4544 = vmul.f32 1.0, %v4543
        %v4545 = vrcp.pop %v4514
        %v4546 = vmul.f32 1.0, %v4545
        %v4547 = vrcp.pop %v4516
        %v4548 = vmul.f32 1.0, %v4547
        %v4549 = vrcp.pop %v4518
        %v4550 = vmul.f32 1.0, %v4549
        %v4551 = vrcp.pop %v4520
        %v4552 = vmul.f32 1.0, %v4551
        %v4553 = vrcp.pop %v4522
        %v4554 = vmul.f32 1.0, %v4553
        %v4555 = vrcp.pop %v4524
        %v4556 = vmul.f32 1.0, %v4555
        %v4557 = vmul.f32 %v4462, %v4526
        %v4558 = vmul.f32 %v4464, %v4528
        %v4559 = vmul.f32 %v4466, %v4530
        %v4560 = vmul.f32 %v4468, %v4532
        %v4561 = vmul.f32 %v4470, %v4534
        %v4562 = vmul.f32 %v4472, %v4536
        %v4563 = vmul.f32 %v4474, %v4538
        %v4564 = vmul.f32 %v4476, %v4540
        %v4565 = vmul.f32 %v4478, %v4542
        %v4566 = vmul.f32 %v4480, %v4544
        %v4567 = vmul.f32 %v4482, %v4546
        %v4568 = vmul.f32 %v4484, %v4548
        %v4569 = vmul.f32 %v4486, %v4550
        %v4570 = vmul.f32 %v4488, %v4552
        %v4571 = vmul.f32 %v4490, %v4554
        %v4572 = vmul.f32 %v4492, %v4556
        %v4573 = vpack.c.bf16 %v4558, %v4557
        %v4574 = vpack.c.bf16 %v4560, %v4559
        %v4575 = vpack.c.bf16 %v4562, %v4561
        %v4576 = vpack.c.bf16 %v4564, %v4563
        %v4577 = vpack.c.bf16 %v4566, %v4565
        %v4578 = vpack.c.bf16 %v4568, %v4567
        %v4579 = vpack.c.bf16 %v4570, %v4569
        %v4580 = vpack.c.bf16 %v4572, %v4571
        %v4581 = vpack.c.bf16 %v3855, %v3851
        %v4582 = vpack.c.bf16 %v3865, %v3861
        %v4583 = vpack.c.bf16 %v3875, %v3871
        %v4584 = vpack.c.bf16 %v3885, %v3881
        %v4585 = vpack.c.bf16 %v3895, %v3891
        %v4586 = vpack.c.bf16 %v3905, %v3901
        %v4587 = vpack.c.bf16 %v3915, %v3911
        %v4588 = vpack.c.bf16 %v3925, %v3921
        %4589 = vmatprep.subr.bf16.mxu0 0
        %4590 = vmatpush1.bf16.msra.mxu0 %v4581
        %4591 = vmatprep.subr.bf16.mxu0 0
        %4592 = vmatpush1.bf16.msra.mxu0 %v4582
        %4593 = vmatprep.subr.bf16.mxu0 0
        %4594 = vmatpush1.bf16.msra.mxu0 %v4583
        %4595 = vmatprep.subr.bf16.mxu0 0
        %4596 = vmatpush1.bf16.msra.mxu0 %v4584
        %4597 = vmatprep.subr.bf16.mxu0 0
        %4598 = vmatpush1.bf16.msra.mxu0 %v4585
        %4599 = vmatprep.subr.bf16.mxu0 0
        %4600 = vmatpush1.bf16.msra.mxu0 %v4586
        %4601 = vmatprep.subr.bf16.mxu0 0
        %4602 = vmatpush1.bf16.msra.mxu0 %v4587
        %4603 = vmatprep.subr.bf16.mxu0 0
        %4604 = vmatpush1.bf16.msra.mxu0 %v4588
        %4605 = vmatprep.subr.bf16.mxu0 0
        %4606 = vmatpush1.bf16.msra.mxu0 0
        %4607 = vmatprep.subr.bf16.mxu0 0
        %4608 = vmatpush1.bf16.msra.mxu0 0
        %4609 = vmatprep.subr.bf16.mxu0 0
        %4610 = vmatpush1.bf16.msra.mxu0 0
        %4611 = vmatprep.subr.bf16.mxu0 0
        %4612 = vmatpush1.bf16.msra.mxu0 0
        %4613 = vmatprep.subr.bf16.mxu0 0
        %4614 = vmatpush1.bf16.msra.mxu0 0
        %4615 = vmatprep.subr.bf16.mxu0 0
        %4616 = vmatpush1.bf16.msra.mxu0 0
        %4617 = vmatprep.subr.bf16.mxu0 0
        %4618 = vmatpush1.bf16.msra.mxu0 0
        %4619 = vmatprep.subr.bf16.mxu0 0
        %4620 = vmatpush1.bf16.msra.mxu0 0
        %4621 = vmatprep.mubr.bf16.mxu0 0
        %4622 = vmatmul.mubr.bf16.gmra.mrb[0].mxu0 %v4573
        %v4623 = vpop.f32.mrb[0].mxu0
        %v4624 = vadd.f32 0.0, %v4623
        %v4625 = vpop.f32.mrb[0].mxu0
        %v4626 = vpop.f32.mrb[0].mxu0
        %v4627 = vadd.f32 0.0, %v4626
        %v4628 = vpop.f32.mrb[0].mxu0
        %4629 = vmatprep.mubr.bf16.mxu0 0
        %4630 = vmatmul.mubr.bf16.gmra.mrb[0].mxu0 %v4574
        %v4631 = vpop.f32.mrb[0].mxu0
        %v4632 = vadd.f32 0.0, %v4631
        %v4633 = vpop.f32.mrb[0].mxu0
        %v4634 = vpop.f32.mrb[0].mxu0
        %v4635 = vadd.f32 0.0, %v4634
        %v4636 = vpop.f32.mrb[0].mxu0
        %4637 = vmatprep.mubr.bf16.mxu0 0
        %4638 = vmatmul.mubr.bf16.gmra.mrb[0].mxu0 %v4575
        %v4639 = vpop.f32.mrb[0].mxu0
        %v4640 = vadd.f32 0.0, %v4639
        %v4641 = vpop.f32.mrb[0].mxu0
        %v4642 = vpop.f32.mrb[0].mxu0
        %v4643 = vadd.f32 0.0, %v4642
        %v4644 = vpop.f32.mrb[0].mxu0
        %4645 = vmatprep.mubr.bf16.mxu0 0
        %4646 = vmatmul.mubr.bf16.gmra.mrb[0].mxu0 %v4576
        %v4647 = vpop.f32.mrb[0].mxu0
        %v4648 = vadd.f32 0.0, %v4647
        %v4649 = vpop.f32.mrb[0].mxu0
        %v4650 = vpop.f32.mrb[0].mxu0
        %v4651 = vadd.f32 0.0, %v4650
        %v4652 = vpop.f32.mrb[0].mxu0
        %4653 = vmatprep.mubr.bf16.mxu0 0
        %4654 = vmatmul.mubr.bf16.gmra.mrb[0].mxu0 %v4577
        %v4655 = vpop.f32.mrb[0].mxu0
        %v4656 = vadd.f32 0.0, %v4655
        %v4657 = vpop.f32.mrb[0].mxu0
        %v4658 = vpop.f32.mrb[0].mxu0
        %v4659 = vadd.f32 0.0, %v4658
        %v4660 = vpop.f32.mrb[0].mxu0
        %4661 = vmatprep.mubr.bf16.mxu0 0
        %4662 = vmatmul.mubr.bf16.gmra.mrb[0].mxu0 %v4578
        %v4663 = vpop.f32.mrb[0].mxu0
        %v4664 = vadd.f32 0.0, %v4663
        %v4665 = vpop.f32.mrb[0].mxu0
        %v4666 = vpop.f32.mrb[0].mxu0
        %v4667 = vadd.f32 0.0, %v4666
        %v4668 = vpop.f32.mrb[0].mxu0
        %4669 = vmatprep.mubr.bf16.mxu0 0
        %4670 = vmatmul.mubr.bf16.gmra.mrb[0].mxu0 %v4579
        %v4671 = vpop.f32.mrb[0].mxu0
        %v4672 = vadd.f32 0.0, %v4671
        %v4673 = vpop.f32.mrb[0].mxu0
        %v4674 = vpop.f32.mrb[0].mxu0
        %v4675 = vadd.f32 0.0, %v4674
        %v4676 = vpop.f32.mrb[0].mxu0
        %4677 = vmatprep.mubr.bf16.mxu0 0
        %4678 = vmatmul.mubr.bf16.gmra.mrb[0].mxu0 %v4580
        %v4679 = vpop.f32.mrb[0].mxu0
        %v4680 = vadd.f32 0.0, %v4679
        %v4681 = vpop.f32.mrb[0].mxu0
        %v4682 = vpop.f32.mrb[0].mxu0
        %v4683 = vadd.f32 0.0, %v4682
        %v4684 = vpop.f32.mrb[0].mxu0
        %4685 = vdwg.mxu0
        %4686 = vrot.lane.b32.xlu0 %v2947, 64
        %v4687 = vpop.permute.xlu0 %4686
        %4688 = vrot.lane.b32.xlu0 %v2951, 64
        %v4689 = vpop.permute.xlu0 %4688
        %4690 = vrot.lane.b32.xlu0 %v2957, 64
        %v4691 = vpop.permute.xlu0 %4690
        %4692 = vrot.lane.b32.xlu0 %v2961, 64
        %v4693 = vpop.permute.xlu0 %4692
        %4694 = vrot.lane.b32.xlu0 %v2967, 64
        %v4695 = vpop.permute.xlu0 %4694
        %4696 = vrot.lane.b32.xlu0 %v2971, 64
        %v4697 = vpop.permute.xlu0 %4696
        %4698 = vrot.lane.b32.xlu0 %v2977, 64
        %v4699 = vpop.permute.xlu0 %4698
        %4700 = vrot.lane.b32.xlu0 %v2981, 64
        %v4701 = vpop.permute.xlu0 %4700
        %4702 = vrot.lane.b32.xlu0 %v2987, 64
        %v4703 = vpop.permute.xlu0 %4702
        %4704 = vrot.lane.b32.xlu0 %v2991, 64
        %v4705 = vpop.permute.xlu0 %4704
        %4706 = vrot.lane.b32.xlu0 %v2997, 64
        %v4707 = vpop.permute.xlu0 %4706
        %4708 = vrot.lane.b32.xlu0 %v3001, 64
        %v4709 = vpop.permute.xlu0 %4708
        %4710 = vrot.lane.b32.xlu0 %v3007, 64
        %v4711 = vpop.permute.xlu0 %4710
        %4712 = vrot.lane.b32.xlu0 %v3011, 64
        %v4713 = vpop.permute.xlu0 %4712
        %4714 = vrot.lane.b32.xlu0 %v3017, 64
        %v4715 = vpop.permute.xlu0 %4714
        %4716 = vrot.lane.b32.xlu0 %v3021, 64
        %v4717 = vpop.permute.xlu0 %4716
        %4718 = vrot.lane.b32.xlu0 %v3399, 64
        %v4719 = vpop.permute.xlu0 %4718
        %4720 = vrot.lane.b32.xlu0 %v3403, 64
        %v4721 = vpop.permute.xlu0 %4720
        %4722 = vrot.lane.b32.xlu0 %v3409, 64
        %v4723 = vpop.permute.xlu0 %4722
        %4724 = vrot.lane.b32.xlu0 %v3413, 64
        %v4725 = vpop.permute.xlu0 %4724
        %4726 = vrot.lane.b32.xlu0 %v3419, 64
        %v4727 = vpop.permute.xlu0 %4726
        %4728 = vrot.lane.b32.xlu0 %v3423, 64
        %v4729 = vpop.permute.xlu0 %4728
        %4730 = vrot.lane.b32.xlu0 %v3429, 64
        %v4731 = vpop.permute.xlu0 %4730
        %4732 = vrot.lane.b32.xlu0 %v3433, 64
        %v4733 = vpop.permute.xlu0 %4732
        %4734 = vrot.lane.b32.xlu0 %v3439, 64
        %v4735 = vpop.permute.xlu0 %4734
        %4736 = vrot.lane.b32.xlu0 %v3443, 64
        %v4737 = vpop.permute.xlu0 %4736
        %4738 = vrot.lane.b32.xlu0 %v3449, 64
        %v4739 = vpop.permute.xlu0 %4738
        %4740 = vrot.lane.b32.xlu0 %v3453, 64
        %v4741 = vpop.permute.xlu0 %4740
        %4742 = vrot.lane.b32.xlu0 %v3459, 64
        %v4743 = vpop.permute.xlu0 %4742
        %4744 = vrot.lane.b32.xlu0 %v3463, 64
        %v4745 = vpop.permute.xlu0 %4744
        %4746 = vrot.lane.b32.xlu0 %v3469, 64
        %v4747 = vpop.permute.xlu0 %4746
        %4748 = vrot.lane.b32.xlu0 %v3473, 64
        %v4749 = vpop.permute.xlu0 %4748
        %v4750 = vsel %vm4171, %v4687, 0
        %v4752 = vsel %vm4171, %v4689, 0
        %v4754 = vsel %vm4171, %v4691, 0
        %v4756 = vsel %vm4171, %v4693, 0
        %v4758 = vsel %vm4171, %v4695, 0
        %v4760 = vsel %vm4171, %v4697, 0
        %v4762 = vsel %vm4171, %v4699, 0
        %v4764 = vsel %vm4171, %v4701, 0
        %v4766 = vsel %vm4171, %v4703, 0
        %v4768 = vsel %vm4171, %v4705, 0
        %v4770 = vsel %vm4171, %v4707, 0
        %v4772 = vsel %vm4171, %v4709, 0
        %v4774 = vsel %vm4171, %v4711, 0
        %v4776 = vsel %vm4171, %v4713, 0
        %v4778 = vsel %vm4171, %v4715, 0
        %v4780 = vsel %vm4171, %v4717, 0
        %v4782 = vsel %vm4171, %v4719, 0
        %v4784 = vsel %vm4171, %v4721, 0
        %v4786 = vsel %vm4171, %v4723, 0
        %v4788 = vsel %vm4171, %v4725, 0
        %v4790 = vsel %vm4171, %v4727, 0
        %v4792 = vsel %vm4171, %v4729, 0
        %v4794 = vsel %vm4171, %v4731, 0
        %v4796 = vsel %vm4171, %v4733, 0
        %v4798 = vsel %vm4171, %v4735, 0
        %v4800 = vsel %vm4171, %v4737, 0
        %v4802 = vsel %vm4171, %v4739, 0
        %v4804 = vsel %vm4171, %v4741, 0
        %v4806 = vsel %vm4171, %v4743, 0
        %v4808 = vsel %vm4171, %v4745, 0
        %v4810 = vsel %vm4171, %v4747, 0
        %v4812 = vsel %vm4171, %v4749, 0
        %4814 = vmatprep.subr.mxu0 0.0
        %4815 = vmatpush1.xpose.msra.mxu0 %v4782
        %4816 = vmatprep.subr.mxu0 0.0
        %4817 = vmatpush1.xpose.msra.mxu0 %v4784
        %4818 = vmatprep.subr.mxu0 0.0
        %4819 = vmatpush1.xpose.msra.mxu0 %v4786
        %4820 = vmatprep.subr.mxu0 0.0
        %4821 = vmatpush1.xpose.msra.mxu0 %v4788
        %4822 = vmatprep.subr.mxu0 0.0
        %4823 = vmatpush1.xpose.msra.mxu0 %v4790
        %4824 = vmatprep.subr.mxu0 0.0
        %4825 = vmatpush1.xpose.msra.mxu0 %v4792
        %4826 = vmatprep.subr.mxu0 0.0
        %4827 = vmatpush1.xpose.msra.mxu0 %v4794
        %4828 = vmatprep.subr.mxu0 0.0
        %4829 = vmatpush1.xpose.msra.mxu0 %v4796
        %4830 = vmatprep.subr.mxu0 0.0
        %4831 = vmatpush1.xpose.msra.mxu0 %v4798
        %4832 = vmatprep.subr.mxu0 0.0
        %4833 = vmatpush1.xpose.msra.mxu0 %v4800
        %4834 = vmatprep.subr.mxu0 0.0
        %4835 = vmatpush1.xpose.msra.mxu0 %v4802
        %4836 = vmatprep.subr.mxu0 0.0
        %4837 = vmatpush1.xpose.msra.mxu0 %v4804
        %4838 = vmatprep.subr.mxu0 0.0
        %4839 = vmatpush1.xpose.msra.mxu0 %v4806
        %4840 = vmatprep.subr.mxu0 0.0
        %4841 = vmatpush1.xpose.msra.mxu0 %v4808
        %4842 = vmatprep.subr.mxu0 0.0
        %4843 = vmatpush1.xpose.msra.mxu0 %v4810
        %4844 = vmatprep.subr.mxu0 0.0
        %4845 = vmatpush1.xpose.msra.mxu0 %v4812
        %4846 = vmatprep.subr.mxu0 0.0
        %4847 = vmatpush1.xpose.msra.mxu0 0.0
        %4848 = vmatprep.subr.mxu0 0.0
        %4849 = vmatpush1.xpose.msra.mxu0 0.0
        %4850 = vmatprep.subr.mxu0 0.0
        %4851 = vmatpush1.xpose.msra.mxu0 0.0
        %4852 = vmatprep.subr.mxu0 0.0
        %4853 = vmatpush1.xpose.msra.mxu0 0.0
        %4854 = vmatprep.subr.mxu0 0.0
        %4855 = vmatpush1.xpose.msra.mxu0 0.0
        %4856 = vmatprep.subr.mxu0 0.0
        %4857 = vmatpush1.xpose.msra.mxu0 0.0
        %4858 = vmatprep.subr.mxu0 0.0
        %4859 = vmatpush1.xpose.msra.mxu0 0.0
        %4860 = vmatprep.subr.mxu0 0.0
        %4861 = vmatpush1.xpose.msra.mxu0 0.0
        %4862 = vmatprep.subr.mxu0 0.0
        %4863 = vmatpush1.xpose.msra.mxu0 0.0
        %4864 = vmatprep.subr.mxu0 0.0
        %4865 = vmatpush1.xpose.msra.mxu0 0.0
        %4866 = vmatprep.subr.mxu0 0.0
        %4867 = vmatpush1.xpose.msra.mxu0 0.0
        %4868 = vmatprep.subr.mxu0 0.0
        %4869 = vmatpush1.xpose.msra.mxu0 0.0
        %4870 = vmatprep.subr.mxu0 0.0
        %4871 = vmatpush1.xpose.msra.mxu0 0.0
        %4872 = vmatprep.subr.mxu0 0.0
        %4873 = vmatpush1.xpose.msra.mxu0 0.0
        %4874 = vmatprep.subr.mxu0 0.0
        %4875 = vmatpush1.xpose.msra.mxu0 0.0
        %4876 = vmatprep.subr.mxu0 0.0
        %4877 = vmatpush1.xpose.msra.mxu0 0.0
        %4878 = vmatprep.mubr.f32.mxu0 0.0
        %4879 = vmatmul.mubr.f32.gmra.mrb[0].mxu0 %v4750
        %v4880 = vpop.f32.mrb[0].mxu0
        %v4881 = vadd.f32 %v4155, %v4880
        %v4882 = vpop.f32.mrb[0].mxu0
        %4883 = vmatprep.mubr.f32.mxu0 0.0
        %4884 = vmatmul.mubr.f32.gmra.mrb[0].mxu0 %v4752
        %v4885 = vpop.f32.mrb[0].mxu0
        %v4886 = vadd.f32 %v4156, %v4885
        %v4887 = vpop.f32.mrb[0].mxu0
        %4888 = vmatprep.mubr.f32.mxu0 0.0
        %4889 = vmatmul.mubr.f32.gmra.mrb[0].mxu0 %v4754
        %v4890 = vpop.f32.mrb[0].mxu0
        %v4891 = vadd.f32 %v4157, %v4890
        %v4892 = vpop.f32.mrb[0].mxu0
        %4893 = vmatprep.mubr.f32.mxu0 0.0
        %4894 = vmatmul.mubr.f32.gmra.mrb[0].mxu0 %v4756
        %v4895 = vpop.f32.mrb[0].mxu0
        %v4896 = vadd.f32 %v4158, %v4895
        %v4897 = vpop.f32.mrb[0].mxu0
        %4898 = vmatprep.mubr.f32.mxu0 0.0
        %4899 = vmatmul.mubr.f32.gmra.mrb[0].mxu0 %v4758
        %v4900 = vpop.f32.mrb[0].mxu0
        %v4901 = vadd.f32 %v4159, %v4900
        %v4902 = vpop.f32.mrb[0].mxu0
        %4903 = vmatprep.mubr.f32.mxu0 0.0
        %4904 = vmatmul.mubr.f32.gmra.mrb[0].mxu0 %v4760
        %v4905 = vpop.f32.mrb[0].mxu0
        %v4906 = vadd.f32 %v4160, %v4905
        %v4907 = vpop.f32.mrb[0].mxu0
        %4908 = vmatprep.mubr.f32.mxu0 0.0
        %4909 = vmatmul.mubr.f32.gmra.mrb[0].mxu0 %v4762
        %v4910 = vpop.f32.mrb[0].mxu0
        %v4911 = vadd.f32 %v4161, %v4910
        %v4912 = vpop.f32.mrb[0].mxu0
        %4913 = vmatprep.mubr.f32.mxu0 0.0
        %4914 = vmatmul.mubr.f32.gmra.mrb[0].mxu0 %v4764
        %v4915 = vpop.f32.mrb[0].mxu0
        %v4916 = vadd.f32 %v4162, %v4915
        %v4917 = vpop.f32.mrb[0].mxu0
        %4918 = vmatprep.mubr.f32.mxu0 0.0
        %4919 = vmatmul.mubr.f32.gmra.mrb[0].mxu0 %v4766
        %v4920 = vpop.f32.mrb[0].mxu0
        %v4921 = vadd.f32 %v4163, %v4920
        %v4922 = vpop.f32.mrb[0].mxu0
        %4923 = vmatprep.mubr.f32.mxu0 0.0
        %4924 = vmatmul.mubr.f32.gmra.mrb[0].mxu0 %v4768
        %v4925 = vpop.f32.mrb[0].mxu0
        %v4926 = vadd.f32 %v4164, %v4925
        %v4927 = vpop.f32.mrb[0].mxu0
        %4928 = vmatprep.mubr.f32.mxu0 0.0
        %4929 = vmatmul.mubr.f32.gmra.mrb[0].mxu0 %v4770
        %v4930 = vpop.f32.mrb[0].mxu0
        %v4931 = vadd.f32 %v4165, %v4930
        %v4932 = vpop.f32.mrb[0].mxu0
        %4933 = vmatprep.mubr.f32.mxu0 0.0
        %4934 = vmatmul.mubr.f32.gmra.mrb[0].mxu0 %v4772
        %v4935 = vpop.f32.mrb[0].mxu0
        %v4936 = vadd.f32 %v4166, %v4935
        %v4937 = vpop.f32.mrb[0].mxu0
        %4938 = vmatprep.mubr.f32.mxu0 0.0
        %4939 = vmatmul.mubr.f32.gmra.mrb[0].mxu0 %v4774
        %v4940 = vpop.f32.mrb[0].mxu0
        %v4941 = vadd.f32 %v4167, %v4940
        %v4942 = vpop.f32.mrb[0].mxu0
        %4943 = vmatprep.mubr.f32.mxu0 0.0
        %4944 = vmatmul.mubr.f32.gmra.mrb[0].mxu0 %v4776
        %v4945 = vpop.f32.mrb[0].mxu0
        %v4946 = vadd.f32 %v4168, %v4945
        %v4947 = vpop.f32.mrb[0].mxu0
        %4948 = vmatprep.mubr.f32.mxu0 0.0
        %4949 = vmatmul.mubr.f32.gmra.mrb[0].mxu0 %v4778
        %v4950 = vpop.f32.mrb[0].mxu0
        %v4951 = vadd.f32 %v4169, %v4950
        %v4952 = vpop.f32.mrb[0].mxu0
        %4953 = vmatprep.mubr.f32.mxu0 0.0
        %4954 = vmatmul.mubr.f32.gmra.mrb[0].mxu0 %v4780
        %v4955 = vpop.f32.mrb[0].mxu0
        %v4956 = vadd.f32 %v4170, %v4955
        %v4957 = vpop.f32.mrb[0].mxu0
        %4958 = vdwg.mxu0
        %4959 = vmax.xlane.f32.xlu0 %v4881
        %v4960 = vpop.xlane.xlu0 %4959
        %4961 = vmax.xlane.f32.xlu0 %v4886
        %v4962 = vpop.xlane.xlu0 %4961
        %4963 = vmax.xlane.f32.xlu0 %v4891
        %v4964 = vpop.xlane.xlu0 %4963
        %4965 = vmax.xlane.f32.xlu0 %v4896
        %v4966 = vpop.xlane.xlu0 %4965
        %4967 = vmax.xlane.f32.xlu0 %v4901
        %v4968 = vpop.xlane.xlu0 %4967
        %4969 = vmax.xlane.f32.xlu0 %v4906
        %v4970 = vpop.xlane.xlu0 %4969
        %4971 = vmax.xlane.f32.xlu0 %v4911
        %v4972 = vpop.xlane.xlu0 %4971
        %4973 = vmax.xlane.f32.xlu0 %v4916
        %v4974 = vpop.xlane.xlu0 %4973
        %4975 = vmax.xlane.f32.xlu0 %v4921
        %v4976 = vpop.xlane.xlu0 %4975
        %4977 = vmax.xlane.f32.xlu0 %v4926
        %v4978 = vpop.xlane.xlu0 %4977
        %4979 = vmax.xlane.f32.xlu0 %v4931
        %v4980 = vpop.xlane.xlu0 %4979
        %4981 = vmax.xlane.f32.xlu0 %v4936
        %v4982 = vpop.xlane.xlu0 %4981
        %4983 = vmax.xlane.f32.xlu0 %v4941
        %v4984 = vpop.xlane.xlu0 %4983
        %4985 = vmax.xlane.f32.xlu0 %v4946
        %v4986 = vpop.xlane.xlu0 %4985
        %4987 = vmax.xlane.f32.xlu0 %v4951
        %v4988 = vpop.xlane.xlu0 %4987
        %4989 = vmax.xlane.f32.xlu0 %v4956
        %v4990 = vpop.xlane.xlu0 %4989
        %v4991 = vsub.f32 %v4881, %v4960
        %v4992 = vsub.f32 %v4886, %v4962
        %v4993 = vsub.f32 %v4891, %v4964
        %v4994 = vsub.f32 %v4896, %v4966
        %v4995 = vsub.f32 %v4901, %v4968
        %v4996 = vsub.f32 %v4906, %v4970
        %v4997 = vsub.f32 %v4911, %v4972
        %v4998 = vsub.f32 %v4916, %v4974
        %v4999 = vsub.f32 %v4921, %v4976
        %v5000 = vsub.f32 %v4926, %v4978
        %v5001 = vsub.f32 %v4931, %v4980
        %v5002 = vsub.f32 %v4936, %v4982
        %v5003 = vsub.f32 %v4941, %v4984
        %v5004 = vsub.f32 %v4946, %v4986
        %v5005 = vsub.f32 %v4951, %v4988
        %v5006 = vsub.f32 %v4956, %v4990
        %v5007 = vmul.f32 %v4991, 1.442695
        %v5008 = vpow.pop %v5007
        %v5009 = vmul.f32 %v4992, 1.442695
        %v5010 = vpow.pop %v5009
        %v5011 = vmul.f32 %v4993, 1.442695
        %v5012 = vpow.pop %v5011
        %v5013 = vmul.f32 %v4994, 1.442695
        %v5014 = vpow.pop %v5013
        %v5015 = vmul.f32 %v4995, 1.442695
        %v5016 = vpow.pop %v5015
        %v5017 = vmul.f32 %v4996, 1.442695
        %v5018 = vpow.pop %v5017
        %v5019 = vmul.f32 %v4997, 1.442695
        %v5020 = vpow.pop %v5019
        %v5021 = vmul.f32 %v4998, 1.442695
        %v5022 = vpow.pop %v5021
        %v5023 = vmul.f32 %v4999, 1.442695
        %v5024 = vpow.pop %v5023
        %v5025 = vmul.f32 %v5000, 1.442695
        %v5026 = vpow.pop %v5025
        %v5027 = vmul.f32 %v5001, 1.442695
        %v5028 = vpow.pop %v5027
        %v5029 = vmul.f32 %v5002, 1.442695
        %v5030 = vpow.pop %v5029
        %v5031 = vmul.f32 %v5003, 1.442695
        %v5032 = vpow.pop %v5031
        %v5033 = vmul.f32 %v5004, 1.442695
        %v5034 = vpow.pop %v5033
        %v5035 = vmul.f32 %v5005, 1.442695
        %v5036 = vpow.pop %v5035
        %v5037 = vmul.f32 %v5006, 1.442695
        %v5038 = vpow.pop %v5037
        %5039 = vadd.xlane.f32.xlu0 %v5008
        %v5040 = vpop.xlane.xlu0 %5039
        %5041 = vadd.xlane.f32.xlu0 %v5010
        %v5042 = vpop.xlane.xlu0 %5041
        %5043 = vadd.xlane.f32.xlu0 %v5012
        %v5044 = vpop.xlane.xlu0 %5043
        %5045 = vadd.xlane.f32.xlu0 %v5014
        %v5046 = vpop.xlane.xlu0 %5045
        %5047 = vadd.xlane.f32.xlu0 %v5016
        %v5048 = vpop.xlane.xlu0 %5047
        %5049 = vadd.xlane.f32.xlu0 %v5018
        %v5050 = vpop.xlane.xlu0 %5049
        %5051 = vadd.xlane.f32.xlu0 %v5020
        %v5052 = vpop.xlane.xlu0 %5051
        %5053 = vadd.xlane.f32.xlu0 %v5022
        %v5054 = vpop.xlane.xlu0 %5053
        %5055 = vadd.xlane.f32.xlu0 %v5024
        %v5056 = vpop.xlane.xlu0 %5055
        %5057 = vadd.xlane.f32.xlu0 %v5026
        %v5058 = vpop.xlane.xlu0 %5057
        %5059 = vadd.xlane.f32.xlu0 %v5028
        %v5060 = vpop.xlane.xlu0 %5059
        %5061 = vadd.xlane.f32.xlu0 %v5030
        %v5062 = vpop.xlane.xlu0 %5061
        %5063 = vadd.xlane.f32.xlu0 %v5032
        %v5064 = vpop.xlane.xlu0 %5063
        %5065 = vadd.xlane.f32.xlu0 %v5034
        %v5066 = vpop.xlane.xlu0 %5065
        %5067 = vadd.xlane.f32.xlu0 %v5036
        %v5068 = vpop.xlane.xlu0 %5067
        %5069 = vadd.xlane.f32.xlu0 %v5038
        %v5070 = vpop.xlane.xlu0 %5069
        %v5071 = vrcp.pop %v5040
        %v5072 = vmul.f32 1.0, %v5071
        %v5073 = vrcp.pop %v5042
        %v5074 = vmul.f32 1.0, %v5073
        %v5075 = vrcp.pop %v5044
        %v5076 = vmul.f32 1.0, %v5075
        %v5077 = vrcp.pop %v5046
        %v5078 = vmul.f32 1.0, %v5077
        %v5079 = vrcp.pop %v5048
        %v5080 = vmul.f32 1.0, %v5079
        %v5081 = vrcp.pop %v5050
        %v5082 = vmul.f32 1.0, %v5081
        %v5083 = vrcp.pop %v5052
        %v5084 = vmul.f32 1.0, %v5083
        %v5085 = vrcp.pop %v5054
        %v5086 = vmul.f32 1.0, %v5085
        %v5087 = vrcp.pop %v5056
        %v5088 = vmul.f32 1.0, %v5087
        %v5089 = vrcp.pop %v5058
        %v5090 = vmul.f32 1.0, %v5089
        %v5091 = vrcp.pop %v5060
        %v5092 = vmul.f32 1.0, %v5091
        %v5093 = vrcp.pop %v5062
        %v5094 = vmul.f32 1.0, %v5093
        %v5095 = vrcp.pop %v5064
        %v5096 = vmul.f32 1.0, %v5095
        %v5097 = vrcp.pop %v5066
        %v5098 = vmul.f32 1.0, %v5097
        %v5099 = vrcp.pop %v5068
        %v5100 = vmul.f32 1.0, %v5099
        %v5101 = vrcp.pop %v5070
        %v5102 = vmul.f32 1.0, %v5101
        %v5103 = vmul.f32 %v5008, %v5072
        %v5104 = vmul.f32 %v5010, %v5074
        %v5105 = vmul.f32 %v5012, %v5076
        %v5106 = vmul.f32 %v5014, %v5078
        %v5107 = vmul.f32 %v5016, %v5080
        %v5108 = vmul.f32 %v5018, %v5082
        %v5109 = vmul.f32 %v5020, %v5084
        %v5110 = vmul.f32 %v5022, %v5086
        %v5111 = vmul.f32 %v5024, %v5088
        %v5112 = vmul.f32 %v5026, %v5090
        %v5113 = vmul.f32 %v5028, %v5092
        %v5114 = vmul.f32 %v5030, %v5094
        %v5115 = vmul.f32 %v5032, %v5096
        %v5116 = vmul.f32 %v5034, %v5098
        %v5117 = vmul.f32 %v5036, %v5100
        %v5118 = vmul.f32 %v5038, %v5102
        %v5119 = vpack.c.bf16 %v5104, %v5103
        %v5120 = vpack.c.bf16 %v5106, %v5105
        %v5121 = vpack.c.bf16 %v5108, %v5107
        %v5122 = vpack.c.bf16 %v5110, %v5109
        %v5123 = vpack.c.bf16 %v5112, %v5111
        %v5124 = vpack.c.bf16 %v5114, %v5113
        %v5125 = vpack.c.bf16 %v5116, %v5115
        %v5126 = vpack.c.bf16 %v5118, %v5117
        %5135 = vrot.lane.b32.xlu0 %v4581, 64
        %v5136 = vpop.permute.xlu0 %5135
        %5137 = vrot.lane.b32.xlu0 %v4582, 64
        %v5138 = vpop.permute.xlu0 %5137
        %5139 = vrot.lane.b32.xlu0 %v4583, 64
        %v5140 = vpop.permute.xlu0 %5139
        %5141 = vrot.lane.b32.xlu0 %v4584, 64
        %v5142 = vpop.permute.xlu0 %5141
        %5143 = vrot.lane.b32.xlu0 %v4585, 64
        %v5144 = vpop.permute.xlu0 %5143
        %5145 = vrot.lane.b32.xlu0 %v4586, 64
        %v5146 = vpop.permute.xlu0 %5145
        %5147 = vrot.lane.b32.xlu0 %v4587, 64
        %v5148 = vpop.permute.xlu0 %5147
        %5149 = vrot.lane.b32.xlu0 %v4588, 64
        %v5150 = vpop.permute.xlu0 %5149
        %5159 = vmatprep.subr.bf16.mxu0 0
        %5160 = vmatpush1.bf16.msra.mxu0 %v5136
        %5161 = vmatprep.subr.bf16.mxu0 0
        %5162 = vmatpush1.bf16.msra.mxu0 %v5138
        %5163 = vmatprep.subr.bf16.mxu0 0
        %5164 = vmatpush1.bf16.msra.mxu0 %v5140
        %5165 = vmatprep.subr.bf16.mxu0 0
        %5166 = vmatpush1.bf16.msra.mxu0 %v5142
        %5167 = vmatprep.subr.bf16.mxu0 0
        %5168 = vmatpush1.bf16.msra.mxu0 %v5144
        %5169 = vmatprep.subr.bf16.mxu0 0
        %5170 = vmatpush1.bf16.msra.mxu0 %v5146
        %5171 = vmatprep.subr.bf16.mxu0 0
        %5172 = vmatpush1.bf16.msra.mxu0 %v5148
        %5173 = vmatprep.subr.bf16.mxu0 0
        %5174 = vmatpush1.bf16.msra.mxu0 %v5150
        %5175 = vmatprep.subr.bf16.mxu0 0
        %5176 = vmatpush1.bf16.msra.mxu0 0
        %5177 = vmatprep.subr.bf16.mxu0 0
        %5178 = vmatpush1.bf16.msra.mxu0 0
        %5179 = vmatprep.subr.bf16.mxu0 0
        %5180 = vmatpush1.bf16.msra.mxu0 0
        %5181 = vmatprep.subr.bf16.mxu0 0
        %5182 = vmatpush1.bf16.msra.mxu0 0
        %5183 = vmatprep.subr.bf16.mxu0 0
        %5184 = vmatpush1.bf16.msra.mxu0 0
        %5185 = vmatprep.subr.bf16.mxu0 0
        %5186 = vmatpush1.bf16.msra.mxu0 0
        %5187 = vmatprep.subr.bf16.mxu0 0
        %5188 = vmatpush1.bf16.msra.mxu0 0
        %5189 = vmatprep.subr.bf16.mxu0 0
        %5190 = vmatpush1.bf16.msra.mxu0 0
        %5191 = vmatprep.mubr.bf16.mxu0 0
        %5192 = vmatmul.mubr.bf16.gmra.mrb[0].mxu0 %v5119
        %v5193 = vpop.f32.mrb[0].mxu0
        %v5194 = vadd.f32 0.0, %v5193
        %v5195 = vpop.f32.mrb[0].mxu0
        %v5196 = vpop.f32.mrb[0].mxu0
        %v5197 = vadd.f32 0.0, %v5196
        %v5198 = vpop.f32.mrb[0].mxu0
        %5199 = vmatprep.mubr.bf16.mxu0 0
        %5200 = vmatmul.mubr.bf16.gmra.mrb[0].mxu0 %v5120
        %v5201 = vpop.f32.mrb[0].mxu0
        %v5202 = vadd.f32 0.0, %v5201
        %v5203 = vpop.f32.mrb[0].mxu0
        %v5204 = vpop.f32.mrb[0].mxu0
        %v5205 = vadd.f32 0.0, %v5204
        %v5206 = vpop.f32.mrb[0].mxu0
        %5207 = vmatprep.mubr.bf16.mxu0 0
        %5208 = vmatmul.mubr.bf16.gmra.mrb[0].mxu0 %v5121
        %v5209 = vpop.f32.mrb[0].mxu0
        %v5210 = vadd.f32 0.0, %v5209
        %v5211 = vpop.f32.mrb[0].mxu0
        %v5212 = vpop.f32.mrb[0].mxu0
        %v5213 = vadd.f32 0.0, %v5212
        %v5214 = vpop.f32.mrb[0].mxu0
        %5215 = vmatprep.mubr.bf16.mxu0 0
        %5216 = vmatmul.mubr.bf16.gmra.mrb[0].mxu0 %v5122
        %v5217 = vpop.f32.mrb[0].mxu0
        %v5218 = vadd.f32 0.0, %v5217
        %v5219 = vpop.f32.mrb[0].mxu0
        %v5220 = vpop.f32.mrb[0].mxu0
        %v5221 = vadd.f32 0.0, %v5220
        %v5222 = vpop.f32.mrb[0].mxu0
        %5223 = vmatprep.mubr.bf16.mxu0 0
        %5224 = vmatmul.mubr.bf16.gmra.mrb[0].mxu0 %v5123
        %v5225 = vpop.f32.mrb[0].mxu0
        %v5226 = vadd.f32 0.0, %v5225
        %v5227 = vpop.f32.mrb[0].mxu0
        %v5228 = vpop.f32.mrb[0].mxu0
        %v5229 = vadd.f32 0.0, %v5228
        %v5230 = vpop.f32.mrb[0].mxu0
        %5231 = vmatprep.mubr.bf16.mxu0 0
        %5232 = vmatmul.mubr.bf16.gmra.mrb[0].mxu0 %v5124
        %v5233 = vpop.f32.mrb[0].mxu0
        %v5234 = vadd.f32 0.0, %v5233
        %v5235 = vpop.f32.mrb[0].mxu0
        %v5236 = vpop.f32.mrb[0].mxu0
        %v5237 = vadd.f32 0.0, %v5236
        %v5238 = vpop.f32.mrb[0].mxu0
        %5239 = vmatprep.mubr.bf16.mxu0 0
        %5240 = vmatmul.mubr.bf16.gmra.mrb[0].mxu0 %v5125
        %v5241 = vpop.f32.mrb[0].mxu0
        %v5242 = vadd.f32 0.0, %v5241
        %v5243 = vpop.f32.mrb[0].mxu0
        %v5244 = vpop.f32.mrb[0].mxu0
        %v5245 = vadd.f32 0.0, %v5244
        %v5246 = vpop.f32.mrb[0].mxu0
        %5247 = vmatprep.mubr.bf16.mxu0 0
        %5248 = vmatmul.mubr.bf16.gmra.mrb[0].mxu0 %v5126
        %v5249 = vpop.f32.mrb[0].mxu0
        %v5250 = vadd.f32 0.0, %v5249
        %v5251 = vpop.f32.mrb[0].mxu0
        %v5252 = vpop.f32.mrb[0].mxu0
        %v5253 = vadd.f32 0.0, %v5252
        %v5254 = vpop.f32.mrb[0].mxu0
        %5255 = vdwg.mxu0
        %v5257 = vsel %vm4171, %v2949, 0
        %v5260 = vsel %vm4171, %v2953, 0
        %v5263 = vsel %vm4171, %v2959, 0
        %v5266 = vsel %vm4171, %v2963, 0
        %v5269 = vsel %vm4171, %v2969, 0
        %v5272 = vsel %vm4171, %v2973, 0
        %v5275 = vsel %vm4171, %v2979, 0
        %v5278 = vsel %vm4171, %v2983, 0
        %v5281 = vsel %vm4171, %v2989, 0
        %v5284 = vsel %vm4171, %v2993, 0
        %v5287 = vsel %vm4171, %v2999, 0
        %v5290 = vsel %vm4171, %v3003, 0
        %v5293 = vsel %vm4171, %v3009, 0
        %v5296 = vsel %vm4171, %v3013, 0
        %v5299 = vsel %vm4171, %v3019, 0
        %v5302 = vsel %vm4171, %v3023, 0
        %v5305 = vsel %vm4171, %v3401, 0
        %v5308 = vsel %vm4171, %v3405, 0
        %v5311 = vsel %vm4171, %v3411, 0
        %v5314 = vsel %vm4171, %v3415, 0
        %v5317 = vsel %vm4171, %v3421, 0
        %v5320 = vsel %vm4171, %v3425, 0
        %v5323 = vsel %vm4171, %v3431, 0
        %v5326 = vsel %vm4171, %v3435, 0
        %v5329 = vsel %vm4171, %v3441, 0
        %v5332 = vsel %vm4171, %v3445, 0
        %v5335 = vsel %vm4171, %v3451, 0
        %v5338 = vsel %vm4171, %v3455, 0
        %v5341 = vsel %vm4171, %v3461, 0
        %v5344 = vsel %vm4171, %v3465, 0
        %v5347 = vsel %vm4171, %v3471, 0
        %v5350 = vsel %vm4171, %v3475, 0
        %5352 = vmatprep.subr.mxu0 0.0
        %5353 = vmatpush1.xpose.msra.mxu0 %v5305
        %5354 = vmatprep.subr.mxu0 0.0
        %5355 = vmatpush1.xpose.msra.mxu0 %v5308
        %5356 = vmatprep.subr.mxu0 0.0
        %5357 = vmatpush1.xpose.msra.mxu0 %v5311
        %5358 = vmatprep.subr.mxu0 0.0
        %5359 = vmatpush1.xpose.msra.mxu0 %v5314
        %5360 = vmatprep.subr.mxu0 0.0
        %5361 = vmatpush1.xpose.msra.mxu0 %v5317
        %5362 = vmatprep.subr.mxu0 0.0
        %5363 = vmatpush1.xpose.msra.mxu0 %v5320
        %5364 = vmatprep.subr.mxu0 0.0
        %5365 = vmatpush1.xpose.msra.mxu0 %v5323
        %5366 = vmatprep.subr.mxu0 0.0
        %5367 = vmatpush1.xpose.msra.mxu0 %v5326
        %5368 = vmatprep.subr.mxu0 0.0
        %5369 = vmatpush1.xpose.msra.mxu0 %v5329
        %5370 = vmatprep.subr.mxu0 0.0
        %5371 = vmatpush1.xpose.msra.mxu0 %v5332
        %5372 = vmatprep.subr.mxu0 0.0
        %5373 = vmatpush1.xpose.msra.mxu0 %v5335
        %5374 = vmatprep.subr.mxu0 0.0
        %5375 = vmatpush1.xpose.msra.mxu0 %v5338
        %5376 = vmatprep.subr.mxu0 0.0
        %5377 = vmatpush1.xpose.msra.mxu0 %v5341
        %5378 = vmatprep.subr.mxu0 0.0
        %5379 = vmatpush1.xpose.msra.mxu0 %v5344
        %5380 = vmatprep.subr.mxu0 0.0
        %5381 = vmatpush1.xpose.msra.mxu0 %v5347
        %5382 = vmatprep.subr.mxu0 0.0
        %5383 = vmatpush1.xpose.msra.mxu0 %v5350
        %5384 = vmatprep.subr.mxu0 0.0
        %5385 = vmatpush1.xpose.msra.mxu0 0.0
        %5386 = vmatprep.subr.mxu0 0.0
        %5387 = vmatpush1.xpose.msra.mxu0 0.0
        %5388 = vmatprep.subr.mxu0 0.0
        %5389 = vmatpush1.xpose.msra.mxu0 0.0
        %5390 = vmatprep.subr.mxu0 0.0
        %5391 = vmatpush1.xpose.msra.mxu0 0.0
        %5392 = vmatprep.subr.mxu0 0.0
        %5393 = vmatpush1.xpose.msra.mxu0 0.0
        %5394 = vmatprep.subr.mxu0 0.0
        %5395 = vmatpush1.xpose.msra.mxu0 0.0
        %5396 = vmatprep.subr.mxu0 0.0
        %5397 = vmatpush1.xpose.msra.mxu0 0.0
        %5398 = vmatprep.subr.mxu0 0.0
        %5399 = vmatpush1.xpose.msra.mxu0 0.0
        %5400 = vmatprep.subr.mxu0 0.0
        %5401 = vmatpush1.xpose.msra.mxu0 0.0
        %5402 = vmatprep.subr.mxu0 0.0
        %5403 = vmatpush1.xpose.msra.mxu0 0.0
        %5404 = vmatprep.subr.mxu0 0.0
        %5405 = vmatpush1.xpose.msra.mxu0 0.0
        %5406 = vmatprep.subr.mxu0 0.0
        %5407 = vmatpush1.xpose.msra.mxu0 0.0
        %5408 = vmatprep.subr.mxu0 0.0
        %5409 = vmatpush1.xpose.msra.mxu0 0.0
        %5410 = vmatprep.subr.mxu0 0.0
        %5411 = vmatpush1.xpose.msra.mxu0 0.0
        %5412 = vmatprep.subr.mxu0 0.0
        %5413 = vmatpush1.xpose.msra.mxu0 0.0
        %5414 = vmatprep.subr.mxu0 0.0
        %5415 = vmatpush1.xpose.msra.mxu0 0.0
        %5416 = vmatprep.mubr.f32.mxu0 0.0
        %5417 = vmatmul.mubr.f32.gmra.mrb[0].mxu0 %v5257
        %v5418 = vpop.f32.mrb[0].mxu0
        %v5419 = vadd.f32 %v4155, %v5418
        %v5420 = vpop.f32.mrb[0].mxu0
        %5421 = vmatprep.mubr.f32.mxu0 0.0
        %5422 = vmatmul.mubr.f32.gmra.mrb[0].mxu0 %v5260
        %v5423 = vpop.f32.mrb[0].mxu0
        %v5424 = vadd.f32 %v4156, %v5423
        %v5425 = vpop.f32.mrb[0].mxu0
        %5426 = vmatprep.mubr.f32.mxu0 0.0
        %5427 = vmatmul.mubr.f32.gmra.mrb[0].mxu0 %v5263
        %v5428 = vpop.f32.mrb[0].mxu0
        %v5429 = vadd.f32 %v4157, %v5428
        %v5430 = vpop.f32.mrb[0].mxu0
        %5431 = vmatprep.mubr.f32.mxu0 0.0
        %5432 = vmatmul.mubr.f32.gmra.mrb[0].mxu0 %v5266
        %v5433 = vpop.f32.mrb[0].mxu0
        %v5434 = vadd.f32 %v4158, %v5433
        %v5435 = vpop.f32.mrb[0].mxu0
        %5436 = vmatprep.mubr.f32.mxu0 0.0
        %5437 = vmatmul.mubr.f32.gmra.mrb[0].mxu0 %v5269
        %v5438 = vpop.f32.mrb[0].mxu0
        %v5439 = vadd.f32 %v4159, %v5438
        %v5440 = vpop.f32.mrb[0].mxu0
        %5441 = vmatprep.mubr.f32.mxu0 0.0
        %5442 = vmatmul.mubr.f32.gmra.mrb[0].mxu0 %v5272
        %v5443 = vpop.f32.mrb[0].mxu0
        %v5444 = vadd.f32 %v4160, %v5443
        %v5445 = vpop.f32.mrb[0].mxu0
        %5446 = vmatprep.mubr.f32.mxu0 0.0
        %5447 = vmatmul.mubr.f32.gmra.mrb[0].mxu0 %v5275
        %v5448 = vpop.f32.mrb[0].mxu0
        %v5449 = vadd.f32 %v4161, %v5448
        %v5450 = vpop.f32.mrb[0].mxu0
        %5451 = vmatprep.mubr.f32.mxu0 0.0
        %5452 = vmatmul.mubr.f32.gmra.mrb[0].mxu0 %v5278
        %v5453 = vpop.f32.mrb[0].mxu0
        %v5454 = vadd.f32 %v4162, %v5453
        %v5455 = vpop.f32.mrb[0].mxu0
        %5456 = vmatprep.mubr.f32.mxu0 0.0
        %5457 = vmatmul.mubr.f32.gmra.mrb[0].mxu0 %v5281
        %v5458 = vpop.f32.mrb[0].mxu0
        %v5459 = vadd.f32 %v4163, %v5458
        %v5460 = vpop.f32.mrb[0].mxu0
        %5461 = vmatprep.mubr.f32.mxu0 0.0
        %5462 = vmatmul.mubr.f32.gmra.mrb[0].mxu0 %v5284
        %v5463 = vpop.f32.mrb[0].mxu0
        %v5464 = vadd.f32 %v4164, %v5463
        %v5465 = vpop.f32.mrb[0].mxu0
        %5466 = vmatprep.mubr.f32.mxu0 0.0
        %5467 = vmatmul.mubr.f32.gmra.mrb[0].mxu0 %v5287
        %v5468 = vpop.f32.mrb[0].mxu0
        %v5469 = vadd.f32 %v4165, %v5468
        %v5470 = vpop.f32.mrb[0].mxu0
        %5471 = vmatprep.mubr.f32.mxu0 0.0
        %5472 = vmatmul.mubr.f32.gmra.mrb[0].mxu0 %v5290
        %v5473 = vpop.f32.mrb[0].mxu0
        %v5474 = vadd.f32 %v4166, %v5473
        %v5475 = vpop.f32.mrb[0].mxu0
        %5476 = vmatprep.mubr.f32.mxu0 0.0
        %5477 = vmatmul.mubr.f32.gmra.mrb[0].mxu0 %v5293
        %v5478 = vpop.f32.mrb[0].mxu0
        %v5479 = vadd.f32 %v4167, %v5478
        %v5480 = vpop.f32.mrb[0].mxu0
        %5481 = vmatprep.mubr.f32.mxu0 0.0
        %5482 = vmatmul.mubr.f32.gmra.mrb[0].mxu0 %v5296
        %v5483 = vpop.f32.mrb[0].mxu0
        %v5484 = vadd.f32 %v4168, %v5483
        %v5485 = vpop.f32.mrb[0].mxu0
        %5486 = vmatprep.mubr.f32.mxu0 0.0
        %5487 = vmatmul.mubr.f32.gmra.mrb[0].mxu0 %v5299
        %v5488 = vpop.f32.mrb[0].mxu0
        %v5489 = vadd.f32 %v4169, %v5488
        %v5490 = vpop.f32.mrb[0].mxu0
        %5491 = vmatprep.mubr.f32.mxu0 0.0
        %5492 = vmatmul.mubr.f32.gmra.mrb[0].mxu0 %v5302
        %v5493 = vpop.f32.mrb[0].mxu0
        %v5494 = vadd.f32 %v4170, %v5493
        %v5495 = vpop.f32.mrb[0].mxu0
        %5496 = vdwg.mxu0
        %5497 = vmax.xlane.f32.xlu0 %v5419
        %v5498 = vpop.xlane.xlu0 %5497
        %5499 = vmax.xlane.f32.xlu0 %v5424
        %v5500 = vpop.xlane.xlu0 %5499
        %5501 = vmax.xlane.f32.xlu0 %v5429
        %v5502 = vpop.xlane.xlu0 %5501
        %5503 = vmax.xlane.f32.xlu0 %v5434
        %v5504 = vpop.xlane.xlu0 %5503
        %5505 = vmax.xlane.f32.xlu0 %v5439
        %v5506 = vpop.xlane.xlu0 %5505
        %5507 = vmax.xlane.f32.xlu0 %v5444
        %v5508 = vpop.xlane.xlu0 %5507
        %5509 = vmax.xlane.f32.xlu0 %v5449
        %v5510 = vpop.xlane.xlu0 %5509
        %5511 = vmax.xlane.f32.xlu0 %v5454
        %v5512 = vpop.xlane.xlu0 %5511
        %5513 = vmax.xlane.f32.xlu0 %v5459
        %v5514 = vpop.xlane.xlu0 %5513
        %5515 = vmax.xlane.f32.xlu0 %v5464
        %v5516 = vpop.xlane.xlu0 %5515
        %5517 = vmax.xlane.f32.xlu0 %v5469
        %v5518 = vpop.xlane.xlu0 %5517
        %5519 = vmax.xlane.f32.xlu0 %v5474
        %v5520 = vpop.xlane.xlu0 %5519
        %5521 = vmax.xlane.f32.xlu0 %v5479
        %v5522 = vpop.xlane.xlu0 %5521
        %5523 = vmax.xlane.f32.xlu0 %v5484
        %v5524 = vpop.xlane.xlu0 %5523
        %5525 = vmax.xlane.f32.xlu0 %v5489
        %v5526 = vpop.xlane.xlu0 %5525
        %5527 = vmax.xlane.f32.xlu0 %v5494
        %v5528 = vpop.xlane.xlu0 %5527
        %v5529 = vsub.f32 %v5419, %v5498
        %v5530 = vsub.f32 %v5424, %v5500
        %v5531 = vsub.f32 %v5429, %v5502
        %v5532 = vsub.f32 %v5434, %v5504
        %v5533 = vsub.f32 %v5439, %v5506
        %v5534 = vsub.f32 %v5444, %v5508
        %v5535 = vsub.f32 %v5449, %v5510
        %v5536 = vsub.f32 %v5454, %v5512
        %v5537 = vsub.f32 %v5459, %v5514
        %v5538 = vsub.f32 %v5464, %v5516
        %v5539 = vsub.f32 %v5469, %v5518
        %v5540 = vsub.f32 %v5474, %v5520
        %v5541 = vsub.f32 %v5479, %v5522
        %v5542 = vsub.f32 %v5484, %v5524
        %v5543 = vsub.f32 %v5489, %v5526
        %v5544 = vsub.f32 %v5494, %v5528
        %v5545 = vmul.f32 %v5529, 1.442695
        %v5546 = vpow.pop %v5545
        %v5547 = vmul.f32 %v5530, 1.442695
        %v5548 = vpow.pop %v5547
        %v5549 = vmul.f32 %v5531, 1.442695
        %v5550 = vpow.pop %v5549
        %v5551 = vmul.f32 %v5532, 1.442695
        %v5552 = vpow.pop %v5551
        %v5553 = vmul.f32 %v5533, 1.442695
        %v5554 = vpow.pop %v5553
        %v5555 = vmul.f32 %v5534, 1.442695
        %v5556 = vpow.pop %v5555
        %v5557 = vmul.f32 %v5535, 1.442695
        %v5558 = vpow.pop %v5557
        %v5559 = vmul.f32 %v5536, 1.442695
        %v5560 = vpow.pop %v5559
        %v5561 = vmul.f32 %v5537, 1.442695
        %v5562 = vpow.pop %v5561
        %v5563 = vmul.f32 %v5538, 1.442695
        %v5564 = vpow.pop %v5563
        %v5565 = vmul.f32 %v5539, 1.442695
        %v5566 = vpow.pop %v5565
        %v5567 = vmul.f32 %v5540, 1.442695
        %v5568 = vpow.pop %v5567
        %v5569 = vmul.f32 %v5541, 1.442695
        %v5570 = vpow.pop %v5569
        %v5571 = vmul.f32 %v5542, 1.442695
        %v5572 = vpow.pop %v5571
        %v5573 = vmul.f32 %v5543, 1.442695
        %v5574 = vpow.pop %v5573
        %v5575 = vmul.f32 %v5544, 1.442695
        %v5576 = vpow.pop %v5575
        %5577 = vadd.xlane.f32.xlu0 %v5546
        %v5578 = vpop.xlane.xlu0 %5577
        %5579 = vadd.xlane.f32.xlu0 %v5548
        %v5580 = vpop.xlane.xlu0 %5579
        %5581 = vadd.xlane.f32.xlu0 %v5550
        %v5582 = vpop.xlane.xlu0 %5581
        %5583 = vadd.xlane.f32.xlu0 %v5552
        %v5584 = vpop.xlane.xlu0 %5583
        %5585 = vadd.xlane.f32.xlu0 %v5554
        %v5586 = vpop.xlane.xlu0 %5585
        %5587 = vadd.xlane.f32.xlu0 %v5556
        %v5588 = vpop.xlane.xlu0 %5587
        %5589 = vadd.xlane.f32.xlu0 %v5558
        %v5590 = vpop.xlane.xlu0 %5589
        %5591 = vadd.xlane.f32.xlu0 %v5560
        %v5592 = vpop.xlane.xlu0 %5591
        %5593 = vadd.xlane.f32.xlu0 %v5562
        %v5594 = vpop.xlane.xlu0 %5593
        %5595 = vadd.xlane.f32.xlu0 %v5564
        %v5596 = vpop.xlane.xlu0 %5595
        %5597 = vadd.xlane.f32.xlu0 %v5566
        %v5598 = vpop.xlane.xlu0 %5597
        %5599 = vadd.xlane.f32.xlu0 %v5568
        %v5600 = vpop.xlane.xlu0 %5599
        %5601 = vadd.xlane.f32.xlu0 %v5570
        %v5602 = vpop.xlane.xlu0 %5601
        %5603 = vadd.xlane.f32.xlu0 %v5572
        %v5604 = vpop.xlane.xlu0 %5603
        %5605 = vadd.xlane.f32.xlu0 %v5574
        %v5606 = vpop.xlane.xlu0 %5605
        %5607 = vadd.xlane.f32.xlu0 %v5576
        %v5608 = vpop.xlane.xlu0 %5607
        %v5609 = vrcp.pop %v5578
        %v5610 = vmul.f32 1.0, %v5609
        %v5611 = vrcp.pop %v5580
        %v5612 = vmul.f32 1.0, %v5611
        %v5613 = vrcp.pop %v5582
        %v5614 = vmul.f32 1.0, %v5613
        %v5615 = vrcp.pop %v5584
        %v5616 = vmul.f32 1.0, %v5615
        %v5617 = vrcp.pop %v5586
        %v5618 = vmul.f32 1.0, %v5617
        %v5619 = vrcp.pop %v5588
        %v5620 = vmul.f32 1.0, %v5619
        %v5621 = vrcp.pop %v5590
        %v5622 = vmul.f32 1.0, %v5621
        %v5623 = vrcp.pop %v5592
        %v5624 = vmul.f32 1.0, %v5623
        %v5625 = vrcp.pop %v5594
        %v5626 = vmul.f32 1.0, %v5625
        %v5627 = vrcp.pop %v5596
        %v5628 = vmul.f32 1.0, %v5627
        %v5629 = vrcp.pop %v5598
        %v5630 = vmul.f32 1.0, %v5629
        %v5631 = vrcp.pop %v5600
        %v5632 = vmul.f32 1.0, %v5631
        %v5633 = vrcp.pop %v5602
        %v5634 = vmul.f32 1.0, %v5633
        %v5635 = vrcp.pop %v5604
        %v5636 = vmul.f32 1.0, %v5635
        %v5637 = vrcp.pop %v5606
        %v5638 = vmul.f32 1.0, %v5637
        %v5639 = vrcp.pop %v5608
        %v5640 = vmul.f32 1.0, %v5639
        %v5641 = vmul.f32 %v5546, %v5610
        %v5642 = vmul.f32 %v5548, %v5612
        %v5643 = vmul.f32 %v5550, %v5614
        %v5644 = vmul.f32 %v5552, %v5616
        %v5645 = vmul.f32 %v5554, %v5618
        %v5646 = vmul.f32 %v5556, %v5620
        %v5647 = vmul.f32 %v5558, %v5622
        %v5648 = vmul.f32 %v5560, %v5624
        %v5649 = vmul.f32 %v5562, %v5626
        %v5650 = vmul.f32 %v5564, %v5628
        %v5651 = vmul.f32 %v5566, %v5630
        %v5652 = vmul.f32 %v5568, %v5632
        %v5653 = vmul.f32 %v5570, %v5634
        %v5654 = vmul.f32 %v5572, %v5636
        %v5655 = vmul.f32 %v5574, %v5638
        %v5656 = vmul.f32 %v5576, %v5640
        %v5657 = vpack.c.bf16 %v5642, %v5641
        %v5658 = vpack.c.bf16 %v5644, %v5643
        %v5659 = vpack.c.bf16 %v5646, %v5645
        %v5660 = vpack.c.bf16 %v5648, %v5647
        %v5661 = vpack.c.bf16 %v5650, %v5649
        %v5662 = vpack.c.bf16 %v5652, %v5651
        %v5663 = vpack.c.bf16 %v5654, %v5653
        %v5664 = vpack.c.bf16 %v5656, %v5655
        %v5665 = vpack.c.bf16 %v3857, %v3853
        %v5666 = vpack.c.bf16 %v3867, %v3863
        %v5667 = vpack.c.bf16 %v3877, %v3873
        %v5668 = vpack.c.bf16 %v3887, %v3883
        %v5669 = vpack.c.bf16 %v3897, %v3893
        %v5670 = vpack.c.bf16 %v3907, %v3903
        %v5671 = vpack.c.bf16 %v3917, %v3913
        %v5672 = vpack.c.bf16 %v3927, %v3923
        %5673 = vmatprep.subr.bf16.mxu0 0
        %5674 = vmatpush1.bf16.msra.mxu0 %v5665
        %5675 = vmatprep.subr.bf16.mxu0 0
        %5676 = vmatpush1.bf16.msra.mxu0 %v5666
        %5677 = vmatprep.subr.bf16.mxu0 0
        %5678 = vmatpush1.bf16.msra.mxu0 %v5667
        %5679 = vmatprep.subr.bf16.mxu0 0
        %5680 = vmatpush1.bf16.msra.mxu0 %v5668
        %5681 = vmatprep.subr.bf16.mxu0 0
        %5682 = vmatpush1.bf16.msra.mxu0 %v5669
        %5683 = vmatprep.subr.bf16.mxu0 0
        %5684 = vmatpush1.bf16.msra.mxu0 %v5670
        %5685 = vmatprep.subr.bf16.mxu0 0
        %5686 = vmatpush1.bf16.msra.mxu0 %v5671
        %5687 = vmatprep.subr.bf16.mxu0 0
        %5688 = vmatpush1.bf16.msra.mxu0 %v5672
        %5689 = vmatprep.subr.bf16.mxu0 0
        %5690 = vmatpush1.bf16.msra.mxu0 0
        %5691 = vmatprep.subr.bf16.mxu0 0
        %5692 = vmatpush1.bf16.msra.mxu0 0
        %5693 = vmatprep.subr.bf16.mxu0 0
        %5694 = vmatpush1.bf16.msra.mxu0 0
        %5695 = vmatprep.subr.bf16.mxu0 0
        %5696 = vmatpush1.bf16.msra.mxu0 0
        %5697 = vmatprep.subr.bf16.mxu0 0
        %5698 = vmatpush1.bf16.msra.mxu0 0
        %5699 = vmatprep.subr.bf16.mxu0 0
        %5700 = vmatpush1.bf16.msra.mxu0 0
        %5701 = vmatprep.subr.bf16.mxu0 0
        %5702 = vmatpush1.bf16.msra.mxu0 0
        %5703 = vmatprep.subr.bf16.mxu0 0
        %5704 = vmatpush1.bf16.msra.mxu0 0
        %5705 = vmatprep.mubr.bf16.mxu0 0
        %5706 = vmatmul.mubr.bf16.gmra.mrb[0].mxu0 %v5657
        %v5707 = vpop.f32.mrb[0].mxu0
        %v5708 = vadd.f32 0.0, %v5707
        %v5709 = vpop.f32.mrb[0].mxu0
        %v5710 = vpop.f32.mrb[0].mxu0
        %v5711 = vadd.f32 0.0, %v5710
        %v5712 = vpop.f32.mrb[0].mxu0
        %5713 = vmatprep.mubr.bf16.mxu0 0
        %5714 = vmatmul.mubr.bf16.gmra.mrb[0].mxu0 %v5658
        %v5715 = vpop.f32.mrb[0].mxu0
        %v5716 = vadd.f32 0.0, %v5715
        %v5717 = vpop.f32.mrb[0].mxu0
        %v5718 = vpop.f32.mrb[0].mxu0
        %v5719 = vadd.f32 0.0, %v5718
        %v5720 = vpop.f32.mrb[0].mxu0
        %5721 = vmatprep.mubr.bf16.mxu0 0
        %5722 = vmatmul.mubr.bf16.gmra.mrb[0].mxu0 %v5659
        %v5723 = vpop.f32.mrb[0].mxu0
        %v5724 = vadd.f32 0.0, %v5723
        %v5725 = vpop.f32.mrb[0].mxu0
        %v5726 = vpop.f32.mrb[0].mxu0
        %v5727 = vadd.f32 0.0, %v5726
        %v5728 = vpop.f32.mrb[0].mxu0
        %5729 = vmatprep.mubr.bf16.mxu0 0
        %5730 = vmatmul.mubr.bf16.gmra.mrb[0].mxu0 %v5660
        %v5731 = vpop.f32.mrb[0].mxu0
        %v5732 = vadd.f32 0.0, %v5731
        %v5733 = vpop.f32.mrb[0].mxu0
        %v5734 = vpop.f32.mrb[0].mxu0
        %v5735 = vadd.f32 0.0, %v5734
        %v5736 = vpop.f32.mrb[0].mxu0
        %5737 = vmatprep.mubr.bf16.mxu0 0
        %5738 = vmatmul.mubr.bf16.gmra.mrb[0].mxu0 %v5661
        %v5739 = vpop.f32.mrb[0].mxu0
        %v5740 = vadd.f32 0.0, %v5739
        %v5741 = vpop.f32.mrb[0].mxu0
        %v5742 = vpop.f32.mrb[0].mxu0
        %v5743 = vadd.f32 0.0, %v5742
        %v5744 = vpop.f32.mrb[0].mxu0
        %5745 = vmatprep.mubr.bf16.mxu0 0
        %5746 = vmatmul.mubr.bf16.gmra.mrb[0].mxu0 %v5662
        %v5747 = vpop.f32.mrb[0].mxu0
        %v5748 = vadd.f32 0.0, %v5747
        %v5749 = vpop.f32.mrb[0].mxu0
        %v5750 = vpop.f32.mrb[0].mxu0
        %v5751 = vadd.f32 0.0, %v5750
        %v5752 = vpop.f32.mrb[0].mxu0
        %5753 = vmatprep.mubr.bf16.mxu0 0
        %5754 = vmatmul.mubr.bf16.gmra.mrb[0].mxu0 %v5663
        %v5755 = vpop.f32.mrb[0].mxu0
        %v5756 = vadd.f32 0.0, %v5755
        %v5757 = vpop.f32.mrb[0].mxu0
        %v5758 = vpop.f32.mrb[0].mxu0
        %v5759 = vadd.f32 0.0, %v5758
        %v5760 = vpop.f32.mrb[0].mxu0
        %5761 = vmatprep.mubr.bf16.mxu0 0
        %5762 = vmatmul.mubr.bf16.gmra.mrb[0].mxu0 %v5664
        %v5763 = vpop.f32.mrb[0].mxu0
        %v5764 = vadd.f32 0.0, %v5763
        %v5765 = vpop.f32.mrb[0].mxu0
        %v5766 = vpop.f32.mrb[0].mxu0
        %v5767 = vadd.f32 0.0, %v5766
        %v5768 = vpop.f32.mrb[0].mxu0
        %5769 = vdwg.mxu0
        %5770 = vrot.lane.b32.xlu0 %v2949, 64
        %v5771 = vpop.permute.xlu0 %5770
        %5772 = vrot.lane.b32.xlu0 %v2953, 64
        %v5773 = vpop.permute.xlu0 %5772
        %5774 = vrot.lane.b32.xlu0 %v2959, 64
        %v5775 = vpop.permute.xlu0 %5774
        %5776 = vrot.lane.b32.xlu0 %v2963, 64
        %v5777 = vpop.permute.xlu0 %5776
        %5778 = vrot.lane.b32.xlu0 %v2969, 64
        %v5779 = vpop.permute.xlu0 %5778
        %5780 = vrot.lane.b32.xlu0 %v2973, 64
        %v5781 = vpop.permute.xlu0 %5780
        %5782 = vrot.lane.b32.xlu0 %v2979, 64
        %v5783 = vpop.permute.xlu0 %5782
        %5784 = vrot.lane.b32.xlu0 %v2983, 64
        %v5785 = vpop.permute.xlu0 %5784
        %5786 = vrot.lane.b32.xlu0 %v2989, 64
        %v5787 = vpop.permute.xlu0 %5786
        %5788 = vrot.lane.b32.xlu0 %v2993, 64
        %v5789 = vpop.permute.xlu0 %5788
        %5790 = vrot.lane.b32.xlu0 %v2999, 64
        %v5791 = vpop.permute.xlu0 %5790
        %5792 = vrot.lane.b32.xlu0 %v3003, 64
        %v5793 = vpop.permute.xlu0 %5792
        %5794 = vrot.lane.b32.xlu0 %v3009, 64
        %v5795 = vpop.permute.xlu0 %5794
        %5796 = vrot.lane.b32.xlu0 %v3013, 64
        %v5797 = vpop.permute.xlu0 %5796
        %5798 = vrot.lane.b32.xlu0 %v3019, 64
        %v5799 = vpop.permute.xlu0 %5798
        %5800 = vrot.lane.b32.xlu0 %v3023, 64
        %v5801 = vpop.permute.xlu0 %5800
        %5802 = vrot.lane.b32.xlu0 %v3401, 64
        %v5803 = vpop.permute.xlu0 %5802
        %5804 = vrot.lane.b32.xlu0 %v3405, 64
        %v5805 = vpop.permute.xlu0 %5804
        %5806 = vrot.lane.b32.xlu0 %v3411, 64
        %v5807 = vpop.permute.xlu0 %5806
        %5808 = vrot.lane.b32.xlu0 %v3415, 64
        %v5809 = vpop.permute.xlu0 %5808
        %5810 = vrot.lane.b32.xlu0 %v3421, 64
        %v5811 = vpop.permute.xlu0 %5810
        %5812 = vrot.lane.b32.xlu0 %v3425, 64
        %v5813 = vpop.permute.xlu0 %5812
        %5814 = vrot.lane.b32.xlu0 %v3431, 64
        %v5815 = vpop.permute.xlu0 %5814
        %5816 = vrot.lane.b32.xlu0 %v3435, 64
        %v5817 = vpop.permute.xlu0 %5816
        %5818 = vrot.lane.b32.xlu0 %v3441, 64
        %v5819 = vpop.permute.xlu0 %5818
        %5820 = vrot.lane.b32.xlu0 %v3445, 64
        %v5821 = vpop.permute.xlu0 %5820
        %5822 = vrot.lane.b32.xlu0 %v3451, 64
        %v5823 = vpop.permute.xlu0 %5822
        %5824 = vrot.lane.b32.xlu0 %v3455, 64
        %v5825 = vpop.permute.xlu0 %5824
        %5826 = vrot.lane.b32.xlu0 %v3461, 64
        %v5827 = vpop.permute.xlu0 %5826
        %5828 = vrot.lane.b32.xlu0 %v3465, 64
        %v5829 = vpop.permute.xlu0 %5828
        %5830 = vrot.lane.b32.xlu0 %v3471, 64
        %v5831 = vpop.permute.xlu0 %5830
        %5832 = vrot.lane.b32.xlu0 %v3475, 64
        %v5833 = vpop.permute.xlu0 %5832
        %v5834 = vsel %vm4171, %v5771, 0
        %v5836 = vsel %vm4171, %v5773, 0
        %v5838 = vsel %vm4171, %v5775, 0
        %v5840 = vsel %vm4171, %v5777, 0
        %v5842 = vsel %vm4171, %v5779, 0
        %v5844 = vsel %vm4171, %v5781, 0
        %v5846 = vsel %vm4171, %v5783, 0
        %v5848 = vsel %vm4171, %v5785, 0
        %v5850 = vsel %vm4171, %v5787, 0
        %v5852 = vsel %vm4171, %v5789, 0
        %v5854 = vsel %vm4171, %v5791, 0
        %v5856 = vsel %vm4171, %v5793, 0
        %v5858 = vsel %vm4171, %v5795, 0
        %v5860 = vsel %vm4171, %v5797, 0
        %v5862 = vsel %vm4171, %v5799, 0
        %v5864 = vsel %vm4171, %v5801, 0
        %v5866 = vsel %vm4171, %v5803, 0
        %v5868 = vsel %vm4171, %v5805, 0
        %v5870 = vsel %vm4171, %v5807, 0
        %v5872 = vsel %vm4171, %v5809, 0
        %v5874 = vsel %vm4171, %v5811, 0
        %v5876 = vsel %vm4171, %v5813, 0
        %v5878 = vsel %vm4171, %v5815, 0
        %v5880 = vsel %vm4171, %v5817, 0
        %v5882 = vsel %vm4171, %v5819, 0
        %v5884 = vsel %vm4171, %v5821, 0
        %v5886 = vsel %vm4171, %v5823, 0
        %v5888 = vsel %vm4171, %v5825, 0
        %v5890 = vsel %vm4171, %v5827, 0
        %v5892 = vsel %vm4171, %v5829, 0
        %v5894 = vsel %vm4171, %v5831, 0
        %v5896 = vsel %vm4171, %v5833, 0
        %5898 = vmatprep.subr.mxu0 0.0
        %5899 = vmatpush1.xpose.msra.mxu0 %v5866
        %5900 = vmatprep.subr.mxu0 0.0
        %5901 = vmatpush1.xpose.msra.mxu0 %v5868
        %5902 = vmatprep.subr.mxu0 0.0
        %5903 = vmatpush1.xpose.msra.mxu0 %v5870
        %5904 = vmatprep.subr.mxu0 0.0
        %5905 = vmatpush1.xpose.msra.mxu0 %v5872
        %5906 = vmatprep.subr.mxu0 0.0
        %5907 = vmatpush1.xpose.msra.mxu0 %v5874
        %5908 = vmatprep.subr.mxu0 0.0
        %5909 = vmatpush1.xpose.msra.mxu0 %v5876
        %5910 = vmatprep.subr.mxu0 0.0
        %5911 = vmatpush1.xpose.msra.mxu0 %v5878
        %5912 = vmatprep.subr.mxu0 0.0
        %5913 = vmatpush1.xpose.msra.mxu0 %v5880
        %5914 = vmatprep.subr.mxu0 0.0
        %5915 = vmatpush1.xpose.msra.mxu0 %v5882
        %5916 = vmatprep.subr.mxu0 0.0
        %5917 = vmatpush1.xpose.msra.mxu0 %v5884
        %5918 = vmatprep.subr.mxu0 0.0
        %5919 = vmatpush1.xpose.msra.mxu0 %v5886
        %5920 = vmatprep.subr.mxu0 0.0
        %5921 = vmatpush1.xpose.msra.mxu0 %v5888
        %5922 = vmatprep.subr.mxu0 0.0
        %5923 = vmatpush1.xpose.msra.mxu0 %v5890
        %5924 = vmatprep.subr.mxu0 0.0
        %5925 = vmatpush1.xpose.msra.mxu0 %v5892
        %5926 = vmatprep.subr.mxu0 0.0
        %5927 = vmatpush1.xpose.msra.mxu0 %v5894
        %5928 = vmatprep.subr.mxu0 0.0
        %5929 = vmatpush1.xpose.msra.mxu0 %v5896
        %5930 = vmatprep.subr.mxu0 0.0
        %5931 = vmatpush1.xpose.msra.mxu0 0.0
        %5932 = vmatprep.subr.mxu0 0.0
        %5933 = vmatpush1.xpose.msra.mxu0 0.0
        %5934 = vmatprep.subr.mxu0 0.0
        %5935 = vmatpush1.xpose.msra.mxu0 0.0
        %5936 = vmatprep.subr.mxu0 0.0
        %5937 = vmatpush1.xpose.msra.mxu0 0.0
        %5938 = vmatprep.subr.mxu0 0.0
        %5939 = vmatpush1.xpose.msra.mxu0 0.0
        %5940 = vmatprep.subr.mxu0 0.0
        %5941 = vmatpush1.xpose.msra.mxu0 0.0
        %5942 = vmatprep.subr.mxu0 0.0
        %5943 = vmatpush1.xpose.msra.mxu0 0.0
        %5944 = vmatprep.subr.mxu0 0.0
        %5945 = vmatpush1.xpose.msra.mxu0 0.0
        %5946 = vmatprep.subr.mxu0 0.0
        %5947 = vmatpush1.xpose.msra.mxu0 0.0
        %5948 = vmatprep.subr.mxu0 0.0
        %5949 = vmatpush1.xpose.msra.mxu0 0.0
        %5950 = vmatprep.subr.mxu0 0.0
        %5951 = vmatpush1.xpose.msra.mxu0 0.0
        %5952 = vmatprep.subr.mxu0 0.0
        %5953 = vmatpush1.xpose.msra.mxu0 0.0
        %5954 = vmatprep.subr.mxu0 0.0
        %5955 = vmatpush1.xpose.msra.mxu0 0.0
        %5956 = vmatprep.subr.mxu0 0.0
        %5957 = vmatpush1.xpose.msra.mxu0 0.0
        %5958 = vmatprep.subr.mxu0 0.0
        %5959 = vmatpush1.xpose.msra.mxu0 0.0
        %5960 = vmatprep.subr.mxu0 0.0
        %5961 = vmatpush1.xpose.msra.mxu0 0.0
        %5962 = vmatprep.mubr.f32.mxu0 0.0
        %5963 = vmatmul.mubr.f32.gmra.mrb[0].mxu0 %v5834
        %v5964 = vpop.f32.mrb[0].mxu0
        %v5965 = vadd.f32 %v4155, %v5964
        %v5966 = vpop.f32.mrb[0].mxu0
        %5967 = vmatprep.mubr.f32.mxu0 0.0
        %5968 = vmatmul.mubr.f32.gmra.mrb[0].mxu0 %v5836
        %v5969 = vpop.f32.mrb[0].mxu0
        %v5970 = vadd.f32 %v4156, %v5969
        %v5971 = vpop.f32.mrb[0].mxu0
        %5972 = vmatprep.mubr.f32.mxu0 0.0
        %5973 = vmatmul.mubr.f32.gmra.mrb[0].mxu0 %v5838
        %v5974 = vpop.f32.mrb[0].mxu0
        %v5975 = vadd.f32 %v4157, %v5974
        %v5976 = vpop.f32.mrb[0].mxu0
        %5977 = vmatprep.mubr.f32.mxu0 0.0
        %5978 = vmatmul.mubr.f32.gmra.mrb[0].mxu0 %v5840
        %v5979 = vpop.f32.mrb[0].mxu0
        %v5980 = vadd.f32 %v4158, %v5979
        %v5981 = vpop.f32.mrb[0].mxu0
        %5982 = vmatprep.mubr.f32.mxu0 0.0
        %5983 = vmatmul.mubr.f32.gmra.mrb[0].mxu0 %v5842
        %v5984 = vpop.f32.mrb[0].mxu0
        %v5985 = vadd.f32 %v4159, %v5984
        %v5986 = vpop.f32.mrb[0].mxu0
        %5987 = vmatprep.mubr.f32.mxu0 0.0
        %5988 = vmatmul.mubr.f32.gmra.mrb[0].mxu0 %v5844
        %v5989 = vpop.f32.mrb[0].mxu0
        %v5990 = vadd.f32 %v4160, %v5989
        %v5991 = vpop.f32.mrb[0].mxu0
        %5992 = vmatprep.mubr.f32.mxu0 0.0
        %5993 = vmatmul.mubr.f32.gmra.mrb[0].mxu0 %v5846
        %v5994 = vpop.f32.mrb[0].mxu0
        %v5995 = vadd.f32 %v4161, %v5994
        %v5996 = vpop.f32.mrb[0].mxu0
        %5997 = vmatprep.mubr.f32.mxu0 0.0
        %5998 = vmatmul.mubr.f32.gmra.mrb[0].mxu0 %v5848
        %v5999 = vpop.f32.mrb[0].mxu0
        %v6000 = vadd.f32 %v4162, %v5999
        %v6001 = vpop.f32.mrb[0].mxu0
        %6002 = vmatprep.mubr.f32.mxu0 0.0
        %6003 = vmatmul.mubr.f32.gmra.mrb[0].mxu0 %v5850
        %v6004 = vpop.f32.mrb[0].mxu0
        %v6005 = vadd.f32 %v4163, %v6004
        %v6006 = vpop.f32.mrb[0].mxu0
        %6007 = vmatprep.mubr.f32.mxu0 0.0
        %6008 = vmatmul.mubr.f32.gmra.mrb[0].mxu0 %v5852
        %v6009 = vpop.f32.mrb[0].mxu0
        %v6010 = vadd.f32 %v4164, %v6009
        %v6011 = vpop.f32.mrb[0].mxu0
        %6012 = vmatprep.mubr.f32.mxu0 0.0
        %6013 = vmatmul.mubr.f32.gmra.mrb[0].mxu0 %v5854
        %v6014 = vpop.f32.mrb[0].mxu0
        %v6015 = vadd.f32 %v4165, %v6014
        %v6016 = vpop.f32.mrb[0].mxu0
        %6017 = vmatprep.mubr.f32.mxu0 0.0
        %6018 = vmatmul.mubr.f32.gmra.mrb[0].mxu0 %v5856
        %v6019 = vpop.f32.mrb[0].mxu0
        %v6020 = vadd.f32 %v4166, %v6019
        %v6021 = vpop.f32.mrb[0].mxu0
        %6022 = vmatprep.mubr.f32.mxu0 0.0
        %6023 = vmatmul.mubr.f32.gmra.mrb[0].mxu0 %v5858
        %v6024 = vpop.f32.mrb[0].mxu0
        %v6025 = vadd.f32 %v4167, %v6024
        %v6026 = vpop.f32.mrb[0].mxu0
        %6027 = vmatprep.mubr.f32.mxu0 0.0
        %6028 = vmatmul.mubr.f32.gmra.mrb[0].mxu0 %v5860
        %v6029 = vpop.f32.mrb[0].mxu0
        %v6030 = vadd.f32 %v4168, %v6029
        %v6031 = vpop.f32.mrb[0].mxu0
        %6032 = vmatprep.mubr.f32.mxu0 0.0
        %6033 = vmatmul.mubr.f32.gmra.mrb[0].mxu0 %v5862
        %v6034 = vpop.f32.mrb[0].mxu0
        %v6035 = vadd.f32 %v4169, %v6034
        %v6036 = vpop.f32.mrb[0].mxu0
        %6037 = vmatprep.mubr.f32.mxu0 0.0
        %6038 = vmatmul.mubr.f32.gmra.mrb[0].mxu0 %v5864
        %v6039 = vpop.f32.mrb[0].mxu0
        %v6040 = vadd.f32 %v4170, %v6039
        %v6041 = vpop.f32.mrb[0].mxu0
        %6042 = vdwg.mxu0
        %6043 = vmax.xlane.f32.xlu0 %v5965
        %v6044 = vpop.xlane.xlu0 %6043
        %6045 = vmax.xlane.f32.xlu0 %v5970
        %v6046 = vpop.xlane.xlu0 %6045
        %6047 = vmax.xlane.f32.xlu0 %v5975
        %v6048 = vpop.xlane.xlu0 %6047
        %6049 = vmax.xlane.f32.xlu0 %v5980
        %v6050 = vpop.xlane.xlu0 %6049
        %6051 = vmax.xlane.f32.xlu0 %v5985
        %v6052 = vpop.xlane.xlu0 %6051
        %6053 = vmax.xlane.f32.xlu0 %v5990
        %v6054 = vpop.xlane.xlu0 %6053
        %6055 = vmax.xlane.f32.xlu0 %v5995
        %v6056 = vpop.xlane.xlu0 %6055
        %6057 = vmax.xlane.f32.xlu0 %v6000
        %v6058 = vpop.xlane.xlu0 %6057
        %6059 = vmax.xlane.f32.xlu0 %v6005
        %v6060 = vpop.xlane.xlu0 %6059
        %6061 = vmax.xlane.f32.xlu0 %v6010
        %v6062 = vpop.xlane.xlu0 %6061
        %6063 = vmax.xlane.f32.xlu0 %v6015
        %v6064 = vpop.xlane.xlu0 %6063
        %6065 = vmax.xlane.f32.xlu0 %v6020
        %v6066 = vpop.xlane.xlu0 %6065
        %6067 = vmax.xlane.f32.xlu0 %v6025
        %v6068 = vpop.xlane.xlu0 %6067
        %6069 = vmax.xlane.f32.xlu0 %v6030
        %v6070 = vpop.xlane.xlu0 %6069
        %6071 = vmax.xlane.f32.xlu0 %v6035
        %v6072 = vpop.xlane.xlu0 %6071
        %6073 = vmax.xlane.f32.xlu0 %v6040
        %v6074 = vpop.xlane.xlu0 %6073
        %v6075 = vsub.f32 %v5965, %v6044
        %v6076 = vsub.f32 %v5970, %v6046
        %v6077 = vsub.f32 %v5975, %v6048
        %v6078 = vsub.f32 %v5980, %v6050
        %v6079 = vsub.f32 %v5985, %v6052
        %v6080 = vsub.f32 %v5990, %v6054
        %v6081 = vsub.f32 %v5995, %v6056
        %v6082 = vsub.f32 %v6000, %v6058
        %v6083 = vsub.f32 %v6005, %v6060
        %v6084 = vsub.f32 %v6010, %v6062
        %v6085 = vsub.f32 %v6015, %v6064
        %v6086 = vsub.f32 %v6020, %v6066
        %v6087 = vsub.f32 %v6025, %v6068
        %v6088 = vsub.f32 %v6030, %v6070
        %v6089 = vsub.f32 %v6035, %v6072
        %v6090 = vsub.f32 %v6040, %v6074
        %v6091 = vmul.f32 %v6075, 1.442695
        %v6092 = vpow.pop %v6091
        %v6093 = vmul.f32 %v6076, 1.442695
        %v6094 = vpow.pop %v6093
        %v6095 = vmul.f32 %v6077, 1.442695
        %v6096 = vpow.pop %v6095
        %v6097 = vmul.f32 %v6078, 1.442695
        %v6098 = vpow.pop %v6097
        %v6099 = vmul.f32 %v6079, 1.442695
        %v6100 = vpow.pop %v6099
        %v6101 = vmul.f32 %v6080, 1.442695
        %v6102 = vpow.pop %v6101
        %v6103 = vmul.f32 %v6081, 1.442695
        %v6104 = vpow.pop %v6103
        %v6105 = vmul.f32 %v6082, 1.442695
        %v6106 = vpow.pop %v6105
        %v6107 = vmul.f32 %v6083, 1.442695
        %v6108 = vpow.pop %v6107
        %v6109 = vmul.f32 %v6084, 1.442695
        %v6110 = vpow.pop %v6109
        %v6111 = vmul.f32 %v6085, 1.442695
        %v6112 = vpow.pop %v6111
        %v6113 = vmul.f32 %v6086, 1.442695
        %v6114 = vpow.pop %v6113
        %v6115 = vmul.f32 %v6087, 1.442695
        %v6116 = vpow.pop %v6115
        %v6117 = vmul.f32 %v6088, 1.442695
        %v6118 = vpow.pop %v6117
        %v6119 = vmul.f32 %v6089, 1.442695
        %v6120 = vpow.pop %v6119
        %v6121 = vmul.f32 %v6090, 1.442695
        %v6122 = vpow.pop %v6121
        %6123 = vadd.xlane.f32.xlu0 %v6092
        %v6124 = vpop.xlane.xlu0 %6123
        %6125 = vadd.xlane.f32.xlu0 %v6094
        %v6126 = vpop.xlane.xlu0 %6125
        %6127 = vadd.xlane.f32.xlu0 %v6096
        %v6128 = vpop.xlane.xlu0 %6127
        %6129 = vadd.xlane.f32.xlu0 %v6098
        %v6130 = vpop.xlane.xlu0 %6129
        %6131 = vadd.xlane.f32.xlu0 %v6100
        %v6132 = vpop.xlane.xlu0 %6131
        %6133 = vadd.xlane.f32.xlu0 %v6102
        %v6134 = vpop.xlane.xlu0 %6133
        %6135 = vadd.xlane.f32.xlu0 %v6104
        %v6136 = vpop.xlane.xlu0 %6135
        %6137 = vadd.xlane.f32.xlu0 %v6106
        %v6138 = vpop.xlane.xlu0 %6137
        %6139 = vadd.xlane.f32.xlu0 %v6108
        %v6140 = vpop.xlane.xlu0 %6139
        %6141 = vadd.xlane.f32.xlu0 %v6110
        %v6142 = vpop.xlane.xlu0 %6141
        %6143 = vadd.xlane.f32.xlu0 %v6112
        %v6144 = vpop.xlane.xlu0 %6143
        %6145 = vadd.xlane.f32.xlu0 %v6114
        %v6146 = vpop.xlane.xlu0 %6145
        %6147 = vadd.xlane.f32.xlu0 %v6116
        %v6148 = vpop.xlane.xlu0 %6147
        %6149 = vadd.xlane.f32.xlu0 %v6118
        %v6150 = vpop.xlane.xlu0 %6149
        %6151 = vadd.xlane.f32.xlu0 %v6120
        %v6152 = vpop.xlane.xlu0 %6151
        %6153 = vadd.xlane.f32.xlu0 %v6122
        %v6154 = vpop.xlane.xlu0 %6153
        %v6155 = vrcp.pop %v6124
        %v6156 = vmul.f32 1.0, %v6155
        %v6157 = vrcp.pop %v6126
        %v6158 = vmul.f32 1.0, %v6157
        %v6159 = vrcp.pop %v6128
        %v6160 = vmul.f32 1.0, %v6159
        %v6161 = vrcp.pop %v6130
        %v6162 = vmul.f32 1.0, %v6161
        %v6163 = vrcp.pop %v6132
        %v6164 = vmul.f32 1.0, %v6163
        %v6165 = vrcp.pop %v6134
        %v6166 = vmul.f32 1.0, %v6165
        %v6167 = vrcp.pop %v6136
        %v6168 = vmul.f32 1.0, %v6167
        %v6169 = vrcp.pop %v6138
        %v6170 = vmul.f32 1.0, %v6169
        %v6171 = vrcp.pop %v6140
        %v6172 = vmul.f32 1.0, %v6171
        %v6173 = vrcp.pop %v6142
        %v6174 = vmul.f32 1.0, %v6173
        %v6175 = vrcp.pop %v6144
        %v6176 = vmul.f32 1.0, %v6175
        %v6177 = vrcp.pop %v6146
        %v6178 = vmul.f32 1.0, %v6177
        %v6179 = vrcp.pop %v6148
        %v6180 = vmul.f32 1.0, %v6179
        %v6181 = vrcp.pop %v6150
        %v6182 = vmul.f32 1.0, %v6181
        %v6183 = vrcp.pop %v6152
        %v6184 = vmul.f32 1.0, %v6183
        %v6185 = vrcp.pop %v6154
        %v6186 = vmul.f32 1.0, %v6185
        %v6187 = vmul.f32 %v6092, %v6156
        %v6188 = vmul.f32 %v6094, %v6158
        %v6189 = vmul.f32 %v6096, %v6160
        %v6190 = vmul.f32 %v6098, %v6162
        %v6191 = vmul.f32 %v6100, %v6164
        %v6192 = vmul.f32 %v6102, %v6166
        %v6193 = vmul.f32 %v6104, %v6168
        %v6194 = vmul.f32 %v6106, %v6170
        %v6195 = vmul.f32 %v6108, %v6172
        %v6196 = vmul.f32 %v6110, %v6174
        %v6197 = vmul.f32 %v6112, %v6176
        %v6198 = vmul.f32 %v6114, %v6178
        %v6199 = vmul.f32 %v6116, %v6180
        %v6200 = vmul.f32 %v6118, %v6182
        %v6201 = vmul.f32 %v6120, %v6184
        %v6202 = vmul.f32 %v6122, %v6186
        %v6203 = vpack.c.bf16 %v6188, %v6187
        %v6204 = vpack.c.bf16 %v6190, %v6189
        %v6205 = vpack.c.bf16 %v6192, %v6191
        %v6206 = vpack.c.bf16 %v6194, %v6193
        %v6207 = vpack.c.bf16 %v6196, %v6195
        %v6208 = vpack.c.bf16 %v6198, %v6197
        %v6209 = vpack.c.bf16 %v6200, %v6199
        %v6210 = vpack.c.bf16 %v6202, %v6201
        %6219 = vrot.lane.b32.xlu0 %v5665, 64
        %v6220 = vpop.permute.xlu0 %6219
        %6221 = vrot.lane.b32.xlu0 %v5666, 64
        %v6222 = vpop.permute.xlu0 %6221
        %6223 = vrot.lane.b32.xlu0 %v5667, 64
        %v6224 = vpop.permute.xlu0 %6223
        %6225 = vrot.lane.b32.xlu0 %v5668, 64
        %v6226 = vpop.permute.xlu0 %6225
        %6227 = vrot.lane.b32.xlu0 %v5669, 64
        %v6228 = vpop.permute.xlu0 %6227
        %6229 = vrot.lane.b32.xlu0 %v5670, 64
        %v6230 = vpop.permute.xlu0 %6229
        %6231 = vrot.lane.b32.xlu0 %v5671, 64
        %v6232 = vpop.permute.xlu0 %6231
        %6233 = vrot.lane.b32.xlu0 %v5672, 64
        %v6234 = vpop.permute.xlu0 %6233
        %6243 = vmatprep.subr.bf16.mxu0 0
        %6244 = vmatpush1.bf16.msra.mxu0 %v6220
        %6245 = vmatprep.subr.bf16.mxu0 0
        %6246 = vmatpush1.bf16.msra.mxu0 %v6222
        %6247 = vmatprep.subr.bf16.mxu0 0
        %6248 = vmatpush1.bf16.msra.mxu0 %v6224
        %6249 = vmatprep.subr.bf16.mxu0 0
        %6250 = vmatpush1.bf16.msra.mxu0 %v6226
        %6251 = vmatprep.subr.bf16.mxu0 0
        %6252 = vmatpush1.bf16.msra.mxu0 %v6228
        %6253 = vmatprep.subr.bf16.mxu0 0
        %6254 = vmatpush1.bf16.msra.mxu0 %v6230
        %6255 = vmatprep.subr.bf16.mxu0 0
        %6256 = vmatpush1.bf16.msra.mxu0 %v6232
        %6257 = vmatprep.subr.bf16.mxu0 0
        %6258 = vmatpush1.bf16.msra.mxu0 %v6234
        %6259 = vmatprep.subr.bf16.mxu0 0
        %6260 = vmatpush1.bf16.msra.mxu0 0
        %6261 = vmatprep.subr.bf16.mxu0 0
        %6262 = vmatpush1.bf16.msra.mxu0 0
        %6263 = vmatprep.subr.bf16.mxu0 0
        %6264 = vmatpush1.bf16.msra.mxu0 0
        %6265 = vmatprep.subr.bf16.mxu0 0
        %6266 = vmatpush1.bf16.msra.mxu0 0
        %6267 = vmatprep.subr.bf16.mxu0 0
        %6268 = vmatpush1.bf16.msra.mxu0 0
        %6269 = vmatprep.subr.bf16.mxu0 0
        %6270 = vmatpush1.bf16.msra.mxu0 0
        %6271 = vmatprep.subr.bf16.mxu0 0
        %6272 = vmatpush1.bf16.msra.mxu0 0
        %6273 = vmatprep.subr.bf16.mxu0 0
        %6274 = vmatpush1.bf16.msra.mxu0 0
        %6275 = vmatprep.mubr.bf16.mxu0 0
        %6276 = vmatmul.mubr.bf16.gmra.mrb[0].mxu0 %v6203
        %v6277 = vpop.f32.mrb[0].mxu0
        %v6278 = vadd.f32 0.0, %v6277
        %v6279 = vpop.f32.mrb[0].mxu0
        %v6280 = vpop.f32.mrb[0].mxu0
        %v6281 = vadd.f32 0.0, %v6280
        %v6282 = vpop.f32.mrb[0].mxu0
        %6283 = vmatprep.mubr.bf16.mxu0 0
        %6284 = vmatmul.mubr.bf16.gmra.mrb[0].mxu0 %v6204
        %v6285 = vpop.f32.mrb[0].mxu0
        %v6286 = vadd.f32 0.0, %v6285
        %v6287 = vpop.f32.mrb[0].mxu0
        %v6288 = vpop.f32.mrb[0].mxu0
        %v6289 = vadd.f32 0.0, %v6288
        %v6290 = vpop.f32.mrb[0].mxu0
        %6291 = vmatprep.mubr.bf16.mxu0 0
        %6292 = vmatmul.mubr.bf16.gmra.mrb[0].mxu0 %v6205
        %v6293 = vpop.f32.mrb[0].mxu0
        %v6294 = vadd.f32 0.0, %v6293
        %v6295 = vpop.f32.mrb[0].mxu0
        %v6296 = vpop.f32.mrb[0].mxu0
        %v6297 = vadd.f32 0.0, %v6296
        %v6298 = vpop.f32.mrb[0].mxu0
        %6299 = vmatprep.mubr.bf16.mxu0 0
        %6300 = vmatmul.mubr.bf16.gmra.mrb[0].mxu0 %v6206
        %v6301 = vpop.f32.mrb[0].mxu0
        %v6302 = vadd.f32 0.0, %v6301
        %v6303 = vpop.f32.mrb[0].mxu0
        %v6304 = vpop.f32.mrb[0].mxu0
        %v6305 = vadd.f32 0.0, %v6304
        %v6306 = vpop.f32.mrb[0].mxu0
        %6307 = vmatprep.mubr.bf16.mxu0 0
        %6308 = vmatmul.mubr.bf16.gmra.mrb[0].mxu0 %v6207
        %v6309 = vpop.f32.mrb[0].mxu0
        %v6310 = vadd.f32 0.0, %v6309
        %v6311 = vpop.f32.mrb[0].mxu0
        %v6312 = vpop.f32.mrb[0].mxu0
        %v6313 = vadd.f32 0.0, %v6312
        %v6314 = vpop.f32.mrb[0].mxu0
        %6315 = vmatprep.mubr.bf16.mxu0 0
        %6316 = vmatmul.mubr.bf16.gmra.mrb[0].mxu0 %v6208
        %v6317 = vpop.f32.mrb[0].mxu0
        %v6318 = vadd.f32 0.0, %v6317
        %v6319 = vpop.f32.mrb[0].mxu0
        %v6320 = vpop.f32.mrb[0].mxu0
        %v6321 = vadd.f32 0.0, %v6320
        %v6322 = vpop.f32.mrb[0].mxu0
        %6323 = vmatprep.mubr.bf16.mxu0 0
        %6324 = vmatmul.mubr.bf16.gmra.mrb[0].mxu0 %v6209
        %v6325 = vpop.f32.mrb[0].mxu0
        %v6326 = vadd.f32 0.0, %v6325
        %v6327 = vpop.f32.mrb[0].mxu0
        %v6328 = vpop.f32.mrb[0].mxu0
        %v6329 = vadd.f32 0.0, %v6328
        %v6330 = vpop.f32.mrb[0].mxu0
        %6331 = vmatprep.mubr.bf16.mxu0 0
        %6332 = vmatmul.mubr.bf16.gmra.mrb[0].mxu0 %v6210
        %v6333 = vpop.f32.mrb[0].mxu0
        %v6334 = vadd.f32 0.0, %v6333
        %v6335 = vpop.f32.mrb[0].mxu0
        %v6336 = vpop.f32.mrb[0].mxu0
        %v6337 = vadd.f32 0.0, %v6336
        %v6338 = vpop.f32.mrb[0].mxu0
        %6339 = vdwg.mxu0
        %v6341 = vsel %vm4171, %v3173, 0
        %v6344 = vsel %vm4171, %v3177, 0
        %v6347 = vsel %vm4171, %v3183, 0
        %v6350 = vsel %vm4171, %v3187, 0
        %v6353 = vsel %vm4171, %v3193, 0
        %v6356 = vsel %vm4171, %v3197, 0
        %v6359 = vsel %vm4171, %v3203, 0
        %v6362 = vsel %vm4171, %v3207, 0
        %v6365 = vsel %vm4171, %v3213, 0
        %v6368 = vsel %vm4171, %v3217, 0
        %v6371 = vsel %vm4171, %v3223, 0
        %v6374 = vsel %vm4171, %v3227, 0
        %v6377 = vsel %vm4171, %v3233, 0
        %v6380 = vsel %vm4171, %v3237, 0
        %v6383 = vsel %vm4171, %v3243, 0
        %v6386 = vsel %vm4171, %v3247, 0
        %v6389 = vsel %vm4171, %v3625, 0
        %v6392 = vsel %vm4171, %v3629, 0
        %v6395 = vsel %vm4171, %v3635, 0
        %v6398 = vsel %vm4171, %v3639, 0
        %v6401 = vsel %vm4171, %v3645, 0
        %v6404 = vsel %vm4171, %v3649, 0
        %v6407 = vsel %vm4171, %v3655, 0
        %v6410 = vsel %vm4171, %v3659, 0
        %v6413 = vsel %vm4171, %v3665, 0
        %v6416 = vsel %vm4171, %v3669, 0
        %v6419 = vsel %vm4171, %v3675, 0
        %v6422 = vsel %vm4171, %v3679, 0
        %v6425 = vsel %vm4171, %v3685, 0
        %v6428 = vsel %vm4171, %v3689, 0
        %v6431 = vsel %vm4171, %v3695, 0
        %v6434 = vsel %vm4171, %v3699, 0
        %6436 = vmatprep.subr.mxu0 0.0
        %6437 = vmatpush1.xpose.msra.mxu0 %v6389
        %6438 = vmatprep.subr.mxu0 0.0
        %6439 = vmatpush1.xpose.msra.mxu0 %v6392
        %6440 = vmatprep.subr.mxu0 0.0
        %6441 = vmatpush1.xpose.msra.mxu0 %v6395
        %6442 = vmatprep.subr.mxu0 0.0
        %6443 = vmatpush1.xpose.msra.mxu0 %v6398
        %6444 = vmatprep.subr.mxu0 0.0
        %6445 = vmatpush1.xpose.msra.mxu0 %v6401
        %6446 = vmatprep.subr.mxu0 0.0
        %6447 = vmatpush1.xpose.msra.mxu0 %v6404
        %6448 = vmatprep.subr.mxu0 0.0
        %6449 = vmatpush1.xpose.msra.mxu0 %v6407
        %6450 = vmatprep.subr.mxu0 0.0
        %6451 = vmatpush1.xpose.msra.mxu0 %v6410
        %6452 = vmatprep.subr.mxu0 0.0
        %6453 = vmatpush1.xpose.msra.mxu0 %v6413
        %6454 = vmatprep.subr.mxu0 0.0
        %6455 = vmatpush1.xpose.msra.mxu0 %v6416
        %6456 = vmatprep.subr.mxu0 0.0
        %6457 = vmatpush1.xpose.msra.mxu0 %v6419
        %6458 = vmatprep.subr.mxu0 0.0
        %6459 = vmatpush1.xpose.msra.mxu0 %v6422
        %6460 = vmatprep.subr.mxu0 0.0
        %6461 = vmatpush1.xpose.msra.mxu0 %v6425
        %6462 = vmatprep.subr.mxu0 0.0
        %6463 = vmatpush1.xpose.msra.mxu0 %v6428
        %6464 = vmatprep.subr.mxu0 0.0
        %6465 = vmatpush1.xpose.msra.mxu0 %v6431
        %6466 = vmatprep.subr.mxu0 0.0
        %6467 = vmatpush1.xpose.msra.mxu0 %v6434
        %6468 = vmatprep.subr.mxu0 0.0
        %6469 = vmatpush1.xpose.msra.mxu0 0.0
        %6470 = vmatprep.subr.mxu0 0.0
        %6471 = vmatpush1.xpose.msra.mxu0 0.0
        %6472 = vmatprep.subr.mxu0 0.0
        %6473 = vmatpush1.xpose.msra.mxu0 0.0
        %6474 = vmatprep.subr.mxu0 0.0
        %6475 = vmatpush1.xpose.msra.mxu0 0.0
        %6476 = vmatprep.subr.mxu0 0.0
        %6477 = vmatpush1.xpose.msra.mxu0 0.0
        %6478 = vmatprep.subr.mxu0 0.0
        %6479 = vmatpush1.xpose.msra.mxu0 0.0
        %6480 = vmatprep.subr.mxu0 0.0
        %6481 = vmatpush1.xpose.msra.mxu0 0.0
        %6482 = vmatprep.subr.mxu0 0.0
        %6483 = vmatpush1.xpose.msra.mxu0 0.0
        %6484 = vmatprep.subr.mxu0 0.0
        %6485 = vmatpush1.xpose.msra.mxu0 0.0
        %6486 = vmatprep.subr.mxu0 0.0
        %6487 = vmatpush1.xpose.msra.mxu0 0.0
        %6488 = vmatprep.subr.mxu0 0.0
        %6489 = vmatpush1.xpose.msra.mxu0 0.0
        %6490 = vmatprep.subr.mxu0 0.0
        %6491 = vmatpush1.xpose.msra.mxu0 0.0
        %6492 = vmatprep.subr.mxu0 0.0
        %6493 = vmatpush1.xpose.msra.mxu0 0.0
        %6494 = vmatprep.subr.mxu0 0.0
        %6495 = vmatpush1.xpose.msra.mxu0 0.0
        %6496 = vmatprep.subr.mxu0 0.0
        %6497 = vmatpush1.xpose.msra.mxu0 0.0
        %6498 = vmatprep.subr.mxu0 0.0
        %6499 = vmatpush1.xpose.msra.mxu0 0.0
        %6500 = vmatprep.mubr.f32.mxu0 0.0
        %6501 = vmatmul.mubr.f32.gmra.mrb[0].mxu0 %v6341
        %v6502 = vpop.f32.mrb[0].mxu0
        %v6503 = vadd.f32 %v4155, %v6502
        %v6504 = vpop.f32.mrb[0].mxu0
        %6505 = vmatprep.mubr.f32.mxu0 0.0
        %6506 = vmatmul.mubr.f32.gmra.mrb[0].mxu0 %v6344
        %v6507 = vpop.f32.mrb[0].mxu0
        %v6508 = vadd.f32 %v4156, %v6507
        %v6509 = vpop.f32.mrb[0].mxu0
        %6510 = vmatprep.mubr.f32.mxu0 0.0
        %6511 = vmatmul.mubr.f32.gmra.mrb[0].mxu0 %v6347
        %v6512 = vpop.f32.mrb[0].mxu0
        %v6513 = vadd.f32 %v4157, %v6512
        %v6514 = vpop.f32.mrb[0].mxu0
        %6515 = vmatprep.mubr.f32.mxu0 0.0
        %6516 = vmatmul.mubr.f32.gmra.mrb[0].mxu0 %v6350
        %v6517 = vpop.f32.mrb[0].mxu0
        %v6518 = vadd.f32 %v4158, %v6517
        %v6519 = vpop.f32.mrb[0].mxu0
        %6520 = vmatprep.mubr.f32.mxu0 0.0
        %6521 = vmatmul.mubr.f32.gmra.mrb[0].mxu0 %v6353
        %v6522 = vpop.f32.mrb[0].mxu0
        %v6523 = vadd.f32 %v4159, %v6522
        %v6524 = vpop.f32.mrb[0].mxu0
        %6525 = vmatprep.mubr.f32.mxu0 0.0
        %6526 = vmatmul.mubr.f32.gmra.mrb[0].mxu0 %v6356
        %v6527 = vpop.f32.mrb[0].mxu0
        %v6528 = vadd.f32 %v4160, %v6527
        %v6529 = vpop.f32.mrb[0].mxu0
        %6530 = vmatprep.mubr.f32.mxu0 0.0
        %6531 = vmatmul.mubr.f32.gmra.mrb[0].mxu0 %v6359
        %v6532 = vpop.f32.mrb[0].mxu0
        %v6533 = vadd.f32 %v4161, %v6532
        %v6534 = vpop.f32.mrb[0].mxu0
        %6535 = vmatprep.mubr.f32.mxu0 0.0
        %6536 = vmatmul.mubr.f32.gmra.mrb[0].mxu0 %v6362
        %v6537 = vpop.f32.mrb[0].mxu0
        %v6538 = vadd.f32 %v4162, %v6537
        %v6539 = vpop.f32.mrb[0].mxu0
        %6540 = vmatprep.mubr.f32.mxu0 0.0
        %6541 = vmatmul.mubr.f32.gmra.mrb[0].mxu0 %v6365
        %v6542 = vpop.f32.mrb[0].mxu0
        %v6543 = vadd.f32 %v4163, %v6542
        %v6544 = vpop.f32.mrb[0].mxu0
        %6545 = vmatprep.mubr.f32.mxu0 0.0
        %6546 = vmatmul.mubr.f32.gmra.mrb[0].mxu0 %v6368
        %v6547 = vpop.f32.mrb[0].mxu0
        %v6548 = vadd.f32 %v4164, %v6547
        %v6549 = vpop.f32.mrb[0].mxu0
        %6550 = vmatprep.mubr.f32.mxu0 0.0
        %6551 = vmatmul.mubr.f32.gmra.mrb[0].mxu0 %v6371
        %v6552 = vpop.f32.mrb[0].mxu0
        %v6553 = vadd.f32 %v4165, %v6552
        %v6554 = vpop.f32.mrb[0].mxu0
        %6555 = vmatprep.mubr.f32.mxu0 0.0
        %6556 = vmatmul.mubr.f32.gmra.mrb[0].mxu0 %v6374
        %v6557 = vpop.f32.mrb[0].mxu0
        %v6558 = vadd.f32 %v4166, %v6557
        %v6559 = vpop.f32.mrb[0].mxu0
        %6560 = vmatprep.mubr.f32.mxu0 0.0
        %6561 = vmatmul.mubr.f32.gmra.mrb[0].mxu0 %v6377
        %v6562 = vpop.f32.mrb[0].mxu0
        %v6563 = vadd.f32 %v4167, %v6562
        %v6564 = vpop.f32.mrb[0].mxu0
        %6565 = vmatprep.mubr.f32.mxu0 0.0
        %6566 = vmatmul.mubr.f32.gmra.mrb[0].mxu0 %v6380
        %v6567 = vpop.f32.mrb[0].mxu0
        %v6568 = vadd.f32 %v4168, %v6567
        %v6569 = vpop.f32.mrb[0].mxu0
        %6570 = vmatprep.mubr.f32.mxu0 0.0
        %6571 = vmatmul.mubr.f32.gmra.mrb[0].mxu0 %v6383
        %v6572 = vpop.f32.mrb[0].mxu0
        %v6573 = vadd.f32 %v4169, %v6572
        %v6574 = vpop.f32.mrb[0].mxu0
        %6575 = vmatprep.mubr.f32.mxu0 0.0
        %6576 = vmatmul.mubr.f32.gmra.mrb[0].mxu0 %v6386
        %v6577 = vpop.f32.mrb[0].mxu0
        %v6578 = vadd.f32 %v4170, %v6577
        %v6579 = vpop.f32.mrb[0].mxu0
        %6580 = vdwg.mxu0
        %6581 = vmax.xlane.f32.xlu0 %v6503
        %v6582 = vpop.xlane.xlu0 %6581
        %6583 = vmax.xlane.f32.xlu0 %v6508
        %v6584 = vpop.xlane.xlu0 %6583
        %6585 = vmax.xlane.f32.xlu0 %v6513
        %v6586 = vpop.xlane.xlu0 %6585
        %6587 = vmax.xlane.f32.xlu0 %v6518
        %v6588 = vpop.xlane.xlu0 %6587
        %6589 = vmax.xlane.f32.xlu0 %v6523
        %v6590 = vpop.xlane.xlu0 %6589
        %6591 = vmax.xlane.f32.xlu0 %v6528
        %v6592 = vpop.xlane.xlu0 %6591
        %6593 = vmax.xlane.f32.xlu0 %v6533
        %v6594 = vpop.xlane.xlu0 %6593
        %6595 = vmax.xlane.f32.xlu0 %v6538
        %v6596 = vpop.xlane.xlu0 %6595
        %6597 = vmax.xlane.f32.xlu0 %v6543
        %v6598 = vpop.xlane.xlu0 %6597
        %6599 = vmax.xlane.f32.xlu0 %v6548
        %v6600 = vpop.xlane.xlu0 %6599
        %6601 = vmax.xlane.f32.xlu0 %v6553
        %v6602 = vpop.xlane.xlu0 %6601
        %6603 = vmax.xlane.f32.xlu0 %v6558
        %v6604 = vpop.xlane.xlu0 %6603
        %6605 = vmax.xlane.f32.xlu0 %v6563
        %v6606 = vpop.xlane.xlu0 %6605
        %6607 = vmax.xlane.f32.xlu0 %v6568
        %v6608 = vpop.xlane.xlu0 %6607
        %6609 = vmax.xlane.f32.xlu0 %v6573
        %v6610 = vpop.xlane.xlu0 %6609
        %6611 = vmax.xlane.f32.xlu0 %v6578
        %v6612 = vpop.xlane.xlu0 %6611
        %v6613 = vsub.f32 %v6503, %v6582
        %v6614 = vsub.f32 %v6508, %v6584
        %v6615 = vsub.f32 %v6513, %v6586
        %v6616 = vsub.f32 %v6518, %v6588
        %v6617 = vsub.f32 %v6523, %v6590
        %v6618 = vsub.f32 %v6528, %v6592
        %v6619 = vsub.f32 %v6533, %v6594
        %v6620 = vsub.f32 %v6538, %v6596
        %v6621 = vsub.f32 %v6543, %v6598
        %v6622 = vsub.f32 %v6548, %v6600
        %v6623 = vsub.f32 %v6553, %v6602
        %v6624 = vsub.f32 %v6558, %v6604
        %v6625 = vsub.f32 %v6563, %v6606
        %v6626 = vsub.f32 %v6568, %v6608
        %v6627 = vsub.f32 %v6573, %v6610
        %v6628 = vsub.f32 %v6578, %v6612
        %v6629 = vmul.f32 %v6613, 1.442695
        %v6630 = vpow.pop %v6629
        %v6631 = vmul.f32 %v6614, 1.442695
        %v6632 = vpow.pop %v6631
        %v6633 = vmul.f32 %v6615, 1.442695
        %v6634 = vpow.pop %v6633
        %v6635 = vmul.f32 %v6616, 1.442695
        %v6636 = vpow.pop %v6635
        %v6637 = vmul.f32 %v6617, 1.442695
        %v6638 = vpow.pop %v6637
        %v6639 = vmul.f32 %v6618, 1.442695
        %v6640 = vpow.pop %v6639
        %v6641 = vmul.f32 %v6619, 1.442695
        %v6642 = vpow.pop %v6641
        %v6643 = vmul.f32 %v6620, 1.442695
        %v6644 = vpow.pop %v6643
        %v6645 = vmul.f32 %v6621, 1.442695
        %v6646 = vpow.pop %v6645
        %v6647 = vmul.f32 %v6622, 1.442695
        %v6648 = vpow.pop %v6647
        %v6649 = vmul.f32 %v6623, 1.442695
        %v6650 = vpow.pop %v6649
        %v6651 = vmul.f32 %v6624, 1.442695
        %v6652 = vpow.pop %v6651
        %v6653 = vmul.f32 %v6625, 1.442695
        %v6654 = vpow.pop %v6653
        %v6655 = vmul.f32 %v6626, 1.442695
        %v6656 = vpow.pop %v6655
        %v6657 = vmul.f32 %v6627, 1.442695
        %v6658 = vpow.pop %v6657
        %v6659 = vmul.f32 %v6628, 1.442695
        %v6660 = vpow.pop %v6659
        %6661 = vadd.xlane.f32.xlu0 %v6630
        %v6662 = vpop.xlane.xlu0 %6661
        %6663 = vadd.xlane.f32.xlu0 %v6632
        %v6664 = vpop.xlane.xlu0 %6663
        %6665 = vadd.xlane.f32.xlu0 %v6634
        %v6666 = vpop.xlane.xlu0 %6665
        %6667 = vadd.xlane.f32.xlu0 %v6636
        %v6668 = vpop.xlane.xlu0 %6667
        %6669 = vadd.xlane.f32.xlu0 %v6638
        %v6670 = vpop.xlane.xlu0 %6669
        %6671 = vadd.xlane.f32.xlu0 %v6640
        %v6672 = vpop.xlane.xlu0 %6671
        %6673 = vadd.xlane.f32.xlu0 %v6642
        %v6674 = vpop.xlane.xlu0 %6673
        %6675 = vadd.xlane.f32.xlu0 %v6644
        %v6676 = vpop.xlane.xlu0 %6675
        %6677 = vadd.xlane.f32.xlu0 %v6646
        %v6678 = vpop.xlane.xlu0 %6677
        %6679 = vadd.xlane.f32.xlu0 %v6648
        %v6680 = vpop.xlane.xlu0 %6679
        %6681 = vadd.xlane.f32.xlu0 %v6650
        %v6682 = vpop.xlane.xlu0 %6681
        %6683 = vadd.xlane.f32.xlu0 %v6652
        %v6684 = vpop.xlane.xlu0 %6683
        %6685 = vadd.xlane.f32.xlu0 %v6654
        %v6686 = vpop.xlane.xlu0 %6685
        %6687 = vadd.xlane.f32.xlu0 %v6656
        %v6688 = vpop.xlane.xlu0 %6687
        %6689 = vadd.xlane.f32.xlu0 %v6658
        %v6690 = vpop.xlane.xlu0 %6689
        %6691 = vadd.xlane.f32.xlu0 %v6660
        %v6692 = vpop.xlane.xlu0 %6691
        %v6693 = vrcp.pop %v6662
        %v6694 = vmul.f32 1.0, %v6693
        %v6695 = vrcp.pop %v6664
        %v6696 = vmul.f32 1.0, %v6695
        %v6697 = vrcp.pop %v6666
        %v6698 = vmul.f32 1.0, %v6697
        %v6699 = vrcp.pop %v6668
        %v6700 = vmul.f32 1.0, %v6699
        %v6701 = vrcp.pop %v6670
        %v6702 = vmul.f32 1.0, %v6701
        %v6703 = vrcp.pop %v6672
        %v6704 = vmul.f32 1.0, %v6703
        %v6705 = vrcp.pop %v6674
        %v6706 = vmul.f32 1.0, %v6705
        %v6707 = vrcp.pop %v6676
        %v6708 = vmul.f32 1.0, %v6707
        %v6709 = vrcp.pop %v6678
        %v6710 = vmul.f32 1.0, %v6709
        %v6711 = vrcp.pop %v6680
        %v6712 = vmul.f32 1.0, %v6711
        %v6713 = vrcp.pop %v6682
        %v6714 = vmul.f32 1.0, %v6713
        %v6715 = vrcp.pop %v6684
        %v6716 = vmul.f32 1.0, %v6715
        %v6717 = vrcp.pop %v6686
        %v6718 = vmul.f32 1.0, %v6717
        %v6719 = vrcp.pop %v6688
        %v6720 = vmul.f32 1.0, %v6719
        %v6721 = vrcp.pop %v6690
        %v6722 = vmul.f32 1.0, %v6721
        %v6723 = vrcp.pop %v6692
        %v6724 = vmul.f32 1.0, %v6723
        %v6725 = vmul.f32 %v6630, %v6694
        %v6726 = vmul.f32 %v6632, %v6696
        %v6727 = vmul.f32 %v6634, %v6698
        %v6728 = vmul.f32 %v6636, %v6700
        %v6729 = vmul.f32 %v6638, %v6702
        %v6730 = vmul.f32 %v6640, %v6704
        %v6731 = vmul.f32 %v6642, %v6706
        %v6732 = vmul.f32 %v6644, %v6708
        %v6733 = vmul.f32 %v6646, %v6710
        %v6734 = vmul.f32 %v6648, %v6712
        %v6735 = vmul.f32 %v6650, %v6714
        %v6736 = vmul.f32 %v6652, %v6716
        %v6737 = vmul.f32 %v6654, %v6718
        %v6738 = vmul.f32 %v6656, %v6720
        %v6739 = vmul.f32 %v6658, %v6722
        %v6740 = vmul.f32 %v6660, %v6724
        %v6741 = vpack.c.bf16 %v6726, %v6725
        %v6742 = vpack.c.bf16 %v6728, %v6727
        %v6743 = vpack.c.bf16 %v6730, %v6729
        %v6744 = vpack.c.bf16 %v6732, %v6731
        %v6745 = vpack.c.bf16 %v6734, %v6733
        %v6746 = vpack.c.bf16 %v6736, %v6735
        %v6747 = vpack.c.bf16 %v6738, %v6737
        %v6748 = vpack.c.bf16 %v6740, %v6739
        %v6749 = vpack.c.bf16 %v4081, %v4077
        %v6750 = vpack.c.bf16 %v4091, %v4087
        %v6751 = vpack.c.bf16 %v4101, %v4097
        %v6752 = vpack.c.bf16 %v4111, %v4107
        %v6753 = vpack.c.bf16 %v4121, %v4117
        %v6754 = vpack.c.bf16 %v4131, %v4127
        %v6755 = vpack.c.bf16 %v4141, %v4137
        %v6756 = vpack.c.bf16 %v4151, %v4147
        %6757 = vmatprep.subr.bf16.mxu0 0
        %6758 = vmatpush1.bf16.msra.mxu0 %v6749
        %6759 = vmatprep.subr.bf16.mxu0 0
        %6760 = vmatpush1.bf16.msra.mxu0 %v6750
        %6761 = vmatprep.subr.bf16.mxu0 0
        %6762 = vmatpush1.bf16.msra.mxu0 %v6751
        %6763 = vmatprep.subr.bf16.mxu0 0
        %6764 = vmatpush1.bf16.msra.mxu0 %v6752
        %6765 = vmatprep.subr.bf16.mxu0 0
        %6766 = vmatpush1.bf16.msra.mxu0 %v6753
        %6767 = vmatprep.subr.bf16.mxu0 0
        %6768 = vmatpush1.bf16.msra.mxu0 %v6754
        %6769 = vmatprep.subr.bf16.mxu0 0
        %6770 = vmatpush1.bf16.msra.mxu0 %v6755
        %6771 = vmatprep.subr.bf16.mxu0 0
        %6772 = vmatpush1.bf16.msra.mxu0 %v6756
        %6773 = vmatprep.subr.bf16.mxu0 0
        %6774 = vmatpush1.bf16.msra.mxu0 0
        %6775 = vmatprep.subr.bf16.mxu0 0
        %6776 = vmatpush1.bf16.msra.mxu0 0
        %6777 = vmatprep.subr.bf16.mxu0 0
        %6778 = vmatpush1.bf16.msra.mxu0 0
        %6779 = vmatprep.subr.bf16.mxu0 0
        %6780 = vmatpush1.bf16.msra.mxu0 0
        %6781 = vmatprep.subr.bf16.mxu0 0
        %6782 = vmatpush1.bf16.msra.mxu0 0
        %6783 = vmatprep.subr.bf16.mxu0 0
        %6784 = vmatpush1.bf16.msra.mxu0 0
        %6785 = vmatprep.subr.bf16.mxu0 0
        %6786 = vmatpush1.bf16.msra.mxu0 0
        %6787 = vmatprep.subr.bf16.mxu0 0
        %6788 = vmatpush1.bf16.msra.mxu0 0
        %6789 = vmatprep.mubr.bf16.mxu0 0
        %6790 = vmatmul.mubr.bf16.gmra.mrb[0].mxu0 %v6741
        %v6791 = vpop.f32.mrb[0].mxu0
        %v6792 = vadd.f32 0.0, %v6791
        %v6793 = vpop.f32.mrb[0].mxu0
        %v6794 = vpop.f32.mrb[0].mxu0
        %v6795 = vadd.f32 0.0, %v6794
        %v6796 = vpop.f32.mrb[0].mxu0
        %6797 = vmatprep.mubr.bf16.mxu0 0
        %6798 = vmatmul.mubr.bf16.gmra.mrb[0].mxu0 %v6742
        %v6799 = vpop.f32.mrb[0].mxu0
        %v6800 = vadd.f32 0.0, %v6799
        %v6801 = vpop.f32.mrb[0].mxu0
        %v6802 = vpop.f32.mrb[0].mxu0
        %v6803 = vadd.f32 0.0, %v6802
        %v6804 = vpop.f32.mrb[0].mxu0
        %6805 = vmatprep.mubr.bf16.mxu0 0
        %6806 = vmatmul.mubr.bf16.gmra.mrb[0].mxu0 %v6743
        %v6807 = vpop.f32.mrb[0].mxu0
        %v6808 = vadd.f32 0.0, %v6807
        %v6809 = vpop.f32.mrb[0].mxu0
        %v6810 = vpop.f32.mrb[0].mxu0
        %v6811 = vadd.f32 0.0, %v6810
        %v6812 = vpop.f32.mrb[0].mxu0
        %6813 = vmatprep.mubr.bf16.mxu0 0
        %6814 = vmatmul.mubr.bf16.gmra.mrb[0].mxu0 %v6744
        %v6815 = vpop.f32.mrb[0].mxu0
        %v6816 = vadd.f32 0.0, %v6815
        %v6817 = vpop.f32.mrb[0].mxu0
        %v6818 = vpop.f32.mrb[0].mxu0
        %v6819 = vadd.f32 0.0, %v6818
        %v6820 = vpop.f32.mrb[0].mxu0
        %6821 = vmatprep.mubr.bf16.mxu0 0
        %6822 = vmatmul.mubr.bf16.gmra.mrb[0].mxu0 %v6745
        %v6823 = vpop.f32.mrb[0].mxu0
        %v6824 = vadd.f32 0.0, %v6823
        %v6825 = vpop.f32.mrb[0].mxu0
        %v6826 = vpop.f32.mrb[0].mxu0
        %v6827 = vadd.f32 0.0, %v6826
        %v6828 = vpop.f32.mrb[0].mxu0
        %6829 = vmatprep.mubr.bf16.mxu0 0
        %6830 = vmatmul.mubr.bf16.gmra.mrb[0].mxu0 %v6746
        %v6831 = vpop.f32.mrb[0].mxu0
        %v6832 = vadd.f32 0.0, %v6831
        %v6833 = vpop.f32.mrb[0].mxu0
        %v6834 = vpop.f32.mrb[0].mxu0
        %v6835 = vadd.f32 0.0, %v6834
        %v6836 = vpop.f32.mrb[0].mxu0
        %6837 = vmatprep.mubr.bf16.mxu0 0
        %6838 = vmatmul.mubr.bf16.gmra.mrb[0].mxu0 %v6747
        %v6839 = vpop.f32.mrb[0].mxu0
        %v6840 = vadd.f32 0.0, %v6839
        %v6841 = vpop.f32.mrb[0].mxu0
        %v6842 = vpop.f32.mrb[0].mxu0
        %v6843 = vadd.f32 0.0, %v6842
        %v6844 = vpop.f32.mrb[0].mxu0
        %6845 = vmatprep.mubr.bf16.mxu0 0
        %6846 = vmatmul.mubr.bf16.gmra.mrb[0].mxu0 %v6748
        %v6847 = vpop.f32.mrb[0].mxu0
        %v6848 = vadd.f32 0.0, %v6847
        %v6849 = vpop.f32.mrb[0].mxu0
        %v6850 = vpop.f32.mrb[0].mxu0
        %v6851 = vadd.f32 0.0, %v6850
        %v6852 = vpop.f32.mrb[0].mxu0
        %6853 = vdwg.mxu0
        %6854 = vrot.lane.b32.xlu0 %v3173, 64
        %v6855 = vpop.permute.xlu0 %6854
        %6856 = vrot.lane.b32.xlu0 %v3177, 64
        %v6857 = vpop.permute.xlu0 %6856
        %6858 = vrot.lane.b32.xlu0 %v3183, 64
        %v6859 = vpop.permute.xlu0 %6858
        %6860 = vrot.lane.b32.xlu0 %v3187, 64
        %v6861 = vpop.permute.xlu0 %6860
        %6862 = vrot.lane.b32.xlu0 %v3193, 64
        %v6863 = vpop.permute.xlu0 %6862
        %6864 = vrot.lane.b32.xlu0 %v3197, 64
        %v6865 = vpop.permute.xlu0 %6864
        %6866 = vrot.lane.b32.xlu0 %v3203, 64
        %v6867 = vpop.permute.xlu0 %6866
        %6868 = vrot.lane.b32.xlu0 %v3207, 64
        %v6869 = vpop.permute.xlu0 %6868
        %6870 = vrot.lane.b32.xlu0 %v3213, 64
        %v6871 = vpop.permute.xlu0 %6870
        %6872 = vrot.lane.b32.xlu0 %v3217, 64
        %v6873 = vpop.permute.xlu0 %6872
        %6874 = vrot.lane.b32.xlu0 %v3223, 64
        %v6875 = vpop.permute.xlu0 %6874
        %6876 = vrot.lane.b32.xlu0 %v3227, 64
        %v6877 = vpop.permute.xlu0 %6876
        %6878 = vrot.lane.b32.xlu0 %v3233, 64
        %v6879 = vpop.permute.xlu0 %6878
        %6880 = vrot.lane.b32.xlu0 %v3237, 64
        %v6881 = vpop.permute.xlu0 %6880
        %6882 = vrot.lane.b32.xlu0 %v3243, 64
        %v6883 = vpop.permute.xlu0 %6882
        %6884 = vrot.lane.b32.xlu0 %v3247, 64
        %v6885 = vpop.permute.xlu0 %6884
        %6886 = vrot.lane.b32.xlu0 %v3625, 64
        %v6887 = vpop.permute.xlu0 %6886
        %6888 = vrot.lane.b32.xlu0 %v3629, 64
        %v6889 = vpop.permute.xlu0 %6888
        %6890 = vrot.lane.b32.xlu0 %v3635, 64
        %v6891 = vpop.permute.xlu0 %6890
        %6892 = vrot.lane.b32.xlu0 %v3639, 64
        %v6893 = vpop.permute.xlu0 %6892
        %6894 = vrot.lane.b32.xlu0 %v3645, 64
        %v6895 = vpop.permute.xlu0 %6894
        %6896 = vrot.lane.b32.xlu0 %v3649, 64
        %v6897 = vpop.permute.xlu0 %6896
        %6898 = vrot.lane.b32.xlu0 %v3655, 64
        %v6899 = vpop.permute.xlu0 %6898
        %6900 = vrot.lane.b32.xlu0 %v3659, 64
        %v6901 = vpop.permute.xlu0 %6900
        %6902 = vrot.lane.b32.xlu0 %v3665, 64
        %v6903 = vpop.permute.xlu0 %6902
        %6904 = vrot.lane.b32.xlu0 %v3669, 64
        %v6905 = vpop.permute.xlu0 %6904
        %6906 = vrot.lane.b32.xlu0 %v3675, 64
        %v6907 = vpop.permute.xlu0 %6906
        %6908 = vrot.lane.b32.xlu0 %v3679, 64
        %v6909 = vpop.permute.xlu0 %6908
        %6910 = vrot.lane.b32.xlu0 %v3685, 64
        %v6911 = vpop.permute.xlu0 %6910
        %6912 = vrot.lane.b32.xlu0 %v3689, 64
        %v6913 = vpop.permute.xlu0 %6912
        %6914 = vrot.lane.b32.xlu0 %v3695, 64
        %v6915 = vpop.permute.xlu0 %6914
        %6916 = vrot.lane.b32.xlu0 %v3699, 64
        %v6917 = vpop.permute.xlu0 %6916
        %v6918 = vsel %vm4171, %v6855, 0
        %v6920 = vsel %vm4171, %v6857, 0
        %v6922 = vsel %vm4171, %v6859, 0
        %v6924 = vsel %vm4171, %v6861, 0
        %v6926 = vsel %vm4171, %v6863, 0
        %v6928 = vsel %vm4171, %v6865, 0
        %v6930 = vsel %vm4171, %v6867, 0
        %v6932 = vsel %vm4171, %v6869, 0
        %v6934 = vsel %vm4171, %v6871, 0
        %v6936 = vsel %vm4171, %v6873, 0
        %v6938 = vsel %vm4171, %v6875, 0
        %v6940 = vsel %vm4171, %v6877, 0
        %v6942 = vsel %vm4171, %v6879, 0
        %v6944 = vsel %vm4171, %v6881, 0
        %v6946 = vsel %vm4171, %v6883, 0
        %v6948 = vsel %vm4171, %v6885, 0
        %v6950 = vsel %vm4171, %v6887, 0
        %v6952 = vsel %vm4171, %v6889, 0
        %v6954 = vsel %vm4171, %v6891, 0
        %v6956 = vsel %vm4171, %v6893, 0
        %v6958 = vsel %vm4171, %v6895, 0
        %v6960 = vsel %vm4171, %v6897, 0
        %v6962 = vsel %vm4171, %v6899, 0
        %v6964 = vsel %vm4171, %v6901, 0
        %v6966 = vsel %vm4171, %v6903, 0
        %v6968 = vsel %vm4171, %v6905, 0
        %v6970 = vsel %vm4171, %v6907, 0
        %v6972 = vsel %vm4171, %v6909, 0
        %v6974 = vsel %vm4171, %v6911, 0
        %v6976 = vsel %vm4171, %v6913, 0
        %v6978 = vsel %vm4171, %v6915, 0
        %v6980 = vsel %vm4171, %v6917, 0
        %6982 = vmatprep.subr.mxu0 0.0
        %6983 = vmatpush1.xpose.msra.mxu0 %v6950
        %6984 = vmatprep.subr.mxu0 0.0
        %6985 = vmatpush1.xpose.msra.mxu0 %v6952
        %6986 = vmatprep.subr.mxu0 0.0
        %6987 = vmatpush1.xpose.msra.mxu0 %v6954
        %6988 = vmatprep.subr.mxu0 0.0
        %6989 = vmatpush1.xpose.msra.mxu0 %v6956
        %6990 = vmatprep.subr.mxu0 0.0
        %6991 = vmatpush1.xpose.msra.mxu0 %v6958
        %6992 = vmatprep.subr.mxu0 0.0
        %6993 = vmatpush1.xpose.msra.mxu0 %v6960
        %6994 = vmatprep.subr.mxu0 0.0
        %6995 = vmatpush1.xpose.msra.mxu0 %v6962
        %6996 = vmatprep.subr.mxu0 0.0
        %6997 = vmatpush1.xpose.msra.mxu0 %v6964
        %6998 = vmatprep.subr.mxu0 0.0
        %6999 = vmatpush1.xpose.msra.mxu0 %v6966
        %7000 = vmatprep.subr.mxu0 0.0
        %7001 = vmatpush1.xpose.msra.mxu0 %v6968
        %7002 = vmatprep.subr.mxu0 0.0
        %7003 = vmatpush1.xpose.msra.mxu0 %v6970
        %7004 = vmatprep.subr.mxu0 0.0
        %7005 = vmatpush1.xpose.msra.mxu0 %v6972
        %7006 = vmatprep.subr.mxu0 0.0
        %7007 = vmatpush1.xpose.msra.mxu0 %v6974
        %7008 = vmatprep.subr.mxu0 0.0
        %7009 = vmatpush1.xpose.msra.mxu0 %v6976
        %7010 = vmatprep.subr.mxu0 0.0
        %7011 = vmatpush1.xpose.msra.mxu0 %v6978
        %7012 = vmatprep.subr.mxu0 0.0
        %7013 = vmatpush1.xpose.msra.mxu0 %v6980
        %7014 = vmatprep.subr.mxu0 0.0
        %7015 = vmatpush1.xpose.msra.mxu0 0.0
        %7016 = vmatprep.subr.mxu0 0.0
        %7017 = vmatpush1.xpose.msra.mxu0 0.0
        %7018 = vmatprep.subr.mxu0 0.0
        %7019 = vmatpush1.xpose.msra.mxu0 0.0
        %7020 = vmatprep.subr.mxu0 0.0
        %7021 = vmatpush1.xpose.msra.mxu0 0.0
        %7022 = vmatprep.subr.mxu0 0.0
        %7023 = vmatpush1.xpose.msra.mxu0 0.0
        %7024 = vmatprep.subr.mxu0 0.0
        %7025 = vmatpush1.xpose.msra.mxu0 0.0
        %7026 = vmatprep.subr.mxu0 0.0
        %7027 = vmatpush1.xpose.msra.mxu0 0.0
        %7028 = vmatprep.subr.mxu0 0.0
        %7029 = vmatpush1.xpose.msra.mxu0 0.0
        %7030 = vmatprep.subr.mxu0 0.0
        %7031 = vmatpush1.xpose.msra.mxu0 0.0
        %7032 = vmatprep.subr.mxu0 0.0
        %7033 = vmatpush1.xpose.msra.mxu0 0.0
        %7034 = vmatprep.subr.mxu0 0.0
        %7035 = vmatpush1.xpose.msra.mxu0 0.0
        %7036 = vmatprep.subr.mxu0 0.0
        %7037 = vmatpush1.xpose.msra.mxu0 0.0
        %7038 = vmatprep.subr.mxu0 0.0
        %7039 = vmatpush1.xpose.msra.mxu0 0.0
        %7040 = vmatprep.subr.mxu0 0.0
        %7041 = vmatpush1.xpose.msra.mxu0 0.0
        %7042 = vmatprep.subr.mxu0 0.0
        %7043 = vmatpush1.xpose.msra.mxu0 0.0
        %7044 = vmatprep.subr.mxu0 0.0
        %7045 = vmatpush1.xpose.msra.mxu0 0.0
        %7046 = vmatprep.mubr.f32.mxu0 0.0
        %7047 = vmatmul.mubr.f32.gmra.mrb[0].mxu0 %v6918
        %v7048 = vpop.f32.mrb[0].mxu0
        %v7049 = vadd.f32 %v4155, %v7048
        %v7050 = vpop.f32.mrb[0].mxu0
        %7051 = vmatprep.mubr.f32.mxu0 0.0
        %7052 = vmatmul.mubr.f32.gmra.mrb[0].mxu0 %v6920
        %v7053 = vpop.f32.mrb[0].mxu0
        %v7054 = vadd.f32 %v4156, %v7053
        %v7055 = vpop.f32.mrb[0].mxu0
        %7056 = vmatprep.mubr.f32.mxu0 0.0
        %7057 = vmatmul.mubr.f32.gmra.mrb[0].mxu0 %v6922
        %v7058 = vpop.f32.mrb[0].mxu0
        %v7059 = vadd.f32 %v4157, %v7058
        %v7060 = vpop.f32.mrb[0].mxu0
        %7061 = vmatprep.mubr.f32.mxu0 0.0
        %7062 = vmatmul.mubr.f32.gmra.mrb[0].mxu0 %v6924
        %v7063 = vpop.f32.mrb[0].mxu0
        %v7064 = vadd.f32 %v4158, %v7063
        %v7065 = vpop.f32.mrb[0].mxu0
        %7066 = vmatprep.mubr.f32.mxu0 0.0
        %7067 = vmatmul.mubr.f32.gmra.mrb[0].mxu0 %v6926
        %v7068 = vpop.f32.mrb[0].mxu0
        %v7069 = vadd.f32 %v4159, %v7068
        %v7070 = vpop.f32.mrb[0].mxu0
        %7071 = vmatprep.mubr.f32.mxu0 0.0
        %7072 = vmatmul.mubr.f32.gmra.mrb[0].mxu0 %v6928
        %v7073 = vpop.f32.mrb[0].mxu0
        %v7074 = vadd.f32 %v4160, %v7073
        %v7075 = vpop.f32.mrb[0].mxu0
        %7076 = vmatprep.mubr.f32.mxu0 0.0
        %7077 = vmatmul.mubr.f32.gmra.mrb[0].mxu0 %v6930
        %v7078 = vpop.f32.mrb[0].mxu0
        %v7079 = vadd.f32 %v4161, %v7078
        %v7080 = vpop.f32.mrb[0].mxu0
        %7081 = vmatprep.mubr.f32.mxu0 0.0
        %7082 = vmatmul.mubr.f32.gmra.mrb[0].mxu0 %v6932
        %v7083 = vpop.f32.mrb[0].mxu0
        %v7084 = vadd.f32 %v4162, %v7083
        %v7085 = vpop.f32.mrb[0].mxu0
        %7086 = vmatprep.mubr.f32.mxu0 0.0
        %7087 = vmatmul.mubr.f32.gmra.mrb[0].mxu0 %v6934
        %v7088 = vpop.f32.mrb[0].mxu0
        %v7089 = vadd.f32 %v4163, %v7088
        %v7090 = vpop.f32.mrb[0].mxu0
        %7091 = vmatprep.mubr.f32.mxu0 0.0
        %7092 = vmatmul.mubr.f32.gmra.mrb[0].mxu0 %v6936
        %v7093 = vpop.f32.mrb[0].mxu0
        %v7094 = vadd.f32 %v4164, %v7093
        %v7095 = vpop.f32.mrb[0].mxu0
        %7096 = vmatprep.mubr.f32.mxu0 0.0
        %7097 = vmatmul.mubr.f32.gmra.mrb[0].mxu0 %v6938
        %v7098 = vpop.f32.mrb[0].mxu0
        %v7099 = vadd.f32 %v4165, %v7098
        %v7100 = vpop.f32.mrb[0].mxu0
        %7101 = vmatprep.mubr.f32.mxu0 0.0
        %7102 = vmatmul.mubr.f32.gmra.mrb[0].mxu0 %v6940
        %v7103 = vpop.f32.mrb[0].mxu0
        %v7104 = vadd.f32 %v4166, %v7103
        %v7105 = vpop.f32.mrb[0].mxu0
        %7106 = vmatprep.mubr.f32.mxu0 0.0
        %7107 = vmatmul.mubr.f32.gmra.mrb[0].mxu0 %v6942
        %v7108 = vpop.f32.mrb[0].mxu0
        %v7109 = vadd.f32 %v4167, %v7108
        %v7110 = vpop.f32.mrb[0].mxu0
        %7111 = vmatprep.mubr.f32.mxu0 0.0
        %7112 = vmatmul.mubr.f32.gmra.mrb[0].mxu0 %v6944
        %v7113 = vpop.f32.mrb[0].mxu0
        %v7114 = vadd.f32 %v4168, %v7113
        %v7115 = vpop.f32.mrb[0].mxu0
        %7116 = vmatprep.mubr.f32.mxu0 0.0
        %7117 = vmatmul.mubr.f32.gmra.mrb[0].mxu0 %v6946
        %v7118 = vpop.f32.mrb[0].mxu0
        %v7119 = vadd.f32 %v4169, %v7118
        %v7120 = vpop.f32.mrb[0].mxu0
        %7121 = vmatprep.mubr.f32.mxu0 0.0
        %7122 = vmatmul.mubr.f32.gmra.mrb[0].mxu0 %v6948
        %v7123 = vpop.f32.mrb[0].mxu0
        %v7124 = vadd.f32 %v4170, %v7123
        %v7125 = vpop.f32.mrb[0].mxu0
        %7126 = vdwg.mxu0
        %7127 = vmax.xlane.f32.xlu0 %v7049
        %v7128 = vpop.xlane.xlu0 %7127
        %7129 = vmax.xlane.f32.xlu0 %v7054
        %v7130 = vpop.xlane.xlu0 %7129
        %7131 = vmax.xlane.f32.xlu0 %v7059
        %v7132 = vpop.xlane.xlu0 %7131
        %7133 = vmax.xlane.f32.xlu0 %v7064
        %v7134 = vpop.xlane.xlu0 %7133
        %7135 = vmax.xlane.f32.xlu0 %v7069
        %v7136 = vpop.xlane.xlu0 %7135
        %7137 = vmax.xlane.f32.xlu0 %v7074
        %v7138 = vpop.xlane.xlu0 %7137
        %7139 = vmax.xlane.f32.xlu0 %v7079
        %v7140 = vpop.xlane.xlu0 %7139
        %7141 = vmax.xlane.f32.xlu0 %v7084
        %v7142 = vpop.xlane.xlu0 %7141
        %7143 = vmax.xlane.f32.xlu0 %v7089
        %v7144 = vpop.xlane.xlu0 %7143
        %7145 = vmax.xlane.f32.xlu0 %v7094
        %v7146 = vpop.xlane.xlu0 %7145
        %7147 = vmax.xlane.f32.xlu0 %v7099
        %v7148 = vpop.xlane.xlu0 %7147
        %7149 = vmax.xlane.f32.xlu0 %v7104
        %v7150 = vpop.xlane.xlu0 %7149
        %7151 = vmax.xlane.f32.xlu0 %v7109
        %v7152 = vpop.xlane.xlu0 %7151
        %7153 = vmax.xlane.f32.xlu0 %v7114
        %v7154 = vpop.xlane.xlu0 %7153
        %7155 = vmax.xlane.f32.xlu0 %v7119
        %v7156 = vpop.xlane.xlu0 %7155
        %7157 = vmax.xlane.f32.xlu0 %v7124
        %v7158 = vpop.xlane.xlu0 %7157
        %v7159 = vsub.f32 %v7049, %v7128
        %v7160 = vsub.f32 %v7054, %v7130
        %v7161 = vsub.f32 %v7059, %v7132
        %v7162 = vsub.f32 %v7064, %v7134
        %v7163 = vsub.f32 %v7069, %v7136
        %v7164 = vsub.f32 %v7074, %v7138
        %v7165 = vsub.f32 %v7079, %v7140
        %v7166 = vsub.f32 %v7084, %v7142
        %v7167 = vsub.f32 %v7089, %v7144
        %v7168 = vsub.f32 %v7094, %v7146
        %v7169 = vsub.f32 %v7099, %v7148
        %v7170 = vsub.f32 %v7104, %v7150
        %v7171 = vsub.f32 %v7109, %v7152
        %v7172 = vsub.f32 %v7114, %v7154
        %v7173 = vsub.f32 %v7119, %v7156
        %v7174 = vsub.f32 %v7124, %v7158
        %v7175 = vmul.f32 %v7159, 1.442695
        %v7176 = vpow.pop %v7175
        %v7177 = vmul.f32 %v7160, 1.442695
        %v7178 = vpow.pop %v7177
        %v7179 = vmul.f32 %v7161, 1.442695
        %v7180 = vpow.pop %v7179
        %v7181 = vmul.f32 %v7162, 1.442695
        %v7182 = vpow.pop %v7181
        %v7183 = vmul.f32 %v7163, 1.442695
        %v7184 = vpow.pop %v7183
        %v7185 = vmul.f32 %v7164, 1.442695
        %v7186 = vpow.pop %v7185
        %v7187 = vmul.f32 %v7165, 1.442695
        %v7188 = vpow.pop %v7187
        %v7189 = vmul.f32 %v7166, 1.442695
        %v7190 = vpow.pop %v7189
        %v7191 = vmul.f32 %v7167, 1.442695
        %v7192 = vpow.pop %v7191
        %v7193 = vmul.f32 %v7168, 1.442695
        %v7194 = vpow.pop %v7193
        %v7195 = vmul.f32 %v7169, 1.442695
        %v7196 = vpow.pop %v7195
        %v7197 = vmul.f32 %v7170, 1.442695
        %v7198 = vpow.pop %v7197
        %v7199 = vmul.f32 %v7171, 1.442695
        %v7200 = vpow.pop %v7199
        %v7201 = vmul.f32 %v7172, 1.442695
        %v7202 = vpow.pop %v7201
        %v7203 = vmul.f32 %v7173, 1.442695
        %v7204 = vpow.pop %v7203
        %v7205 = vmul.f32 %v7174, 1.442695
        %v7206 = vpow.pop %v7205
        %7207 = vadd.xlane.f32.xlu0 %v7176
        %v7208 = vpop.xlane.xlu0 %7207
        %7209 = vadd.xlane.f32.xlu0 %v7178
        %v7210 = vpop.xlane.xlu0 %7209
        %7211 = vadd.xlane.f32.xlu0 %v7180
        %v7212 = vpop.xlane.xlu0 %7211
        %7213 = vadd.xlane.f32.xlu0 %v7182
        %v7214 = vpop.xlane.xlu0 %7213
        %7215 = vadd.xlane.f32.xlu0 %v7184
        %v7216 = vpop.xlane.xlu0 %7215
        %7217 = vadd.xlane.f32.xlu0 %v7186
        %v7218 = vpop.xlane.xlu0 %7217
        %7219 = vadd.xlane.f32.xlu0 %v7188
        %v7220 = vpop.xlane.xlu0 %7219
        %7221 = vadd.xlane.f32.xlu0 %v7190
        %v7222 = vpop.xlane.xlu0 %7221
        %7223 = vadd.xlane.f32.xlu0 %v7192
        %v7224 = vpop.xlane.xlu0 %7223
        %7225 = vadd.xlane.f32.xlu0 %v7194
        %v7226 = vpop.xlane.xlu0 %7225
        %7227 = vadd.xlane.f32.xlu0 %v7196
        %v7228 = vpop.xlane.xlu0 %7227
        %7229 = vadd.xlane.f32.xlu0 %v7198
        %v7230 = vpop.xlane.xlu0 %7229
        %7231 = vadd.xlane.f32.xlu0 %v7200
        %v7232 = vpop.xlane.xlu0 %7231
        %7233 = vadd.xlane.f32.xlu0 %v7202
        %v7234 = vpop.xlane.xlu0 %7233
        %7235 = vadd.xlane.f32.xlu0 %v7204
        %v7236 = vpop.xlane.xlu0 %7235
        %7237 = vadd.xlane.f32.xlu0 %v7206
        %v7238 = vpop.xlane.xlu0 %7237
        %v7239 = vrcp.pop %v7208
        %v7240 = vmul.f32 1.0, %v7239
        %v7241 = vrcp.pop %v7210
        %v7242 = vmul.f32 1.0, %v7241
        %v7243 = vrcp.pop %v7212
        %v7244 = vmul.f32 1.0, %v7243
        %v7245 = vrcp.pop %v7214
        %v7246 = vmul.f32 1.0, %v7245
        %v7247 = vrcp.pop %v7216
        %v7248 = vmul.f32 1.0, %v7247
        %v7249 = vrcp.pop %v7218
        %v7250 = vmul.f32 1.0, %v7249
        %v7251 = vrcp.pop %v7220
        %v7252 = vmul.f32 1.0, %v7251
        %v7253 = vrcp.pop %v7222
        %v7254 = vmul.f32 1.0, %v7253
        %v7255 = vrcp.pop %v7224
        %v7256 = vmul.f32 1.0, %v7255
        %v7257 = vrcp.pop %v7226
        %v7258 = vmul.f32 1.0, %v7257
        %v7259 = vrcp.pop %v7228
        %v7260 = vmul.f32 1.0, %v7259
        %v7261 = vrcp.pop %v7230
        %v7262 = vmul.f32 1.0, %v7261
        %v7263 = vrcp.pop %v7232
        %v7264 = vmul.f32 1.0, %v7263
        %v7265 = vrcp.pop %v7234
        %v7266 = vmul.f32 1.0, %v7265
        %v7267 = vrcp.pop %v7236
        %v7268 = vmul.f32 1.0, %v7267
        %v7269 = vrcp.pop %v7238
        %v7270 = vmul.f32 1.0, %v7269
        %v7271 = vmul.f32 %v7176, %v7240
        %v7272 = vmul.f32 %v7178, %v7242
        %v7273 = vmul.f32 %v7180, %v7244
        %v7274 = vmul.f32 %v7182, %v7246
        %v7275 = vmul.f32 %v7184, %v7248
        %v7276 = vmul.f32 %v7186, %v7250
        %v7277 = vmul.f32 %v7188, %v7252
        %v7278 = vmul.f32 %v7190, %v7254
        %v7279 = vmul.f32 %v7192, %v7256
        %v7280 = vmul.f32 %v7194, %v7258
        %v7281 = vmul.f32 %v7196, %v7260
        %v7282 = vmul.f32 %v7198, %v7262
        %v7283 = vmul.f32 %v7200, %v7264
        %v7284 = vmul.f32 %v7202, %v7266
        %v7285 = vmul.f32 %v7204, %v7268
        %v7286 = vmul.f32 %v7206, %v7270
        %v7287 = vpack.c.bf16 %v7272, %v7271
        %v7288 = vpack.c.bf16 %v7274, %v7273
        %v7289 = vpack.c.bf16 %v7276, %v7275
        %v7290 = vpack.c.bf16 %v7278, %v7277
        %v7291 = vpack.c.bf16 %v7280, %v7279
        %v7292 = vpack.c.bf16 %v7282, %v7281
        %v7293 = vpack.c.bf16 %v7284, %v7283
        %v7294 = vpack.c.bf16 %v7286, %v7285
        %7303 = vrot.lane.b32.xlu0 %v6749, 64
        %v7304 = vpop.permute.xlu0 %7303
        %7305 = vrot.lane.b32.xlu0 %v6750, 64
        %v7306 = vpop.permute.xlu0 %7305
        %7307 = vrot.lane.b32.xlu0 %v6751, 64
        %v7308 = vpop.permute.xlu0 %7307
        %7309 = vrot.lane.b32.xlu0 %v6752, 64
        %v7310 = vpop.permute.xlu0 %7309
        %7311 = vrot.lane.b32.xlu0 %v6753, 64
        %v7312 = vpop.permute.xlu0 %7311
        %7313 = vrot.lane.b32.xlu0 %v6754, 64
        %v7314 = vpop.permute.xlu0 %7313
        %7315 = vrot.lane.b32.xlu0 %v6755, 64
        %v7316 = vpop.permute.xlu0 %7315
        %7317 = vrot.lane.b32.xlu0 %v6756, 64
        %v7318 = vpop.permute.xlu0 %7317
        %7327 = vmatprep.subr.bf16.mxu0 0
        %7328 = vmatpush1.bf16.msra.mxu0 %v7304
        %7329 = vmatprep.subr.bf16.mxu0 0
        %7330 = vmatpush1.bf16.msra.mxu0 %v7306
        %7331 = vmatprep.subr.bf16.mxu0 0
        %7332 = vmatpush1.bf16.msra.mxu0 %v7308
        %7333 = vmatprep.subr.bf16.mxu0 0
        %7334 = vmatpush1.bf16.msra.mxu0 %v7310
        %7335 = vmatprep.subr.bf16.mxu0 0
        %7336 = vmatpush1.bf16.msra.mxu0 %v7312
        %7337 = vmatprep.subr.bf16.mxu0 0
        %7338 = vmatpush1.bf16.msra.mxu0 %v7314
        %7339 = vmatprep.subr.bf16.mxu0 0
        %7340 = vmatpush1.bf16.msra.mxu0 %v7316
        %7341 = vmatprep.subr.bf16.mxu0 0
        %7342 = vmatpush1.bf16.msra.mxu0 %v7318
        %7343 = vmatprep.subr.bf16.mxu0 0
        %7344 = vmatpush1.bf16.msra.mxu0 0
        %7345 = vmatprep.subr.bf16.mxu0 0
        %7346 = vmatpush1.bf16.msra.mxu0 0
        %7347 = vmatprep.subr.bf16.mxu0 0
        %7348 = vmatpush1.bf16.msra.mxu0 0
        %7349 = vmatprep.subr.bf16.mxu0 0
        %7350 = vmatpush1.bf16.msra.mxu0 0
        %7351 = vmatprep.subr.bf16.mxu0 0
        %7352 = vmatpush1.bf16.msra.mxu0 0
        %7353 = vmatprep.subr.bf16.mxu0 0
        %7354 = vmatpush1.bf16.msra.mxu0 0
        %7355 = vmatprep.subr.bf16.mxu0 0
        %7356 = vmatpush1.bf16.msra.mxu0 0
        %7357 = vmatprep.subr.bf16.mxu0 0
        %7358 = vmatpush1.bf16.msra.mxu0 0
        %7359 = vmatprep.mubr.bf16.mxu0 0
        %7360 = vmatmul.mubr.bf16.gmra.mrb[0].mxu0 %v7287
        %v7361 = vpop.f32.mrb[0].mxu0
        %v7362 = vadd.f32 0.0, %v7361
        %v7363 = vpop.f32.mrb[0].mxu0
        %v7364 = vpop.f32.mrb[0].mxu0
        %v7365 = vadd.f32 0.0, %v7364
        %v7366 = vpop.f32.mrb[0].mxu0
        %7367 = vmatprep.mubr.bf16.mxu0 0
        %7368 = vmatmul.mubr.bf16.gmra.mrb[0].mxu0 %v7288
        %v7369 = vpop.f32.mrb[0].mxu0
        %v7370 = vadd.f32 0.0, %v7369
        %v7371 = vpop.f32.mrb[0].mxu0
        %v7372 = vpop.f32.mrb[0].mxu0
        %v7373 = vadd.f32 0.0, %v7372
        %v7374 = vpop.f32.mrb[0].mxu0
        %7375 = vmatprep.mubr.bf16.mxu0 0
        %7376 = vmatmul.mubr.bf16.gmra.mrb[0].mxu0 %v7289
        %v7377 = vpop.f32.mrb[0].mxu0
        %v7378 = vadd.f32 0.0, %v7377
        %v7379 = vpop.f32.mrb[0].mxu0
        %v7380 = vpop.f32.mrb[0].mxu0
        %v7381 = vadd.f32 0.0, %v7380
        %v7382 = vpop.f32.mrb[0].mxu0
        %7383 = vmatprep.mubr.bf16.mxu0 0
        %7384 = vmatmul.mubr.bf16.gmra.mrb[0].mxu0 %v7290
        %v7385 = vpop.f32.mrb[0].mxu0
        %v7386 = vadd.f32 0.0, %v7385
        %v7387 = vpop.f32.mrb[0].mxu0
        %v7388 = vpop.f32.mrb[0].mxu0
        %v7389 = vadd.f32 0.0, %v7388
        %v7390 = vpop.f32.mrb[0].mxu0
        %7391 = vmatprep.mubr.bf16.mxu0 0
        %7392 = vmatmul.mubr.bf16.gmra.mrb[0].mxu0 %v7291
        %v7393 = vpop.f32.mrb[0].mxu0
        %v7394 = vadd.f32 0.0, %v7393
        %v7395 = vpop.f32.mrb[0].mxu0
        %v7396 = vpop.f32.mrb[0].mxu0
        %v7397 = vadd.f32 0.0, %v7396
        %v7398 = vpop.f32.mrb[0].mxu0
        %7399 = vmatprep.mubr.bf16.mxu0 0
        %7400 = vmatmul.mubr.bf16.gmra.mrb[0].mxu0 %v7292
        %v7401 = vpop.f32.mrb[0].mxu0
        %v7402 = vadd.f32 0.0, %v7401
        %v7403 = vpop.f32.mrb[0].mxu0
        %v7404 = vpop.f32.mrb[0].mxu0
        %v7405 = vadd.f32 0.0, %v7404
        %v7406 = vpop.f32.mrb[0].mxu0
        %7407 = vmatprep.mubr.bf16.mxu0 0
        %7408 = vmatmul.mubr.bf16.gmra.mrb[0].mxu0 %v7293
        %v7409 = vpop.f32.mrb[0].mxu0
        %v7410 = vadd.f32 0.0, %v7409
        %v7411 = vpop.f32.mrb[0].mxu0
        %v7412 = vpop.f32.mrb[0].mxu0
        %v7413 = vadd.f32 0.0, %v7412
        %v7414 = vpop.f32.mrb[0].mxu0
        %7415 = vmatprep.mubr.bf16.mxu0 0
        %7416 = vmatmul.mubr.bf16.gmra.mrb[0].mxu0 %v7294
        %v7417 = vpop.f32.mrb[0].mxu0
        %v7418 = vadd.f32 0.0, %v7417
        %v7419 = vpop.f32.mrb[0].mxu0
        %v7420 = vpop.f32.mrb[0].mxu0
        %v7421 = vadd.f32 0.0, %v7420
        %v7422 = vpop.f32.mrb[0].mxu0
        %7423 = vdwg.mxu0
        %v7425 = vsel %vm4171, %v3175, 0
        %v7428 = vsel %vm4171, %v3179, 0
        %v7431 = vsel %vm4171, %v3185, 0
        %v7434 = vsel %vm4171, %v3189, 0
        %v7437 = vsel %vm4171, %v3195, 0
        %v7440 = vsel %vm4171, %v3199, 0
        %v7443 = vsel %vm4171, %v3205, 0
        %v7446 = vsel %vm4171, %v3209, 0
        %v7449 = vsel %vm4171, %v3215, 0
        %v7452 = vsel %vm4171, %v3219, 0
        %v7455 = vsel %vm4171, %v3225, 0
        %v7458 = vsel %vm4171, %v3229, 0
        %v7461 = vsel %vm4171, %v3235, 0
        %v7464 = vsel %vm4171, %v3239, 0
        %v7467 = vsel %vm4171, %v3245, 0
        %v7470 = vsel %vm4171, %v3249, 0
        %v7473 = vsel %vm4171, %v3627, 0
        %v7476 = vsel %vm4171, %v3631, 0
        %v7479 = vsel %vm4171, %v3637, 0
        %v7482 = vsel %vm4171, %v3641, 0
        %v7485 = vsel %vm4171, %v3647, 0
        %v7488 = vsel %vm4171, %v3651, 0
        %v7491 = vsel %vm4171, %v3657, 0
        %v7494 = vsel %vm4171, %v3661, 0
        %v7497 = vsel %vm4171, %v3667, 0
        %v7500 = vsel %vm4171, %v3671, 0
        %v7503 = vsel %vm4171, %v3677, 0
        %v7506 = vsel %vm4171, %v3681, 0
        %v7509 = vsel %vm4171, %v3687, 0
        %v7512 = vsel %vm4171, %v3691, 0
        %v7515 = vsel %vm4171, %v3697, 0
        %v7518 = vsel %vm4171, %v3701, 0
        %7520 = vmatprep.subr.mxu0 0.0
        %7521 = vmatpush1.xpose.msra.mxu0 %v7473
        %7522 = vmatprep.subr.mxu0 0.0
        %7523 = vmatpush1.xpose.msra.mxu0 %v7476
        %7524 = vmatprep.subr.mxu0 0.0
        %7525 = vmatpush1.xpose.msra.mxu0 %v7479
        %7526 = vmatprep.subr.mxu0 0.0
        %7527 = vmatpush1.xpose.msra.mxu0 %v7482
        %7528 = vmatprep.subr.mxu0 0.0
        %7529 = vmatpush1.xpose.msra.mxu0 %v7485
        %7530 = vmatprep.subr.mxu0 0.0
        %7531 = vmatpush1.xpose.msra.mxu0 %v7488
        %7532 = vmatprep.subr.mxu0 0.0
        %7533 = vmatpush1.xpose.msra.mxu0 %v7491
        %7534 = vmatprep.subr.mxu0 0.0
        %7535 = vmatpush1.xpose.msra.mxu0 %v7494
        %7536 = vmatprep.subr.mxu0 0.0
        %7537 = vmatpush1.xpose.msra.mxu0 %v7497
        %7538 = vmatprep.subr.mxu0 0.0
        %7539 = vmatpush1.xpose.msra.mxu0 %v7500
        %7540 = vmatprep.subr.mxu0 0.0
        %7541 = vmatpush1.xpose.msra.mxu0 %v7503
        %7542 = vmatprep.subr.mxu0 0.0
        %7543 = vmatpush1.xpose.msra.mxu0 %v7506
        %7544 = vmatprep.subr.mxu0 0.0
        %7545 = vmatpush1.xpose.msra.mxu0 %v7509
        %7546 = vmatprep.subr.mxu0 0.0
        %7547 = vmatpush1.xpose.msra.mxu0 %v7512
        %7548 = vmatprep.subr.mxu0 0.0
        %7549 = vmatpush1.xpose.msra.mxu0 %v7515
        %7550 = vmatprep.subr.mxu0 0.0
        %7551 = vmatpush1.xpose.msra.mxu0 %v7518
        %7552 = vmatprep.subr.mxu0 0.0
        %7553 = vmatpush1.xpose.msra.mxu0 0.0
        %7554 = vmatprep.subr.mxu0 0.0
        %7555 = vmatpush1.xpose.msra.mxu0 0.0
        %7556 = vmatprep.subr.mxu0 0.0
        %7557 = vmatpush1.xpose.msra.mxu0 0.0
        %7558 = vmatprep.subr.mxu0 0.0
        %7559 = vmatpush1.xpose.msra.mxu0 0.0
        %7560 = vmatprep.subr.mxu0 0.0
        %7561 = vmatpush1.xpose.msra.mxu0 0.0
        %7562 = vmatprep.subr.mxu0 0.0
        %7563 = vmatpush1.xpose.msra.mxu0 0.0
        %7564 = vmatprep.subr.mxu0 0.0
        %7565 = vmatpush1.xpose.msra.mxu0 0.0
        %7566 = vmatprep.subr.mxu0 0.0
        %7567 = vmatpush1.xpose.msra.mxu0 0.0
        %7568 = vmatprep.subr.mxu0 0.0
        %7569 = vmatpush1.xpose.msra.mxu0 0.0
        %7570 = vmatprep.subr.mxu0 0.0
        %7571 = vmatpush1.xpose.msra.mxu0 0.0
        %7572 = vmatprep.subr.mxu0 0.0
        %7573 = vmatpush1.xpose.msra.mxu0 0.0
        %7574 = vmatprep.subr.mxu0 0.0
        %7575 = vmatpush1.xpose.msra.mxu0 0.0
        %7576 = vmatprep.subr.mxu0 0.0
        %7577 = vmatpush1.xpose.msra.mxu0 0.0
        %7578 = vmatprep.subr.mxu0 0.0
        %7579 = vmatpush1.xpose.msra.mxu0 0.0
        %7580 = vmatprep.subr.mxu0 0.0
        %7581 = vmatpush1.xpose.msra.mxu0 0.0
        %7582 = vmatprep.subr.mxu0 0.0
        %7583 = vmatpush1.xpose.msra.mxu0 0.0
        %7584 = vmatprep.mubr.f32.mxu0 0.0
        %7585 = vmatmul.mubr.f32.gmra.mrb[0].mxu0 %v7425
        %v7586 = vpop.f32.mrb[0].mxu0
        %v7587 = vadd.f32 %v4155, %v7586
        %v7588 = vpop.f32.mrb[0].mxu0
        %7589 = vmatprep.mubr.f32.mxu0 0.0
        %7590 = vmatmul.mubr.f32.gmra.mrb[0].mxu0 %v7428
        %v7591 = vpop.f32.mrb[0].mxu0
        %v7592 = vadd.f32 %v4156, %v7591
        %v7593 = vpop.f32.mrb[0].mxu0
        %7594 = vmatprep.mubr.f32.mxu0 0.0
        %7595 = vmatmul.mubr.f32.gmra.mrb[0].mxu0 %v7431
        %v7596 = vpop.f32.mrb[0].mxu0
        %v7597 = vadd.f32 %v4157, %v7596
        %v7598 = vpop.f32.mrb[0].mxu0
        %7599 = vmatprep.mubr.f32.mxu0 0.0
        %7600 = vmatmul.mubr.f32.gmra.mrb[0].mxu0 %v7434
        %v7601 = vpop.f32.mrb[0].mxu0
        %v7602 = vadd.f32 %v4158, %v7601
        %v7603 = vpop.f32.mrb[0].mxu0
        %7604 = vmatprep.mubr.f32.mxu0 0.0
        %7605 = vmatmul.mubr.f32.gmra.mrb[0].mxu0 %v7437
        %v7606 = vpop.f32.mrb[0].mxu0
        %v7607 = vadd.f32 %v4159, %v7606
        %v7608 = vpop.f32.mrb[0].mxu0
        %7609 = vmatprep.mubr.f32.mxu0 0.0
        %7610 = vmatmul.mubr.f32.gmra.mrb[0].mxu0 %v7440
        %v7611 = vpop.f32.mrb[0].mxu0
        %v7612 = vadd.f32 %v4160, %v7611
        %v7613 = vpop.f32.mrb[0].mxu0
        %7614 = vmatprep.mubr.f32.mxu0 0.0
        %7615 = vmatmul.mubr.f32.gmra.mrb[0].mxu0 %v7443
        %v7616 = vpop.f32.mrb[0].mxu0
        %v7617 = vadd.f32 %v4161, %v7616
        %v7618 = vpop.f32.mrb[0].mxu0
        %7619 = vmatprep.mubr.f32.mxu0 0.0
        %7620 = vmatmul.mubr.f32.gmra.mrb[0].mxu0 %v7446
        %v7621 = vpop.f32.mrb[0].mxu0
        %v7622 = vadd.f32 %v4162, %v7621
        %v7623 = vpop.f32.mrb[0].mxu0
        %7624 = vmatprep.mubr.f32.mxu0 0.0
        %7625 = vmatmul.mubr.f32.gmra.mrb[0].mxu0 %v7449
        %v7626 = vpop.f32.mrb[0].mxu0
        %v7627 = vadd.f32 %v4163, %v7626
        %v7628 = vpop.f32.mrb[0].mxu0
        %7629 = vmatprep.mubr.f32.mxu0 0.0
        %7630 = vmatmul.mubr.f32.gmra.mrb[0].mxu0 %v7452
        %v7631 = vpop.f32.mrb[0].mxu0
        %v7632 = vadd.f32 %v4164, %v7631
        %v7633 = vpop.f32.mrb[0].mxu0
        %7634 = vmatprep.mubr.f32.mxu0 0.0
        %7635 = vmatmul.mubr.f32.gmra.mrb[0].mxu0 %v7455
        %v7636 = vpop.f32.mrb[0].mxu0
        %v7637 = vadd.f32 %v4165, %v7636
        %v7638 = vpop.f32.mrb[0].mxu0
        %7639 = vmatprep.mubr.f32.mxu0 0.0
        %7640 = vmatmul.mubr.f32.gmra.mrb[0].mxu0 %v7458
        %v7641 = vpop.f32.mrb[0].mxu0
        %v7642 = vadd.f32 %v4166, %v7641
        %v7643 = vpop.f32.mrb[0].mxu0
        %7644 = vmatprep.mubr.f32.mxu0 0.0
        %7645 = vmatmul.mubr.f32.gmra.mrb[0].mxu0 %v7461
        %v7646 = vpop.f32.mrb[0].mxu0
        %v7647 = vadd.f32 %v4167, %v7646
        %v7648 = vpop.f32.mrb[0].mxu0
        %7649 = vmatprep.mubr.f32.mxu0 0.0
        %7650 = vmatmul.mubr.f32.gmra.mrb[0].mxu0 %v7464
        %v7651 = vpop.f32.mrb[0].mxu0
        %v7652 = vadd.f32 %v4168, %v7651
        %v7653 = vpop.f32.mrb[0].mxu0
        %7654 = vmatprep.mubr.f32.mxu0 0.0
        %7655 = vmatmul.mubr.f32.gmra.mrb[0].mxu0 %v7467
        %v7656 = vpop.f32.mrb[0].mxu0
        %v7657 = vadd.f32 %v4169, %v7656
        %v7658 = vpop.f32.mrb[0].mxu0
        %7659 = vmatprep.mubr.f32.mxu0 0.0
        %7660 = vmatmul.mubr.f32.gmra.mrb[0].mxu0 %v7470
        %v7661 = vpop.f32.mrb[0].mxu0
        %v7662 = vadd.f32 %v4170, %v7661
        %v7663 = vpop.f32.mrb[0].mxu0
        %7664 = vdwg.mxu0
        %7665 = vmax.xlane.f32.xlu0 %v7587
        %v7666 = vpop.xlane.xlu0 %7665
        %7667 = vmax.xlane.f32.xlu0 %v7592
        %v7668 = vpop.xlane.xlu0 %7667
        %7669 = vmax.xlane.f32.xlu0 %v7597
        %v7670 = vpop.xlane.xlu0 %7669
        %7671 = vmax.xlane.f32.xlu0 %v7602
        %v7672 = vpop.xlane.xlu0 %7671
        %7673 = vmax.xlane.f32.xlu0 %v7607
        %v7674 = vpop.xlane.xlu0 %7673
        %7675 = vmax.xlane.f32.xlu0 %v7612
        %v7676 = vpop.xlane.xlu0 %7675
        %7677 = vmax.xlane.f32.xlu0 %v7617
        %v7678 = vpop.xlane.xlu0 %7677
        %7679 = vmax.xlane.f32.xlu0 %v7622
        %v7680 = vpop.xlane.xlu0 %7679
        %7681 = vmax.xlane.f32.xlu0 %v7627
        %v7682 = vpop.xlane.xlu0 %7681
        %7683 = vmax.xlane.f32.xlu0 %v7632
        %v7684 = vpop.xlane.xlu0 %7683
        %7685 = vmax.xlane.f32.xlu0 %v7637
        %v7686 = vpop.xlane.xlu0 %7685
        %7687 = vmax.xlane.f32.xlu0 %v7642
        %v7688 = vpop.xlane.xlu0 %7687
        %7689 = vmax.xlane.f32.xlu0 %v7647
        %v7690 = vpop.xlane.xlu0 %7689
        %7691 = vmax.xlane.f32.xlu0 %v7652
        %v7692 = vpop.xlane.xlu0 %7691
        %7693 = vmax.xlane.f32.xlu0 %v7657
        %v7694 = vpop.xlane.xlu0 %7693
        %7695 = vmax.xlane.f32.xlu0 %v7662
        %v7696 = vpop.xlane.xlu0 %7695
        %v7697 = vsub.f32 %v7587, %v7666
        %v7698 = vsub.f32 %v7592, %v7668
        %v7699 = vsub.f32 %v7597, %v7670
        %v7700 = vsub.f32 %v7602, %v7672
        %v7701 = vsub.f32 %v7607, %v7674
        %v7702 = vsub.f32 %v7612, %v7676
        %v7703 = vsub.f32 %v7617, %v7678
        %v7704 = vsub.f32 %v7622, %v7680
        %v7705 = vsub.f32 %v7627, %v7682
        %v7706 = vsub.f32 %v7632, %v7684
        %v7707 = vsub.f32 %v7637, %v7686
        %v7708 = vsub.f32 %v7642, %v7688
        %v7709 = vsub.f32 %v7647, %v7690
        %v7710 = vsub.f32 %v7652, %v7692
        %v7711 = vsub.f32 %v7657, %v7694
        %v7712 = vsub.f32 %v7662, %v7696
        %v7713 = vmul.f32 %v7697, 1.442695
        %v7714 = vpow.pop %v7713
        %v7715 = vmul.f32 %v7698, 1.442695
        %v7716 = vpow.pop %v7715
        %v7717 = vmul.f32 %v7699, 1.442695
        %v7718 = vpow.pop %v7717
        %v7719 = vmul.f32 %v7700, 1.442695
        %v7720 = vpow.pop %v7719
        %v7721 = vmul.f32 %v7701, 1.442695
        %v7722 = vpow.pop %v7721
        %v7723 = vmul.f32 %v7702, 1.442695
        %v7724 = vpow.pop %v7723
        %v7725 = vmul.f32 %v7703, 1.442695
        %v7726 = vpow.pop %v7725
        %v7727 = vmul.f32 %v7704, 1.442695
        %v7728 = vpow.pop %v7727
        %v7729 = vmul.f32 %v7705, 1.442695
        %v7730 = vpow.pop %v7729
        %v7731 = vmul.f32 %v7706, 1.442695
        %v7732 = vpow.pop %v7731
        %v7733 = vmul.f32 %v7707, 1.442695
        %v7734 = vpow.pop %v7733
        %v7735 = vmul.f32 %v7708, 1.442695
        %v7736 = vpow.pop %v7735
        %v7737 = vmul.f32 %v7709, 1.442695
        %v7738 = vpow.pop %v7737
        %v7739 = vmul.f32 %v7710, 1.442695
        %v7740 = vpow.pop %v7739
        %v7741 = vmul.f32 %v7711, 1.442695
        %v7742 = vpow.pop %v7741
        %v7743 = vmul.f32 %v7712, 1.442695
        %v7744 = vpow.pop %v7743
        %7745 = vadd.xlane.f32.xlu0 %v7714
        %v7746 = vpop.xlane.xlu0 %7745
        %7747 = vadd.xlane.f32.xlu0 %v7716
        %v7748 = vpop.xlane.xlu0 %7747
        %7749 = vadd.xlane.f32.xlu0 %v7718
        %v7750 = vpop.xlane.xlu0 %7749
        %7751 = vadd.xlane.f32.xlu0 %v7720
        %v7752 = vpop.xlane.xlu0 %7751
        %7753 = vadd.xlane.f32.xlu0 %v7722
        %v7754 = vpop.xlane.xlu0 %7753
        %7755 = vadd.xlane.f32.xlu0 %v7724
        %v7756 = vpop.xlane.xlu0 %7755
        %7757 = vadd.xlane.f32.xlu0 %v7726
        %v7758 = vpop.xlane.xlu0 %7757
        %7759 = vadd.xlane.f32.xlu0 %v7728
        %v7760 = vpop.xlane.xlu0 %7759
        %7761 = vadd.xlane.f32.xlu0 %v7730
        %v7762 = vpop.xlane.xlu0 %7761
        %7763 = vadd.xlane.f32.xlu0 %v7732
        %v7764 = vpop.xlane.xlu0 %7763
        %7765 = vadd.xlane.f32.xlu0 %v7734
        %v7766 = vpop.xlane.xlu0 %7765
        %7767 = vadd.xlane.f32.xlu0 %v7736
        %v7768 = vpop.xlane.xlu0 %7767
        %7769 = vadd.xlane.f32.xlu0 %v7738
        %v7770 = vpop.xlane.xlu0 %7769
        %7771 = vadd.xlane.f32.xlu0 %v7740
        %v7772 = vpop.xlane.xlu0 %7771
        %7773 = vadd.xlane.f32.xlu0 %v7742
        %v7774 = vpop.xlane.xlu0 %7773
        %7775 = vadd.xlane.f32.xlu0 %v7744
        %v7776 = vpop.xlane.xlu0 %7775
        %v7777 = vrcp.pop %v7746
        %v7778 = vmul.f32 1.0, %v7777
        %v7779 = vrcp.pop %v7748
        %v7780 = vmul.f32 1.0, %v7779
        %v7781 = vrcp.pop %v7750
        %v7782 = vmul.f32 1.0, %v7781
        %v7783 = vrcp.pop %v7752
        %v7784 = vmul.f32 1.0, %v7783
        %v7785 = vrcp.pop %v7754
        %v7786 = vmul.f32 1.0, %v7785
        %v7787 = vrcp.pop %v7756
        %v7788 = vmul.f32 1.0, %v7787
        %v7789 = vrcp.pop %v7758
        %v7790 = vmul.f32 1.0, %v7789
        %v7791 = vrcp.pop %v7760
        %v7792 = vmul.f32 1.0, %v7791
        %v7793 = vrcp.pop %v7762
        %v7794 = vmul.f32 1.0, %v7793
        %v7795 = vrcp.pop %v7764
        %v7796 = vmul.f32 1.0, %v7795
        %v7797 = vrcp.pop %v7766
        %v7798 = vmul.f32 1.0, %v7797
        %v7799 = vrcp.pop %v7768
        %v7800 = vmul.f32 1.0, %v7799
        %v7801 = vrcp.pop %v7770
        %v7802 = vmul.f32 1.0, %v7801
        %v7803 = vrcp.pop %v7772
        %v7804 = vmul.f32 1.0, %v7803
        %v7805 = vrcp.pop %v7774
        %v7806 = vmul.f32 1.0, %v7805
        %v7807 = vrcp.pop %v7776
        %v7808 = vmul.f32 1.0, %v7807
        %v7809 = vmul.f32 %v7714, %v7778
        %v7810 = vmul.f32 %v7716, %v7780
        %v7811 = vmul.f32 %v7718, %v7782
        %v7812 = vmul.f32 %v7720, %v7784
        %v7813 = vmul.f32 %v7722, %v7786
        %v7814 = vmul.f32 %v7724, %v7788
        %v7815 = vmul.f32 %v7726, %v7790
        %v7816 = vmul.f32 %v7728, %v7792
        %v7817 = vmul.f32 %v7730, %v7794
        %v7818 = vmul.f32 %v7732, %v7796
        %v7819 = vmul.f32 %v7734, %v7798
        %v7820 = vmul.f32 %v7736, %v7800
        %v7821 = vmul.f32 %v7738, %v7802
        %v7822 = vmul.f32 %v7740, %v7804
        %v7823 = vmul.f32 %v7742, %v7806
        %v7824 = vmul.f32 %v7744, %v7808
        %v7825 = vpack.c.bf16 %v7810, %v7809
        %v7826 = vpack.c.bf16 %v7812, %v7811
        %v7827 = vpack.c.bf16 %v7814, %v7813
        %v7828 = vpack.c.bf16 %v7816, %v7815
        %v7829 = vpack.c.bf16 %v7818, %v7817
        %v7830 = vpack.c.bf16 %v7820, %v7819
        %v7831 = vpack.c.bf16 %v7822, %v7821
        %v7832 = vpack.c.bf16 %v7824, %v7823
        %v7833 = vpack.c.bf16 %v4083, %v4079
        %v7834 = vpack.c.bf16 %v4093, %v4089
        %v7835 = vpack.c.bf16 %v4103, %v4099
        %v7836 = vpack.c.bf16 %v4113, %v4109
        %v7837 = vpack.c.bf16 %v4123, %v4119
        %v7838 = vpack.c.bf16 %v4133, %v4129
        %v7839 = vpack.c.bf16 %v4143, %v4139
        %v7840 = vpack.c.bf16 %v4153, %v4149
        %7841 = vmatprep.subr.bf16.mxu0 0
        %7842 = vmatpush1.bf16.msra.mxu0 %v7833
        %7843 = vmatprep.subr.bf16.mxu0 0
        %7844 = vmatpush1.bf16.msra.mxu0 %v7834
        %7845 = vmatprep.subr.bf16.mxu0 0
        %7846 = vmatpush1.bf16.msra.mxu0 %v7835
        %7847 = vmatprep.subr.bf16.mxu0 0
        %7848 = vmatpush1.bf16.msra.mxu0 %v7836
        %7849 = vmatprep.subr.bf16.mxu0 0
        %7850 = vmatpush1.bf16.msra.mxu0 %v7837
        %7851 = vmatprep.subr.bf16.mxu0 0
        %7852 = vmatpush1.bf16.msra.mxu0 %v7838
        %7853 = vmatprep.subr.bf16.mxu0 0
        %7854 = vmatpush1.bf16.msra.mxu0 %v7839
        %7855 = vmatprep.subr.bf16.mxu0 0
        %7856 = vmatpush1.bf16.msra.mxu0 %v7840
        %7857 = vmatprep.subr.bf16.mxu0 0
        %7858 = vmatpush1.bf16.msra.mxu0 0
        %7859 = vmatprep.subr.bf16.mxu0 0
        %7860 = vmatpush1.bf16.msra.mxu0 0
        %7861 = vmatprep.subr.bf16.mxu0 0
        %7862 = vmatpush1.bf16.msra.mxu0 0
        %7863 = vmatprep.subr.bf16.mxu0 0
        %7864 = vmatpush1.bf16.msra.mxu0 0
        %7865 = vmatprep.subr.bf16.mxu0 0
        %7866 = vmatpush1.bf16.msra.mxu0 0
        %7867 = vmatprep.subr.bf16.mxu0 0
        %7868 = vmatpush1.bf16.msra.mxu0 0
        %7869 = vmatprep.subr.bf16.mxu0 0
        %7870 = vmatpush1.bf16.msra.mxu0 0
        %7871 = vmatprep.subr.bf16.mxu0 0
        %7872 = vmatpush1.bf16.msra.mxu0 0
        %7873 = vmatprep.mubr.bf16.mxu0 0
        %7874 = vmatmul.mubr.bf16.gmra.mrb[0].mxu0 %v7825
        %v7875 = vpop.f32.mrb[0].mxu0
        %v7876 = vadd.f32 0.0, %v7875
        %v7877 = vpop.f32.mrb[0].mxu0
        %v7878 = vpop.f32.mrb[0].mxu0
        %v7879 = vadd.f32 0.0, %v7878
        %v7880 = vpop.f32.mrb[0].mxu0
        %7881 = vmatprep.mubr.bf16.mxu0 0
        %7882 = vmatmul.mubr.bf16.gmra.mrb[0].mxu0 %v7826
        %v7883 = vpop.f32.mrb[0].mxu0
        %v7884 = vadd.f32 0.0, %v7883
        %v7885 = vpop.f32.mrb[0].mxu0
        %v7886 = vpop.f32.mrb[0].mxu0
        %v7887 = vadd.f32 0.0, %v7886
        %v7888 = vpop.f32.mrb[0].mxu0
        %7889 = vmatprep.mubr.bf16.mxu0 0
        %7890 = vmatmul.mubr.bf16.gmra.mrb[0].mxu0 %v7827
        %v7891 = vpop.f32.mrb[0].mxu0
        %v7892 = vadd.f32 0.0, %v7891
        %v7893 = vpop.f32.mrb[0].mxu0
        %v7894 = vpop.f32.mrb[0].mxu0
        %v7895 = vadd.f32 0.0, %v7894
        %v7896 = vpop.f32.mrb[0].mxu0
        %7897 = vmatprep.mubr.bf16.mxu0 0
        %7898 = vmatmul.mubr.bf16.gmra.mrb[0].mxu0 %v7828
        %v7899 = vpop.f32.mrb[0].mxu0
        %v7900 = vadd.f32 0.0, %v7899
        %v7901 = vpop.f32.mrb[0].mxu0
        %v7902 = vpop.f32.mrb[0].mxu0
        %v7903 = vadd.f32 0.0, %v7902
        %v7904 = vpop.f32.mrb[0].mxu0
        %7905 = vmatprep.mubr.bf16.mxu0 0
        %7906 = vmatmul.mubr.bf16.gmra.mrb[0].mxu0 %v7829
        %v7907 = vpop.f32.mrb[0].mxu0
        %v7908 = vadd.f32 0.0, %v7907
        %v7909 = vpop.f32.mrb[0].mxu0
        %v7910 = vpop.f32.mrb[0].mxu0
        %v7911 = vadd.f32 0.0, %v7910
        %v7912 = vpop.f32.mrb[0].mxu0
        %7913 = vmatprep.mubr.bf16.mxu0 0
        %7914 = vmatmul.mubr.bf16.gmra.mrb[0].mxu0 %v7830
        %v7915 = vpop.f32.mrb[0].mxu0
        %v7916 = vadd.f32 0.0, %v7915
        %v7917 = vpop.f32.mrb[0].mxu0
        %v7918 = vpop.f32.mrb[0].mxu0
        %v7919 = vadd.f32 0.0, %v7918
        %v7920 = vpop.f32.mrb[0].mxu0
        %7921 = vmatprep.mubr.bf16.mxu0 0
        %7922 = vmatmul.mubr.bf16.gmra.mrb[0].mxu0 %v7831
        %v7923 = vpop.f32.mrb[0].mxu0
        %v7924 = vadd.f32 0.0, %v7923
        %v7925 = vpop.f32.mrb[0].mxu0
        %v7926 = vpop.f32.mrb[0].mxu0
        %v7927 = vadd.f32 0.0, %v7926
        %v7928 = vpop.f32.mrb[0].mxu0
        %7929 = vmatprep.mubr.bf16.mxu0 0
        %7930 = vmatmul.mubr.bf16.gmra.mrb[0].mxu0 %v7832
        %v7931 = vpop.f32.mrb[0].mxu0
        %v7932 = vadd.f32 0.0, %v7931
        %v7933 = vpop.f32.mrb[0].mxu0
        %v7934 = vpop.f32.mrb[0].mxu0
        %v7935 = vadd.f32 0.0, %v7934
        %v7936 = vpop.f32.mrb[0].mxu0
        %7937 = vdwg.mxu0
        %7938 = vrot.lane.b32.xlu0 %v3175, 64
        %v7939 = vpop.permute.xlu0 %7938
        %7940 = vrot.lane.b32.xlu0 %v3179, 64
        %v7941 = vpop.permute.xlu0 %7940
        %7942 = vrot.lane.b32.xlu0 %v3185, 64
        %v7943 = vpop.permute.xlu0 %7942
        %7944 = vrot.lane.b32.xlu0 %v3189, 64
        %v7945 = vpop.permute.xlu0 %7944
        %7946 = vrot.lane.b32.xlu0 %v3195, 64
        %v7947 = vpop.permute.xlu0 %7946
        %7948 = vrot.lane.b32.xlu0 %v3199, 64
        %v7949 = vpop.permute.xlu0 %7948
        %7950 = vrot.lane.b32.xlu0 %v3205, 64
        %v7951 = vpop.permute.xlu0 %7950
        %7952 = vrot.lane.b32.xlu0 %v3209, 64
        %v7953 = vpop.permute.xlu0 %7952
        %7954 = vrot.lane.b32.xlu0 %v3215, 64
        %v7955 = vpop.permute.xlu0 %7954
        %7956 = vrot.lane.b32.xlu0 %v3219, 64
        %v7957 = vpop.permute.xlu0 %7956
        %7958 = vrot.lane.b32.xlu0 %v3225, 64
        %v7959 = vpop.permute.xlu0 %7958
        %7960 = vrot.lane.b32.xlu0 %v3229, 64
        %v7961 = vpop.permute.xlu0 %7960
        %7962 = vrot.lane.b32.xlu0 %v3235, 64
        %v7963 = vpop.permute.xlu0 %7962
        %7964 = vrot.lane.b32.xlu0 %v3239, 64
        %v7965 = vpop.permute.xlu0 %7964
        %7966 = vrot.lane.b32.xlu0 %v3245, 64
        %v7967 = vpop.permute.xlu0 %7966
        %7968 = vrot.lane.b32.xlu0 %v3249, 64
        %v7969 = vpop.permute.xlu0 %7968
        %7970 = vrot.lane.b32.xlu0 %v3627, 64
        %v7971 = vpop.permute.xlu0 %7970
        %7972 = vrot.lane.b32.xlu0 %v3631, 64
        %v7973 = vpop.permute.xlu0 %7972
        %7974 = vrot.lane.b32.xlu0 %v3637, 64
        %v7975 = vpop.permute.xlu0 %7974
        %7976 = vrot.lane.b32.xlu0 %v3641, 64
        %v7977 = vpop.permute.xlu0 %7976
        %7978 = vrot.lane.b32.xlu0 %v3647, 64
        %v7979 = vpop.permute.xlu0 %7978
        %7980 = vrot.lane.b32.xlu0 %v3651, 64
        %v7981 = vpop.permute.xlu0 %7980
        %7982 = vrot.lane.b32.xlu0 %v3657, 64
        %v7983 = vpop.permute.xlu0 %7982
        %7984 = vrot.lane.b32.xlu0 %v3661, 64
        %v7985 = vpop.permute.xlu0 %7984
        %7986 = vrot.lane.b32.xlu0 %v3667, 64
        %v7987 = vpop.permute.xlu0 %7986
        %7988 = vrot.lane.b32.xlu0 %v3671, 64
        %v7989 = vpop.permute.xlu0 %7988
        %7990 = vrot.lane.b32.xlu0 %v3677, 64
        %v7991 = vpop.permute.xlu0 %7990
        %7992 = vrot.lane.b32.xlu0 %v3681, 64
        %v7993 = vpop.permute.xlu0 %7992
        %7994 = vrot.lane.b32.xlu0 %v3687, 64
        %v7995 = vpop.permute.xlu0 %7994
        %7996 = vrot.lane.b32.xlu0 %v3691, 64
        %v7997 = vpop.permute.xlu0 %7996
        %7998 = vrot.lane.b32.xlu0 %v3697, 64
        %v7999 = vpop.permute.xlu0 %7998
        %8000 = vrot.lane.b32.xlu0 %v3701, 64
        %v8001 = vpop.permute.xlu0 %8000
        %v8002 = vsel %vm4171, %v7939, 0
        %v8004 = vsel %vm4171, %v7941, 0
        %v8006 = vsel %vm4171, %v7943, 0
        %v8008 = vsel %vm4171, %v7945, 0
        %v8010 = vsel %vm4171, %v7947, 0
        %v8012 = vsel %vm4171, %v7949, 0
        %v8014 = vsel %vm4171, %v7951, 0
        %v8016 = vsel %vm4171, %v7953, 0
        %v8018 = vsel %vm4171, %v7955, 0
        %v8020 = vsel %vm4171, %v7957, 0
        %v8022 = vsel %vm4171, %v7959, 0
        %v8024 = vsel %vm4171, %v7961, 0
        %v8026 = vsel %vm4171, %v7963, 0
        %v8028 = vsel %vm4171, %v7965, 0
        %v8030 = vsel %vm4171, %v7967, 0
        %v8032 = vsel %vm4171, %v7969, 0
        %v8034 = vsel %vm4171, %v7971, 0
        %v8036 = vsel %vm4171, %v7973, 0
        %v8038 = vsel %vm4171, %v7975, 0
        %v8040 = vsel %vm4171, %v7977, 0
        %v8042 = vsel %vm4171, %v7979, 0
        %v8044 = vsel %vm4171, %v7981, 0
        %v8046 = vsel %vm4171, %v7983, 0
        %v8048 = vsel %vm4171, %v7985, 0
        %v8050 = vsel %vm4171, %v7987, 0
        %v8052 = vsel %vm4171, %v7989, 0
        %v8054 = vsel %vm4171, %v7991, 0
        %v8056 = vsel %vm4171, %v7993, 0
        %v8058 = vsel %vm4171, %v7995, 0
        %v8060 = vsel %vm4171, %v7997, 0
        %v8062 = vsel %vm4171, %v7999, 0
        %v8064 = vsel %vm4171, %v8001, 0
        %8066 = vmatprep.subr.mxu0 0.0
        %8067 = vmatpush1.xpose.msra.mxu0 %v8034
        %8068 = vmatprep.subr.mxu0 0.0
        %8069 = vmatpush1.xpose.msra.mxu0 %v8036
        %8070 = vmatprep.subr.mxu0 0.0
        %8071 = vmatpush1.xpose.msra.mxu0 %v8038
        %8072 = vmatprep.subr.mxu0 0.0
        %8073 = vmatpush1.xpose.msra.mxu0 %v8040
        %8074 = vmatprep.subr.mxu0 0.0
        %8075 = vmatpush1.xpose.msra.mxu0 %v8042
        %8076 = vmatprep.subr.mxu0 0.0
        %8077 = vmatpush1.xpose.msra.mxu0 %v8044
        %8078 = vmatprep.subr.mxu0 0.0
        %8079 = vmatpush1.xpose.msra.mxu0 %v8046
        %8080 = vmatprep.subr.mxu0 0.0
        %8081 = vmatpush1.xpose.msra.mxu0 %v8048
        %8082 = vmatprep.subr.mxu0 0.0
        %8083 = vmatpush1.xpose.msra.mxu0 %v8050
        %8084 = vmatprep.subr.mxu0 0.0
        %8085 = vmatpush1.xpose.msra.mxu0 %v8052
        %8086 = vmatprep.subr.mxu0 0.0
        %8087 = vmatpush1.xpose.msra.mxu0 %v8054
        %8088 = vmatprep.subr.mxu0 0.0
        %8089 = vmatpush1.xpose.msra.mxu0 %v8056
        %8090 = vmatprep.subr.mxu0 0.0
        %8091 = vmatpush1.xpose.msra.mxu0 %v8058
        %8092 = vmatprep.subr.mxu0 0.0
        %8093 = vmatpush1.xpose.msra.mxu0 %v8060
        %8094 = vmatprep.subr.mxu0 0.0
        %8095 = vmatpush1.xpose.msra.mxu0 %v8062
        %8096 = vmatprep.subr.mxu0 0.0
        %8097 = vmatpush1.xpose.msra.mxu0 %v8064
        %8098 = vmatprep.subr.mxu0 0.0
        %8099 = vmatpush1.xpose.msra.mxu0 0.0
        %8100 = vmatprep.subr.mxu0 0.0
        %8101 = vmatpush1.xpose.msra.mxu0 0.0
        %8102 = vmatprep.subr.mxu0 0.0
        %8103 = vmatpush1.xpose.msra.mxu0 0.0
        %8104 = vmatprep.subr.mxu0 0.0
        %8105 = vmatpush1.xpose.msra.mxu0 0.0
        %8106 = vmatprep.subr.mxu0 0.0
        %8107 = vmatpush1.xpose.msra.mxu0 0.0
        %8108 = vmatprep.subr.mxu0 0.0
        %8109 = vmatpush1.xpose.msra.mxu0 0.0
        %8110 = vmatprep.subr.mxu0 0.0
        %8111 = vmatpush1.xpose.msra.mxu0 0.0
        %8112 = vmatprep.subr.mxu0 0.0
        %8113 = vmatpush1.xpose.msra.mxu0 0.0
        %8114 = vmatprep.subr.mxu0 0.0
        %8115 = vmatpush1.xpose.msra.mxu0 0.0
        %8116 = vmatprep.subr.mxu0 0.0
        %8117 = vmatpush1.xpose.msra.mxu0 0.0
        %8118 = vmatprep.subr.mxu0 0.0
        %8119 = vmatpush1.xpose.msra.mxu0 0.0
        %8120 = vmatprep.subr.mxu0 0.0
        %8121 = vmatpush1.xpose.msra.mxu0 0.0
        %8122 = vmatprep.subr.mxu0 0.0
        %8123 = vmatpush1.xpose.msra.mxu0 0.0
        %8124 = vmatprep.subr.mxu0 0.0
        %8125 = vmatpush1.xpose.msra.mxu0 0.0
        %8126 = vmatprep.subr.mxu0 0.0
        %8127 = vmatpush1.xpose.msra.mxu0 0.0
        %8128 = vmatprep.subr.mxu0 0.0
        %8129 = vmatpush1.xpose.msra.mxu0 0.0
        %8130 = vmatprep.mubr.f32.mxu0 0.0
        %8131 = vmatmul.mubr.f32.gmra.mrb[0].mxu0 %v8002
        %v8132 = vpop.f32.mrb[0].mxu0
        %v8133 = vadd.f32 %v4155, %v8132
        %v8134 = vpop.f32.mrb[0].mxu0
        %8135 = vmatprep.mubr.f32.mxu0 0.0
        %8136 = vmatmul.mubr.f32.gmra.mrb[0].mxu0 %v8004
        %v8137 = vpop.f32.mrb[0].mxu0
        %v8138 = vadd.f32 %v4156, %v8137
        %v8139 = vpop.f32.mrb[0].mxu0
        %8140 = vmatprep.mubr.f32.mxu0 0.0
        %8141 = vmatmul.mubr.f32.gmra.mrb[0].mxu0 %v8006
        %v8142 = vpop.f32.mrb[0].mxu0
        %v8143 = vadd.f32 %v4157, %v8142
        %v8144 = vpop.f32.mrb[0].mxu0
        %8145 = vmatprep.mubr.f32.mxu0 0.0
        %8146 = vmatmul.mubr.f32.gmra.mrb[0].mxu0 %v8008
        %v8147 = vpop.f32.mrb[0].mxu0
        %v8148 = vadd.f32 %v4158, %v8147
        %v8149 = vpop.f32.mrb[0].mxu0
        %8150 = vmatprep.mubr.f32.mxu0 0.0
        %8151 = vmatmul.mubr.f32.gmra.mrb[0].mxu0 %v8010
        %v8152 = vpop.f32.mrb[0].mxu0
        %v8153 = vadd.f32 %v4159, %v8152
        %v8154 = vpop.f32.mrb[0].mxu0
        %8155 = vmatprep.mubr.f32.mxu0 0.0
        %8156 = vmatmul.mubr.f32.gmra.mrb[0].mxu0 %v8012
        %v8157 = vpop.f32.mrb[0].mxu0
        %v8158 = vadd.f32 %v4160, %v8157
        %v8159 = vpop.f32.mrb[0].mxu0
        %8160 = vmatprep.mubr.f32.mxu0 0.0
        %8161 = vmatmul.mubr.f32.gmra.mrb[0].mxu0 %v8014
        %v8162 = vpop.f32.mrb[0].mxu0
        %v8163 = vadd.f32 %v4161, %v8162
        %v8164 = vpop.f32.mrb[0].mxu0
        %8165 = vmatprep.mubr.f32.mxu0 0.0
        %8166 = vmatmul.mubr.f32.gmra.mrb[0].mxu0 %v8016
        %v8167 = vpop.f32.mrb[0].mxu0
        %v8168 = vadd.f32 %v4162, %v8167
        %v8169 = vpop.f32.mrb[0].mxu0
        %8170 = vmatprep.mubr.f32.mxu0 0.0
        %8171 = vmatmul.mubr.f32.gmra.mrb[0].mxu0 %v8018
        %v8172 = vpop.f32.mrb[0].mxu0
        %v8173 = vadd.f32 %v4163, %v8172
        %v8174 = vpop.f32.mrb[0].mxu0
        %8175 = vmatprep.mubr.f32.mxu0 0.0
        %8176 = vmatmul.mubr.f32.gmra.mrb[0].mxu0 %v8020
        %v8177 = vpop.f32.mrb[0].mxu0
        %v8178 = vadd.f32 %v4164, %v8177
        %v8179 = vpop.f32.mrb[0].mxu0
        %8180 = vmatprep.mubr.f32.mxu0 0.0
        %8181 = vmatmul.mubr.f32.gmra.mrb[0].mxu0 %v8022
        %v8182 = vpop.f32.mrb[0].mxu0
        %v8183 = vadd.f32 %v4165, %v8182
        %v8184 = vpop.f32.mrb[0].mxu0
        %8185 = vmatprep.mubr.f32.mxu0 0.0
        %8186 = vmatmul.mubr.f32.gmra.mrb[0].mxu0 %v8024
        %v8187 = vpop.f32.mrb[0].mxu0
        %v8188 = vadd.f32 %v4166, %v8187
        %v8189 = vpop.f32.mrb[0].mxu0
        %8190 = vmatprep.mubr.f32.mxu0 0.0
        %8191 = vmatmul.mubr.f32.gmra.mrb[0].mxu0 %v8026
        %v8192 = vpop.f32.mrb[0].mxu0
        %v8193 = vadd.f32 %v4167, %v8192
        %v8194 = vpop.f32.mrb[0].mxu0
        %8195 = vmatprep.mubr.f32.mxu0 0.0
        %8196 = vmatmul.mubr.f32.gmra.mrb[0].mxu0 %v8028
        %v8197 = vpop.f32.mrb[0].mxu0
        %v8198 = vadd.f32 %v4168, %v8197
        %v8199 = vpop.f32.mrb[0].mxu0
        %8200 = vmatprep.mubr.f32.mxu0 0.0
        %8201 = vmatmul.mubr.f32.gmra.mrb[0].mxu0 %v8030
        %v8202 = vpop.f32.mrb[0].mxu0
        %v8203 = vadd.f32 %v4169, %v8202
        %v8204 = vpop.f32.mrb[0].mxu0
        %8205 = vmatprep.mubr.f32.mxu0 0.0
        %8206 = vmatmul.mubr.f32.gmra.mrb[0].mxu0 %v8032
        %v8207 = vpop.f32.mrb[0].mxu0
        %v8208 = vadd.f32 %v4170, %v8207
        %v8209 = vpop.f32.mrb[0].mxu0
        %8210 = vdwg.mxu0
        %8211 = vmax.xlane.f32.xlu0 %v8133
        %v8212 = vpop.xlane.xlu0 %8211
        %8213 = vmax.xlane.f32.xlu0 %v8138
        %v8214 = vpop.xlane.xlu0 %8213
        %8215 = vmax.xlane.f32.xlu0 %v8143
        %v8216 = vpop.xlane.xlu0 %8215
        %8217 = vmax.xlane.f32.xlu0 %v8148
        %v8218 = vpop.xlane.xlu0 %8217
        %8219 = vmax.xlane.f32.xlu0 %v8153
        %v8220 = vpop.xlane.xlu0 %8219
        %8221 = vmax.xlane.f32.xlu0 %v8158
        %v8222 = vpop.xlane.xlu0 %8221
        %8223 = vmax.xlane.f32.xlu0 %v8163
        %v8224 = vpop.xlane.xlu0 %8223
        %8225 = vmax.xlane.f32.xlu0 %v8168
        %v8226 = vpop.xlane.xlu0 %8225
        %8227 = vmax.xlane.f32.xlu0 %v8173
        %v8228 = vpop.xlane.xlu0 %8227
        %8229 = vmax.xlane.f32.xlu0 %v8178
        %v8230 = vpop.xlane.xlu0 %8229
        %8231 = vmax.xlane.f32.xlu0 %v8183
        %v8232 = vpop.xlane.xlu0 %8231
        %8233 = vmax.xlane.f32.xlu0 %v8188
        %v8234 = vpop.xlane.xlu0 %8233
        %8235 = vmax.xlane.f32.xlu0 %v8193
        %v8236 = vpop.xlane.xlu0 %8235
        %8237 = vmax.xlane.f32.xlu0 %v8198
        %v8238 = vpop.xlane.xlu0 %8237
        %8239 = vmax.xlane.f32.xlu0 %v8203
        %v8240 = vpop.xlane.xlu0 %8239
        %8241 = vmax.xlane.f32.xlu0 %v8208
        %v8242 = vpop.xlane.xlu0 %8241
        %v8243 = vsub.f32 %v8133, %v8212
        %v8244 = vsub.f32 %v8138, %v8214
        %v8245 = vsub.f32 %v8143, %v8216
        %v8246 = vsub.f32 %v8148, %v8218
        %v8247 = vsub.f32 %v8153, %v8220
        %v8248 = vsub.f32 %v8158, %v8222
        %v8249 = vsub.f32 %v8163, %v8224
        %v8250 = vsub.f32 %v8168, %v8226
        %v8251 = vsub.f32 %v8173, %v8228
        %v8252 = vsub.f32 %v8178, %v8230
        %v8253 = vsub.f32 %v8183, %v8232
        %v8254 = vsub.f32 %v8188, %v8234
        %v8255 = vsub.f32 %v8193, %v8236
        %v8256 = vsub.f32 %v8198, %v8238
        %v8257 = vsub.f32 %v8203, %v8240
        %v8258 = vsub.f32 %v8208, %v8242
        %v8259 = vmul.f32 %v8243, 1.442695
        %v8260 = vpow.pop %v8259
        %v8261 = vmul.f32 %v8244, 1.442695
        %v8262 = vpow.pop %v8261
        %v8263 = vmul.f32 %v8245, 1.442695
        %v8264 = vpow.pop %v8263
        %v8265 = vmul.f32 %v8246, 1.442695
        %v8266 = vpow.pop %v8265
        %v8267 = vmul.f32 %v8247, 1.442695
        %v8268 = vpow.pop %v8267
        %v8269 = vmul.f32 %v8248, 1.442695
        %v8270 = vpow.pop %v8269
        %v8271 = vmul.f32 %v8249, 1.442695
        %v8272 = vpow.pop %v8271
        %v8273 = vmul.f32 %v8250, 1.442695
        %v8274 = vpow.pop %v8273
        %v8275 = vmul.f32 %v8251, 1.442695
        %v8276 = vpow.pop %v8275
        %v8277 = vmul.f32 %v8252, 1.442695
        %v8278 = vpow.pop %v8277
        %v8279 = vmul.f32 %v8253, 1.442695
        %v8280 = vpow.pop %v8279
        %v8281 = vmul.f32 %v8254, 1.442695
        %v8282 = vpow.pop %v8281
        %v8283 = vmul.f32 %v8255, 1.442695
        %v8284 = vpow.pop %v8283
        %v8285 = vmul.f32 %v8256, 1.442695
        %v8286 = vpow.pop %v8285
        %v8287 = vmul.f32 %v8257, 1.442695
        %v8288 = vpow.pop %v8287
        %v8289 = vmul.f32 %v8258, 1.442695
        %v8290 = vpow.pop %v8289
        %8291 = vadd.xlane.f32.xlu0 %v8260
        %v8292 = vpop.xlane.xlu0 %8291
        %8293 = vadd.xlane.f32.xlu0 %v8262
        %v8294 = vpop.xlane.xlu0 %8293
        %8295 = vadd.xlane.f32.xlu0 %v8264
        %v8296 = vpop.xlane.xlu0 %8295
        %8297 = vadd.xlane.f32.xlu0 %v8266
        %v8298 = vpop.xlane.xlu0 %8297
        %8299 = vadd.xlane.f32.xlu0 %v8268
        %v8300 = vpop.xlane.xlu0 %8299
        %8301 = vadd.xlane.f32.xlu0 %v8270
        %v8302 = vpop.xlane.xlu0 %8301
        %8303 = vadd.xlane.f32.xlu0 %v8272
        %v8304 = vpop.xlane.xlu0 %8303
        %8305 = vadd.xlane.f32.xlu0 %v8274
        %v8306 = vpop.xlane.xlu0 %8305
        %8307 = vadd.xlane.f32.xlu0 %v8276
        %v8308 = vpop.xlane.xlu0 %8307
        %8309 = vadd.xlane.f32.xlu0 %v8278
        %v8310 = vpop.xlane.xlu0 %8309
        %8311 = vadd.xlane.f32.xlu0 %v8280
        %v8312 = vpop.xlane.xlu0 %8311
        %8313 = vadd.xlane.f32.xlu0 %v8282
        %v8314 = vpop.xlane.xlu0 %8313
        %8315 = vadd.xlane.f32.xlu0 %v8284
        %v8316 = vpop.xlane.xlu0 %8315
        %8317 = vadd.xlane.f32.xlu0 %v8286
        %v8318 = vpop.xlane.xlu0 %8317
        %8319 = vadd.xlane.f32.xlu0 %v8288
        %v8320 = vpop.xlane.xlu0 %8319
        %8321 = vadd.xlane.f32.xlu0 %v8290
        %v8322 = vpop.xlane.xlu0 %8321
        %v8323 = vrcp.pop %v8292
        %v8324 = vmul.f32 1.0, %v8323
        %v8325 = vrcp.pop %v8294
        %v8326 = vmul.f32 1.0, %v8325
        %v8327 = vrcp.pop %v8296
        %v8328 = vmul.f32 1.0, %v8327
        %v8329 = vrcp.pop %v8298
        %v8330 = vmul.f32 1.0, %v8329
        %v8331 = vrcp.pop %v8300
        %v8332 = vmul.f32 1.0, %v8331
        %v8333 = vrcp.pop %v8302
        %v8334 = vmul.f32 1.0, %v8333
        %v8335 = vrcp.pop %v8304
        %v8336 = vmul.f32 1.0, %v8335
        %v8337 = vrcp.pop %v8306
        %v8338 = vmul.f32 1.0, %v8337
        %v8339 = vrcp.pop %v8308
        %v8340 = vmul.f32 1.0, %v8339
        %v8341 = vrcp.pop %v8310
        %v8342 = vmul.f32 1.0, %v8341
        %v8343 = vrcp.pop %v8312
        %v8344 = vmul.f32 1.0, %v8343
        %v8345 = vrcp.pop %v8314
        %v8346 = vmul.f32 1.0, %v8345
        %v8347 = vrcp.pop %v8316
        %v8348 = vmul.f32 1.0, %v8347
        %v8349 = vrcp.pop %v8318
        %v8350 = vmul.f32 1.0, %v8349
        %v8351 = vrcp.pop %v8320
        %v8352 = vmul.f32 1.0, %v8351
        %v8353 = vrcp.pop %v8322
        %v8354 = vmul.f32 1.0, %v8353
        %v8355 = vmul.f32 %v8260, %v8324
        %v8356 = vmul.f32 %v8262, %v8326
        %v8357 = vmul.f32 %v8264, %v8328
        %v8358 = vmul.f32 %v8266, %v8330
        %v8359 = vmul.f32 %v8268, %v8332
        %v8360 = vmul.f32 %v8270, %v8334
        %v8361 = vmul.f32 %v8272, %v8336
        %v8362 = vmul.f32 %v8274, %v8338
        %v8363 = vmul.f32 %v8276, %v8340
        %v8364 = vmul.f32 %v8278, %v8342
        %v8365 = vmul.f32 %v8280, %v8344
        %v8366 = vmul.f32 %v8282, %v8346
        %v8367 = vmul.f32 %v8284, %v8348
        %v8368 = vmul.f32 %v8286, %v8350
        %v8369 = vmul.f32 %v8288, %v8352
        %v8370 = vmul.f32 %v8290, %v8354
        %v8371 = vpack.c.bf16 %v8356, %v8355
        %v8372 = vpack.c.bf16 %v8358, %v8357
        %v8373 = vpack.c.bf16 %v8360, %v8359
        %v8374 = vpack.c.bf16 %v8362, %v8361
        %v8375 = vpack.c.bf16 %v8364, %v8363
        %v8376 = vpack.c.bf16 %v8366, %v8365
        %v8377 = vpack.c.bf16 %v8368, %v8367
        %v8378 = vpack.c.bf16 %v8370, %v8369
        %8387 = vrot.lane.b32.xlu0 %v7833, 64
        %v8388 = vpop.permute.xlu0 %8387
        %8389 = vrot.lane.b32.xlu0 %v7834, 64
        %v8390 = vpop.permute.xlu0 %8389
        %8391 = vrot.lane.b32.xlu0 %v7835, 64
        %v8392 = vpop.permute.xlu0 %8391
        %8393 = vrot.lane.b32.xlu0 %v7836, 64
        %v8394 = vpop.permute.xlu0 %8393
        %8395 = vrot.lane.b32.xlu0 %v7837, 64
        %v8396 = vpop.permute.xlu0 %8395
        %8397 = vrot.lane.b32.xlu0 %v7838, 64
        %v8398 = vpop.permute.xlu0 %8397
        %8399 = vrot.lane.b32.xlu0 %v7839, 64
        %v8400 = vpop.permute.xlu0 %8399
        %8401 = vrot.lane.b32.xlu0 %v7840, 64
        %v8402 = vpop.permute.xlu0 %8401
        %8411 = vmatprep.subr.bf16.mxu0 0
        %8412 = vmatpush1.bf16.msra.mxu0 %v8388
        %8413 = vmatprep.subr.bf16.mxu0 0
        %8414 = vmatpush1.bf16.msra.mxu0 %v8390
        %8415 = vmatprep.subr.bf16.mxu0 0
        %8416 = vmatpush1.bf16.msra.mxu0 %v8392
        %8417 = vmatprep.subr.bf16.mxu0 0
        %8418 = vmatpush1.bf16.msra.mxu0 %v8394
        %8419 = vmatprep.subr.bf16.mxu0 0
        %8420 = vmatpush1.bf16.msra.mxu0 %v8396
        %8421 = vmatprep.subr.bf16.mxu0 0
        %8422 = vmatpush1.bf16.msra.mxu0 %v8398
        %8423 = vmatprep.subr.bf16.mxu0 0
        %8424 = vmatpush1.bf16.msra.mxu0 %v8400
        %8425 = vmatprep.subr.bf16.mxu0 0
        %8426 = vmatpush1.bf16.msra.mxu0 %v8402
        %8427 = vmatprep.subr.bf16.mxu0 0
        %8428 = vmatpush1.bf16.msra.mxu0 0
        %8429 = vmatprep.subr.bf16.mxu0 0
        %8430 = vmatpush1.bf16.msra.mxu0 0
        %8431 = vmatprep.subr.bf16.mxu0 0
        %8432 = vmatpush1.bf16.msra.mxu0 0
        %8433 = vmatprep.subr.bf16.mxu0 0
        %8434 = vmatpush1.bf16.msra.mxu0 0
        %8435 = vmatprep.subr.bf16.mxu0 0
        %8436 = vmatpush1.bf16.msra.mxu0 0
        %8437 = vmatprep.subr.bf16.mxu0 0
        %8438 = vmatpush1.bf16.msra.mxu0 0
        %8439 = vmatprep.subr.bf16.mxu0 0
        %8440 = vmatpush1.bf16.msra.mxu0 0
        %8441 = vmatprep.subr.bf16.mxu0 0
        %8442 = vmatpush1.bf16.msra.mxu0 0
        %8443 = vmatprep.mubr.bf16.mxu0 0
        %8444 = vmatmul.mubr.bf16.gmra.mrb[0].mxu0 %v8371
        %v8445 = vpop.f32.mrb[0].mxu0
        %v8446 = vadd.f32 0.0, %v8445
        %v8447 = vpop.f32.mrb[0].mxu0
        %v8448 = vpop.f32.mrb[0].mxu0
        %v8449 = vadd.f32 0.0, %v8448
        %v8450 = vpop.f32.mrb[0].mxu0
        %8451 = vmatprep.mubr.bf16.mxu0 0
        %8452 = vmatmul.mubr.bf16.gmra.mrb[0].mxu0 %v8372
        %v8453 = vpop.f32.mrb[0].mxu0
        %v8454 = vadd.f32 0.0, %v8453
        %v8455 = vpop.f32.mrb[0].mxu0
        %v8456 = vpop.f32.mrb[0].mxu0
        %v8457 = vadd.f32 0.0, %v8456
        %v8458 = vpop.f32.mrb[0].mxu0
        %8459 = vmatprep.mubr.bf16.mxu0 0
        %8460 = vmatmul.mubr.bf16.gmra.mrb[0].mxu0 %v8373
        %v8461 = vpop.f32.mrb[0].mxu0
        %v8462 = vadd.f32 0.0, %v8461
        %v8463 = vpop.f32.mrb[0].mxu0
        %v8464 = vpop.f32.mrb[0].mxu0
        %v8465 = vadd.f32 0.0, %v8464
        %v8466 = vpop.f32.mrb[0].mxu0
        %8467 = vmatprep.mubr.bf16.mxu0 0
        %8468 = vmatmul.mubr.bf16.gmra.mrb[0].mxu0 %v8374
        %v8469 = vpop.f32.mrb[0].mxu0
        %v8470 = vadd.f32 0.0, %v8469
        %v8471 = vpop.f32.mrb[0].mxu0
        %v8472 = vpop.f32.mrb[0].mxu0
        %v8473 = vadd.f32 0.0, %v8472
        %v8474 = vpop.f32.mrb[0].mxu0
        %8475 = vmatprep.mubr.bf16.mxu0 0
        %8476 = vmatmul.mubr.bf16.gmra.mrb[0].mxu0 %v8375
        %v8477 = vpop.f32.mrb[0].mxu0
        %v8478 = vadd.f32 0.0, %v8477
        %v8479 = vpop.f32.mrb[0].mxu0
        %v8480 = vpop.f32.mrb[0].mxu0
        %v8481 = vadd.f32 0.0, %v8480
        %v8482 = vpop.f32.mrb[0].mxu0
        %8483 = vmatprep.mubr.bf16.mxu0 0
        %8484 = vmatmul.mubr.bf16.gmra.mrb[0].mxu0 %v8376
        %v8485 = vpop.f32.mrb[0].mxu0
        %v8486 = vadd.f32 0.0, %v8485
        %v8487 = vpop.f32.mrb[0].mxu0
        %v8488 = vpop.f32.mrb[0].mxu0
        %v8489 = vadd.f32 0.0, %v8488
        %v8490 = vpop.f32.mrb[0].mxu0
        %8491 = vmatprep.mubr.bf16.mxu0 0
        %8492 = vmatmul.mubr.bf16.gmra.mrb[0].mxu0 %v8377
        %v8493 = vpop.f32.mrb[0].mxu0
        %v8494 = vadd.f32 0.0, %v8493
        %v8495 = vpop.f32.mrb[0].mxu0
        %v8496 = vpop.f32.mrb[0].mxu0
        %v8497 = vadd.f32 0.0, %v8496
        %v8498 = vpop.f32.mrb[0].mxu0
        %8499 = vmatprep.mubr.bf16.mxu0 0
        %8500 = vmatmul.mubr.bf16.gmra.mrb[0].mxu0 %v8378
        %v8501 = vpop.f32.mrb[0].mxu0
        %v8502 = vadd.f32 0.0, %v8501
        %v8503 = vpop.f32.mrb[0].mxu0
        %v8504 = vpop.f32.mrb[0].mxu0
        %v8505 = vadd.f32 0.0, %v8504
        %v8506 = vpop.f32.mrb[0].mxu0
        %8507 = vdwg.mxu0
        %8524 = vrot.lane.b32.xlu0 %v5194, 64
        %v8525 = vpop.permute.xlu0 %8524
        %8526 = vrot.lane.b32.xlu0 %v5197, 64
        %v8527 = vpop.permute.xlu0 %8526
        %8528 = vrot.lane.b32.xlu0 %v5202, 64
        %v8529 = vpop.permute.xlu0 %8528
        %8530 = vrot.lane.b32.xlu0 %v5205, 64
        %v8531 = vpop.permute.xlu0 %8530
        %8532 = vrot.lane.b32.xlu0 %v5210, 64
        %v8533 = vpop.permute.xlu0 %8532
        %8534 = vrot.lane.b32.xlu0 %v5213, 64
        %v8535 = vpop.permute.xlu0 %8534
        %8536 = vrot.lane.b32.xlu0 %v5218, 64
        %v8537 = vpop.permute.xlu0 %8536
        %8538 = vrot.lane.b32.xlu0 %v5221, 64
        %v8539 = vpop.permute.xlu0 %8538
        %8540 = vrot.lane.b32.xlu0 %v5226, 64
        %v8541 = vpop.permute.xlu0 %8540
        %8542 = vrot.lane.b32.xlu0 %v5229, 64
        %v8543 = vpop.permute.xlu0 %8542
        %8544 = vrot.lane.b32.xlu0 %v5234, 64
        %v8545 = vpop.permute.xlu0 %8544
        %8546 = vrot.lane.b32.xlu0 %v5237, 64
        %v8547 = vpop.permute.xlu0 %8546
        %8548 = vrot.lane.b32.xlu0 %v5242, 64
        %v8549 = vpop.permute.xlu0 %8548
        %8550 = vrot.lane.b32.xlu0 %v5245, 64
        %v8551 = vpop.permute.xlu0 %8550
        %8552 = vrot.lane.b32.xlu0 %v5250, 64
        %v8553 = vpop.permute.xlu0 %8552
        %8554 = vrot.lane.b32.xlu0 %v5253, 64
        %v8555 = vpop.permute.xlu0 %8554
        %8588 = vrot.lane.b32.xlu0 %v6278, 64
        %v8589 = vpop.permute.xlu0 %8588
        %8590 = vrot.lane.b32.xlu0 %v6281, 64
        %v8591 = vpop.permute.xlu0 %8590
        %8592 = vrot.lane.b32.xlu0 %v6286, 64
        %v8593 = vpop.permute.xlu0 %8592
        %8594 = vrot.lane.b32.xlu0 %v6289, 64
        %v8595 = vpop.permute.xlu0 %8594
        %8596 = vrot.lane.b32.xlu0 %v6294, 64
        %v8597 = vpop.permute.xlu0 %8596
        %8598 = vrot.lane.b32.xlu0 %v6297, 64
        %v8599 = vpop.permute.xlu0 %8598
        %8600 = vrot.lane.b32.xlu0 %v6302, 64
        %v8601 = vpop.permute.xlu0 %8600
        %8602 = vrot.lane.b32.xlu0 %v6305, 64
        %v8603 = vpop.permute.xlu0 %8602
        %8604 = vrot.lane.b32.xlu0 %v6310, 64
        %v8605 = vpop.permute.xlu0 %8604
        %8606 = vrot.lane.b32.xlu0 %v6313, 64
        %v8607 = vpop.permute.xlu0 %8606
        %8608 = vrot.lane.b32.xlu0 %v6318, 64
        %v8609 = vpop.permute.xlu0 %8608
        %8610 = vrot.lane.b32.xlu0 %v6321, 64
        %v8611 = vpop.permute.xlu0 %8610
        %8612 = vrot.lane.b32.xlu0 %v6326, 64
        %v8613 = vpop.permute.xlu0 %8612
        %8614 = vrot.lane.b32.xlu0 %v6329, 64
        %v8615 = vpop.permute.xlu0 %8614
        %8616 = vrot.lane.b32.xlu0 %v6334, 64
        %v8617 = vpop.permute.xlu0 %8616
        %8618 = vrot.lane.b32.xlu0 %v6337, 64
        %v8619 = vpop.permute.xlu0 %8618
        %8652 = vrot.lane.b32.xlu0 %v7362, 64
        %v8653 = vpop.permute.xlu0 %8652
        %8654 = vrot.lane.b32.xlu0 %v7365, 64
        %v8655 = vpop.permute.xlu0 %8654
        %8656 = vrot.lane.b32.xlu0 %v7370, 64
        %v8657 = vpop.permute.xlu0 %8656
        %8658 = vrot.lane.b32.xlu0 %v7373, 64
        %v8659 = vpop.permute.xlu0 %8658
        %8660 = vrot.lane.b32.xlu0 %v7378, 64
        %v8661 = vpop.permute.xlu0 %8660
        %8662 = vrot.lane.b32.xlu0 %v7381, 64
        %v8663 = vpop.permute.xlu0 %8662
        %8664 = vrot.lane.b32.xlu0 %v7386, 64
        %v8665 = vpop.permute.xlu0 %8664
        %8666 = vrot.lane.b32.xlu0 %v7389, 64
        %v8667 = vpop.permute.xlu0 %8666
        %8668 = vrot.lane.b32.xlu0 %v7394, 64
        %v8669 = vpop.permute.xlu0 %8668
        %8670 = vrot.lane.b32.xlu0 %v7397, 64
        %v8671 = vpop.permute.xlu0 %8670
        %8672 = vrot.lane.b32.xlu0 %v7402, 64
        %v8673 = vpop.permute.xlu0 %8672
        %8674 = vrot.lane.b32.xlu0 %v7405, 64
        %v8675 = vpop.permute.xlu0 %8674
        %8676 = vrot.lane.b32.xlu0 %v7410, 64
        %v8677 = vpop.permute.xlu0 %8676
        %8678 = vrot.lane.b32.xlu0 %v7413, 64
        %v8679 = vpop.permute.xlu0 %8678
        %8680 = vrot.lane.b32.xlu0 %v7418, 64
        %v8681 = vpop.permute.xlu0 %8680
        %8682 = vrot.lane.b32.xlu0 %v7421, 64
        %v8683 = vpop.permute.xlu0 %8682
        %8716 = vrot.lane.b32.xlu0 %v8446, 64
        %v8717 = vpop.permute.xlu0 %8716
        %8718 = vrot.lane.b32.xlu0 %v8449, 64
        %v8719 = vpop.permute.xlu0 %8718
        %8720 = vrot.lane.b32.xlu0 %v8454, 64
        %v8721 = vpop.permute.xlu0 %8720
        %8722 = vrot.lane.b32.xlu0 %v8457, 64
        %v8723 = vpop.permute.xlu0 %8722
        %8724 = vrot.lane.b32.xlu0 %v8462, 64
        %v8725 = vpop.permute.xlu0 %8724
        %8726 = vrot.lane.b32.xlu0 %v8465, 64
        %v8727 = vpop.permute.xlu0 %8726
        %8728 = vrot.lane.b32.xlu0 %v8470, 64
        %v8729 = vpop.permute.xlu0 %8728
        %8730 = vrot.lane.b32.xlu0 %v8473, 64
        %v8731 = vpop.permute.xlu0 %8730
        %8732 = vrot.lane.b32.xlu0 %v8478, 64
        %v8733 = vpop.permute.xlu0 %8732
        %8734 = vrot.lane.b32.xlu0 %v8481, 64
        %v8735 = vpop.permute.xlu0 %8734
        %8736 = vrot.lane.b32.xlu0 %v8486, 64
        %v8737 = vpop.permute.xlu0 %8736
        %8738 = vrot.lane.b32.xlu0 %v8489, 64
        %v8739 = vpop.permute.xlu0 %8738
        %8740 = vrot.lane.b32.xlu0 %v8494, 64
        %v8741 = vpop.permute.xlu0 %8740
        %8742 = vrot.lane.b32.xlu0 %v8497, 64
        %v8743 = vpop.permute.xlu0 %8742
        %8744 = vrot.lane.b32.xlu0 %v8502, 64
        %v8745 = vpop.permute.xlu0 %8744
        %8746 = vrot.lane.b32.xlu0 %v8505, 64
        %v8747 = vpop.permute.xlu0 %8746
        %v8764 = vsel %vm4171, %v4624, %v8525
        %v8765 = vsel %vm4171, %v4627, %v8527
        %v8766 = vsel %vm4171, %v4632, %v8529
        %v8767 = vsel %vm4171, %v4635, %v8531
        %v8768 = vsel %vm4171, %v4640, %v8533
        %v8769 = vsel %vm4171, %v4643, %v8535
        %v8770 = vsel %vm4171, %v4648, %v8537
        %v8771 = vsel %vm4171, %v4651, %v8539
        %v8772 = vsel %vm4171, %v4656, %v8541
        %v8773 = vsel %vm4171, %v4659, %v8543
        %v8774 = vsel %vm4171, %v4664, %v8545
        %v8775 = vsel %vm4171, %v4667, %v8547
        %v8776 = vsel %vm4171, %v4672, %v8549
        %v8777 = vsel %vm4171, %v4675, %v8551
        %v8778 = vsel %vm4171, %v4680, %v8553
        %v8779 = vsel %vm4171, %v4683, %v8555
        %v8780 = vsel %vm4171, %v5708, %v8589
        %v8781 = vsel %vm4171, %v5711, %v8591
        %v8782 = vsel %vm4171, %v5716, %v8593
        %v8783 = vsel %vm4171, %v5719, %v8595
        %v8784 = vsel %vm4171, %v5724, %v8597
        %v8785 = vsel %vm4171, %v5727, %v8599
        %v8786 = vsel %vm4171, %v5732, %v8601
        %v8787 = vsel %vm4171, %v5735, %v8603
        %v8788 = vsel %vm4171, %v5740, %v8605
        %v8789 = vsel %vm4171, %v5743, %v8607
        %v8790 = vsel %vm4171, %v5748, %v8609
        %v8791 = vsel %vm4171, %v5751, %v8611
        %v8792 = vsel %vm4171, %v5756, %v8613
        %v8793 = vsel %vm4171, %v5759, %v8615
        %v8794 = vsel %vm4171, %v5764, %v8617
        %v8795 = vsel %vm4171, %v5767, %v8619
        %v8796 = vsel %vm4171, %v6792, %v8653
        %v8797 = vsel %vm4171, %v6795, %v8655
        %v8798 = vsel %vm4171, %v6800, %v8657
        %v8799 = vsel %vm4171, %v6803, %v8659
        %v8800 = vsel %vm4171, %v6808, %v8661
        %v8801 = vsel %vm4171, %v6811, %v8663
        %v8802 = vsel %vm4171, %v6816, %v8665
        %v8803 = vsel %vm4171, %v6819, %v8667
        %v8804 = vsel %vm4171, %v6824, %v8669
        %v8805 = vsel %vm4171, %v6827, %v8671
        %v8806 = vsel %vm4171, %v6832, %v8673
        %v8807 = vsel %vm4171, %v6835, %v8675
        %v8808 = vsel %vm4171, %v6840, %v8677
        %v8809 = vsel %vm4171, %v6843, %v8679
        %v8810 = vsel %vm4171, %v6848, %v8681
        %v8811 = vsel %vm4171, %v6851, %v8683
        %v8812 = vsel %vm4171, %v7876, %v8717
        %v8813 = vsel %vm4171, %v7879, %v8719
        %v8814 = vsel %vm4171, %v7884, %v8721
        %v8815 = vsel %vm4171, %v7887, %v8723
        %v8816 = vsel %vm4171, %v7892, %v8725
        %v8817 = vsel %vm4171, %v7895, %v8727
        %v8818 = vsel %vm4171, %v7900, %v8729
        %v8819 = vsel %vm4171, %v7903, %v8731
        %v8820 = vsel %vm4171, %v7908, %v8733
        %v8821 = vsel %vm4171, %v7911, %v8735
        %v8822 = vsel %vm4171, %v7916, %v8737
        %v8823 = vsel %vm4171, %v7919, %v8739
        %v8824 = vsel %vm4171, %v7924, %v8741
        %v8825 = vsel %vm4171, %v7927, %v8743
        %v8826 = vsel %vm4171, %v7932, %v8745
        %v8827 = vsel %vm4171, %v7935, %v8747
        %v8828 = vpack.c.bf16 %v8765, %v8764
        %v8829 = vpack.c.bf16 %v8781, %v8780
        %v8830 = vpack.c.bf16 %v8797, %v8796
        %v8831 = vpack.c.bf16 %v8813, %v8812
        %v8832 = vpack.c.bf16 %v8767, %v8766
        %v8833 = vpack.c.bf16 %v8783, %v8782
        %v8834 = vpack.c.bf16 %v8799, %v8798
        %v8835 = vpack.c.bf16 %v8815, %v8814
        %v8836 = vpack.c.bf16 %v8769, %v8768
        %v8837 = vpack.c.bf16 %v8785, %v8784
        %v8838 = vpack.c.bf16 %v8801, %v8800
        %v8839 = vpack.c.bf16 %v8817, %v8816
        %v8840 = vpack.c.bf16 %v8771, %v8770
        %v8841 = vpack.c.bf16 %v8787, %v8786
        %v8842 = vpack.c.bf16 %v8803, %v8802
        %v8843 = vpack.c.bf16 %v8819, %v8818
        %v8844 = vpack.c.bf16 %v8773, %v8772
        %v8845 = vpack.c.bf16 %v8789, %v8788
        %v8846 = vpack.c.bf16 %v8805, %v8804
        %v8847 = vpack.c.bf16 %v8821, %v8820
        %v8848 = vpack.c.bf16 %v8775, %v8774
        %v8849 = vpack.c.bf16 %v8791, %v8790
        %v8850 = vpack.c.bf16 %v8807, %v8806
        %v8851 = vpack.c.bf16 %v8823, %v8822
        %v8852 = vpack.c.bf16 %v8777, %v8776
        %v8853 = vpack.c.bf16 %v8793, %v8792
        %v8854 = vpack.c.bf16 %v8809, %v8808
        %v8855 = vpack.c.bf16 %v8825, %v8824
        %v8856 = vpack.c.bf16 %v8779, %v8778
        %v8857 = vpack.c.bf16 %v8795, %v8794
        %v8858 = vpack.c.bf16 %v8811, %v8810
        %v8859 = vpack.c.bf16 %v8827, %v8826
        %v8860 = vld [vmem:[#allocation8] sm:$0xff]
        %v8861 = vld [vmem:[#allocation8 + $0x8] sm:$0xff]
        %v8862 = vld [vmem:[#allocation8 + $0x10] sm:$0xff]
        %v8863 = vld [vmem:[#allocation8 + $0x18] sm:$0xff]
        %v8864 = vld [vmem:[#allocation8 + $0x20] sm:$0xff]
        %v8865 = vld [vmem:[#allocation8 + $0x28] sm:$0xff]
        %v8866 = vld [vmem:[#allocation8 + $0x30] sm:$0xff]
        %v8867 = vld [vmem:[#allocation8 + $0x38] sm:$0xff]
        %v8868 = vld [vmem:[#allocation8 + $0x40] sm:$0xff]
        %v8869 = vld [vmem:[#allocation8 + $0x48] sm:$0xff]
        %v8870 = vld [vmem:[#allocation8 + $0x50] sm:$0xff]
        %v8871 = vld [vmem:[#allocation8 + $0x58] sm:$0xff]
        %v8872 = vld [vmem:[#allocation8 + $0x60] sm:$0xff]
        %v8873 = vld [vmem:[#allocation8 + $0x68] sm:$0xff]
        %v8874 = vld [vmem:[#allocation8 + $0x70] sm:$0xff]
        %v8875 = vld [vmem:[#allocation8 + $0x78] sm:$0xff]
        %v8876 = vld [vmem:[#allocation8 + $0x80] sm:$0xff]
        %v8877 = vld [vmem:[#allocation8 + $0x88] sm:$0xff]
        %v8878 = vld [vmem:[#allocation8 + $0x90] sm:$0xff]
        %v8879 = vld [vmem:[#allocation8 + $0x98] sm:$0xff]
        %v8880 = vld [vmem:[#allocation8 + $0xa0] sm:$0xff]
        %v8881 = vld [vmem:[#allocation8 + $0xa8] sm:$0xff]
        %v8882 = vld [vmem:[#allocation8 + $0xb0] sm:$0xff]
        %v8883 = vld [vmem:[#allocation8 + $0xb8] sm:$0xff]
        %v8884 = vld [vmem:[#allocation8 + $0xc0] sm:$0xff]
        %v8885 = vld [vmem:[#allocation8 + $0xc8] sm:$0xff]
        %v8886 = vld [vmem:[#allocation8 + $0xd0] sm:$0xff]
        %v8887 = vld [vmem:[#allocation8 + $0xd8] sm:$0xff]
        %v8888 = vld [vmem:[#allocation8 + $0xe0] sm:$0xff]
        %v8889 = vld [vmem:[#allocation8 + $0xe8] sm:$0xff]
        %v8890 = vld [vmem:[#allocation8 + $0xf0] sm:$0xff]
        %v8891 = vld [vmem:[#allocation8 + $0xf8] sm:$0xff]
        %v8892 = vld [vmem:[#allocation8 + $0x100] sm:$0xff]
        %v8893 = vld [vmem:[#allocation8 + $0x108] sm:$0xff]
        %v8894 = vld [vmem:[#allocation8 + $0x110] sm:$0xff]
        %v8895 = vld [vmem:[#allocation8 + $0x118] sm:$0xff]
        %v8896 = vld [vmem:[#allocation8 + $0x120] sm:$0xff]
        %v8897 = vld [vmem:[#allocation8 + $0x128] sm:$0xff]
        %v8898 = vld [vmem:[#allocation8 + $0x130] sm:$0xff]
        %v8899 = vld [vmem:[#allocation8 + $0x138] sm:$0xff]
        %v8900 = vld [vmem:[#allocation8 + $0x140] sm:$0xff]
        %v8901 = vld [vmem:[#allocation8 + $0x148] sm:$0xff]
        %v8902 = vld [vmem:[#allocation8 + $0x150] sm:$0xff]
        %v8903 = vld [vmem:[#allocation8 + $0x158] sm:$0xff]
        %v8904 = vld [vmem:[#allocation8 + $0x160] sm:$0xff]
        %v8905 = vld [vmem:[#allocation8 + $0x168] sm:$0xff]
        %v8906 = vld [vmem:[#allocation8 + $0x170] sm:$0xff]
        %v8907 = vld [vmem:[#allocation8 + $0x178] sm:$0xff]
        %v8908 = vld [vmem:[#allocation8 + $0x180] sm:$0xff]
        %v8909 = vld [vmem:[#allocation8 + $0x188] sm:$0xff]
        %v8910 = vld [vmem:[#allocation8 + $0x190] sm:$0xff]
        %v8911 = vld [vmem:[#allocation8 + $0x198] sm:$0xff]
        %v8912 = vld [vmem:[#allocation8 + $0x1a0] sm:$0xff]
        %v8913 = vld [vmem:[#allocation8 + $0x1a8] sm:$0xff]
        %v8914 = vld [vmem:[#allocation8 + $0x1b0] sm:$0xff]
        %v8915 = vld [vmem:[#allocation8 + $0x1b8] sm:$0xff]
        %v8916 = vld [vmem:[#allocation8 + $0x1c0] sm:$0xff]
        %v8917 = vld [vmem:[#allocation8 + $0x1c8] sm:$0xff]
        %v8918 = vld [vmem:[#allocation8 + $0x1d0] sm:$0xff]
        %v8919 = vld [vmem:[#allocation8 + $0x1d8] sm:$0xff]
        %v8920 = vld [vmem:[#allocation8 + $0x1e0] sm:$0xff]
        %v8921 = vld [vmem:[#allocation8 + $0x1e8] sm:$0xff]
        %v8922 = vld [vmem:[#allocation8 + $0x1f0] sm:$0xff]
        %v8923 = vld [vmem:[#allocation8 + $0x1f8] sm:$0xff]
        %v8924 = vld [vmem:[#allocation8 + $0x200] sm:$0xff]
        %v8925 = vld [vmem:[#allocation8 + $0x208] sm:$0xff]
        %v8926 = vld [vmem:[#allocation8 + $0x210] sm:$0xff]
        %v8927 = vld [vmem:[#allocation8 + $0x218] sm:$0xff]
        %v8928 = vld [vmem:[#allocation8 + $0x220] sm:$0xff]
        %v8929 = vld [vmem:[#allocation8 + $0x228] sm:$0xff]
        %v8930 = vld [vmem:[#allocation8 + $0x230] sm:$0xff]
        %v8931 = vld [vmem:[#allocation8 + $0x238] sm:$0xff]
        %v8932 = vld [vmem:[#allocation8 + $0x240] sm:$0xff]
        %v8933 = vld [vmem:[#allocation8 + $0x248] sm:$0xff]
        %v8934 = vld [vmem:[#allocation8 + $0x250] sm:$0xff]
        %v8935 = vld [vmem:[#allocation8 + $0x258] sm:$0xff]
        %v8936 = vld [vmem:[#allocation8 + $0x260] sm:$0xff]
        %v8937 = vld [vmem:[#allocation8 + $0x268] sm:$0xff]
        %v8938 = vld [vmem:[#allocation8 + $0x270] sm:$0xff]
        %v8939 = vld [vmem:[#allocation8 + $0x278] sm:$0xff]
        %v8940 = vld [vmem:[#allocation8 + $0x280] sm:$0xff]
        %v8941 = vld [vmem:[#allocation8 + $0x288] sm:$0xff]
        %v8942 = vld [vmem:[#allocation8 + $0x290] sm:$0xff]
        %v8943 = vld [vmem:[#allocation8 + $0x298] sm:$0xff]
        %v8944 = vld [vmem:[#allocation8 + $0x2a0] sm:$0xff]
        %v8945 = vld [vmem:[#allocation8 + $0x2a8] sm:$0xff]
        %v8946 = vld [vmem:[#allocation8 + $0x2b0] sm:$0xff]
        %v8947 = vld [vmem:[#allocation8 + $0x2b8] sm:$0xff]
        %v8948 = vld [vmem:[#allocation8 + $0x2c0] sm:$0xff]
        %v8949 = vld [vmem:[#allocation8 + $0x2c8] sm:$0xff]
        %v8950 = vld [vmem:[#allocation8 + $0x2d0] sm:$0xff]
        %v8951 = vld [vmem:[#allocation8 + $0x2d8] sm:$0xff]
        %v8952 = vld [vmem:[#allocation8 + $0x2e0] sm:$0xff]
        %v8953 = vld [vmem:[#allocation8 + $0x2e8] sm:$0xff]
        %v8954 = vld [vmem:[#allocation8 + $0x2f0] sm:$0xff]
        %v8955 = vld [vmem:[#allocation8 + $0x2f8] sm:$0xff]
        %v8956 = vld [vmem:[#allocation8 + $0x300] sm:$0xff]
        %v8957 = vld [vmem:[#allocation8 + $0x308] sm:$0xff]
        %v8958 = vld [vmem:[#allocation8 + $0x310] sm:$0xff]
        %v8959 = vld [vmem:[#allocation8 + $0x318] sm:$0xff]
        %v8960 = vld [vmem:[#allocation8 + $0x320] sm:$0xff]
        %v8961 = vld [vmem:[#allocation8 + $0x328] sm:$0xff]
        %v8962 = vld [vmem:[#allocation8 + $0x330] sm:$0xff]
        %v8963 = vld [vmem:[#allocation8 + $0x338] sm:$0xff]
        %v8964 = vld [vmem:[#allocation8 + $0x340] sm:$0xff]
        %v8965 = vld [vmem:[#allocation8 + $0x348] sm:$0xff]
        %v8966 = vld [vmem:[#allocation8 + $0x350] sm:$0xff]
        %v8967 = vld [vmem:[#allocation8 + $0x358] sm:$0xff]
        %v8968 = vld [vmem:[#allocation8 + $0x360] sm:$0xff]
        %v8969 = vld [vmem:[#allocation8 + $0x368] sm:$0xff]
        %v8970 = vld [vmem:[#allocation8 + $0x370] sm:$0xff]
        %v8971 = vld [vmem:[#allocation8 + $0x378] sm:$0xff]
        %v8972 = vld [vmem:[#allocation8 + $0x380] sm:$0xff]
        %v8973 = vld [vmem:[#allocation8 + $0x388] sm:$0xff]
        %v8974 = vld [vmem:[#allocation8 + $0x390] sm:$0xff]
        %v8975 = vld [vmem:[#allocation8 + $0x398] sm:$0xff]
        %v8976 = vld [vmem:[#allocation8 + $0x3a0] sm:$0xff]
        %v8977 = vld [vmem:[#allocation8 + $0x3a8] sm:$0xff]
        %v8978 = vld [vmem:[#allocation8 + $0x3b0] sm:$0xff]
        %v8979 = vld [vmem:[#allocation8 + $0x3b8] sm:$0xff]
        %v8980 = vld [vmem:[#allocation8 + $0x3c0] sm:$0xff]
        %v8981 = vld [vmem:[#allocation8 + $0x3c8] sm:$0xff]
        %v8982 = vld [vmem:[#allocation8 + $0x3d0] sm:$0xff]
        %v8983 = vld [vmem:[#allocation8 + $0x3d8] sm:$0xff]
        %v8984 = vld [vmem:[#allocation8 + $0x3e0] sm:$0xff]
        %v8985 = vld [vmem:[#allocation8 + $0x3e8] sm:$0xff]
        %v8986 = vld [vmem:[#allocation8 + $0x3f0] sm:$0xff]
        %v8987 = vld [vmem:[#allocation8 + $0x3f8] sm:$0xff]
        %v8988 = vld [vmem:[#allocation10] sm:$0xf]
        %v8990 = vlaneseq
        %v8991 = vshrl.u32 %v8990, 7
        %v8992 = vsub.s32 0, %v8991
        %v8993 = vrot.slane %v8988, %v8992
        %v8994 = vlaneseq
        %v8995 = vshrl.u32 %v8994, 7
        %v8996 = vsub.s32 1, %v8995
        %v8997 = vrot.slane %v8988, %v8996
        %v8998 = vlaneseq
        %v8999 = vshrl.u32 %v8998, 7
        %v9000 = vsub.s32 2, %v8999
        %v9001 = vrot.slane %v8988, %v9000
        %v9002 = vlaneseq
        %v9003 = vshrl.u32 %v9002, 7
        %v9004 = vsub.s32 3, %v9003
        %v9005 = vrot.slane %v8988, %v9004
        %v9138 = vunpack.c.l.b16 %v8860
        %v9139 = vunpack.c.h.b16 %v8860
        %v9140 = vunpack.c.l.b16 %v8861
        %v9141 = vunpack.c.h.b16 %v8861
        %v9142 = vunpack.c.l.b16 %v8862
        %v9143 = vunpack.c.h.b16 %v8862
        %v9144 = vunpack.c.l.b16 %v8863
        %v9145 = vunpack.c.h.b16 %v8863
        %v9146 = vunpack.c.l.b16 %v8864
        %v9147 = vunpack.c.h.b16 %v8864
        %v9148 = vunpack.c.l.b16 %v8865
        %v9149 = vunpack.c.h.b16 %v8865
        %v9150 = vunpack.c.l.b16 %v8866
        %v9151 = vunpack.c.h.b16 %v8866
        %v9152 = vunpack.c.l.b16 %v8867
        %v9153 = vunpack.c.h.b16 %v8867
        %v9154 = vunpack.c.l.b16 %v8868
        %v9155 = vunpack.c.h.b16 %v8868
        %v9156 = vunpack.c.l.b16 %v8869
        %v9157 = vunpack.c.h.b16 %v8869
        %v9158 = vunpack.c.l.b16 %v8870
        %v9159 = vunpack.c.h.b16 %v8870
        %v9160 = vunpack.c.l.b16 %v8871
        %v9161 = vunpack.c.h.b16 %v8871
        %v9162 = vunpack.c.l.b16 %v8872
        %v9163 = vunpack.c.h.b16 %v8872
        %v9164 = vunpack.c.l.b16 %v8873
        %v9165 = vunpack.c.h.b16 %v8873
        %v9166 = vunpack.c.l.b16 %v8874
        %v9167 = vunpack.c.h.b16 %v8874
        %v9168 = vunpack.c.l.b16 %v8875
        %v9169 = vunpack.c.h.b16 %v8875
        %v9170 = vunpack.c.l.b16 %v8876
        %v9171 = vunpack.c.h.b16 %v8876
        %v9172 = vunpack.c.l.b16 %v8877
        %v9173 = vunpack.c.h.b16 %v8877
        %v9174 = vunpack.c.l.b16 %v8878
        %v9175 = vunpack.c.h.b16 %v8878
        %v9176 = vunpack.c.l.b16 %v8879
        %v9177 = vunpack.c.h.b16 %v8879
        %v9178 = vunpack.c.l.b16 %v8880
        %v9179 = vunpack.c.h.b16 %v8880
        %v9180 = vunpack.c.l.b16 %v8881
        %v9181 = vunpack.c.h.b16 %v8881
        %v9182 = vunpack.c.l.b16 %v8882
        %v9183 = vunpack.c.h.b16 %v8882
        %v9184 = vunpack.c.l.b16 %v8883
        %v9185 = vunpack.c.h.b16 %v8883
        %v9186 = vunpack.c.l.b16 %v8884
        %v9187 = vunpack.c.h.b16 %v8884
        %v9188 = vunpack.c.l.b16 %v8885
        %v9189 = vunpack.c.h.b16 %v8885
        %v9190 = vunpack.c.l.b16 %v8886
        %v9191 = vunpack.c.h.b16 %v8886
        %v9192 = vunpack.c.l.b16 %v8887
        %v9193 = vunpack.c.h.b16 %v8887
        %v9194 = vunpack.c.l.b16 %v8888
        %v9195 = vunpack.c.h.b16 %v8888
        %v9196 = vunpack.c.l.b16 %v8889
        %v9197 = vunpack.c.h.b16 %v8889
        %v9198 = vunpack.c.l.b16 %v8890
        %v9199 = vunpack.c.h.b16 %v8890
        %v9200 = vunpack.c.l.b16 %v8891
        %v9201 = vunpack.c.h.b16 %v8891
        %v9202 = vunpack.c.l.b16 %v8892
        %v9203 = vunpack.c.h.b16 %v8892
        %v9204 = vunpack.c.l.b16 %v8893
        %v9205 = vunpack.c.h.b16 %v8893
        %v9206 = vunpack.c.l.b16 %v8894
        %v9207 = vunpack.c.h.b16 %v8894
        %v9208 = vunpack.c.l.b16 %v8895
        %v9209 = vunpack.c.h.b16 %v8895
        %v9210 = vunpack.c.l.b16 %v8896
        %v9211 = vunpack.c.h.b16 %v8896
        %v9212 = vunpack.c.l.b16 %v8897
        %v9213 = vunpack.c.h.b16 %v8897
        %v9214 = vunpack.c.l.b16 %v8898
        %v9215 = vunpack.c.h.b16 %v8898
        %v9216 = vunpack.c.l.b16 %v8899
        %v9217 = vunpack.c.h.b16 %v8899
        %v9218 = vunpack.c.l.b16 %v8900
        %v9219 = vunpack.c.h.b16 %v8900
        %v9220 = vunpack.c.l.b16 %v8901
        %v9221 = vunpack.c.h.b16 %v8901
        %v9222 = vunpack.c.l.b16 %v8902
        %v9223 = vunpack.c.h.b16 %v8902
        %v9224 = vunpack.c.l.b16 %v8903
        %v9225 = vunpack.c.h.b16 %v8903
        %v9226 = vunpack.c.l.b16 %v8904
        %v9227 = vunpack.c.h.b16 %v8904
        %v9228 = vunpack.c.l.b16 %v8905
        %v9229 = vunpack.c.h.b16 %v8905
        %v9230 = vunpack.c.l.b16 %v8906
        %v9231 = vunpack.c.h.b16 %v8906
        %v9232 = vunpack.c.l.b16 %v8907
        %v9233 = vunpack.c.h.b16 %v8907
        %v9234 = vunpack.c.l.b16 %v8908
        %v9235 = vunpack.c.h.b16 %v8908
        %v9236 = vunpack.c.l.b16 %v8909
        %v9237 = vunpack.c.h.b16 %v8909
        %v9238 = vunpack.c.l.b16 %v8910
        %v9239 = vunpack.c.h.b16 %v8910
        %v9240 = vunpack.c.l.b16 %v8911
        %v9241 = vunpack.c.h.b16 %v8911
        %v9242 = vunpack.c.l.b16 %v8912
        %v9243 = vunpack.c.h.b16 %v8912
        %v9244 = vunpack.c.l.b16 %v8913
        %v9245 = vunpack.c.h.b16 %v8913
        %v9246 = vunpack.c.l.b16 %v8914
        %v9247 = vunpack.c.h.b16 %v8914
        %v9248 = vunpack.c.l.b16 %v8915
        %v9249 = vunpack.c.h.b16 %v8915
        %v9250 = vunpack.c.l.b16 %v8916
        %v9251 = vunpack.c.h.b16 %v8916
        %v9252 = vunpack.c.l.b16 %v8917
        %v9253 = vunpack.c.h.b16 %v8917
        %v9254 = vunpack.c.l.b16 %v8918
        %v9255 = vunpack.c.h.b16 %v8918
        %v9256 = vunpack.c.l.b16 %v8919
        %v9257 = vunpack.c.h.b16 %v8919
        %v9258 = vunpack.c.l.b16 %v8920
        %v9259 = vunpack.c.h.b16 %v8920
        %v9260 = vunpack.c.l.b16 %v8921
        %v9261 = vunpack.c.h.b16 %v8921
        %v9262 = vunpack.c.l.b16 %v8922
        %v9263 = vunpack.c.h.b16 %v8922
        %v9264 = vunpack.c.l.b16 %v8923
        %v9265 = vunpack.c.h.b16 %v8923
        %v9266 = vunpack.c.l.b16 %v8924
        %v9267 = vunpack.c.h.b16 %v8924
        %v9268 = vunpack.c.l.b16 %v8925
        %v9269 = vunpack.c.h.b16 %v8925
        %v9270 = vunpack.c.l.b16 %v8926
        %v9271 = vunpack.c.h.b16 %v8926
        %v9272 = vunpack.c.l.b16 %v8927
        %v9273 = vunpack.c.h.b16 %v8927
        %v9274 = vunpack.c.l.b16 %v8928
        %v9275 = vunpack.c.h.b16 %v8928
        %v9276 = vunpack.c.l.b16 %v8929
        %v9277 = vunpack.c.h.b16 %v8929
        %v9278 = vunpack.c.l.b16 %v8930
        %v9279 = vunpack.c.h.b16 %v8930
        %v9280 = vunpack.c.l.b16 %v8931
        %v9281 = vunpack.c.h.b16 %v8931
        %v9282 = vunpack.c.l.b16 %v8932
        %v9283 = vunpack.c.h.b16 %v8932
        %v9284 = vunpack.c.l.b16 %v8933
        %v9285 = vunpack.c.h.b16 %v8933
        %v9286 = vunpack.c.l.b16 %v8934
        %v9287 = vunpack.c.h.b16 %v8934
        %v9288 = vunpack.c.l.b16 %v8935
        %v9289 = vunpack.c.h.b16 %v8935
        %v9290 = vunpack.c.l.b16 %v8936
        %v9291 = vunpack.c.h.b16 %v8936
        %v9292 = vunpack.c.l.b16 %v8937
        %v9293 = vunpack.c.h.b16 %v8937
        %v9294 = vunpack.c.l.b16 %v8938
        %v9295 = vunpack.c.h.b16 %v8938
        %v9296 = vunpack.c.l.b16 %v8939
        %v9297 = vunpack.c.h.b16 %v8939
        %v9298 = vunpack.c.l.b16 %v8940
        %v9299 = vunpack.c.h.b16 %v8940
        %v9300 = vunpack.c.l.b16 %v8941
        %v9301 = vunpack.c.h.b16 %v8941
        %v9302 = vunpack.c.l.b16 %v8942
        %v9303 = vunpack.c.h.b16 %v8942
        %v9304 = vunpack.c.l.b16 %v8943
        %v9305 = vunpack.c.h.b16 %v8943
        %v9306 = vunpack.c.l.b16 %v8944
        %v9307 = vunpack.c.h.b16 %v8944
        %v9308 = vunpack.c.l.b16 %v8945
        %v9309 = vunpack.c.h.b16 %v8945
        %v9310 = vunpack.c.l.b16 %v8946
        %v9311 = vunpack.c.h.b16 %v8946
        %v9312 = vunpack.c.l.b16 %v8947
        %v9313 = vunpack.c.h.b16 %v8947
        %v9314 = vunpack.c.l.b16 %v8948
        %v9315 = vunpack.c.h.b16 %v8948
        %v9316 = vunpack.c.l.b16 %v8949
        %v9317 = vunpack.c.h.b16 %v8949
        %v9318 = vunpack.c.l.b16 %v8950
        %v9319 = vunpack.c.h.b16 %v8950
        %v9320 = vunpack.c.l.b16 %v8951
        %v9321 = vunpack.c.h.b16 %v8951
        %v9322 = vunpack.c.l.b16 %v8952
        %v9323 = vunpack.c.h.b16 %v8952
        %v9324 = vunpack.c.l.b16 %v8953
        %v9325 = vunpack.c.h.b16 %v8953
        %v9326 = vunpack.c.l.b16 %v8954
        %v9327 = vunpack.c.h.b16 %v8954
        %v9328 = vunpack.c.l.b16 %v8955
        %v9329 = vunpack.c.h.b16 %v8955
        %v9330 = vunpack.c.l.b16 %v8956
        %v9331 = vunpack.c.h.b16 %v8956
        %v9332 = vunpack.c.l.b16 %v8957
        %v9333 = vunpack.c.h.b16 %v8957
        %v9334 = vunpack.c.l.b16 %v8958
        %v9335 = vunpack.c.h.b16 %v8958
        %v9336 = vunpack.c.l.b16 %v8959
        %v9337 = vunpack.c.h.b16 %v8959
        %v9338 = vunpack.c.l.b16 %v8960
        %v9339 = vunpack.c.h.b16 %v8960
        %v9340 = vunpack.c.l.b16 %v8961
        %v9341 = vunpack.c.h.b16 %v8961
        %v9342 = vunpack.c.l.b16 %v8962
        %v9343 = vunpack.c.h.b16 %v8962
        %v9344 = vunpack.c.l.b16 %v8963
        %v9345 = vunpack.c.h.b16 %v8963
        %v9346 = vunpack.c.l.b16 %v8964
        %v9347 = vunpack.c.h.b16 %v8964
        %v9348 = vunpack.c.l.b16 %v8965
        %v9349 = vunpack.c.h.b16 %v8965
        %v9350 = vunpack.c.l.b16 %v8966
        %v9351 = vunpack.c.h.b16 %v8966
        %v9352 = vunpack.c.l.b16 %v8967
        %v9353 = vunpack.c.h.b16 %v8967
        %v9354 = vunpack.c.l.b16 %v8968
        %v9355 = vunpack.c.h.b16 %v8968
        %v9356 = vunpack.c.l.b16 %v8969
        %v9357 = vunpack.c.h.b16 %v8969
        %v9358 = vunpack.c.l.b16 %v8970
        %v9359 = vunpack.c.h.b16 %v8970
        %v9360 = vunpack.c.l.b16 %v8971
        %v9361 = vunpack.c.h.b16 %v8971
        %v9362 = vunpack.c.l.b16 %v8972
        %v9363 = vunpack.c.h.b16 %v8972
        %v9364 = vunpack.c.l.b16 %v8973
        %v9365 = vunpack.c.h.b16 %v8973
        %v9366 = vunpack.c.l.b16 %v8974
        %v9367 = vunpack.c.h.b16 %v8974
        %v9368 = vunpack.c.l.b16 %v8975
        %v9369 = vunpack.c.h.b16 %v8975
        %v9370 = vunpack.c.l.b16 %v8976
        %v9371 = vunpack.c.h.b16 %v8976
        %v9372 = vunpack.c.l.b16 %v8977
        %v9373 = vunpack.c.h.b16 %v8977
        %v9374 = vunpack.c.l.b16 %v8978
        %v9375 = vunpack.c.h.b16 %v8978
        %v9376 = vunpack.c.l.b16 %v8979
        %v9377 = vunpack.c.h.b16 %v8979
        %v9378 = vunpack.c.l.b16 %v8980
        %v9379 = vunpack.c.h.b16 %v8980
        %v9380 = vunpack.c.l.b16 %v8981
        %v9381 = vunpack.c.h.b16 %v8981
        %v9382 = vunpack.c.l.b16 %v8982
        %v9383 = vunpack.c.h.b16 %v8982
        %v9384 = vunpack.c.l.b16 %v8983
        %v9385 = vunpack.c.h.b16 %v8983
        %v9386 = vunpack.c.l.b16 %v8984
        %v9387 = vunpack.c.h.b16 %v8984
        %v9388 = vunpack.c.l.b16 %v8985
        %v9389 = vunpack.c.h.b16 %v8985
        %v9390 = vunpack.c.l.b16 %v8986
        %v9391 = vunpack.c.h.b16 %v8986
        %v9392 = vunpack.c.l.b16 %v8987
        %v9393 = vunpack.c.h.b16 %v8987
        %v9394 = vpack.c.b16 %v9142, %v9138
        %v9395 = vpack.c.b16 %v9143, %v9139
        %v9396 = vpack.c.b16 %v9144, %v9140
        %v9397 = vpack.c.b16 %v9145, %v9141
        %v9398 = vpack.c.b16 %v9150, %v9146
        %v9399 = vpack.c.b16 %v9151, %v9147
        %v9400 = vpack.c.b16 %v9152, %v9148
        %v9401 = vpack.c.b16 %v9153, %v9149
        %v9402 = vpack.c.b16 %v9158, %v9154
        %v9403 = vpack.c.b16 %v9159, %v9155
        %v9404 = vpack.c.b16 %v9160, %v9156
        %v9405 = vpack.c.b16 %v9161, %v9157
        %v9406 = vpack.c.b16 %v9166, %v9162
        %v9407 = vpack.c.b16 %v9167, %v9163
        %v9408 = vpack.c.b16 %v9168, %v9164
        %v9409 = vpack.c.b16 %v9169, %v9165
        %v9410 = vpack.c.b16 %v9174, %v9170
        %v9411 = vpack.c.b16 %v9175, %v9171
        %v9412 = vpack.c.b16 %v9176, %v9172
        %v9413 = vpack.c.b16 %v9177, %v9173
        %v9414 = vpack.c.b16 %v9182, %v9178
        %v9415 = vpack.c.b16 %v9183, %v9179
        %v9416 = vpack.c.b16 %v9184, %v9180
        %v9417 = vpack.c.b16 %v9185, %v9181
        %v9418 = vpack.c.b16 %v9190, %v9186
        %v9419 = vpack.c.b16 %v9191, %v9187
        %v9420 = vpack.c.b16 %v9192, %v9188
        %v9421 = vpack.c.b16 %v9193, %v9189
        %v9422 = vpack.c.b16 %v9198, %v9194
        %v9423 = vpack.c.b16 %v9199, %v9195
        %v9424 = vpack.c.b16 %v9200, %v9196
        %v9425 = vpack.c.b16 %v9201, %v9197
        %v9426 = vpack.c.b16 %v9206, %v9202
        %v9427 = vpack.c.b16 %v9207, %v9203
        %v9428 = vpack.c.b16 %v9208, %v9204
        %v9429 = vpack.c.b16 %v9209, %v9205
        %v9430 = vpack.c.b16 %v9214, %v9210
        %v9431 = vpack.c.b16 %v9215, %v9211
        %v9432 = vpack.c.b16 %v9216, %v9212
        %v9433 = vpack.c.b16 %v9217, %v9213
        %v9434 = vpack.c.b16 %v9222, %v9218
        %v9435 = vpack.c.b16 %v9223, %v9219
        %v9436 = vpack.c.b16 %v9224, %v9220
        %v9437 = vpack.c.b16 %v9225, %v9221
        %v9438 = vpack.c.b16 %v9230, %v9226
        %v9439 = vpack.c.b16 %v9231, %v9227
        %v9440 = vpack.c.b16 %v9232, %v9228
        %v9441 = vpack.c.b16 %v9233, %v9229
        %v9442 = vpack.c.b16 %v9238, %v9234
        %v9443 = vpack.c.b16 %v9239, %v9235
        %v9444 = vpack.c.b16 %v9240, %v9236
        %v9445 = vpack.c.b16 %v9241, %v9237
        %v9446 = vpack.c.b16 %v9246, %v9242
        %v9447 = vpack.c.b16 %v9247, %v9243
        %v9448 = vpack.c.b16 %v9248, %v9244
        %v9449 = vpack.c.b16 %v9249, %v9245
        %v9450 = vpack.c.b16 %v9254, %v9250
        %v9451 = vpack.c.b16 %v9255, %v9251
        %v9452 = vpack.c.b16 %v9256, %v9252
        %v9453 = vpack.c.b16 %v9257, %v9253
        %v9454 = vpack.c.b16 %v9262, %v9258
        %v9455 = vpack.c.b16 %v9263, %v9259
        %v9456 = vpack.c.b16 %v9264, %v9260
        %v9457 = vpack.c.b16 %v9265, %v9261
        %v9458 = vpack.c.b16 %v9270, %v9266
        %v9459 = vpack.c.b16 %v9271, %v9267
        %v9460 = vpack.c.b16 %v9272, %v9268
        %v9461 = vpack.c.b16 %v9273, %v9269
        %v9462 = vpack.c.b16 %v9278, %v9274
        %v9463 = vpack.c.b16 %v9279, %v9275
        %v9464 = vpack.c.b16 %v9280, %v9276
        %v9465 = vpack.c.b16 %v9281, %v9277
        %v9466 = vpack.c.b16 %v9286, %v9282
        %v9467 = vpack.c.b16 %v9287, %v9283
        %v9468 = vpack.c.b16 %v9288, %v9284
        %v9469 = vpack.c.b16 %v9289, %v9285
        %v9470 = vpack.c.b16 %v9294, %v9290
        %v9471 = vpack.c.b16 %v9295, %v9291
        %v9472 = vpack.c.b16 %v9296, %v9292
        %v9473 = vpack.c.b16 %v9297, %v9293
        %v9474 = vpack.c.b16 %v9302, %v9298
        %v9475 = vpack.c.b16 %v9303, %v9299
        %v9476 = vpack.c.b16 %v9304, %v9300
        %v9477 = vpack.c.b16 %v9305, %v9301
        %v9478 = vpack.c.b16 %v9310, %v9306
        %v9479 = vpack.c.b16 %v9311, %v9307
        %v9480 = vpack.c.b16 %v9312, %v9308
        %v9481 = vpack.c.b16 %v9313, %v9309
        %v9482 = vpack.c.b16 %v9318, %v9314
        %v9483 = vpack.c.b16 %v9319, %v9315
        %v9484 = vpack.c.b16 %v9320, %v9316
        %v9485 = vpack.c.b16 %v9321, %v9317
        %v9486 = vpack.c.b16 %v9326, %v9322
        %v9487 = vpack.c.b16 %v9327, %v9323
        %v9488 = vpack.c.b16 %v9328, %v9324
        %v9489 = vpack.c.b16 %v9329, %v9325
        %v9490 = vpack.c.b16 %v9334, %v9330
        %v9491 = vpack.c.b16 %v9335, %v9331
        %v9492 = vpack.c.b16 %v9336, %v9332
        %v9493 = vpack.c.b16 %v9337, %v9333
        %v9494 = vpack.c.b16 %v9342, %v9338
        %v9495 = vpack.c.b16 %v9343, %v9339
        %v9496 = vpack.c.b16 %v9344, %v9340
        %v9497 = vpack.c.b16 %v9345, %v9341
        %v9498 = vpack.c.b16 %v9350, %v9346
        %v9499 = vpack.c.b16 %v9351, %v9347
        %v9500 = vpack.c.b16 %v9352, %v9348
        %v9501 = vpack.c.b16 %v9353, %v9349
        %v9502 = vpack.c.b16 %v9358, %v9354
        %v9503 = vpack.c.b16 %v9359, %v9355
        %v9504 = vpack.c.b16 %v9360, %v9356
        %v9505 = vpack.c.b16 %v9361, %v9357
        %v9506 = vpack.c.b16 %v9366, %v9362
        %v9507 = vpack.c.b16 %v9367, %v9363
        %v9508 = vpack.c.b16 %v9368, %v9364
        %v9509 = vpack.c.b16 %v9369, %v9365
        %v9510 = vpack.c.b16 %v9374, %v9370
        %v9511 = vpack.c.b16 %v9375, %v9371
        %v9512 = vpack.c.b16 %v9376, %v9372
        %v9513 = vpack.c.b16 %v9377, %v9373
        %v9514 = vpack.c.b16 %v9382, %v9378
        %v9515 = vpack.c.b16 %v9383, %v9379
        %v9516 = vpack.c.b16 %v9384, %v9380
        %v9517 = vpack.c.b16 %v9385, %v9381
        %v9518 = vpack.c.b16 %v9390, %v9386
        %v9519 = vpack.c.b16 %v9391, %v9387
        %v9520 = vpack.c.b16 %v9392, %v9388
        %v9521 = vpack.c.b16 %v9393, %v9389
        %9650 = vmatprep.subr.bf16.mxu0 %v9395
        %9651 = vmatpush1.bf16.msra.mxu0 %v9394
        %9652 = vmatprep.subr.bf16.mxu0 %v9399
        %9653 = vmatpush1.bf16.msra.mxu0 %v9398
        %9654 = vmatprep.subr.bf16.mxu0 %v9403
        %9655 = vmatpush1.bf16.msra.mxu0 %v9402
        %9656 = vmatprep.subr.bf16.mxu0 %v9407
        %9657 = vmatpush1.bf16.msra.mxu0 %v9406
        %9658 = vmatprep.subr.bf16.mxu0 %v9411
        %9659 = vmatpush1.bf16.msra.mxu0 %v9410
        %9660 = vmatprep.subr.bf16.mxu0 %v9415
        %9661 = vmatpush1.bf16.msra.mxu0 %v9414
        %9662 = vmatprep.subr.bf16.mxu0 %v9419
        %9663 = vmatpush1.bf16.msra.mxu0 %v9418
        %9664 = vmatprep.subr.bf16.mxu0 %v9423
        %9665 = vmatpush1.bf16.msra.mxu0 %v9422
        %9666 = vmatprep.subr.bf16.mxu0 %v9427
        %9667 = vmatpush1.bf16.msra.mxu0 %v9426
        %9668 = vmatprep.subr.bf16.mxu0 %v9431
        %9669 = vmatpush1.bf16.msra.mxu0 %v9430
        %9670 = vmatprep.subr.bf16.mxu0 %v9435
        %9671 = vmatpush1.bf16.msra.mxu0 %v9434
        %9672 = vmatprep.subr.bf16.mxu0 %v9439
        %9673 = vmatpush1.bf16.msra.mxu0 %v9438
        %9674 = vmatprep.subr.bf16.mxu0 %v9443
        %9675 = vmatpush1.bf16.msra.mxu0 %v9442
        %9676 = vmatprep.subr.bf16.mxu0 %v9447
        %9677 = vmatpush1.bf16.msra.mxu0 %v9446
        %9678 = vmatprep.subr.bf16.mxu0 %v9451
        %9679 = vmatpush1.bf16.msra.mxu0 %v9450
        %9680 = vmatprep.subr.bf16.mxu0 %v9455
        %9681 = vmatpush1.bf16.msra.mxu0 %v9454
        %9682 = vmatprep.mubr.bf16.mxu0 %v8829
        %9683 = vmatmul.mubr.bf16.gmra.mrb[0].mxu0 %v8828
        %v9684 = vpop.f32.mrb[0].mxu0
        %v9685 = vadd.f32 %v8993, %v9684
        %v9686 = vpop.f32.mrb[0].mxu0
        %v9687 = vadd.f32 %v8997, %v9686
        %v9688 = vpop.f32.mrb[0].mxu0
        %v9689 = vadd.f32 %v8993, %v9688
        %v9690 = vpop.f32.mrb[0].mxu0
        %v9691 = vadd.f32 %v8997, %v9690
        %9692 = vmatprep.mubr.bf16.mxu0 %v8833
        %9693 = vmatmul.mubr.bf16.gmra.mrb[0].mxu0 %v8832
        %v9694 = vpop.f32.mrb[0].mxu0
        %v9695 = vadd.f32 %v8993, %v9694
        %v9696 = vpop.f32.mrb[0].mxu0
        %v9697 = vadd.f32 %v8997, %v9696
        %v9698 = vpop.f32.mrb[0].mxu0
        %v9699 = vadd.f32 %v8993, %v9698
        %v9700 = vpop.f32.mrb[0].mxu0
        %v9701 = vadd.f32 %v8997, %v9700
        %9702 = vmatprep.mubr.bf16.mxu0 %v8837
        %9703 = vmatmul.mubr.bf16.gmra.mrb[0].mxu0 %v8836
        %v9704 = vpop.f32.mrb[0].mxu0
        %v9705 = vadd.f32 %v8993, %v9704
        %v9706 = vpop.f32.mrb[0].mxu0
        %v9707 = vadd.f32 %v8997, %v9706
        %v9708 = vpop.f32.mrb[0].mxu0
        %v9709 = vadd.f32 %v8993, %v9708
        %v9710 = vpop.f32.mrb[0].mxu0
        %v9711 = vadd.f32 %v8997, %v9710
        %9712 = vmatprep.mubr.bf16.mxu0 %v8841
        %9713 = vmatmul.mubr.bf16.gmra.mrb[0].mxu0 %v8840
        %v9714 = vpop.f32.mrb[0].mxu0
        %v9715 = vadd.f32 %v8993, %v9714
        %v9716 = vpop.f32.mrb[0].mxu0
        %v9717 = vadd.f32 %v8997, %v9716
        %v9718 = vpop.f32.mrb[0].mxu0
        %v9719 = vadd.f32 %v8993, %v9718
        %v9720 = vpop.f32.mrb[0].mxu0
        %v9721 = vadd.f32 %v8997, %v9720
        %9722 = vmatprep.mubr.bf16.mxu0 %v8845
        %9723 = vmatmul.mubr.bf16.gmra.mrb[0].mxu0 %v8844
        %v9724 = vpop.f32.mrb[0].mxu0
        %v9725 = vadd.f32 %v8993, %v9724
        %v9726 = vpop.f32.mrb[0].mxu0
        %v9727 = vadd.f32 %v8997, %v9726
        %v9728 = vpop.f32.mrb[0].mxu0
        %v9729 = vadd.f32 %v8993, %v9728
        %v9730 = vpop.f32.mrb[0].mxu0
        %v9731 = vadd.f32 %v8997, %v9730
        %9732 = vmatprep.mubr.bf16.mxu0 %v8849
        %9733 = vmatmul.mubr.bf16.gmra.mrb[0].mxu0 %v8848
        %v9734 = vpop.f32.mrb[0].mxu0
        %v9735 = vadd.f32 %v8993, %v9734
        %v9736 = vpop.f32.mrb[0].mxu0
        %v9737 = vadd.f32 %v8997, %v9736
        %v9738 = vpop.f32.mrb[0].mxu0
        %v9739 = vadd.f32 %v8993, %v9738
        %v9740 = vpop.f32.mrb[0].mxu0
        %v9741 = vadd.f32 %v8997, %v9740
        %9742 = vmatprep.mubr.bf16.mxu0 %v8853
        %9743 = vmatmul.mubr.bf16.gmra.mrb[0].mxu0 %v8852
        %v9744 = vpop.f32.mrb[0].mxu0
        %v9745 = vadd.f32 %v8993, %v9744
        %v9746 = vpop.f32.mrb[0].mxu0
        %v9747 = vadd.f32 %v8997, %v9746
        %v9748 = vpop.f32.mrb[0].mxu0
        %v9749 = vadd.f32 %v8993, %v9748
        %v9750 = vpop.f32.mrb[0].mxu0
        %v9751 = vadd.f32 %v8997, %v9750
        %9752 = vmatprep.mubr.bf16.mxu0 %v8857
        %9753 = vmatmul.mubr.bf16.gmra.mrb[0].mxu0 %v8856
        %v9754 = vpop.f32.mrb[0].mxu0
        %v9755 = vadd.f32 %v8993, %v9754
        %v9756 = vpop.f32.mrb[0].mxu0
        %v9757 = vadd.f32 %v8997, %v9756
        %v9758 = vpop.f32.mrb[0].mxu0
        %v9759 = vadd.f32 %v8993, %v9758
        %v9760 = vpop.f32.mrb[0].mxu0
        %v9761 = vadd.f32 %v8997, %v9760
        %9762 = vdwg.mxu0
        %9763 = vmatprep.subr.bf16.mxu0 %v9459
        %9764 = vmatpush1.bf16.msra.mxu0 %v9458
        %9765 = vmatprep.subr.bf16.mxu0 %v9463
        %9766 = vmatpush1.bf16.msra.mxu0 %v9462
        %9767 = vmatprep.subr.bf16.mxu0 %v9467
        %9768 = vmatpush1.bf16.msra.mxu0 %v9466
        %9769 = vmatprep.subr.bf16.mxu0 %v9471
        %9770 = vmatpush1.bf16.msra.mxu0 %v9470
        %9771 = vmatprep.subr.bf16.mxu0 %v9475
        %9772 = vmatpush1.bf16.msra.mxu0 %v9474
        %9773 = vmatprep.subr.bf16.mxu0 %v9479
        %9774 = vmatpush1.bf16.msra.mxu0 %v9478
        %9775 = vmatprep.subr.bf16.mxu0 %v9483
        %9776 = vmatpush1.bf16.msra.mxu0 %v9482
        %9777 = vmatprep.subr.bf16.mxu0 %v9487
        %9778 = vmatpush1.bf16.msra.mxu0 %v9486
        %9779 = vmatprep.subr.bf16.mxu0 %v9491
        %9780 = vmatpush1.bf16.msra.mxu0 %v9490
        %9781 = vmatprep.subr.bf16.mxu0 %v9495
        %9782 = vmatpush1.bf16.msra.mxu0 %v9494
        %9783 = vmatprep.subr.bf16.mxu0 %v9499
        %9784 = vmatpush1.bf16.msra.mxu0 %v9498
        %9785 = vmatprep.subr.bf16.mxu0 %v9503
        %9786 = vmatpush1.bf16.msra.mxu0 %v9502
        %9787 = vmatprep.subr.bf16.mxu0 %v9507
        %9788 = vmatpush1.bf16.msra.mxu0 %v9506
        %9789 = vmatprep.subr.bf16.mxu0 %v9511
        %9790 = vmatpush1.bf16.msra.mxu0 %v9510
        %9791 = vmatprep.subr.bf16.mxu0 %v9515
        %9792 = vmatpush1.bf16.msra.mxu0 %v9514
        %9793 = vmatprep.subr.bf16.mxu0 %v9519
        %9794 = vmatpush1.bf16.msra.mxu0 %v9518
        %9795 = vmatprep.mubr.bf16.mxu0 %v8831
        %9796 = vmatmul.mubr.bf16.gmra.mrb[0].mxu0 %v8830
        %v9797 = vpop.f32.mrb[0].mxu0
        %v9798 = vadd.f32 %v9685, %v9797
        %v9799 = vpop.f32.mrb[0].mxu0
        %v9800 = vadd.f32 %v9687, %v9799
        %v9801 = vpop.f32.mrb[0].mxu0
        %v9802 = vadd.f32 %v9689, %v9801
        %v9803 = vpop.f32.mrb[0].mxu0
        %v9804 = vadd.f32 %v9691, %v9803
        %9805 = vmatprep.mubr.bf16.mxu0 %v8835
        %9806 = vmatmul.mubr.bf16.gmra.mrb[0].mxu0 %v8834
        %v9807 = vpop.f32.mrb[0].mxu0
        %v9808 = vadd.f32 %v9695, %v9807
        %v9809 = vpop.f32.mrb[0].mxu0
        %v9810 = vadd.f32 %v9697, %v9809
        %v9811 = vpop.f32.mrb[0].mxu0
        %v9812 = vadd.f32 %v9699, %v9811
        %v9813 = vpop.f32.mrb[0].mxu0
        %v9814 = vadd.f32 %v9701, %v9813
        %9815 = vmatprep.mubr.bf16.mxu0 %v8839
        %9816 = vmatmul.mubr.bf16.gmra.mrb[0].mxu0 %v8838
        %v9817 = vpop.f32.mrb[0].mxu0
        %v9818 = vadd.f32 %v9705, %v9817
        %v9819 = vpop.f32.mrb[0].mxu0
        %v9820 = vadd.f32 %v9707, %v9819
        %v9821 = vpop.f32.mrb[0].mxu0
        %v9822 = vadd.f32 %v9709, %v9821
        %v9823 = vpop.f32.mrb[0].mxu0
        %v9824 = vadd.f32 %v9711, %v9823
        %9825 = vmatprep.mubr.bf16.mxu0 %v8843
        %9826 = vmatmul.mubr.bf16.gmra.mrb[0].mxu0 %v8842
        %v9827 = vpop.f32.mrb[0].mxu0
        %v9828 = vadd.f32 %v9715, %v9827
        %v9829 = vpop.f32.mrb[0].mxu0
        %v9830 = vadd.f32 %v9717, %v9829
        %v9831 = vpop.f32.mrb[0].mxu0
        %v9832 = vadd.f32 %v9719, %v9831
        %v9833 = vpop.f32.mrb[0].mxu0
        %v9834 = vadd.f32 %v9721, %v9833
        %9835 = vmatprep.mubr.bf16.mxu0 %v8847
        %9836 = vmatmul.mubr.bf16.gmra.mrb[0].mxu0 %v8846
        %v9837 = vpop.f32.mrb[0].mxu0
        %v9838 = vadd.f32 %v9725, %v9837
        %v9839 = vpop.f32.mrb[0].mxu0
        %v9840 = vadd.f32 %v9727, %v9839
        %v9841 = vpop.f32.mrb[0].mxu0
        %v9842 = vadd.f32 %v9729, %v9841
        %v9843 = vpop.f32.mrb[0].mxu0
        %v9844 = vadd.f32 %v9731, %v9843
        %9845 = vmatprep.mubr.bf16.mxu0 %v8851
        %9846 = vmatmul.mubr.bf16.gmra.mrb[0].mxu0 %v8850
        %v9847 = vpop.f32.mrb[0].mxu0
        %v9848 = vadd.f32 %v9735, %v9847
        %v9849 = vpop.f32.mrb[0].mxu0
        %v9850 = vadd.f32 %v9737, %v9849
        %v9851 = vpop.f32.mrb[0].mxu0
        %v9852 = vadd.f32 %v9739, %v9851
        %v9853 = vpop.f32.mrb[0].mxu0
        %v9854 = vadd.f32 %v9741, %v9853
        %9855 = vmatprep.mubr.bf16.mxu0 %v8855
        %9856 = vmatmul.mubr.bf16.gmra.mrb[0].mxu0 %v8854
        %v9857 = vpop.f32.mrb[0].mxu0
        %v9858 = vadd.f32 %v9745, %v9857
        %v9859 = vpop.f32.mrb[0].mxu0
        %v9860 = vadd.f32 %v9747, %v9859
        %v9861 = vpop.f32.mrb[0].mxu0
        %v9862 = vadd.f32 %v9749, %v9861
        %v9863 = vpop.f32.mrb[0].mxu0
        %v9864 = vadd.f32 %v9751, %v9863
        %9865 = vmatprep.mubr.bf16.mxu0 %v8859
        %9866 = vmatmul.mubr.bf16.gmra.mrb[0].mxu0 %v8858
        %v9867 = vpop.f32.mrb[0].mxu0
        %v9868 = vadd.f32 %v9755, %v9867
        %v9869 = vpop.f32.mrb[0].mxu0
        %v9870 = vadd.f32 %v9757, %v9869
        %v9871 = vpop.f32.mrb[0].mxu0
        %v9872 = vadd.f32 %v9759, %v9871
        %v9873 = vpop.f32.mrb[0].mxu0
        %v9874 = vadd.f32 %v9761, %v9873
        %9875 = vdwg.mxu0
        %9876 = vmatprep.subr.bf16.mxu0 %v9397
        %9877 = vmatpush1.bf16.msra.mxu0 %v9396
        %9878 = vmatprep.subr.bf16.mxu0 %v9401
        %9879 = vmatpush1.bf16.msra.mxu0 %v9400
        %9880 = vmatprep.subr.bf16.mxu0 %v9405
        %9881 = vmatpush1.bf16.msra.mxu0 %v9404
        %9882 = vmatprep.subr.bf16.mxu0 %v9409
        %9883 = vmatpush1.bf16.msra.mxu0 %v9408
        %9884 = vmatprep.subr.bf16.mxu0 %v9413
        %9885 = vmatpush1.bf16.msra.mxu0 %v9412
        %9886 = vmatprep.subr.bf16.mxu0 %v9417
        %9887 = vmatpush1.bf16.msra.mxu0 %v9416
        %9888 = vmatprep.subr.bf16.mxu0 %v9421
        %9889 = vmatpush1.bf16.msra.mxu0 %v9420
        %9890 = vmatprep.subr.bf16.mxu0 %v9425
        %9891 = vmatpush1.bf16.msra.mxu0 %v9424
        %9892 = vmatprep.subr.bf16.mxu0 %v9429
        %9893 = vmatpush1.bf16.msra.mxu0 %v9428
        %9894 = vmatprep.subr.bf16.mxu0 %v9433
        %9895 = vmatpush1.bf16.msra.mxu0 %v9432
        %9896 = vmatprep.subr.bf16.mxu0 %v9437
        %9897 = vmatpush1.bf16.msra.mxu0 %v9436
        %9898 = vmatprep.subr.bf16.mxu0 %v9441
        %9899 = vmatpush1.bf16.msra.mxu0 %v9440
        %9900 = vmatprep.subr.bf16.mxu0 %v9445
        %9901 = vmatpush1.bf16.msra.mxu0 %v9444
        %9902 = vmatprep.subr.bf16.mxu0 %v9449
        %9903 = vmatpush1.bf16.msra.mxu0 %v9448
        %9904 = vmatprep.subr.bf16.mxu0 %v9453
        %9905 = vmatpush1.bf16.msra.mxu0 %v9452
        %9906 = vmatprep.subr.bf16.mxu0 %v9457
        %9907 = vmatpush1.bf16.msra.mxu0 %v9456
        %9908 = vmatprep.mubr.bf16.mxu0 %v8829
        %9909 = vmatmul.mubr.bf16.gmra.mrb[0].mxu0 %v8828
        %v9910 = vpop.f32.mrb[0].mxu0
        %v9911 = vadd.f32 %v9001, %v9910
        %v9912 = vpop.f32.mrb[0].mxu0
        %v9913 = vadd.f32 %v9005, %v9912
        %v9914 = vpop.f32.mrb[0].mxu0
        %v9915 = vadd.f32 %v9001, %v9914
        %v9916 = vpop.f32.mrb[0].mxu0
        %v9917 = vadd.f32 %v9005, %v9916
        %9918 = vmatprep.mubr.bf16.mxu0 %v8833
        %9919 = vmatmul.mubr.bf16.gmra.mrb[0].mxu0 %v8832
        %v9920 = vpop.f32.mrb[0].mxu0
        %v9921 = vadd.f32 %v9001, %v9920
        %v9922 = vpop.f32.mrb[0].mxu0
        %v9923 = vadd.f32 %v9005, %v9922
        %v9924 = vpop.f32.mrb[0].mxu0
        %v9925 = vadd.f32 %v9001, %v9924
        %v9926 = vpop.f32.mrb[0].mxu0
        %v9927 = vadd.f32 %v9005, %v9926
        %9928 = vmatprep.mubr.bf16.mxu0 %v8837
        %9929 = vmatmul.mubr.bf16.gmra.mrb[0].mxu0 %v8836
        %v9930 = vpop.f32.mrb[0].mxu0
        %v9931 = vadd.f32 %v9001, %v9930
        %v9932 = vpop.f32.mrb[0].mxu0
        %v9933 = vadd.f32 %v9005, %v9932
        %v9934 = vpop.f32.mrb[0].mxu0
        %v9935 = vadd.f32 %v9001, %v9934
        %v9936 = vpop.f32.mrb[0].mxu0
        %v9937 = vadd.f32 %v9005, %v9936
        %9938 = vmatprep.mubr.bf16.mxu0 %v8841
        %9939 = vmatmul.mubr.bf16.gmra.mrb[0].mxu0 %v8840
        %v9940 = vpop.f32.mrb[0].mxu0
        %v9941 = vadd.f32 %v9001, %v9940
        %v9942 = vpop.f32.mrb[0].mxu0
        %v9943 = vadd.f32 %v9005, %v9942
        %v9944 = vpop.f32.mrb[0].mxu0
        %v9945 = vadd.f32 %v9001, %v9944
        %v9946 = vpop.f32.mrb[0].mxu0
        %v9947 = vadd.f32 %v9005, %v9946
        %9948 = vmatprep.mubr.bf16.mxu0 %v8845
        %9949 = vmatmul.mubr.bf16.gmra.mrb[0].mxu0 %v8844
        %v9950 = vpop.f32.mrb[0].mxu0
        %v9951 = vadd.f32 %v9001, %v9950
        %v9952 = vpop.f32.mrb[0].mxu0
        %v9953 = vadd.f32 %v9005, %v9952
        %v9954 = vpop.f32.mrb[0].mxu0
        %v9955 = vadd.f32 %v9001, %v9954
        %v9956 = vpop.f32.mrb[0].mxu0
        %v9957 = vadd.f32 %v9005, %v9956
        %9958 = vmatprep.mubr.bf16.mxu0 %v8849
        %9959 = vmatmul.mubr.bf16.gmra.mrb[0].mxu0 %v8848
        %v9960 = vpop.f32.mrb[0].mxu0
        %v9961 = vadd.f32 %v9001, %v9960
        %v9962 = vpop.f32.mrb[0].mxu0
        %v9963 = vadd.f32 %v9005, %v9962
        %v9964 = vpop.f32.mrb[0].mxu0
        %v9965 = vadd.f32 %v9001, %v9964
        %v9966 = vpop.f32.mrb[0].mxu0
        %v9967 = vadd.f32 %v9005, %v9966
        %9968 = vmatprep.mubr.bf16.mxu0 %v8853
        %9969 = vmatmul.mubr.bf16.gmra.mrb[0].mxu0 %v8852
        %v9970 = vpop.f32.mrb[0].mxu0
        %v9971 = vadd.f32 %v9001, %v9970
        %v9972 = vpop.f32.mrb[0].mxu0
        %v9973 = vadd.f32 %v9005, %v9972
        %v9974 = vpop.f32.mrb[0].mxu0
        %v9975 = vadd.f32 %v9001, %v9974
        %v9976 = vpop.f32.mrb[0].mxu0
        %v9977 = vadd.f32 %v9005, %v9976
        %9978 = vmatprep.mubr.bf16.mxu0 %v8857
        %9979 = vmatmul.mubr.bf16.gmra.mrb[0].mxu0 %v8856
        %v9980 = vpop.f32.mrb[0].mxu0
        %v9981 = vadd.f32 %v9001, %v9980
        %v9982 = vpop.f32.mrb[0].mxu0
        %v9983 = vadd.f32 %v9005, %v9982
        %v9984 = vpop.f32.mrb[0].mxu0
        %v9985 = vadd.f32 %v9001, %v9984
        %v9986 = vpop.f32.mrb[0].mxu0
        %v9987 = vadd.f32 %v9005, %v9986
        %9988 = vdwg.mxu0
        %9989 = vmatprep.subr.bf16.mxu0 %v9461
        %9990 = vmatpush1.bf16.msra.mxu0 %v9460
        %9991 = vmatprep.subr.bf16.mxu0 %v9465
        %9992 = vmatpush1.bf16.msra.mxu0 %v9464
        %9993 = vmatprep.subr.bf16.mxu0 %v9469
        %9994 = vmatpush1.bf16.msra.mxu0 %v9468
        %9995 = vmatprep.subr.bf16.mxu0 %v9473
        %9996 = vmatpush1.bf16.msra.mxu0 %v9472
        %9997 = vmatprep.subr.bf16.mxu0 %v9477
        %9998 = vmatpush1.bf16.msra.mxu0 %v9476
        %9999 = vmatprep.subr.bf16.mxu0 %v9481
        %10000 = vmatpush1.bf16.msra.mxu0 %v9480
        %10001 = vmatprep.subr.bf16.mxu0 %v9485
        %10002 = vmatpush1.bf16.msra.mxu0 %v9484
        %10003 = vmatprep.subr.bf16.mxu0 %v9489
        %10004 = vmatpush1.bf16.msra.mxu0 %v9488
        %10005 = vmatprep.subr.bf16.mxu0 %v9493
        %10006 = vmatpush1.bf16.msra.mxu0 %v9492
        %10007 = vmatprep.subr.bf16.mxu0 %v9497
        %10008 = vmatpush1.bf16.msra.mxu0 %v9496
        %10009 = vmatprep.subr.bf16.mxu0 %v9501
        %10010 = vmatpush1.bf16.msra.mxu0 %v9500
        %10011 = vmatprep.subr.bf16.mxu0 %v9505
        %10012 = vmatpush1.bf16.msra.mxu0 %v9504
        %10013 = vmatprep.subr.bf16.mxu0 %v9509
        %10014 = vmatpush1.bf16.msra.mxu0 %v9508
        %10015 = vmatprep.subr.bf16.mxu0 %v9513
        %10016 = vmatpush1.bf16.msra.mxu0 %v9512
        %10017 = vmatprep.subr.bf16.mxu0 %v9517
        %10018 = vmatpush1.bf16.msra.mxu0 %v9516
        %10019 = vmatprep.subr.bf16.mxu0 %v9521
        %10020 = vmatpush1.bf16.msra.mxu0 %v9520
        %10021 = vmatprep.mubr.bf16.mxu0 %v8831
        %10022 = vmatmul.mubr.bf16.gmra.mrb[0].mxu0 %v8830
        %v10023 = vpop.f32.mrb[0].mxu0
        %v10024 = vadd.f32 %v9911, %v10023
        %v10025 = vpop.f32.mrb[0].mxu0
        %v10026 = vadd.f32 %v9913, %v10025
        %v10027 = vpop.f32.mrb[0].mxu0
        %v10028 = vadd.f32 %v9915, %v10027
        %v10029 = vpop.f32.mrb[0].mxu0
        %v10030 = vadd.f32 %v9917, %v10029
        %10031 = vmatprep.mubr.bf16.mxu0 %v8835
        %10032 = vmatmul.mubr.bf16.gmra.mrb[0].mxu0 %v8834
        %v10033 = vpop.f32.mrb[0].mxu0
        %v10034 = vadd.f32 %v9921, %v10033
        %v10035 = vpop.f32.mrb[0].mxu0
        %v10036 = vadd.f32 %v9923, %v10035
        %v10037 = vpop.f32.mrb[0].mxu0
        %v10038 = vadd.f32 %v9925, %v10037
        %v10039 = vpop.f32.mrb[0].mxu0
        %v10040 = vadd.f32 %v9927, %v10039
        %10041 = vmatprep.mubr.bf16.mxu0 %v8839
        %10042 = vmatmul.mubr.bf16.gmra.mrb[0].mxu0 %v8838
        %v10043 = vpop.f32.mrb[0].mxu0
        %v10044 = vadd.f32 %v9931, %v10043
        %v10045 = vpop.f32.mrb[0].mxu0
        %v10046 = vadd.f32 %v9933, %v10045
        %v10047 = vpop.f32.mrb[0].mxu0
        %v10048 = vadd.f32 %v9935, %v10047
        %v10049 = vpop.f32.mrb[0].mxu0
        %v10050 = vadd.f32 %v9937, %v10049
        %10051 = vmatprep.mubr.bf16.mxu0 %v8843
        %10052 = vmatmul.mubr.bf16.gmra.mrb[0].mxu0 %v8842
        %v10053 = vpop.f32.mrb[0].mxu0
        %v10054 = vadd.f32 %v9941, %v10053
        %v10055 = vpop.f32.mrb[0].mxu0
        %v10056 = vadd.f32 %v9943, %v10055
        %v10057 = vpop.f32.mrb[0].mxu0
        %v10058 = vadd.f32 %v9945, %v10057
        %v10059 = vpop.f32.mrb[0].mxu0
        %v10060 = vadd.f32 %v9947, %v10059
        %10061 = vmatprep.mubr.bf16.mxu0 %v8847
        %10062 = vmatmul.mubr.bf16.gmra.mrb[0].mxu0 %v8846
        %v10063 = vpop.f32.mrb[0].mxu0
        %v10064 = vadd.f32 %v9951, %v10063
        %v10065 = vpop.f32.mrb[0].mxu0
        %v10066 = vadd.f32 %v9953, %v10065
        %v10067 = vpop.f32.mrb[0].mxu0
        %v10068 = vadd.f32 %v9955, %v10067
        %v10069 = vpop.f32.mrb[0].mxu0
        %v10070 = vadd.f32 %v9957, %v10069
        %10071 = vmatprep.mubr.bf16.mxu0 %v8851
        %10072 = vmatmul.mubr.bf16.gmra.mrb[0].mxu0 %v8850
        %v10073 = vpop.f32.mrb[0].mxu0
        %v10074 = vadd.f32 %v9961, %v10073
        %v10075 = vpop.f32.mrb[0].mxu0
        %v10076 = vadd.f32 %v9963, %v10075
        %v10077 = vpop.f32.mrb[0].mxu0
        %v10078 = vadd.f32 %v9965, %v10077
        %v10079 = vpop.f32.mrb[0].mxu0
        %v10080 = vadd.f32 %v9967, %v10079
        %10081 = vmatprep.mubr.bf16.mxu0 %v8855
        %10082 = vmatmul.mubr.bf16.gmra.mrb[0].mxu0 %v8854
        %v10083 = vpop.f32.mrb[0].mxu0
        %v10084 = vadd.f32 %v9971, %v10083
        %v10085 = vpop.f32.mrb[0].mxu0
        %v10086 = vadd.f32 %v9973, %v10085
        %v10087 = vpop.f32.mrb[0].mxu0
        %v10088 = vadd.f32 %v9975, %v10087
        %v10089 = vpop.f32.mrb[0].mxu0
        %v10090 = vadd.f32 %v9977, %v10089
        %10091 = vmatprep.mubr.bf16.mxu0 %v8859
        %10092 = vmatmul.mubr.bf16.gmra.mrb[0].mxu0 %v8858
        %v10093 = vpop.f32.mrb[0].mxu0
        %v10094 = vadd.f32 %v9981, %v10093
        %v10095 = vpop.f32.mrb[0].mxu0
        %v10096 = vadd.f32 %v9983, %v10095
        %v10097 = vpop.f32.mrb[0].mxu0
        %v10098 = vadd.f32 %v9985, %v10097
        %v10099 = vpop.f32.mrb[0].mxu0
        %v10100 = vadd.f32 %v9987, %v10099
        %10101 = vdwg.mxu0
        %10102 = vst [vmem:[%s299] sm:$0xff] %v9798
        %10103 = vst [vmem:[%s299 + $0x8] sm:$0xff] %v9800
        %10104 = vst [vmem:[%s299 + $0x10] sm:$0xff] %v10024
        %10105 = vst [vmem:[%s299 + $0x18] sm:$0xff] %v10026
        %10106 = vst [vmem:[%s299 + $0x20] sm:$0xff] %v9802
        %10107 = vst [vmem:[%s299 + $0x28] sm:$0xff] %v9804
        %10108 = vst [vmem:[%s299 + $0x30] sm:$0xff] %v10028
        %10109 = vst [vmem:[%s299 + $0x38] sm:$0xff] %v10030
        %10110 = vst [vmem:[%s299 + $0x40] sm:$0xff] %v9808
        %10111 = vst [vmem:[%s299 + $0x48] sm:$0xff] %v9810
        %10112 = vst [vmem:[%s299 + $0x50] sm:$0xff] %v10034
        %10113 = vst [vmem:[%s299 + $0x58] sm:$0xff] %v10036
        %10114 = vst [vmem:[%s299 + $0x60] sm:$0xff] %v9812
        %10115 = vst [vmem:[%s299 + $0x68] sm:$0xff] %v9814
        %10116 = vst [vmem:[%s299 + $0x70] sm:$0xff] %v10038
        %10117 = vst [vmem:[%s299 + $0x78] sm:$0xff] %v10040
        %10118 = vst [vmem:[%s299 + $0x80] sm:$0xff] %v9818
        %10119 = vst [vmem:[%s299 + $0x88] sm:$0xff] %v9820
        %10120 = vst [vmem:[%s299 + $0x90] sm:$0xff] %v10044
        %10121 = vst [vmem:[%s299 + $0x98] sm:$0xff] %v10046
        %10122 = vst [vmem:[%s299 + $0xa0] sm:$0xff] %v9822
        %10123 = vst [vmem:[%s299 + $0xa8] sm:$0xff] %v9824
        %10124 = vst [vmem:[%s299 + $0xb0] sm:$0xff] %v10048
        %10125 = vst [vmem:[%s299 + $0xb8] sm:$0xff] %v10050
        %10126 = vst [vmem:[%s299 + $0xc0] sm:$0xff] %v9828
        %10127 = vst [vmem:[%s299 + $0xc8] sm:$0xff] %v9830
        %10128 = vst [vmem:[%s299 + $0xd0] sm:$0xff] %v10054
        %10129 = vst [vmem:[%s299 + $0xd8] sm:$0xff] %v10056
        %10130 = vst [vmem:[%s299 + $0xe0] sm:$0xff] %v9832
        %10131 = vst [vmem:[%s299 + $0xe8] sm:$0xff] %v9834
        %10132 = vst [vmem:[%s299 + $0xf0] sm:$0xff] %v10058
        %10133 = vst [vmem:[%s299 + $0xf8] sm:$0xff] %v10060
        %10134 = vst [vmem:[%s299 + $0x100] sm:$0xff] %v9838
        %10135 = vst [vmem:[%s299 + $0x108] sm:$0xff] %v9840
        %10136 = vst [vmem:[%s299 + $0x110] sm:$0xff] %v10064
        %10137 = vst [vmem:[%s299 + $0x118] sm:$0xff] %v10066
        %10138 = vst [vmem:[%s299 + $0x120] sm:$0xff] %v9842
        %10139 = vst [vmem:[%s299 + $0x128] sm:$0xff] %v9844
        %10140 = vst [vmem:[%s299 + $0x130] sm:$0xff] %v10068
        %10141 = vst [vmem:[%s299 + $0x138] sm:$0xff] %v10070
        %10142 = vst [vmem:[%s299 + $0x140] sm:$0xff] %v9848
        %10143 = vst [vmem:[%s299 + $0x148] sm:$0xff] %v9850
        %10144 = vst [vmem:[%s299 + $0x150] sm:$0xff] %v10074
        %10145 = vst [vmem:[%s299 + $0x158] sm:$0xff] %v10076
        %10146 = vst [vmem:[%s299 + $0x160] sm:$0xff] %v9852
        %10147 = vst [vmem:[%s299 + $0x168] sm:$0xff] %v9854
        %10148 = vst [vmem:[%s299 + $0x170] sm:$0xff] %v10078
        %10149 = vst [vmem:[%s299 + $0x178] sm:$0xff] %v10080
        %10150 = vst [vmem:[%s299 + $0x180] sm:$0xff] %v9858
        %10151 = vst [vmem:[%s299 + $0x188] sm:$0xff] %v9860
        %10152 = vst [vmem:[%s299 + $0x190] sm:$0xff] %v10084
        %10153 = vst [vmem:[%s299 + $0x198] sm:$0xff] %v10086
        %10154 = vst [vmem:[%s299 + $0x1a0] sm:$0xff] %v9862
        %10155 = vst [vmem:[%s299 + $0x1a8] sm:$0xff] %v9864
        %10156 = vst [vmem:[%s299 + $0x1b0] sm:$0xff] %v10088
        %10157 = vst [vmem:[%s299 + $0x1b8] sm:$0xff] %v10090
        %10158 = vst [vmem:[%s299 + $0x1c0] sm:$0xff] %v9868
        %10159 = vst [vmem:[%s299 + $0x1c8] sm:$0xff] %v9870
        %10160 = vst [vmem:[%s299 + $0x1d0] sm:$0xff] %v10094
        %10161 = vst [vmem:[%s299 + $0x1d8] sm:$0xff] %v10096
        %10162 = vst [vmem:[%s299 + $0x1e0] sm:$0xff] %v9872
        %10163 = vst [vmem:[%s299 + $0x1e8] sm:$0xff] %v9874
        %10164 = vst [vmem:[%s299 + $0x1f0] sm:$0xff] %v10098
        %10165 = vst [vmem:[%s299 + $0x1f8] sm:$0xff] %v10100
        %s10166 = sand.u32 %s142, 1
        %s10167 = scalar_lea.sflag [#allocation4], %s10166
        %s10168 = sand.u32 %s142, 1
        %s10169 = smul.addr %s10168, 512
        %s10170 = scalar_lea.vmem [#allocation11], %s10169
        // Predicated region
        $region61: #{tpu_custom_call.1} parent=39 // pred_check
          %p10171 = pneg %p152
        $region62: #{tpu_custom_call.1} parent=39 // pred_check_branch
          %10173 = sbr.rel (%p10171) target = $region64
        $region63: #{tpu_custom_call.1} parent=39 // pred_region
          %s10174 = smul.u32 16, %s24
          %s10176 = ssub.s32 8192, 8192
          %10177 = vsyncadd %s10167, %s10176
          %s10178 = smul.addr %s10174, 4
          %s10179 = smul.addr %s10178, 128
          %s10180 = scalar_lea.hbm %s5, %s10179
          %s10181 = sshll.u32 %s10170, 4
          %s10182 = int_to_ptr.vmem [resolvable:$true] %s10181
          %10187 = dma.vmem_to_hbm [thread:$0]  %s10182, 8192, %s10180, %s10167, 512, 512, 32
        $region64: #{tpu_custom_call.1} parent=39 // pred_fallthru
          _
      $region40: #{tpu_custom_call.1} parent=5 // pred_fallthru
        _
      %p10188 = scmp.le.s32.totalorder 2, %s19
      // Predicated region
      $region65: #{tpu_custom_call.1} parent=5 // pred_check
        %p10189 = pneg %p10188
      $region66: #{tpu_custom_call.1} parent=5 // pred_check_branch
        %10191 = sbr.rel (%p10189) target = $region68
      $region67: #{tpu_custom_call.1} parent=5 // pred_region
        %s10192 = ssub.s32 %s19, 2
        // Predicated region
        $region69: #{tpu_custom_call.1} parent=67 // pred_check
          %p10193 = pneg %p158
        $region70: #{tpu_custom_call.1} parent=67 // pred_check_branch
          %10195 = sbr.rel (%p10193) target = $region72
        $region71: #{tpu_custom_call.1} parent=67 // pred_region
          %s10196 = sand.u32 %s143, 1
          %s10197 = scalar_lea.sflag [#allocation4], %s10196
          %s10198 = sand.u32 %s143, 1
          %s10199 = smul.addr %s10198, 512
          %s10200 = scalar_lea.vmem [#allocation11], %s10199
          %10201 = dma.done %s10197, 8192
        $region72: #{tpu_custom_call.1} parent=67 // pred_fallthru
          _
      $region68: #{tpu_custom_call.1} parent=5 // pred_fallthru
        _
    $region6: #{tpu_custom_call.1} parent=1 // loop_footer
      %s23 = sadd.s32 1, %s19
    $region7: #{tpu_custom_call.1} parent=1 // loop_footer_branch
      %18 = sbr.rel target = $region3
    $region8: #{tpu_custom_call.1} parent=1 // loop_exit
      _
    %10202 = vsyncpa [#allocation3], 1
    %s10203 = scalar_lea.sflag [#allocation3], 1
    %10204 = vsyncpa %s10203, 1
    %10205 = vsyncpa [#allocation6], 1
    %s10206 = scalar_lea.sflag [#allocation6], 1
    %10207 = vsyncpa %s10206, 1
    %10208 = vsyncpa [#allocation9], 1
    %10209 = vsyncpa [#allocation4], 1
    %s10210 = scalar_lea.sflag [#allocation4], 1
    %10211 = vsyncpa %s10210, 1

</llo_original>
